<compile_context>
chip_gen: v7x
topology: tpu7x:2x2x1
jax: 0.10.0
libtpu: 0.0.40
codegen_flags: <defaults>
</compile_context>

<pallas_src>
import functools

import jax
import jax.numpy as jnp
from jax.experimental import pallas as pl
from jax.experimental.pallas import tpu as pltpu

LEAKY_SLOPE = 0.2
BN_EPS = 1e-5


def _lrelu(x):
    # max(x, 0.2*x): one vmul + one vmax (instead of cmp + select).
    return jnp.maximum(x, LEAKY_SLOPE * x)


def _z2_tile(x_ref, w1_ref, b1_ref, w2_ref):
    """Blocks 1-2 (pre-norm) for one (TP, c_in) pixel tile -> (TP, 2*c_hid) f32."""
    x = x_ref[...]                                       # (TP, c_in) f32
    c_in = x.shape[1]
    # Block 1: K = c_in is tiny -> keep it off the MXU, use VPU broadcast-FMAs.
    h1 = b1_ref[...]                                     # (1, c_hid)
    for c in range(c_in):                                # static unroll
        h1 = h1 + x[:, c:c + 1] * w1_ref[c:c + 1, :]
    h1 = _lrelu(h1)                                      # (TP, c_hid) f32
    # Block 2 on the MXU: bf16 inputs, f32 accumulation.
    z2 = jnp.dot(h1.astype(jnp.bfloat16), w2_ref[...],
                 preferred_element_type=jnp.float32)     # (TP, 2*c_hid) f32
    return z2


def _stats_kernel(p_valid, tp, x_ref, w1_ref, b1_ref, w2_ref, sums_ref):
    """Pass 1: accumulate per-channel sum / sum-of-squares of z2 over all pixels."""
    i = pl.program_id(0)

    @pl.when(i == 0)
    def _init():
        sums_ref[...] = jnp.zeros_like(sums_ref)

    z2 = _z2_tile(x_ref, w1_ref, b1_ref, w2_ref)         # (tp, c2) f32
    # Mask rows that are zero-padding past the true pixel count (BN stats must
    # be computed over exactly N*H*W pixels).
    row = i * tp + jax.lax.broadcasted_iota(jnp.int32, z2.shape, 0)
    z2 = jnp.where(row < p_valid, z2, 0.0)
    sums_ref[...] += jnp.concatenate(
        [jnp.sum(z2, axis=0, keepdims=True),
         jnp.sum(z2 * z2, axis=0, keepdims=True)], axis=0)


def _apply_kernel(tp, x_ref, w1_ref, b1_ref, w2_ref, scale_ref, shift_ref,
                  w3_ref, b3_ref, o_ref):
    """Pass 2: recompute z2, apply folded BN affine + LeakyReLU + final 1x1 conv."""
    z2 = _z2_tile(x_ref, w1_ref, b1_ref, w2_ref)         # (tp, c2) f32
    h2 = _lrelu(z2 * scale_ref[...] + shift_ref[...])    # BN folded into scale/shift
    w3c = w3_ref[...]                                    # (c2, 1) f32
    b3 = b3_ref[0, 0]                                    # SMEM scalar
    # Final 1x1 conv -> 1 channel, stored lane-dense: per 128-pixel sub-block do a
    # transpose (XLU) + sublane reduction (VPU/XLU); the MXU stays free for block 2
    # and the (tp//128, 128) tile is written with unmasked, lane-dense stores.
    rows = []
    for b in range(tp // 128):                           # static unroll
        h2_bt = h2[b * 128:(b + 1) * 128, :].T           # (c2, 128)
        rows.append(jnp.sum(h2_bt * w3c, axis=0, keepdims=True))   # (1, 128)
    o_ref[...] = jnp.concatenate(rows, axis=0) + b3      # (tp//128, 128)


@functools.partial(jax.jit, static_argnames=("tp",))
def pixel_discriminator_pallas(x_nchw, params, *, tp=1024):
    """x_nchw: (N, C_in, H, W) float32 -> (N, 1, H, W) float32."""
    w1, b1, w2, gamma, beta, w3, b3 = params
    N, C_in, H, W = x_nchw.shape
    c_hid = w1.shape[1]
    c2 = w2.shape[1]
    assert tp % 1024 == 0, "tp must be a multiple of 1024 (lane-dense output tiles)"
    assert c2 % 128 == 0, "2*c_hid must be a multiple of 128"

    P = N * H * W
    P_pad = ((P + tp - 1) // tp) * tp
    n_tiles = P_pad // tp

    # NCHW -> NHWC -> (P, C_in): channels on the lane axis, pixels on sublanes.
    x_pc = jnp.transpose(x_nchw, (0, 2, 3, 1)).reshape(P, C_in).astype(jnp.float32)
    if P_pad != P:
        x_pc = jnp.pad(x_pc, ((0, P_pad - P), (0, 0)))

    w2_bf = w2.astype(jnp.bfloat16)                      # bf16 MXU inputs
    b3_s = b3.reshape(1, 1).astype(jnp.float32)

    # ---------------- pass 1: global BatchNorm statistics -------------------
    flops1 = P_pad * (2 * C_in * c_hid + 2 * c_hid * c2 + 4 * c2)
    bytes1 = P_pad * C_in * 4 + (C_in * c_hid + c_hid) * 4 + c_hid * c2 * 2 + 2 * c2 * 4
    sums = pl.pallas_call(
        functools.partial(_stats_kernel, P, tp),
        out_shape=jax.ShapeDtypeStruct((2, c2), jnp.float32),
        grid=(n_tiles,),
        in_specs=[
            pl.BlockSpec((tp, C_in), lambda i: (i, 0)),       # x tile
            pl.BlockSpec((C_in, c_hid), lambda i: (0, 0)),    # w1 (resident)
            pl.BlockSpec((1, c_hid), lambda i: (0, 0)),       # b1 (resident)
            pl.BlockSpec((c_hid, c2), lambda i: (0, 0)),      # w2 bf16 (resident)
        ],
        out_specs=pl.BlockSpec((2, c2), lambda i: (0, 0)),    # resident accumulator
        compiler_params=pltpu.CompilerParams(
            dimension_semantics=("arbitrary",)),
        cost_estimate=pl.CostEstimate(
            flops=flops1, transcendentals=0, bytes_accessed=bytes1),
    )(x_pc, w1, b1, w2_bf)

    # Fold BatchNorm (training-mode stats over N*H*W, biased variance) into one
    # per-channel affine: h2 = z2 * scale + shift.  Tiny (1, c2) math in the wrapper.
    mean = sums[0:1, :] / float(P)
    var = jnp.maximum(sums[1:2, :] / float(P) - mean * mean, 0.0)
    scale = gamma.reshape(1, c2) * jax.lax.rsqrt(var + BN_EPS)
    shift = beta.reshape(1, c2) - mean * scale

    # ---------------- pass 2: normalize + final 1x1 conv --------------------
    flops2 = P_pad * (2 * C_in * c_hid + 2 * c_hid * c2 + 6 * c2)
    bytes2 = (P_pad * C_in * 4 + P_pad * 4
              + (C_in * c_hid + c_hid + 3 * c2 + 1) * 4 + c_hid * c2 * 2)
    out = pl.pallas_call(
        functools.partial(_apply_kernel, tp),
        out_shape=jax.ShapeDtypeStruct((P_pad // 128, 128), jnp.float32),
        grid=(n_tiles,),
        in_specs=[
            pl.BlockSpec((tp, C_in), lambda i: (i, 0)),       # x tile
            pl.BlockSpec((C_in, c_hid), lambda i: (0, 0)),    # w1
            pl.BlockSpec((1, c_hid), lambda i: (0, 0)),       # b1
            pl.BlockSpec((c_hid, c2), lambda i: (0, 0)),      # w2 bf16
            pl.BlockSpec((1, c2), lambda i: (0, 0)),          # BN scale
            pl.BlockSpec((1, c2), lambda i: (0, 0)),          # BN shift
            pl.BlockSpec((c2, 1), lambda i: (0, 0)),          # w3
            pl.BlockSpec(memory_space=pltpu.SMEM),            # b3 scalar
        ],
        out_specs=pl.BlockSpec((tp // 128, 128), lambda i: (i, 0)),   # lane-dense
        compiler_params=pltpu.CompilerParams(
            dimension_semantics=("parallel",)),               # 2x on v7x megacore
        cost_estimate=pl.CostEstimate(
            flops=flops2, transcendentals=0, bytes_accessed=bytes2),
    )(x_pc, w1, b1, w2_bf, scale, shift, w3, b3_s)

    out_flat = out.reshape(P_pad)[:P]
    return jnp.transpose(out_flat.reshape(N, H, W, 1), (0, 3, 1, 2))


def pixel_discriminator_ref(x_nchw, params, mm_dtype=jnp.float32):
    """Pure-JAX reference.  mm_dtype=bfloat16 mirrors the kernel's block-2 MXU cast."""
    N, C_in, H, W = x_nchw.shape
    x_pc = jnp.transpose(x_nchw, (0, 2, 3, 1)).reshape(N * H * W, C_in)
    w1, b1, w2, gamma, beta, w3, b3 = params

    def lrelu(v):
        return jnp.where(v > 0, v, LEAKY_SLOPE * v)

    h1 = lrelu(x_pc @ w1 + b1)
    z2 = jnp.dot(h1.astype(mm_dtype), w2.astype(mm_dtype),
                 preferred_element_type=jnp.float32)
    mean = jnp.mean(z2, axis=0, keepdims=True)
    var = jnp.mean((z2 - mean) ** 2, axis=0, keepdims=True)
    h2 = lrelu((z2 - mean) * jax.lax.rsqrt(var + BN_EPS) * gamma + beta)
    out = h2 @ w3 + b3
    return jnp.transpose(out.reshape(N, H, W, 1), (0, 3, 1, 2))


def init_params(key, c_in=3, c_hid=64):
    """Conv weights ~ N(0, 0.02) (pix2pix init), biases 0, BN gamma=1, beta=0.
    Weights stored transposed relative to PyTorch: (C_in, C_out)."""
    k1, k2, k3 = jax.random.split(key, 3)
    w1 = 0.02 * jax.random.normal(k1, (c_in, c_hid), jnp.float32)
    b1 = jnp.zeros((1, c_hid), jnp.float32)
    w2 = 0.02 * jax.random.normal(k2, (c_hid, 2 * c_hid), jnp.float32)
    gamma = jnp.ones((1, 2 * c_hid), jnp.float32)
    beta = jnp.zeros((1, 2 * c_hid), jnp.float32)
    w3 = 0.02 * jax.random.normal(k3, (2 * c_hid, 1), jnp.float32)
    b3 = jnp.zeros((1, 1), jnp.float32)
    return (w1, b1, w2, gamma, beta, w3, b3)


if __name__ == "__main__":
    key = jax.random.PRNGKey(0)
    kp, kx1, kx2 = jax.random.split(key, 3)

    C_IN, C_HID = 3, 64
    params = init_params(kp, c_in=C_IN, c_hid=C_HID)

    # Case 1: P = 2*32*32 = 2048 pixels -> two 1024-pixel grid tiles, no padding.
    x1 = jax.random.normal(kx1, (2, C_IN, 32, 32), jnp.float32)
    out1 = jax.block_until_ready(pixel_discriminator_pallas(x1, params, tp=1024))
    ref1_bf = pixel_discriminator_ref(x1, params, mm_dtype=jnp.bfloat16)
    ref1_f32 = pixel_discriminator_ref(x1, params, mm_dtype=jnp.float32)
    assert out1.shape == (2, 1, 32, 32), out1.shape
    assert jnp.allclose(out1, ref1_bf, atol=5e-3, rtol=5e-2), \
        float(jnp.max(jnp.abs(out1 - ref1_bf)))
    assert jnp.allclose(out1, ref1_f32, atol=5e-2, rtol=5e-2), \
        float(jnp.max(jnp.abs(out1 - ref1_f32)))

    # Case 2: ragged P = 2*23*23 = 1058 -> padded to 2048; exercises the BN mask path.
    x2 = jax.random.normal(kx2, (2, C_IN, 23, 23), jnp.float32)
    out2 = jax.block_until_ready(pixel_discriminator_pallas(x2, params, tp=1024))
    ref2_bf = pixel_discriminator_ref(x2, params, mm_dtype=jnp.bfloat16)
    assert out2.shape == (2, 1, 23, 23), out2.shape
    assert jnp.allclose(out2, ref2_bf, atol=5e-3, rtol=5e-2), \
        float(jnp.max(jnp.abs(out2 - ref2_bf)))

    print("KERNEL_OK")
</pallas_src>

<mosaic_0001>
module attributes {stable_mosaic.version = 11 : i64} {
  func.func @_stats_kernel(%arg0: i32, %arg1: memref<1024x3xf32, #tpu.memory_space<vmem>>, %arg2: memref<3x64xf32, #tpu.memory_space<vmem>>, %arg3: memref<1x64xf32, #tpu.memory_space<vmem>>, %arg4: memref<64x128xbf16, #tpu.memory_space<vmem>>, %arg5: memref<2x128xf32, #tpu.memory_space<vmem>>) attributes {dimension_semantics = [#tpu.dimension_semantics<arbitrary>], iteration_bounds = array<i64: 2>, scalar_prefetch = 0 : i64, scratch_operands = 0 : i64, tpu.core_type = #tpu.core_type<tc>, window_params = [{transform_indices = @transform_0, window_bounds = array<i64: 1024, 3>}, {pipeline_mode = #tpu.pipeline_mode<synchronous>, transform_indices = @transform_1, window_bounds = array<i64: 3, 64>}, {pipeline_mode = #tpu.pipeline_mode<synchronous>, transform_indices = @transform_2, window_bounds = array<i64: 1, 64>}, {pipeline_mode = #tpu.pipeline_mode<synchronous>, transform_indices = @transform_3, window_bounds = array<i64: 64, 128>}, {pipeline_mode = #tpu.pipeline_mode<synchronous>, transform_indices = @transform_4, window_bounds = array<i64: 2, 128>}]} {
    %c0_i32 = arith.constant 0 : i32
    %0 = arith.cmpi eq, %arg0, %c0_i32 : i32
    %1 = arith.extui %0 : i1 to i32
    %c0_i32_0 = arith.constant 0 : i32
    %2 = arith.cmpi ne, %1, %c0_i32_0 : i32
    scf.if %2 {
      %cst_18 = arith.constant 0.000000e+00 : f32
      %47 = vector.broadcast %cst_18 : f32 to vector<2x128xf32>
      %c0_19 = arith.constant 0 : index
      %c0_20 = arith.constant 0 : index
      %48 = vector.load %arg5[%c0_19, %c0_20] : memref<2x128xf32, #tpu.memory_space<vmem>>, vector<2x128xf32>
      tpu.vector_store %arg5[%c0_19, %c0_20], %47 {strides = array<i32>} : memref<2x128xf32, #tpu.memory_space<vmem>>, vector<2x128xf32>,
    } else {
    }
    %c0 = arith.constant 0 : index
    %c0_1 = arith.constant 0 : index
    %3 = vector.load %arg1[%c0, %c0_1] : memref<1024x3xf32, #tpu.memory_space<vmem>>, vector<1024x3xf32>
    %c0_2 = arith.constant 0 : index
    %c0_3 = arith.constant 0 : index
    %4 = vector.load %arg3[%c0_2, %c0_3] : memref<1x64xf32, #tpu.memory_space<vmem>>, vector<1x64xf32>
    %5 = vector.extract_strided_slice %3 {offsets = [0, 0], sizes = [1024, 1], strides = [1, 1]} : vector<1024x3xf32> to vector<1024x1xf32>
    %c0_4 = arith.constant 0 : index
    %c0_5 = arith.constant 0 : index
    %6 = vector.load %arg2[%c0_4, %c0_5] : memref<3x64xf32, #tpu.memory_space<vmem>>, vector<1x64xf32>
    %7 = vector.broadcast %5 : vector<1024x1xf32> to vector<1024x64xf32>
    %8 = vector.broadcast %6 : vector<1x64xf32> to vector<1024x64xf32>
    %9 = arith.mulf %7, %8 : vector<1024x64xf32>
    %10 = vector.broadcast %4 : vector<1x64xf32> to vector<1024x64xf32>
    %11 = arith.addf %10, %9 : vector<1024x64xf32>
    %12 = vector.extract_strided_slice %3 {offsets = [0, 1], sizes = [1024, 1], strides = [1, 1]} : vector<1024x3xf32> to vector<1024x1xf32>
    %c1 = arith.constant 1 : index
    %c0_6 = arith.constant 0 : index
    %13 = vector.load %arg2[%c1, %c0_6] : memref<3x64xf32, #tpu.memory_space<vmem>>, vector<1x64xf32>
    %14 = vector.broadcast %12 : vector<1024x1xf32> to vector<1024x64xf32>
    %15 = vector.broadcast %13 : vector<1x64xf32> to vector<1024x64xf32>
    %16 = arith.mulf %14, %15 : vector<1024x64xf32>
    %17 = arith.addf %11, %16 : vector<1024x64xf32>
    %18 = vector.extract_strided_slice %3 {offsets = [0, 2], sizes = [1024, 1], strides = [1, 1]} : vector<1024x3xf32> to vector<1024x1xf32>
    %c2 = arith.constant 2 : index
    %c0_7 = arith.constant 0 : index
    %19 = vector.load %arg2[%c2, %c0_7] : memref<3x64xf32, #tpu.memory_space<vmem>>, vector<1x64xf32>
    %20 = vector.broadcast %18 : vector<1024x1xf32> to vector<1024x64xf32>
    %21 = vector.broadcast %19 : vector<1x64xf32> to vector<1024x64xf32>
    %22 = arith.mulf %20, %21 : vector<1024x64xf32>
    %23 = arith.addf %17, %22 : vector<1024x64xf32>
    %cst = arith.constant 2.000000e-01 : f32
    %24 = vector.broadcast %cst : f32 to vector<1024x64xf32>
    %25 = arith.mulf %24, %23 : vector<1024x64xf32>
    %26 = arith.maximumf %23, %25 : vector<1024x64xf32>
    %27 = arith.truncf %26 : vector<1024x64xf32> to vector<1024x64xbf16>
    %c0_8 = arith.constant 0 : index
    %c0_9 = arith.constant 0 : index
    %28 = vector.load %arg4[%c0_8, %c0_9] : memref<64x128xbf16, #tpu.memory_space<vmem>>, vector<64x128xbf16>
    %cst_10 = arith.constant dense<0.000000e+00> : vector<1024x128xf32>
    %29 = tpu.matmul %27, %28, %cst_10 {dimension_numbers = #tpu.dot_dimension_numbers<[1], [0], [0], [1], [0, 0, 1, 1], [], []>} : vector<1024x64xbf16>, vector<64x128xbf16>, vector<1024x128xf32> -> vector<1024x128xf32>
    %c1024_i32 = arith.constant 1024 : i32
    %30 = arith.muli %arg0, %c1024_i32 : i32
    %31 = tpu.iota {dimensions = array<i32: 0>} : vector<1024x128xi32>
    %32 = vector.broadcast %30 : i32 to vector<1024x128xi32>
    %33 = arith.addi %32, %31 : vector<1024x128xi32>
    %c2048_i32 = arith.constant 2048 : i32
    %34 = vector.broadcast %c2048_i32 : i32 to vector<1024x128xi32>
    %35 = arith.cmpi slt, %33, %34 : vector<1024x128xi32>
    %cst_11 = arith.constant 0.000000e+00 : f32
    %36 = vector.broadcast %cst_11 : f32 to vector<1024x128xf32>
    %37 = arith.select %35, %29, %36 : vector<1024x128xi1>, vector<1024x128xf32>
    %c0_12 = arith.constant 0 : index
    %c0_13 = arith.constant 0 : index
    %38 = vector.load %arg5[%c0_12, %c0_13] : memref<2x128xf32, #tpu.memory_space<vmem>>, vector<2x128xf32>
    %cst_14 = arith.constant dense<0.000000e+00> : vector<128xf32>
    %39 = vector.multi_reduction <add>, %37, %cst_14 [0] : vector<1024x128xf32> to vector<128xf32>
    %40 = vector.shape_cast %39 : vector<128xf32> to vector<1x128xf32>
    %41 = arith.mulf %37, %37 : vector<1024x128xf32>
    %cst_15 = arith.constant dense<0.000000e+00> : vector<128xf32>
    %42 = vector.multi_reduction <add>, %41, %cst_15 [0] : vector<1024x128xf32> to vector<128xf32>
    %43 = vector.shape_cast %42 : vector<128xf32> to vector<1x128xf32>
    %44 = tpu.concatenate %40, %43 in 0 : vector<1x128xf32>, vector<1x128xf32> -> vector<2x128xf32>
    %45 = arith.addf %38, %44 : vector<2x128xf32>
    %c0_16 = arith.constant 0 : index
    %c0_17 = arith.constant 0 : index
    %46 = vector.load %arg5[%c0_16, %c0_17] : memref<2x128xf32, #tpu.memory_space<vmem>>, vector<2x128xf32>
    tpu.vector_store %arg5[%c0_16, %c0_17], %45 {strides = array<i32>} : memref<2x128xf32, #tpu.memory_space<vmem>>, vector<2x128xf32>,
    return
  }
  func.func @transform_0(%arg0: i32) -> (i32, i32) {
    %c0_i32 = arith.constant 0 : i32
    %c0_i32_0 = arith.constant 0 : i32
    return %arg0, %c0_i32 : i32, i32
  }
  func.func @transform_1(%arg0: i32) -> (i32, i32) {
    %c0_i32 = arith.constant 0 : i32
    %c0_i32_0 = arith.constant 0 : i32
    %c0_i32_1 = arith.constant 0 : i32
    return %c0_i32, %c0_i32_0 : i32, i32
  }
  func.func @transform_2(%arg0: i32) -> (i32, i32) {
    %c0_i32 = arith.constant 0 : i32
    %c0_i32_0 = arith.constant 0 : i32
    %c0_i32_1 = arith.constant 0 : i32
    return %c0_i32, %c0_i32_0 : i32, i32
  }
  func.func @transform_3(%arg0: i32) -> (i32, i32) {
    %c0_i32 = arith.constant 0 : i32
    %c0_i32_0 = arith.constant 0 : i32
    %c0_i32_1 = arith.constant 0 : i32
    return %c0_i32, %c0_i32_0 : i32, i32
  }
  func.func @transform_4(%arg0: i32) -> (i32, i32) {
    %c0_i32 = arith.constant 0 : i32
    %c0_i32_0 = arith.constant 0 : i32
    %c0_i32_1 = arith.constant 0 : i32
    return %c0_i32, %c0_i32_0 : i32, i32
  }
}

module attributes {stable_mosaic.version = 11 : i64} {
  func.func @_apply_kernel(%arg0: i32, %arg1: memref<1024x3xf32, #tpu.memory_space<vmem>>, %arg2: memref<3x64xf32, #tpu.memory_space<vmem>>, %arg3: memref<1x64xf32, #tpu.memory_space<vmem>>, %arg4: memref<64x128xbf16, #tpu.memory_space<vmem>>, %arg5: memref<1x128xf32, #tpu.memory_space<vmem>>, %arg6: memref<1x128xf32, #tpu.memory_space<vmem>>, %arg7: memref<128x1xf32, #tpu.memory_space<vmem>>, %arg8: memref<1x1xf32, #tpu.memory_space<smem>>, %arg9: memref<8x128xf32, #tpu.memory_space<vmem>>) attributes {dimension_semantics = [#tpu.dimension_semantics<parallel>], iteration_bounds = array<i64: 2>, scalar_prefetch = 0 : i64, scratch_operands = 0 : i64, tpu.core_type = #tpu.core_type<tc>, window_params = [{transform_indices = @transform_0, window_bounds = array<i64: 1024, 3>}, {pipeline_mode = #tpu.pipeline_mode<synchronous>, transform_indices = @transform_1, window_bounds = array<i64: 3, 64>}, {pipeline_mode = #tpu.pipeline_mode<synchronous>, transform_indices = @transform_2, window_bounds = array<i64: 1, 64>}, {pipeline_mode = #tpu.pipeline_mode<synchronous>, transform_indices = @transform_3, window_bounds = array<i64: 64, 128>}, {pipeline_mode = #tpu.pipeline_mode<synchronous>, transform_indices = @transform_4, window_bounds = array<i64: 1, 128>}, {pipeline_mode = #tpu.pipeline_mode<synchronous>, transform_indices = @transform_5, window_bounds = array<i64: 1, 128>}, {pipeline_mode = #tpu.pipeline_mode<synchronous>, transform_indices = @transform_6, window_bounds = array<i64: 128, 1>}, {transform_indices = @transform_7, window_bounds = array<i64: 1, 1>}, {transform_indices = @transform_8, window_bounds = array<i64: 8, 128>}]} {
    %c0 = arith.constant 0 : index
    %c0_0 = arith.constant 0 : index
    %0 = vector.load %arg1[%c0, %c0_0] : memref<1024x3xf32, #tpu.memory_space<vmem>>, vector<1024x3xf32>
    %c0_1 = arith.constant 0 : index
    %c0_2 = arith.constant 0 : index
    %1 = vector.load %arg3[%c0_1, %c0_2] : memref<1x64xf32, #tpu.memory_space<vmem>>, vector<1x64xf32>
    %2 = vector.extract_strided_slice %0 {offsets = [0, 0], sizes = [1024, 1], strides = [1, 1]} : vector<1024x3xf32> to vector<1024x1xf32>
    %c0_3 = arith.constant 0 : index
    %c0_4 = arith.constant 0 : index
    %3 = vector.load %arg2[%c0_3, %c0_4] : memref<3x64xf32, #tpu.memory_space<vmem>>, vector<1x64xf32>
    %4 = vector.broadcast %2 : vector<1024x1xf32> to vector<1024x64xf32>
    %5 = vector.broadcast %3 : vector<1x64xf32> to vector<1024x64xf32>
    %6 = arith.mulf %4, %5 : vector<1024x64xf32>
    %7 = vector.broadcast %1 : vector<1x64xf32> to vector<1024x64xf32>
    %8 = arith.addf %7, %6 : vector<1024x64xf32>
    %9 = vector.extract_strided_slice %0 {offsets = [0, 1], sizes = [1024, 1], strides = [1, 1]} : vector<1024x3xf32> to vector<1024x1xf32>
    %c1 = arith.constant 1 : index
    %c0_5 = arith.constant 0 : index
    %10 = vector.load %arg2[%c1, %c0_5] : memref<3x64xf32, #tpu.memory_space<vmem>>, vector<1x64xf32>
    %11 = vector.broadcast %9 : vector<1024x1xf32> to vector<1024x64xf32>
    %12 = vector.broadcast %10 : vector<1x64xf32> to vector<1024x64xf32>
    %13 = arith.mulf %11, %12 : vector<1024x64xf32>
    %14 = arith.addf %8, %13 : vector<1024x64xf32>
    %15 = vector.extract_strided_slice %0 {offsets = [0, 2], sizes = [1024, 1], strides = [1, 1]} : vector<1024x3xf32> to vector<1024x1xf32>
    %c2 = arith.constant 2 : index
    %c0_6 = arith.constant 0 : index
    %16 = vector.load %arg2[%c2, %c0_6] : memref<3x64xf32, #tpu.memory_space<vmem>>, vector<1x64xf32>
    %17 = vector.broadcast %15 : vector<1024x1xf32> to vector<1024x64xf32>
    %18 = vector.broadcast %16 : vector<1x64xf32> to vector<1024x64xf32>
    %19 = arith.mulf %17, %18 : vector<1024x64xf32>
    %20 = arith.addf %14, %19 : vector<1024x64xf32>
    %cst = arith.constant 2.000000e-01 : f32
    %21 = vector.broadcast %cst : f32 to vector<1024x64xf32>
    %22 = arith.mulf %21, %20 : vector<1024x64xf32>
    %23 = arith.maximumf %20, %22 : vector<1024x64xf32>
    %24 = arith.truncf %23 : vector<1024x64xf32> to vector<1024x64xbf16>
    %c0_7 = arith.constant 0 : index
    %c0_8 = arith.constant 0 : index
    %25 = vector.load %arg4[%c0_7, %c0_8] : memref<64x128xbf16, #tpu.memory_space<vmem>>, vector<64x128xbf16>
    %cst_9 = arith.constant dense<0.000000e+00> : vector<1024x128xf32>
    %26 = tpu.matmul %24, %25, %cst_9 {dimension_numbers = #tpu.dot_dimension_numbers<[1], [0], [0], [1], [0, 0, 1, 1], [], []>} : vector<1024x64xbf16>, vector<64x128xbf16>, vector<1024x128xf32> -> vector<1024x128xf32>
    %c0_10 = arith.constant 0 : index
    %c0_11 = arith.constant 0 : index
    %27 = vector.load %arg5[%c0_10, %c0_11] : memref<1x128xf32, #tpu.memory_space<vmem>>, vector<1x128xf32>
    %28 = vector.broadcast %27 : vector<1x128xf32> to vector<1024x128xf32>
    %29 = arith.mulf %26, %28 : vector<1024x128xf32>
    %c0_12 = arith.constant 0 : index
    %c0_13 = arith.constant 0 : index
    %30 = vector.load %arg6[%c0_12, %c0_13] : memref<1x128xf32, #tpu.memory_space<vmem>>, vector<1x128xf32>
    %31 = vector.broadcast %30 : vector<1x128xf32> to vector<1024x128xf32>
    %32 = arith.addf %29, %31 : vector<1024x128xf32>
    %cst_14 = arith.constant 2.000000e-01 : f32
    %33 = vector.broadcast %cst_14 : f32 to vector<1024x128xf32>
    %34 = arith.mulf %33, %32 : vector<1024x128xf32>
    %35 = arith.maximumf %32, %34 : vector<1024x128xf32>
    %c0_15 = arith.constant 0 : index
    %c0_16 = arith.constant 0 : index
    %36 = vector.load %arg7[%c0_15, %c0_16] : memref<128x1xf32, #tpu.memory_space<vmem>>, vector<128x1xf32>
    %c0_17 = arith.constant 0 : index
    %c0_18 = arith.constant 0 : index
    %37 = memref.load %arg8[%c0_17, %c0_18] : memref<1x1xf32, #tpu.memory_space<smem>>
    %38 = vector.extract_strided_slice %35 {offsets = [0, 0], sizes = [128, 128], strides = [1, 1]} : vector<1024x128xf32> to vector<128x128xf32>
    %39 = tpu.transpose %38, [1, 0] : vector<128x128xf32> -> vector<128x128xf32>
    %40 = vector.broadcast %36 : vector<128x1xf32> to vector<128x128xf32>
    %41 = arith.mulf %39, %40 : vector<128x128xf32>
    %cst_19 = arith.constant dense<0.000000e+00> : vector<128xf32>
    %42 = vector.multi_reduction <add>, %41, %cst_19 [0] : vector<128x128xf32> to vector<128xf32>
    %43 = vector.shape_cast %42 : vector<128xf32> to vector<1x128xf32>
    %44 = vector.extract_strided_slice %35 {offsets = [128, 0], sizes = [128, 128], strides = [1, 1]} : vector<1024x128xf32> to vector<128x128xf32>
    %45 = tpu.transpose %44, [1, 0] : vector<128x128xf32> -> vector<128x128xf32>
    %46 = vector.broadcast %36 : vector<128x1xf32> to vector<128x128xf32>
    %47 = arith.mulf %45, %46 : vector<128x128xf32>
    %cst_20 = arith.constant dense<0.000000e+00> : vector<128xf32>
    %48 = vector.multi_reduction <add>, %47, %cst_20 [0] : vector<128x128xf32> to vector<128xf32>
    %49 = vector.shape_cast %48 : vector<128xf32> to vector<1x128xf32>
    %50 = vector.extract_strided_slice %35 {offsets = [256, 0], sizes = [128, 128], strides = [1, 1]} : vector<1024x128xf32> to vector<128x128xf32>
    %51 = tpu.transpose %50, [1, 0] : vector<128x128xf32> -> vector<128x128xf32>
    %52 = vector.broadcast %36 : vector<128x1xf32> to vector<128x128xf32>
    %53 = arith.mulf %51, %52 : vector<128x128xf32>
    %cst_21 = arith.constant dense<0.000000e+00> : vector<128xf32>
    %54 = vector.multi_reduction <add>, %53, %cst_21 [0] : vector<128x128xf32> to vector<128xf32>
    %55 = vector.shape_cast %54 : vector<128xf32> to vector<1x128xf32>
    %56 = vector.extract_strided_slice %35 {offsets = [384, 0], sizes = [128, 128], strides = [1, 1]} : vector<1024x128xf32> to vector<128x128xf32>
    %57 = tpu.transpose %56, [1, 0] : vector<128x128xf32> -> vector<128x128xf32>
    %58 = vector.broadcast %36 : vector<128x1xf32> to vector<128x128xf32>
    %59 = arith.mulf %57, %58 : vector<128x128xf32>
    %cst_22 = arith.constant dense<0.000000e+00> : vector<128xf32>
    %60 = vector.multi_reduction <add>, %59, %cst_22 [0] : vector<128x128xf32> to vector<128xf32>
    %61 = vector.shape_cast %60 : vector<128xf32> to vector<1x128xf32>
    %62 = vector.extract_strided_slice %35 {offsets = [512, 0], sizes = [128, 128], strides = [1, 1]} : vector<1024x128xf32> to vector<128x128xf32>
    %63 = tpu.transpose %62, [1, 0] : vector<128x128xf32> -> vector<128x128xf32>
    %64 = vector.broadcast %36 : vector<128x1xf32> to vector<128x128xf32>
    %65 = arith.mulf %63, %64 : vector<128x128xf32>
    %cst_23 = arith.constant dense<0.000000e+00> : vector<128xf32>
    %66 = vector.multi_reduction <add>, %65, %cst_23 [0] : vector<128x128xf32> to vector<128xf32>
    %67 = vector.shape_cast %66 : vector<128xf32> to vector<1x128xf32>
    %68 = vector.extract_strided_slice %35 {offsets = [640, 0], sizes = [128, 128], strides = [1, 1]} : vector<1024x128xf32> to vector<128x128xf32>
    %69 = tpu.transpose %68, [1, 0] : vector<128x128xf32> -> vector<128x128xf32>
    %70 = vector.broadcast %36 : vector<128x1xf32> to vector<128x128xf32>
    %71 = arith.mulf %69, %70 : vector<128x128xf32>
    %cst_24 = arith.constant dense<0.000000e+00> : vector<128xf32>
    %72 = vector.multi_reduction <add>, %71, %cst_24 [0] : vector<128x128xf32> to vector<128xf32>
    %73 = vector.shape_cast %72 : vector<128xf32> to vector<1x128xf32>
    %74 = vector.extract_strided_slice %35 {offsets = [768, 0], sizes = [128, 128], strides = [1, 1]} : vector<1024x128xf32> to vector<128x128xf32>
    %75 = tpu.transpose %74, [1, 0] : vector<128x128xf32> -> vector<128x128xf32>
    %76 = vector.broadcast %36 : vector<128x1xf32> to vector<128x128xf32>
    %77 = arith.mulf %75, %76 : vector<128x128xf32>
    %cst_25 = arith.constant dense<0.000000e+00> : vector<128xf32>
    %78 = vector.multi_reduction <add>, %77, %cst_25 [0] : vector<128x128xf32> to vector<128xf32>
    %79 = vector.shape_cast %78 : vector<128xf32> to vector<1x128xf32>
    %80 = vector.extract_strided_slice %35 {offsets = [896, 0], sizes = [128, 128], strides = [1, 1]} : vector<1024x128xf32> to vector<128x128xf32>
    %81 = tpu.transpose %80, [1, 0] : vector<128x128xf32> -> vector<128x128xf32>
    %82 = vector.broadcast %36 : vector<128x1xf32> to vector<128x128xf32>
    %83 = arith.mulf %81, %82 : vector<128x128xf32>
    %cst_26 = arith.constant dense<0.000000e+00> : vector<128xf32>
    %84 = vector.multi_reduction <add>, %83, %cst_26 [0] : vector<128x128xf32> to vector<128xf32>
    %85 = vector.shape_cast %84 : vector<128xf32> to vector<1x128xf32>
    %86 = tpu.concatenate %43, %49, %55, %61, %67, %73, %79, %85 in 0 : vector<1x128xf32>, vector<1x128xf32>, vector<1x128xf32>, vector<1x128xf32>, vector<1x128xf32>, vector<1x128xf32>, vector<1x128xf32>, vector<1x128xf32> -> vector<8x128xf32>
    %87 = vector.broadcast %37 : f32 to vector<8x128xf32>
    %88 = arith.addf %86, %87 : vector<8x128xf32>
    %c0_27 = arith.constant 0 : index
    %c0_28 = arith.constant 0 : index
    %89 = vector.load %arg9[%c0_27, %c0_28] : memref<8x128xf32, #tpu.memory_space<vmem>>, vector<8x128xf32>
    tpu.vector_store %arg9[%c0_27, %c0_28], %88 {strides = array<i32>} : memref<8x128xf32, #tpu.memory_space<vmem>>, vector<8x128xf32>,
    return
  }
  func.func @transform_0(%arg0: i32) -> (i32, i32) {
    %c0_i32 = arith.constant 0 : i32
    %c0_i32_0 = arith.constant 0 : i32
    return %arg0, %c0_i32 : i32, i32
  }
  func.func @transform_1(%arg0: i32) -> (i32, i32) {
    %c0_i32 = arith.constant 0 : i32
    %c0_i32_0 = arith.constant 0 : i32
    %c0_i32_1 = arith.constant 0 : i32
    return %c0_i32, %c0_i32_0 : i32, i32
  }
  func.func @transform_2(%arg0: i32) -> (i32, i32) {
    %c0_i32 = arith.constant 0 : i32
    %c0_i32_0 = arith.constant 0 : i32
    %c0_i32_1 = arith.constant 0 : i32
    return %c0_i32, %c0_i32_0 : i32, i32
  }
  func.func @transform_3(%arg0: i32) -> (i32, i32) {
    %c0_i32 = arith.constant 0 : i32
    %c0_i32_0 = arith.constant 0 : i32
    %c0_i32_1 = arith.constant 0 : i32
    return %c0_i32, %c0_i32_0 : i32, i32
  }
  func.func @transform_4(%arg0: i32) -> (i32, i32) {
    %c0_i32 = arith.constant 0 : i32
    %c0_i32_0 = arith.constant 0 : i32
    %c0_i32_1 = arith.constant 0 : i32
    return %c0_i32, %c0_i32_0 : i32, i32
  }
  func.func @transform_5(%arg0: i32) -> (i32, i32) {
    %c0_i32 = arith.constant 0 : i32
    %c0_i32_0 = arith.constant 0 : i32
    %c0_i32_1 = arith.constant 0 : i32
    return %c0_i32, %c0_i32_0 : i32, i32
  }
  func.func @transform_6(%arg0: i32) -> (i32, i32) {
    %c0_i32 = arith.constant 0 : i32
    %c0_i32_0 = arith.constant 0 : i32
    %c0_i32_1 = arith.constant 0 : i32
    return %c0_i32, %c0_i32_0 : i32, i32
  }
  func.func @transform_7(%arg0: i32) -> (i32, i32) {
    %c0_i32 = arith.constant 0 : i32
    %c0_i32_0 = arith.constant 0 : i32
    %c0_i32_1 = arith.constant 0 : i32
    return %c0_i32, %c0_i32_0 : i32, i32
  }
  func.func @transform_8(%arg0: i32) -> (i32, i32) {
    %c0_i32 = arith.constant 0 : i32
    %c0_i32_0 = arith.constant 0 : i32
    return %arg0, %c0_i32 : i32, i32
  }
}

</mosaic_0001>

<llo_original>
// kernel: pixel_discriminator_pallas.3
$region0: #{pixel_discriminator_pallas.3}
  #allocation0 [shape = 'u32[]', space=smem, size = 0x4, offset = 0x4, fixed_abs, tag = 'smem constant byte address 0x4 - core index']
  #allocation1 [shape = 'u32[144,128]{1,0:T(1,128)}', space=vmem, size = 0x12000, scoped, tag = 'internal scratch']
  #allocation2 [shape = 'f32[1,1]{1,0:T(1,128)S(6)}', space=smem, size = 0x200, scoped, tag = 'scoped memory for pixel_discriminator_pallas.3']
  %s0 = inlined_call_operand.vmem [shape: f32[2048,3], index: 0, kind: input, shape index: {}]
  %s1 = inlined_call_operand.vmem [shape: f32[3,64], index: 1, kind: input, shape index: {}]
  %s2 = inlined_call_operand.vmem [shape: f32[1,64], index: 2, kind: input, shape index: {}]
  %s3 = inlined_call_operand.vmem [shape: bf16[64,128], index: 3, kind: input, shape index: {}]
  %s4 = inlined_call_operand.vmem [shape: f32[1,128], index: 4, kind: input, shape index: {}]
  %s5 = inlined_call_operand.vmem [shape: f32[1,128], index: 5, kind: input, shape index: {}]
  %s6 = inlined_call_operand.vmem [shape: f32[128,1], index: 6, kind: input, shape index: {}]
  %s7 = inlined_call_operand.<no memory space> [shape: f32[1,1], index: 7, kind: input, shape index: {}]
  %s8 = inlined_call_operand.vmem [shape: f32[16,128], index: 8, kind: output, shape index: {}]
  %s9 = sld [smem:[#allocation0]]
  $region65: #{pixel_discriminator_pallas.3} parent=0
    _
  %s11 = ssub.s32 1, %s9
  %s12 = scalar_select 0, %s11, %s9
  %13 = sst [smem:[#allocation2]] %s7
  loop: start=0, step=1, limit=4
  $region2: #{pixel_discriminator_pallas.3} parent=0 // loop_pre_header
    _
  $region3: #{pixel_discriminator_pallas.3} parent=0 // loop_header
    %s15 = sphi 0, %s19
    %p16 = scmp.ge.s32.totalorder %s15, 4
    %s25 = sphi 0, %s27
    %s28 = sphi 0, %s25
    %s29 = sphi 0, %s28
    %s45 = sphi 0, %s29
    %s49 = sphi 0, %s49
    %s51 = sphi 0, %s49
    %s52 = sphi 0, %s51
    %s66 = sphi 0, %s52
    %s70 = sphi 0, %s70
    %s72 = sphi 0, %s70
    %s73 = sphi 0, %s72
    %s87 = sphi 0, %s73
    %s91 = sphi 0, %s91
    %s93 = sphi 0, %s91
    %s94 = sphi 0, %s93
    %s108 = sphi 0, %s94
    %s112 = sphi 0, %s112
    %s114 = sphi 0, %s112
    %s115 = sphi 0, %s114
    %s129 = sphi 0, %s115
    %s133 = sphi 0, %s133
    %s135 = sphi 0, %s133
    %s136 = sphi 0, %s135
    %s150 = sphi 0, %s136
    %s154 = sphi 0, %s154
    %s156 = sphi 0, %s154
    %s157 = sphi 0, %s156
    %s171 = sphi 0, %s157
    %s175 = sphi 0, %s175
    %s177 = sphi 0, %s175
    %s178 = sphi 0, %s177
    %s192 = sphi 0, %s178
    %s198 = sphi 0, %s200
    %s201 = sphi 0, %s198
    %s202 = sphi 0, %s201
    %s218 = sphi 0, %s202
  $region4: #{pixel_discriminator_pallas.3} parent=0 // loop_header_branch
    %18 = sbr.rel (%p16) target = $region8
  $region5: #{pixel_discriminator_pallas.3} parent=0 // loop_body
    %s20 = ssub.s32 %s15, 1
    %s21 = ssub.s32 %s15, 2
    %s22 = sadd.s32 %s15, 1
    %s23 = ssub.s32 %s15, %s22
    %p24 = scmp.eq.s32.totalorder %s23, 0
    %s26 = sadd.s32 %s25, 1
    %s27 = scalar_select %p24, %s25, %s26
    %p30 = pneg %p24
    %p31 = scmp.eq.s32.totalorder %s15, 1
    %p32 = por %p30, %p31
    %p33 = scmp.ne.s32.totalorder %s25, %s28
    %p34 = scmp.eq.s32.totalorder %s15, 0
    %p35 = por %p33, %p34
    %p36 = scmp.ne.s32.totalorder %s25, %s28
    %p37 = scmp.eq.s32.totalorder %s20, 1
    %p38 = por %p36, %p37
    %p39 = scmp.ne.s32.totalorder %s28, %s29
    %p40 = scmp.eq.s32.totalorder %s20, 0
    %p41 = por %p39, %p40
    %p42 = scmp.ne.s32.totalorder %s28, %s29
    %p43 = scmp.eq.s32.totalorder %s21, 1
    %p44 = por %p42, %p43
    %p46 = scmp.ne.s32.totalorder %s29, %s45
    %p47 = scmp.eq.s32.totalorder %s21, 0
    %p48 = por %p46, %p47
    %s50 = sadd.s32 %s49, 1
    %p53 = scmp.eq.s32.totalorder %s15, 1
    %p54 = scmp.ne.s32.totalorder %s49, %s51
    %p55 = scmp.eq.s32.totalorder %s15, 0
    %p56 = por %p54, %p55
    %p57 = scmp.ne.s32.totalorder %s49, %s51
    %p58 = scmp.eq.s32.totalorder %s20, 1
    %p59 = por %p57, %p58
    %p60 = scmp.ne.s32.totalorder %s51, %s52
    %p61 = scmp.eq.s32.totalorder %s20, 0
    %p62 = por %p60, %p61
    %p63 = scmp.ne.s32.totalorder %s51, %s52
    %p64 = scmp.eq.s32.totalorder %s21, 1
    %p65 = por %p63, %p64
    %p67 = scmp.ne.s32.totalorder %s52, %s66
    %p68 = scmp.eq.s32.totalorder %s21, 0
    %p69 = por %p67, %p68
    %s71 = sadd.s32 %s70, 1
    %p74 = scmp.eq.s32.totalorder %s15, 1
    %p75 = scmp.ne.s32.totalorder %s70, %s72
    %p76 = scmp.eq.s32.totalorder %s15, 0
    %p77 = por %p75, %p76
    %p78 = scmp.ne.s32.totalorder %s70, %s72
    %p79 = scmp.eq.s32.totalorder %s20, 1
    %p80 = por %p78, %p79
    %p81 = scmp.ne.s32.totalorder %s72, %s73
    %p82 = scmp.eq.s32.totalorder %s20, 0
    %p83 = por %p81, %p82
    %p84 = scmp.ne.s32.totalorder %s72, %s73
    %p85 = scmp.eq.s32.totalorder %s21, 1
    %p86 = por %p84, %p85
    %p88 = scmp.ne.s32.totalorder %s73, %s87
    %p89 = scmp.eq.s32.totalorder %s21, 0
    %p90 = por %p88, %p89
    %s92 = sadd.s32 %s91, 1
    %p95 = scmp.eq.s32.totalorder %s15, 1
    %p96 = scmp.ne.s32.totalorder %s91, %s93
    %p97 = scmp.eq.s32.totalorder %s15, 0
    %p98 = por %p96, %p97
    %p99 = scmp.ne.s32.totalorder %s91, %s93
    %p100 = scmp.eq.s32.totalorder %s20, 1
    %p101 = por %p99, %p100
    %p102 = scmp.ne.s32.totalorder %s93, %s94
    %p103 = scmp.eq.s32.totalorder %s20, 0
    %p104 = por %p102, %p103
    %p105 = scmp.ne.s32.totalorder %s93, %s94
    %p106 = scmp.eq.s32.totalorder %s21, 1
    %p107 = por %p105, %p106
    %p109 = scmp.ne.s32.totalorder %s94, %s108
    %p110 = scmp.eq.s32.totalorder %s21, 0
    %p111 = por %p109, %p110
    %s113 = sadd.s32 %s112, 1
    %p116 = scmp.eq.s32.totalorder %s15, 1
    %p117 = scmp.ne.s32.totalorder %s112, %s114
    %p118 = scmp.eq.s32.totalorder %s15, 0
    %p119 = por %p117, %p118
    %p120 = scmp.ne.s32.totalorder %s112, %s114
    %p121 = scmp.eq.s32.totalorder %s20, 1
    %p122 = por %p120, %p121
    %p123 = scmp.ne.s32.totalorder %s114, %s115
    %p124 = scmp.eq.s32.totalorder %s20, 0
    %p125 = por %p123, %p124
    %p126 = scmp.ne.s32.totalorder %s114, %s115
    %p127 = scmp.eq.s32.totalorder %s21, 1
    %p128 = por %p126, %p127
    %p130 = scmp.ne.s32.totalorder %s115, %s129
    %p131 = scmp.eq.s32.totalorder %s21, 0
    %p132 = por %p130, %p131
    %s134 = sadd.s32 %s133, 1
    %p137 = scmp.eq.s32.totalorder %s15, 1
    %p138 = scmp.ne.s32.totalorder %s133, %s135
    %p139 = scmp.eq.s32.totalorder %s15, 0
    %p140 = por %p138, %p139
    %p141 = scmp.ne.s32.totalorder %s133, %s135
    %p142 = scmp.eq.s32.totalorder %s20, 1
    %p143 = por %p141, %p142
    %p144 = scmp.ne.s32.totalorder %s135, %s136
    %p145 = scmp.eq.s32.totalorder %s20, 0
    %p146 = por %p144, %p145
    %p147 = scmp.ne.s32.totalorder %s135, %s136
    %p148 = scmp.eq.s32.totalorder %s21, 1
    %p149 = por %p147, %p148
    %p151 = scmp.ne.s32.totalorder %s136, %s150
    %p152 = scmp.eq.s32.totalorder %s21, 0
    %p153 = por %p151, %p152
    %s155 = sadd.s32 %s154, 1
    %p158 = scmp.eq.s32.totalorder %s15, 1
    %p159 = scmp.ne.s32.totalorder %s154, %s156
    %p160 = scmp.eq.s32.totalorder %s15, 0
    %p161 = por %p159, %p160
    %p162 = scmp.ne.s32.totalorder %s154, %s156
    %p163 = scmp.eq.s32.totalorder %s20, 1
    %p164 = por %p162, %p163
    %p165 = scmp.ne.s32.totalorder %s156, %s157
    %p166 = scmp.eq.s32.totalorder %s20, 0
    %p167 = por %p165, %p166
    %p168 = scmp.ne.s32.totalorder %s156, %s157
    %p169 = scmp.eq.s32.totalorder %s21, 1
    %p170 = por %p168, %p169
    %p172 = scmp.ne.s32.totalorder %s157, %s171
    %p173 = scmp.eq.s32.totalorder %s21, 0
    %p174 = por %p172, %p173
    %s176 = sadd.s32 %s175, 1
    %p179 = scmp.eq.s32.totalorder %s15, 1
    %p180 = scmp.ne.s32.totalorder %s175, %s177
    %p181 = scmp.eq.s32.totalorder %s15, 0
    %p182 = por %p180, %p181
    %p183 = scmp.ne.s32.totalorder %s175, %s177
    %p184 = scmp.eq.s32.totalorder %s20, 1
    %p185 = por %p183, %p184
    %p186 = scmp.ne.s32.totalorder %s177, %s178
    %p187 = scmp.eq.s32.totalorder %s20, 0
    %p188 = por %p186, %p187
    %p189 = scmp.ne.s32.totalorder %s177, %s178
    %p190 = scmp.eq.s32.totalorder %s21, 1
    %p191 = por %p189, %p190
    %p193 = scmp.ne.s32.totalorder %s178, %s192
    %p194 = scmp.eq.s32.totalorder %s21, 0
    %p195 = por %p193, %p194
    %s196 = ssub.s32 %s15, %s22
    %p197 = scmp.eq.s32.totalorder %s196, 0
    %s199 = sadd.s32 %s198, 1
    %s200 = scalar_select %p197, %s198, %s199
    %p203 = pneg %p197
    %p204 = scmp.eq.s32.totalorder %s15, 1
    %p205 = por %p203, %p204
    %p206 = scmp.ne.s32.totalorder %s198, %s201
    %p207 = scmp.eq.s32.totalorder %s15, 0
    %p208 = por %p206, %p207
    %p209 = scmp.ne.s32.totalorder %s198, %s201
    %p210 = scmp.eq.s32.totalorder %s20, 1
    %p211 = por %p209, %p210
    %p212 = scmp.ne.s32.totalorder %s201, %s202
    %p213 = scmp.eq.s32.totalorder %s20, 0
    %p214 = por %p212, %p213
    %p215 = scmp.ne.s32.totalorder %s201, %s202
    %p216 = scmp.eq.s32.totalorder %s21, 1
    %p217 = por %p215, %p216
    %p219 = scmp.ne.s32.totalorder %s202, %s218
    %p220 = scmp.eq.s32.totalorder %s21, 0
    %p221 = por %p219, %p220
    %p222 = scmp.le.s32.totalorder 1, %s15
    %p223 = scmp.lt.s32.totalorder %s15, 3
    %p224 = pnand %p222, %p223
    %p225 = pneg %p224
    // Predicated region
    $region9: #{pixel_discriminator_pallas.3} parent=5 // pred_check
      _
    $region10: #{pixel_discriminator_pallas.3} parent=5 // pred_check_branch
      %227 = sbr.rel (%p224) target = $region12
    $region11: #{pixel_discriminator_pallas.3} parent=5 // pred_region
      %s228 = ssub.s32 %s15, 1
      // Predicated region
      $region13: #{pixel_discriminator_pallas.3} parent=11 // pred_check
        %p229 = pneg %p62
      $region14: #{pixel_discriminator_pallas.3} parent=11 // pred_check_branch
        %231 = sbr.rel (%p229) target = $region16
      $region15: #{pixel_discriminator_pallas.3} parent=11 // pred_region
        _
      $region16: #{pixel_discriminator_pallas.3} parent=11 // pred_fallthru
        _
      // Predicated region
      $region17: #{pixel_discriminator_pallas.3} parent=11 // pred_check
        %p232 = pneg %p83
      $region18: #{pixel_discriminator_pallas.3} parent=11 // pred_check_branch
        %234 = sbr.rel (%p232) target = $region20
      $region19: #{pixel_discriminator_pallas.3} parent=11 // pred_region
        _
      $region20: #{pixel_discriminator_pallas.3} parent=11 // pred_fallthru
        _
      // Predicated region
      $region21: #{pixel_discriminator_pallas.3} parent=11 // pred_check
        %p235 = pneg %p104
      $region22: #{pixel_discriminator_pallas.3} parent=11 // pred_check_branch
        %237 = sbr.rel (%p235) target = $region24
      $region23: #{pixel_discriminator_pallas.3} parent=11 // pred_region
        _
      $region24: #{pixel_discriminator_pallas.3} parent=11 // pred_fallthru
        _
      // Predicated region
      $region25: #{pixel_discriminator_pallas.3} parent=11 // pred_check
        %p238 = pneg %p125
      $region26: #{pixel_discriminator_pallas.3} parent=11 // pred_check_branch
        %240 = sbr.rel (%p238) target = $region28
      $region27: #{pixel_discriminator_pallas.3} parent=11 // pred_region
        _
      $region28: #{pixel_discriminator_pallas.3} parent=11 // pred_fallthru
        _
      // Predicated region
      $region29: #{pixel_discriminator_pallas.3} parent=11 // pred_check
        %p241 = pneg %p146
      $region30: #{pixel_discriminator_pallas.3} parent=11 // pred_check_branch
        %243 = sbr.rel (%p241) target = $region32
      $region31: #{pixel_discriminator_pallas.3} parent=11 // pred_region
        _
      $region32: #{pixel_discriminator_pallas.3} parent=11 // pred_fallthru
        _
      // Predicated region
      $region33: #{pixel_discriminator_pallas.3} parent=11 // pred_check
        %p244 = pneg %p167
      $region34: #{pixel_discriminator_pallas.3} parent=11 // pred_check_branch
        %246 = sbr.rel (%p244) target = $region36
      $region35: #{pixel_discriminator_pallas.3} parent=11 // pred_region
        _
      $region36: #{pixel_discriminator_pallas.3} parent=11 // pred_fallthru
        _
      // Predicated region
      $region37: #{pixel_discriminator_pallas.3} parent=11 // pred_check
        %p247 = pneg %p188
      $region38: #{pixel_discriminator_pallas.3} parent=11 // pred_check_branch
        %249 = sbr.rel (%p247) target = $region40
      $region39: #{pixel_discriminator_pallas.3} parent=11 // pred_region
        _
      $region40: #{pixel_discriminator_pallas.3} parent=11 // pred_fallthru
        _
    $region12: #{pixel_discriminator_pallas.3} parent=5 // pred_fallthru
      _
    %p250 = scmp.lt.s32.totalorder %s15, 2
    // Predicated region
    $region41: #{pixel_discriminator_pallas.3} parent=5 // pred_check
      %p251 = pneg %p250
    $region42: #{pixel_discriminator_pallas.3} parent=5 // pred_check_branch
      %253 = sbr.rel (%p251) target = $region44
    $region43: #{pixel_discriminator_pallas.3} parent=5 // pred_region
      // Predicated region
      $region45: #{pixel_discriminator_pallas.3} parent=43 // pred_check
        %p254 = pneg %p35
      $region46: #{pixel_discriminator_pallas.3} parent=43 // pred_check_branch
        %256 = sbr.rel (%p254) target = $region48
      $region47: #{pixel_discriminator_pallas.3} parent=43 // pred_region
        %s257 = smul.u32 128, %s15
        %p258 = scmp.lt.s32.totalorder %s257, 255
        %s259 = scalar_select %p258, %s257, 255
        %s260 = smul.addr %s259, 8
        %s261 = scalar_lea.vmem %s0, %s260
        %s262 = smul.u32 128, %s15
      $region48: #{pixel_discriminator_pallas.3} parent=43 // pred_fallthru
        _
    $region44: #{pixel_discriminator_pallas.3} parent=5 // pred_fallthru
      _
    %p263 = scmp.le.s32.totalorder 1, %s15
    %p264 = scmp.lt.s32.totalorder %s15, 3
    %p265 = pnand %p263, %p264
    %p266 = pneg %p265
    // Predicated region
    $region49: #{pixel_discriminator_pallas.3} parent=5 // pred_check
      _
    $region50: #{pixel_discriminator_pallas.3} parent=5 // pred_check_branch
      %268 = sbr.rel (%p265) target = $region52
    $region51: #{pixel_discriminator_pallas.3} parent=5 // pred_region
      %s269 = ssub.s32 %s15, 1
      %s270 = smul.u32 128, %s20
      %p271 = scmp.lt.s32.totalorder %s270, 255
      %s272 = scalar_select %p271, %s270, 255
      %s273 = smul.addr %s272, 8
      %s274 = scalar_lea.vmem %s0, %s273
      %p275 = pneg %p41
      %p276 = pneg %p38
      %p277 = pneg %p62
      %p278 = pneg %p59
      %p279 = pneg %p83
      %p280 = pneg %p80
      %p281 = pneg %p104
      %p282 = pneg %p101
      %p283 = pneg %p125
      %p284 = pneg %p122
      %p285 = pneg %p146
      %p286 = pneg %p143
      %p287 = pneg %p167
      %p288 = pneg %p164
      %p289 = pneg %p188
      %p290 = pneg %p185
      %p291 = pneg %p214
      %p292 = pneg %p211
      %p293 = scmp.lt.s32.totalorder %s20, 1
      %s294 = scalar_select %p293, %s20, 1
      %s295 = smul.addr %s294, 8
      %s296 = scalar_lea.vmem %s8, %s295
      %s297 = smul.u32 128, %s20
      %p298 = scmp.lt.s32.totalorder %s297, 255
      %s299 = scalar_select %p298, %s297, 255
      %s300 = smul.addr %s299, 8
      %s301 = scalar_lea.vmem %s0, %s300
      %s302 = smul.u32 128, %s20
      %p303 = scmp.lt.s32.totalorder %s20, 1
      %s304 = scalar_select %p303, %s20, 1
      %s305 = smul.addr %s304, 8
      %s306 = scalar_lea.vmem %s8, %s305
      %v308 = vld [vmem:[%s301] sm:$0xff]
      %v309 = vld [vmem:[%s301 + $0x8] sm:$0xff]
      %v310 = vld [vmem:[%s301 + $0x10] sm:$0xff]
      %v311 = vld [vmem:[%s301 + $0x18] sm:$0xff]
      %v312 = vld [vmem:[%s301 + $0x20] sm:$0xff]
      %v313 = vld [vmem:[%s301 + $0x28] sm:$0xff]
      %v314 = vld [vmem:[%s301 + $0x30] sm:$0xff]
      %v315 = vld [vmem:[%s301 + $0x38] sm:$0xff]
      %v316 = vld [vmem:[%s301 + $0x40] sm:$0xff]
      %v317 = vld [vmem:[%s301 + $0x48] sm:$0xff]
      %v318 = vld [vmem:[%s301 + $0x50] sm:$0xff]
      %v319 = vld [vmem:[%s301 + $0x58] sm:$0xff]
      %v320 = vld [vmem:[%s301 + $0x60] sm:$0xff]
      %v321 = vld [vmem:[%s301 + $0x68] sm:$0xff]
      %v322 = vld [vmem:[%s301 + $0x70] sm:$0xff]
      %v323 = vld [vmem:[%s301 + $0x78] sm:$0xff]
      %v324 = vld [vmem:[%s301 + $0x80] sm:$0xff]
      %v325 = vld [vmem:[%s301 + $0x88] sm:$0xff]
      %v326 = vld [vmem:[%s301 + $0x90] sm:$0xff]
      %v327 = vld [vmem:[%s301 + $0x98] sm:$0xff]
      %v328 = vld [vmem:[%s301 + $0xa0] sm:$0xff]
      %v329 = vld [vmem:[%s301 + $0xa8] sm:$0xff]
      %v330 = vld [vmem:[%s301 + $0xb0] sm:$0xff]
      %v331 = vld [vmem:[%s301 + $0xb8] sm:$0xff]
      %v332 = vld [vmem:[%s301 + $0xc0] sm:$0xff]
      %v333 = vld [vmem:[%s301 + $0xc8] sm:$0xff]
      %v334 = vld [vmem:[%s301 + $0xd0] sm:$0xff]
      %v335 = vld [vmem:[%s301 + $0xd8] sm:$0xff]
      %v336 = vld [vmem:[%s301 + $0xe0] sm:$0xff]
      %v337 = vld [vmem:[%s301 + $0xe8] sm:$0xff]
      %v338 = vld [vmem:[%s301 + $0xf0] sm:$0xff]
      %v339 = vld [vmem:[%s301 + $0xf8] sm:$0xff]
      %v340 = vld [vmem:[%s301 + $0x100] sm:$0xff]
      %v341 = vld [vmem:[%s301 + $0x108] sm:$0xff]
      %v342 = vld [vmem:[%s301 + $0x110] sm:$0xff]
      %v343 = vld [vmem:[%s301 + $0x118] sm:$0xff]
      %v344 = vld [vmem:[%s301 + $0x120] sm:$0xff]
      %v345 = vld [vmem:[%s301 + $0x128] sm:$0xff]
      %v346 = vld [vmem:[%s301 + $0x130] sm:$0xff]
      %v347 = vld [vmem:[%s301 + $0x138] sm:$0xff]
      %v348 = vld [vmem:[%s301 + $0x140] sm:$0xff]
      %v349 = vld [vmem:[%s301 + $0x148] sm:$0xff]
      %v350 = vld [vmem:[%s301 + $0x150] sm:$0xff]
      %v351 = vld [vmem:[%s301 + $0x158] sm:$0xff]
      %v352 = vld [vmem:[%s301 + $0x160] sm:$0xff]
      %v353 = vld [vmem:[%s301 + $0x168] sm:$0xff]
      %v354 = vld [vmem:[%s301 + $0x170] sm:$0xff]
      %v355 = vld [vmem:[%s301 + $0x178] sm:$0xff]
      %v356 = vld [vmem:[%s301 + $0x180] sm:$0xff]
      %v357 = vld [vmem:[%s301 + $0x188] sm:$0xff]
      %v358 = vld [vmem:[%s301 + $0x190] sm:$0xff]
      %v359 = vld [vmem:[%s301 + $0x198] sm:$0xff]
      %v360 = vld [vmem:[%s301 + $0x1a0] sm:$0xff]
      %v361 = vld [vmem:[%s301 + $0x1a8] sm:$0xff]
      %v362 = vld [vmem:[%s301 + $0x1b0] sm:$0xff]
      %v363 = vld [vmem:[%s301 + $0x1b8] sm:$0xff]
      %v364 = vld [vmem:[%s301 + $0x1c0] sm:$0xff]
      %v365 = vld [vmem:[%s301 + $0x1c8] sm:$0xff]
      %v366 = vld [vmem:[%s301 + $0x1d0] sm:$0xff]
      %v367 = vld [vmem:[%s301 + $0x1d8] sm:$0xff]
      %v368 = vld [vmem:[%s301 + $0x1e0] sm:$0xff]
      %v369 = vld [vmem:[%s301 + $0x1e8] sm:$0xff]
      %v370 = vld [vmem:[%s301 + $0x1f0] sm:$0xff]
      %v371 = vld [vmem:[%s301 + $0x1f8] sm:$0xff]
      %v372 = vld [vmem:[%s301 + $0x200] sm:$0xff]
      %v373 = vld [vmem:[%s301 + $0x208] sm:$0xff]
      %v374 = vld [vmem:[%s301 + $0x210] sm:$0xff]
      %v375 = vld [vmem:[%s301 + $0x218] sm:$0xff]
      %v376 = vld [vmem:[%s301 + $0x220] sm:$0xff]
      %v377 = vld [vmem:[%s301 + $0x228] sm:$0xff]
      %v378 = vld [vmem:[%s301 + $0x230] sm:$0xff]
      %v379 = vld [vmem:[%s301 + $0x238] sm:$0xff]
      %v380 = vld [vmem:[%s301 + $0x240] sm:$0xff]
      %v381 = vld [vmem:[%s301 + $0x248] sm:$0xff]
      %v382 = vld [vmem:[%s301 + $0x250] sm:$0xff]
      %v383 = vld [vmem:[%s301 + $0x258] sm:$0xff]
      %v384 = vld [vmem:[%s301 + $0x260] sm:$0xff]
      %v385 = vld [vmem:[%s301 + $0x268] sm:$0xff]
      %v386 = vld [vmem:[%s301 + $0x270] sm:$0xff]
      %v387 = vld [vmem:[%s301 + $0x278] sm:$0xff]
      %v388 = vld [vmem:[%s301 + $0x280] sm:$0xff]
      %v389 = vld [vmem:[%s301 + $0x288] sm:$0xff]
      %v390 = vld [vmem:[%s301 + $0x290] sm:$0xff]
      %v391 = vld [vmem:[%s301 + $0x298] sm:$0xff]
      %v392 = vld [vmem:[%s301 + $0x2a0] sm:$0xff]
      %v393 = vld [vmem:[%s301 + $0x2a8] sm:$0xff]
      %v394 = vld [vmem:[%s301 + $0x2b0] sm:$0xff]
      %v395 = vld [vmem:[%s301 + $0x2b8] sm:$0xff]
      %v396 = vld [vmem:[%s301 + $0x2c0] sm:$0xff]
      %v397 = vld [vmem:[%s301 + $0x2c8] sm:$0xff]
      %v398 = vld [vmem:[%s301 + $0x2d0] sm:$0xff]
      %v399 = vld [vmem:[%s301 + $0x2d8] sm:$0xff]
      %v400 = vld [vmem:[%s301 + $0x2e0] sm:$0xff]
      %v401 = vld [vmem:[%s301 + $0x2e8] sm:$0xff]
      %v402 = vld [vmem:[%s301 + $0x2f0] sm:$0xff]
      %v403 = vld [vmem:[%s301 + $0x2f8] sm:$0xff]
      %v404 = vld [vmem:[%s301 + $0x300] sm:$0xff]
      %v405 = vld [vmem:[%s301 + $0x308] sm:$0xff]
      %v406 = vld [vmem:[%s301 + $0x310] sm:$0xff]
      %v407 = vld [vmem:[%s301 + $0x318] sm:$0xff]
      %v408 = vld [vmem:[%s301 + $0x320] sm:$0xff]
      %v409 = vld [vmem:[%s301 + $0x328] sm:$0xff]
      %v410 = vld [vmem:[%s301 + $0x330] sm:$0xff]
      %v411 = vld [vmem:[%s301 + $0x338] sm:$0xff]
      %v412 = vld [vmem:[%s301 + $0x340] sm:$0xff]
      %v413 = vld [vmem:[%s301 + $0x348] sm:$0xff]
      %v414 = vld [vmem:[%s301 + $0x350] sm:$0xff]
      %v415 = vld [vmem:[%s301 + $0x358] sm:$0xff]
      %v416 = vld [vmem:[%s301 + $0x360] sm:$0xff]
      %v417 = vld [vmem:[%s301 + $0x368] sm:$0xff]
      %v418 = vld [vmem:[%s301 + $0x370] sm:$0xff]
      %v419 = vld [vmem:[%s301 + $0x378] sm:$0xff]
      %v420 = vld [vmem:[%s301 + $0x380] sm:$0xff]
      %v421 = vld [vmem:[%s301 + $0x388] sm:$0xff]
      %v422 = vld [vmem:[%s301 + $0x390] sm:$0xff]
      %v423 = vld [vmem:[%s301 + $0x398] sm:$0xff]
      %v424 = vld [vmem:[%s301 + $0x3a0] sm:$0xff]
      %v425 = vld [vmem:[%s301 + $0x3a8] sm:$0xff]
      %v426 = vld [vmem:[%s301 + $0x3b0] sm:$0xff]
      %v427 = vld [vmem:[%s301 + $0x3b8] sm:$0xff]
      %v428 = vld [vmem:[%s301 + $0x3c0] sm:$0xff]
      %v429 = vld [vmem:[%s301 + $0x3c8] sm:$0xff]
      %v430 = vld [vmem:[%s301 + $0x3d0] sm:$0xff]
      %v431 = vld [vmem:[%s301 + $0x3d8] sm:$0xff]
      %v432 = vld [vmem:[%s301 + $0x3e0] sm:$0xff]
      %v433 = vld [vmem:[%s301 + $0x3e8] sm:$0xff]
      %v434 = vld [vmem:[%s301 + $0x3f0] sm:$0xff]
      %v435 = vld [vmem:[%s301 + $0x3f8] sm:$0xff]
      %v436 = vld [vmem:[%s2] sm:$0x1]
      %v437 = vld [vmem:[%s1] sm:$0x1]
      %439 = vset.pattern.permute.xlu0 0
      %440 = vperm.xlu0 %439, %v308
      %v441 = vpop.permute.xlu0 %440
      %444 = vset.pattern.permute.xlu0 0
      %445 = vperm.xlu0 %444, %v309
      %v446 = vpop.permute.xlu0 %445
      %449 = vset.pattern.permute.xlu0 0
      %450 = vperm.xlu0 %449, %v310
      %v451 = vpop.permute.xlu0 %450
      %454 = vset.pattern.permute.xlu0 0
      %455 = vperm.xlu0 %454, %v311
      %v456 = vpop.permute.xlu0 %455
      %459 = vset.pattern.permute.xlu0 0
      %460 = vperm.xlu0 %459, %v312
      %v461 = vpop.permute.xlu0 %460
      %464 = vset.pattern.permute.xlu0 0
      %465 = vperm.xlu0 %464, %v313
      %v466 = vpop.permute.xlu0 %465
      %469 = vset.pattern.permute.xlu0 0
      %470 = vperm.xlu0 %469, %v314
      %v471 = vpop.permute.xlu0 %470
      %474 = vset.pattern.permute.xlu0 0
      %475 = vperm.xlu0 %474, %v315
      %v476 = vpop.permute.xlu0 %475
      %479 = vset.pattern.permute.xlu0 0
      %480 = vperm.xlu0 %479, %v316
      %v481 = vpop.permute.xlu0 %480
      %484 = vset.pattern.permute.xlu0 0
      %485 = vperm.xlu0 %484, %v317
      %v486 = vpop.permute.xlu0 %485
      %489 = vset.pattern.permute.xlu0 0
      %490 = vperm.xlu0 %489, %v318
      %v491 = vpop.permute.xlu0 %490
      %494 = vset.pattern.permute.xlu0 0
      %495 = vperm.xlu0 %494, %v319
      %v496 = vpop.permute.xlu0 %495
      %499 = vset.pattern.permute.xlu0 0
      %500 = vperm.xlu0 %499, %v320
      %v501 = vpop.permute.xlu0 %500
      %504 = vset.pattern.permute.xlu0 0
      %505 = vperm.xlu0 %504, %v321
      %v506 = vpop.permute.xlu0 %505
      %509 = vset.pattern.permute.xlu0 0
      %510 = vperm.xlu0 %509, %v322
      %v511 = vpop.permute.xlu0 %510
      %514 = vset.pattern.permute.xlu0 0
      %515 = vperm.xlu0 %514, %v323
      %v516 = vpop.permute.xlu0 %515
      %519 = vset.pattern.permute.xlu0 0
      %520 = vperm.xlu0 %519, %v324
      %v521 = vpop.permute.xlu0 %520
      %524 = vset.pattern.permute.xlu0 0
      %525 = vperm.xlu0 %524, %v325
      %v526 = vpop.permute.xlu0 %525
      %529 = vset.pattern.permute.xlu0 0
      %530 = vperm.xlu0 %529, %v326
      %v531 = vpop.permute.xlu0 %530
      %534 = vset.pattern.permute.xlu0 0
      %535 = vperm.xlu0 %534, %v327
      %v536 = vpop.permute.xlu0 %535
      %539 = vset.pattern.permute.xlu0 0
      %540 = vperm.xlu0 %539, %v328
      %v541 = vpop.permute.xlu0 %540
      %544 = vset.pattern.permute.xlu0 0
      %545 = vperm.xlu0 %544, %v329
      %v546 = vpop.permute.xlu0 %545
      %549 = vset.pattern.permute.xlu0 0
      %550 = vperm.xlu0 %549, %v330
      %v551 = vpop.permute.xlu0 %550
      %554 = vset.pattern.permute.xlu0 0
      %555 = vperm.xlu0 %554, %v331
      %v556 = vpop.permute.xlu0 %555
      %559 = vset.pattern.permute.xlu0 0
      %560 = vperm.xlu0 %559, %v332
      %v561 = vpop.permute.xlu0 %560
      %564 = vset.pattern.permute.xlu0 0
      %565 = vperm.xlu0 %564, %v333
      %v566 = vpop.permute.xlu0 %565
      %569 = vset.pattern.permute.xlu0 0
      %570 = vperm.xlu0 %569, %v334
      %v571 = vpop.permute.xlu0 %570
      %574 = vset.pattern.permute.xlu0 0
      %575 = vperm.xlu0 %574, %v335
      %v576 = vpop.permute.xlu0 %575
      %579 = vset.pattern.permute.xlu0 0
      %580 = vperm.xlu0 %579, %v336
      %v581 = vpop.permute.xlu0 %580
      %584 = vset.pattern.permute.xlu0 0
      %585 = vperm.xlu0 %584, %v337
      %v586 = vpop.permute.xlu0 %585
      %589 = vset.pattern.permute.xlu0 0
      %590 = vperm.xlu0 %589, %v338
      %v591 = vpop.permute.xlu0 %590
      %594 = vset.pattern.permute.xlu0 0
      %595 = vperm.xlu0 %594, %v339
      %v596 = vpop.permute.xlu0 %595
      %599 = vset.pattern.permute.xlu0 0
      %600 = vperm.xlu0 %599, %v340
      %v601 = vpop.permute.xlu0 %600
      %604 = vset.pattern.permute.xlu0 0
      %605 = vperm.xlu0 %604, %v341
      %v606 = vpop.permute.xlu0 %605
      %609 = vset.pattern.permute.xlu0 0
      %610 = vperm.xlu0 %609, %v342
      %v611 = vpop.permute.xlu0 %610
      %614 = vset.pattern.permute.xlu0 0
      %615 = vperm.xlu0 %614, %v343
      %v616 = vpop.permute.xlu0 %615
      %619 = vset.pattern.permute.xlu0 0
      %620 = vperm.xlu0 %619, %v344
      %v621 = vpop.permute.xlu0 %620
      %624 = vset.pattern.permute.xlu0 0
      %625 = vperm.xlu0 %624, %v345
      %v626 = vpop.permute.xlu0 %625
      %629 = vset.pattern.permute.xlu0 0
      %630 = vperm.xlu0 %629, %v346
      %v631 = vpop.permute.xlu0 %630
      %634 = vset.pattern.permute.xlu0 0
      %635 = vperm.xlu0 %634, %v347
      %v636 = vpop.permute.xlu0 %635
      %639 = vset.pattern.permute.xlu0 0
      %640 = vperm.xlu0 %639, %v348
      %v641 = vpop.permute.xlu0 %640
      %644 = vset.pattern.permute.xlu0 0
      %645 = vperm.xlu0 %644, %v349
      %v646 = vpop.permute.xlu0 %645
      %649 = vset.pattern.permute.xlu0 0
      %650 = vperm.xlu0 %649, %v350
      %v651 = vpop.permute.xlu0 %650
      %654 = vset.pattern.permute.xlu0 0
      %655 = vperm.xlu0 %654, %v351
      %v656 = vpop.permute.xlu0 %655
      %659 = vset.pattern.permute.xlu0 0
      %660 = vperm.xlu0 %659, %v352
      %v661 = vpop.permute.xlu0 %660
      %664 = vset.pattern.permute.xlu0 0
      %665 = vperm.xlu0 %664, %v353
      %v666 = vpop.permute.xlu0 %665
      %669 = vset.pattern.permute.xlu0 0
      %670 = vperm.xlu0 %669, %v354
      %v671 = vpop.permute.xlu0 %670
      %674 = vset.pattern.permute.xlu0 0
      %675 = vperm.xlu0 %674, %v355
      %v676 = vpop.permute.xlu0 %675
      %679 = vset.pattern.permute.xlu0 0
      %680 = vperm.xlu0 %679, %v356
      %v681 = vpop.permute.xlu0 %680
      %684 = vset.pattern.permute.xlu0 0
      %685 = vperm.xlu0 %684, %v357
      %v686 = vpop.permute.xlu0 %685
      %689 = vset.pattern.permute.xlu0 0
      %690 = vperm.xlu0 %689, %v358
      %v691 = vpop.permute.xlu0 %690
      %694 = vset.pattern.permute.xlu0 0
      %695 = vperm.xlu0 %694, %v359
      %v696 = vpop.permute.xlu0 %695
      %699 = vset.pattern.permute.xlu0 0
      %700 = vperm.xlu0 %699, %v360
      %v701 = vpop.permute.xlu0 %700
      %704 = vset.pattern.permute.xlu0 0
      %705 = vperm.xlu0 %704, %v361
      %v706 = vpop.permute.xlu0 %705
      %709 = vset.pattern.permute.xlu0 0
      %710 = vperm.xlu0 %709, %v362
      %v711 = vpop.permute.xlu0 %710
      %714 = vset.pattern.permute.xlu0 0
      %715 = vperm.xlu0 %714, %v363
      %v716 = vpop.permute.xlu0 %715
      %719 = vset.pattern.permute.xlu0 0
      %720 = vperm.xlu0 %719, %v364
      %v721 = vpop.permute.xlu0 %720
      %724 = vset.pattern.permute.xlu0 0
      %725 = vperm.xlu0 %724, %v365
      %v726 = vpop.permute.xlu0 %725
      %729 = vset.pattern.permute.xlu0 0
      %730 = vperm.xlu0 %729, %v366
      %v731 = vpop.permute.xlu0 %730
      %734 = vset.pattern.permute.xlu0 0
      %735 = vperm.xlu0 %734, %v367
      %v736 = vpop.permute.xlu0 %735
      %739 = vset.pattern.permute.xlu0 0
      %740 = vperm.xlu0 %739, %v368
      %v741 = vpop.permute.xlu0 %740
      %744 = vset.pattern.permute.xlu0 0
      %745 = vperm.xlu0 %744, %v369
      %v746 = vpop.permute.xlu0 %745
      %749 = vset.pattern.permute.xlu0 0
      %750 = vperm.xlu0 %749, %v370
      %v751 = vpop.permute.xlu0 %750
      %754 = vset.pattern.permute.xlu0 0
      %755 = vperm.xlu0 %754, %v371
      %v756 = vpop.permute.xlu0 %755
      %759 = vset.pattern.permute.xlu0 0
      %760 = vperm.xlu0 %759, %v372
      %v761 = vpop.permute.xlu0 %760
      %764 = vset.pattern.permute.xlu0 0
      %765 = vperm.xlu0 %764, %v373
      %v766 = vpop.permute.xlu0 %765
      %769 = vset.pattern.permute.xlu0 0
      %770 = vperm.xlu0 %769, %v374
      %v771 = vpop.permute.xlu0 %770
      %774 = vset.pattern.permute.xlu0 0
      %775 = vperm.xlu0 %774, %v375
      %v776 = vpop.permute.xlu0 %775
      %779 = vset.pattern.permute.xlu0 0
      %780 = vperm.xlu0 %779, %v376
      %v781 = vpop.permute.xlu0 %780
      %784 = vset.pattern.permute.xlu0 0
      %785 = vperm.xlu0 %784, %v377
      %v786 = vpop.permute.xlu0 %785
      %789 = vset.pattern.permute.xlu0 0
      %790 = vperm.xlu0 %789, %v378
      %v791 = vpop.permute.xlu0 %790
      %794 = vset.pattern.permute.xlu0 0
      %795 = vperm.xlu0 %794, %v379
      %v796 = vpop.permute.xlu0 %795
      %799 = vset.pattern.permute.xlu0 0
      %800 = vperm.xlu0 %799, %v380
      %v801 = vpop.permute.xlu0 %800
      %804 = vset.pattern.permute.xlu0 0
      %805 = vperm.xlu0 %804, %v381
      %v806 = vpop.permute.xlu0 %805
      %809 = vset.pattern.permute.xlu0 0
      %810 = vperm.xlu0 %809, %v382
      %v811 = vpop.permute.xlu0 %810
      %814 = vset.pattern.permute.xlu0 0
      %815 = vperm.xlu0 %814, %v383
      %v816 = vpop.permute.xlu0 %815
      %819 = vset.pattern.permute.xlu0 0
      %820 = vperm.xlu0 %819, %v384
      %v821 = vpop.permute.xlu0 %820
      %824 = vset.pattern.permute.xlu0 0
      %825 = vperm.xlu0 %824, %v385
      %v826 = vpop.permute.xlu0 %825
      %829 = vset.pattern.permute.xlu0 0
      %830 = vperm.xlu0 %829, %v386
      %v831 = vpop.permute.xlu0 %830
      %834 = vset.pattern.permute.xlu0 0
      %835 = vperm.xlu0 %834, %v387
      %v836 = vpop.permute.xlu0 %835
      %839 = vset.pattern.permute.xlu0 0
      %840 = vperm.xlu0 %839, %v388
      %v841 = vpop.permute.xlu0 %840
      %844 = vset.pattern.permute.xlu0 0
      %845 = vperm.xlu0 %844, %v389
      %v846 = vpop.permute.xlu0 %845
      %849 = vset.pattern.permute.xlu0 0
      %850 = vperm.xlu0 %849, %v390
      %v851 = vpop.permute.xlu0 %850
      %854 = vset.pattern.permute.xlu0 0
      %855 = vperm.xlu0 %854, %v391
      %v856 = vpop.permute.xlu0 %855
      %859 = vset.pattern.permute.xlu0 0
      %860 = vperm.xlu0 %859, %v392
      %v861 = vpop.permute.xlu0 %860
      %864 = vset.pattern.permute.xlu0 0
      %865 = vperm.xlu0 %864, %v393
      %v866 = vpop.permute.xlu0 %865
      %869 = vset.pattern.permute.xlu0 0
      %870 = vperm.xlu0 %869, %v394
      %v871 = vpop.permute.xlu0 %870
      %874 = vset.pattern.permute.xlu0 0
      %875 = vperm.xlu0 %874, %v395
      %v876 = vpop.permute.xlu0 %875
      %879 = vset.pattern.permute.xlu0 0
      %880 = vperm.xlu0 %879, %v396
      %v881 = vpop.permute.xlu0 %880
      %884 = vset.pattern.permute.xlu0 0
      %885 = vperm.xlu0 %884, %v397
      %v886 = vpop.permute.xlu0 %885
      %889 = vset.pattern.permute.xlu0 0
      %890 = vperm.xlu0 %889, %v398
      %v891 = vpop.permute.xlu0 %890
      %894 = vset.pattern.permute.xlu0 0
      %895 = vperm.xlu0 %894, %v399
      %v896 = vpop.permute.xlu0 %895
      %899 = vset.pattern.permute.xlu0 0
      %900 = vperm.xlu0 %899, %v400
      %v901 = vpop.permute.xlu0 %900
      %904 = vset.pattern.permute.xlu0 0
      %905 = vperm.xlu0 %904, %v401
      %v906 = vpop.permute.xlu0 %905
      %909 = vset.pattern.permute.xlu0 0
      %910 = vperm.xlu0 %909, %v402
      %v911 = vpop.permute.xlu0 %910
      %914 = vset.pattern.permute.xlu0 0
      %915 = vperm.xlu0 %914, %v403
      %v916 = vpop.permute.xlu0 %915
      %919 = vset.pattern.permute.xlu0 0
      %920 = vperm.xlu0 %919, %v404
      %v921 = vpop.permute.xlu0 %920
      %924 = vset.pattern.permute.xlu0 0
      %925 = vperm.xlu0 %924, %v405
      %v926 = vpop.permute.xlu0 %925
      %929 = vset.pattern.permute.xlu0 0
      %930 = vperm.xlu0 %929, %v406
      %v931 = vpop.permute.xlu0 %930
      %934 = vset.pattern.permute.xlu0 0
      %935 = vperm.xlu0 %934, %v407
      %v936 = vpop.permute.xlu0 %935
      %939 = vset.pattern.permute.xlu0 0
      %940 = vperm.xlu0 %939, %v408
      %v941 = vpop.permute.xlu0 %940
      %944 = vset.pattern.permute.xlu0 0
      %945 = vperm.xlu0 %944, %v409
      %v946 = vpop.permute.xlu0 %945
      %949 = vset.pattern.permute.xlu0 0
      %950 = vperm.xlu0 %949, %v410
      %v951 = vpop.permute.xlu0 %950
      %954 = vset.pattern.permute.xlu0 0
      %955 = vperm.xlu0 %954, %v411
      %v956 = vpop.permute.xlu0 %955
      %959 = vset.pattern.permute.xlu0 0
      %960 = vperm.xlu0 %959, %v412
      %v961 = vpop.permute.xlu0 %960
      %964 = vset.pattern.permute.xlu0 0
      %965 = vperm.xlu0 %964, %v413
      %v966 = vpop.permute.xlu0 %965
      %969 = vset.pattern.permute.xlu0 0
      %970 = vperm.xlu0 %969, %v414
      %v971 = vpop.permute.xlu0 %970
      %974 = vset.pattern.permute.xlu0 0
      %975 = vperm.xlu0 %974, %v415
      %v976 = vpop.permute.xlu0 %975
      %979 = vset.pattern.permute.xlu0 0
      %980 = vperm.xlu0 %979, %v416
      %v981 = vpop.permute.xlu0 %980
      %984 = vset.pattern.permute.xlu0 0
      %985 = vperm.xlu0 %984, %v417
      %v986 = vpop.permute.xlu0 %985
      %989 = vset.pattern.permute.xlu0 0
      %990 = vperm.xlu0 %989, %v418
      %v991 = vpop.permute.xlu0 %990
      %994 = vset.pattern.permute.xlu0 0
      %995 = vperm.xlu0 %994, %v419
      %v996 = vpop.permute.xlu0 %995
      %999 = vset.pattern.permute.xlu0 0
      %1000 = vperm.xlu0 %999, %v420
      %v1001 = vpop.permute.xlu0 %1000
      %1004 = vset.pattern.permute.xlu0 0
      %1005 = vperm.xlu0 %1004, %v421
      %v1006 = vpop.permute.xlu0 %1005
      %1009 = vset.pattern.permute.xlu0 0
      %1010 = vperm.xlu0 %1009, %v422
      %v1011 = vpop.permute.xlu0 %1010
      %1014 = vset.pattern.permute.xlu0 0
      %1015 = vperm.xlu0 %1014, %v423
      %v1016 = vpop.permute.xlu0 %1015
      %1019 = vset.pattern.permute.xlu0 0
      %1020 = vperm.xlu0 %1019, %v424
      %v1021 = vpop.permute.xlu0 %1020
      %1024 = vset.pattern.permute.xlu0 0
      %1025 = vperm.xlu0 %1024, %v425
      %v1026 = vpop.permute.xlu0 %1025
      %1029 = vset.pattern.permute.xlu0 0
      %1030 = vperm.xlu0 %1029, %v426
      %v1031 = vpop.permute.xlu0 %1030
      %1034 = vset.pattern.permute.xlu0 0
      %1035 = vperm.xlu0 %1034, %v427
      %v1036 = vpop.permute.xlu0 %1035
      %1039 = vset.pattern.permute.xlu0 0
      %1040 = vperm.xlu0 %1039, %v428
      %v1041 = vpop.permute.xlu0 %1040
      %1044 = vset.pattern.permute.xlu0 0
      %1045 = vperm.xlu0 %1044, %v429
      %v1046 = vpop.permute.xlu0 %1045
      %1049 = vset.pattern.permute.xlu0 0
      %1050 = vperm.xlu0 %1049, %v430
      %v1051 = vpop.permute.xlu0 %1050
      %1054 = vset.pattern.permute.xlu0 0
      %1055 = vperm.xlu0 %1054, %v431
      %v1056 = vpop.permute.xlu0 %1055
      %1059 = vset.pattern.permute.xlu0 0
      %1060 = vperm.xlu0 %1059, %v432
      %v1061 = vpop.permute.xlu0 %1060
      %1064 = vset.pattern.permute.xlu0 0
      %1065 = vperm.xlu0 %1064, %v433
      %v1066 = vpop.permute.xlu0 %1065
      %1069 = vset.pattern.permute.xlu0 0
      %1070 = vperm.xlu0 %1069, %v434
      %v1071 = vpop.permute.xlu0 %1070
      %1074 = vset.pattern.permute.xlu0 0
      %1075 = vperm.xlu0 %1074, %v435
      %v1076 = vpop.permute.xlu0 %1075
      %v1078 = vlaneseq
      %v1079 = vshrl.u32 %v1078, 7
      %v1080 = vsub.s32 0, %v1079
      %v1081 = vrot.slane %v437, %v1080
      %v1082 = vmul.f32 %v441, %v1081
      %v1083 = vmul.f32 %v446, %v1081
      %v1084 = vmul.f32 %v451, %v1081
      %v1085 = vmul.f32 %v456, %v1081
      %v1086 = vmul.f32 %v461, %v1081
      %v1087 = vmul.f32 %v466, %v1081
      %v1088 = vmul.f32 %v471, %v1081
      %v1089 = vmul.f32 %v476, %v1081
      %v1090 = vmul.f32 %v481, %v1081
      %v1091 = vmul.f32 %v486, %v1081
      %v1092 = vmul.f32 %v491, %v1081
      %v1093 = vmul.f32 %v496, %v1081
      %v1094 = vmul.f32 %v501, %v1081
      %v1095 = vmul.f32 %v506, %v1081
      %v1096 = vmul.f32 %v511, %v1081
      %v1097 = vmul.f32 %v516, %v1081
      %v1098 = vmul.f32 %v521, %v1081
      %v1099 = vmul.f32 %v526, %v1081
      %v1100 = vmul.f32 %v531, %v1081
      %v1101 = vmul.f32 %v536, %v1081
      %v1102 = vmul.f32 %v541, %v1081
      %v1103 = vmul.f32 %v546, %v1081
      %v1104 = vmul.f32 %v551, %v1081
      %v1105 = vmul.f32 %v556, %v1081
      %v1106 = vmul.f32 %v561, %v1081
      %v1107 = vmul.f32 %v566, %v1081
      %v1108 = vmul.f32 %v571, %v1081
      %v1109 = vmul.f32 %v576, %v1081
      %v1110 = vmul.f32 %v581, %v1081
      %v1111 = vmul.f32 %v586, %v1081
      %v1112 = vmul.f32 %v591, %v1081
      %v1113 = vmul.f32 %v596, %v1081
      %v1114 = vmul.f32 %v601, %v1081
      %v1115 = vmul.f32 %v606, %v1081
      %v1116 = vmul.f32 %v611, %v1081
      %v1117 = vmul.f32 %v616, %v1081
      %v1118 = vmul.f32 %v621, %v1081
      %v1119 = vmul.f32 %v626, %v1081
      %v1120 = vmul.f32 %v631, %v1081
      %v1121 = vmul.f32 %v636, %v1081
      %v1122 = vmul.f32 %v641, %v1081
      %v1123 = vmul.f32 %v646, %v1081
      %v1124 = vmul.f32 %v651, %v1081
      %v1125 = vmul.f32 %v656, %v1081
      %v1126 = vmul.f32 %v661, %v1081
      %v1127 = vmul.f32 %v666, %v1081
      %v1128 = vmul.f32 %v671, %v1081
      %v1129 = vmul.f32 %v676, %v1081
      %v1130 = vmul.f32 %v681, %v1081
      %v1131 = vmul.f32 %v686, %v1081
      %v1132 = vmul.f32 %v691, %v1081
      %v1133 = vmul.f32 %v696, %v1081
      %v1134 = vmul.f32 %v701, %v1081
      %v1135 = vmul.f32 %v706, %v1081
      %v1136 = vmul.f32 %v711, %v1081
      %v1137 = vmul.f32 %v716, %v1081
      %v1138 = vmul.f32 %v721, %v1081
      %v1139 = vmul.f32 %v726, %v1081
      %v1140 = vmul.f32 %v731, %v1081
      %v1141 = vmul.f32 %v736, %v1081
      %v1142 = vmul.f32 %v741, %v1081
      %v1143 = vmul.f32 %v746, %v1081
      %v1144 = vmul.f32 %v751, %v1081
      %v1145 = vmul.f32 %v756, %v1081
      %v1146 = vmul.f32 %v761, %v1081
      %v1147 = vmul.f32 %v766, %v1081
      %v1148 = vmul.f32 %v771, %v1081
      %v1149 = vmul.f32 %v776, %v1081
      %v1150 = vmul.f32 %v781, %v1081
      %v1151 = vmul.f32 %v786, %v1081
      %v1152 = vmul.f32 %v791, %v1081
      %v1153 = vmul.f32 %v796, %v1081
      %v1154 = vmul.f32 %v801, %v1081
      %v1155 = vmul.f32 %v806, %v1081
      %v1156 = vmul.f32 %v811, %v1081
      %v1157 = vmul.f32 %v816, %v1081
      %v1158 = vmul.f32 %v821, %v1081
      %v1159 = vmul.f32 %v826, %v1081
      %v1160 = vmul.f32 %v831, %v1081
      %v1161 = vmul.f32 %v836, %v1081
      %v1162 = vmul.f32 %v841, %v1081
      %v1163 = vmul.f32 %v846, %v1081
      %v1164 = vmul.f32 %v851, %v1081
      %v1165 = vmul.f32 %v856, %v1081
      %v1166 = vmul.f32 %v861, %v1081
      %v1167 = vmul.f32 %v866, %v1081
      %v1168 = vmul.f32 %v871, %v1081
      %v1169 = vmul.f32 %v876, %v1081
      %v1170 = vmul.f32 %v881, %v1081
      %v1171 = vmul.f32 %v886, %v1081
      %v1172 = vmul.f32 %v891, %v1081
      %v1173 = vmul.f32 %v896, %v1081
      %v1174 = vmul.f32 %v901, %v1081
      %v1175 = vmul.f32 %v906, %v1081
      %v1176 = vmul.f32 %v911, %v1081
      %v1177 = vmul.f32 %v916, %v1081
      %v1178 = vmul.f32 %v921, %v1081
      %v1179 = vmul.f32 %v926, %v1081
      %v1180 = vmul.f32 %v931, %v1081
      %v1181 = vmul.f32 %v936, %v1081
      %v1182 = vmul.f32 %v941, %v1081
      %v1183 = vmul.f32 %v946, %v1081
      %v1184 = vmul.f32 %v951, %v1081
      %v1185 = vmul.f32 %v956, %v1081
      %v1186 = vmul.f32 %v961, %v1081
      %v1187 = vmul.f32 %v966, %v1081
      %v1188 = vmul.f32 %v971, %v1081
      %v1189 = vmul.f32 %v976, %v1081
      %v1190 = vmul.f32 %v981, %v1081
      %v1191 = vmul.f32 %v986, %v1081
      %v1192 = vmul.f32 %v991, %v1081
      %v1193 = vmul.f32 %v996, %v1081
      %v1194 = vmul.f32 %v1001, %v1081
      %v1195 = vmul.f32 %v1006, %v1081
      %v1196 = vmul.f32 %v1011, %v1081
      %v1197 = vmul.f32 %v1016, %v1081
      %v1198 = vmul.f32 %v1021, %v1081
      %v1199 = vmul.f32 %v1026, %v1081
      %v1200 = vmul.f32 %v1031, %v1081
      %v1201 = vmul.f32 %v1036, %v1081
      %v1202 = vmul.f32 %v1041, %v1081
      %v1203 = vmul.f32 %v1046, %v1081
      %v1204 = vmul.f32 %v1051, %v1081
      %v1205 = vmul.f32 %v1056, %v1081
      %v1206 = vmul.f32 %v1061, %v1081
      %v1207 = vmul.f32 %v1066, %v1081
      %v1208 = vmul.f32 %v1071, %v1081
      %v1209 = vmul.f32 %v1076, %v1081
      %v1211 = vlaneseq
      %v1212 = vshrl.u32 %v1211, 7
      %v1213 = vsub.s32 0, %v1212
      %v1214 = vrot.slane %v436, %v1213
      %v1216 = vadd.f32 %v1214, %v1082
      %v1217 = vadd.f32 %v1214, %v1083
      %v1218 = vadd.f32 %v1214, %v1084
      %v1219 = vadd.f32 %v1214, %v1085
      %v1220 = vadd.f32 %v1214, %v1086
      %v1221 = vadd.f32 %v1214, %v1087
      %v1222 = vadd.f32 %v1214, %v1088
      %v1223 = vadd.f32 %v1214, %v1089
      %v1224 = vadd.f32 %v1214, %v1090
      %v1225 = vadd.f32 %v1214, %v1091
      %v1226 = vadd.f32 %v1214, %v1092
      %v1227 = vadd.f32 %v1214, %v1093
      %v1228 = vadd.f32 %v1214, %v1094
      %v1229 = vadd.f32 %v1214, %v1095
      %v1230 = vadd.f32 %v1214, %v1096
      %v1231 = vadd.f32 %v1214, %v1097
      %v1232 = vadd.f32 %v1214, %v1098
      %v1233 = vadd.f32 %v1214, %v1099
      %v1234 = vadd.f32 %v1214, %v1100
      %v1235 = vadd.f32 %v1214, %v1101
      %v1236 = vadd.f32 %v1214, %v1102
      %v1237 = vadd.f32 %v1214, %v1103
      %v1238 = vadd.f32 %v1214, %v1104
      %v1239 = vadd.f32 %v1214, %v1105
      %v1240 = vadd.f32 %v1214, %v1106
      %v1241 = vadd.f32 %v1214, %v1107
      %v1242 = vadd.f32 %v1214, %v1108
      %v1243 = vadd.f32 %v1214, %v1109
      %v1244 = vadd.f32 %v1214, %v1110
      %v1245 = vadd.f32 %v1214, %v1111
      %v1246 = vadd.f32 %v1214, %v1112
      %v1247 = vadd.f32 %v1214, %v1113
      %v1248 = vadd.f32 %v1214, %v1114
      %v1249 = vadd.f32 %v1214, %v1115
      %v1250 = vadd.f32 %v1214, %v1116
      %v1251 = vadd.f32 %v1214, %v1117
      %v1252 = vadd.f32 %v1214, %v1118
      %v1253 = vadd.f32 %v1214, %v1119
      %v1254 = vadd.f32 %v1214, %v1120
      %v1255 = vadd.f32 %v1214, %v1121
      %v1256 = vadd.f32 %v1214, %v1122
      %v1257 = vadd.f32 %v1214, %v1123
      %v1258 = vadd.f32 %v1214, %v1124
      %v1259 = vadd.f32 %v1214, %v1125
      %v1260 = vadd.f32 %v1214, %v1126
      %v1261 = vadd.f32 %v1214, %v1127
      %v1262 = vadd.f32 %v1214, %v1128
      %v1263 = vadd.f32 %v1214, %v1129
      %v1264 = vadd.f32 %v1214, %v1130
      %v1265 = vadd.f32 %v1214, %v1131
      %v1266 = vadd.f32 %v1214, %v1132
      %v1267 = vadd.f32 %v1214, %v1133
      %v1268 = vadd.f32 %v1214, %v1134
      %v1269 = vadd.f32 %v1214, %v1135
      %v1270 = vadd.f32 %v1214, %v1136
      %v1271 = vadd.f32 %v1214, %v1137
      %v1272 = vadd.f32 %v1214, %v1138
      %v1273 = vadd.f32 %v1214, %v1139
      %v1274 = vadd.f32 %v1214, %v1140
      %v1275 = vadd.f32 %v1214, %v1141
      %v1276 = vadd.f32 %v1214, %v1142
      %v1277 = vadd.f32 %v1214, %v1143
      %v1278 = vadd.f32 %v1214, %v1144
      %v1279 = vadd.f32 %v1214, %v1145
      %v1280 = vadd.f32 %v1214, %v1146
      %v1281 = vadd.f32 %v1214, %v1147
      %v1282 = vadd.f32 %v1214, %v1148
      %v1283 = vadd.f32 %v1214, %v1149
      %v1284 = vadd.f32 %v1214, %v1150
      %v1285 = vadd.f32 %v1214, %v1151
      %v1286 = vadd.f32 %v1214, %v1152
      %v1287 = vadd.f32 %v1214, %v1153
      %v1288 = vadd.f32 %v1214, %v1154
      %v1289 = vadd.f32 %v1214, %v1155
      %v1290 = vadd.f32 %v1214, %v1156
      %v1291 = vadd.f32 %v1214, %v1157
      %v1292 = vadd.f32 %v1214, %v1158
      %v1293 = vadd.f32 %v1214, %v1159
      %v1294 = vadd.f32 %v1214, %v1160
      %v1295 = vadd.f32 %v1214, %v1161
      %v1296 = vadd.f32 %v1214, %v1162
      %v1297 = vadd.f32 %v1214, %v1163
      %v1298 = vadd.f32 %v1214, %v1164
      %v1299 = vadd.f32 %v1214, %v1165
      %v1300 = vadd.f32 %v1214, %v1166
      %v1301 = vadd.f32 %v1214, %v1167
      %v1302 = vadd.f32 %v1214, %v1168
      %v1303 = vadd.f32 %v1214, %v1169
      %v1304 = vadd.f32 %v1214, %v1170
      %v1305 = vadd.f32 %v1214, %v1171
      %v1306 = vadd.f32 %v1214, %v1172
      %v1307 = vadd.f32 %v1214, %v1173
      %v1308 = vadd.f32 %v1214, %v1174
      %v1309 = vadd.f32 %v1214, %v1175
      %v1310 = vadd.f32 %v1214, %v1176
      %v1311 = vadd.f32 %v1214, %v1177
      %v1312 = vadd.f32 %v1214, %v1178
      %v1313 = vadd.f32 %v1214, %v1179
      %v1314 = vadd.f32 %v1214, %v1180
      %v1315 = vadd.f32 %v1214, %v1181
      %v1316 = vadd.f32 %v1214, %v1182
      %v1317 = vadd.f32 %v1214, %v1183
      %v1318 = vadd.f32 %v1214, %v1184
      %v1319 = vadd.f32 %v1214, %v1185
      %v1320 = vadd.f32 %v1214, %v1186
      %v1321 = vadd.f32 %v1214, %v1187
      %v1322 = vadd.f32 %v1214, %v1188
      %v1323 = vadd.f32 %v1214, %v1189
      %v1324 = vadd.f32 %v1214, %v1190
      %v1325 = vadd.f32 %v1214, %v1191
      %v1326 = vadd.f32 %v1214, %v1192
      %v1327 = vadd.f32 %v1214, %v1193
      %v1328 = vadd.f32 %v1214, %v1194
      %v1329 = vadd.f32 %v1214, %v1195
      %v1330 = vadd.f32 %v1214, %v1196
      %v1331 = vadd.f32 %v1214, %v1197
      %v1332 = vadd.f32 %v1214, %v1198
      %v1333 = vadd.f32 %v1214, %v1199
      %v1334 = vadd.f32 %v1214, %v1200
      %v1335 = vadd.f32 %v1214, %v1201
      %v1336 = vadd.f32 %v1214, %v1202
      %v1337 = vadd.f32 %v1214, %v1203
      %v1338 = vadd.f32 %v1214, %v1204
      %v1339 = vadd.f32 %v1214, %v1205
      %v1340 = vadd.f32 %v1214, %v1206
      %v1341 = vadd.f32 %v1214, %v1207
      %v1342 = vadd.f32 %v1214, %v1208
      %v1343 = vadd.f32 %v1214, %v1209
      %v1344 = vld [vmem:[%s1 + $0x1] sm:$0x1]
      %1345 = vset.pattern.permute.xlu0 1
      %1346 = vperm.xlu0 %1345, %v308
      %v1347 = vpop.permute.xlu0 %1346
      %1349 = vset.pattern.permute.xlu0 1
      %1350 = vperm.xlu0 %1349, %v309
      %v1351 = vpop.permute.xlu0 %1350
      %1353 = vset.pattern.permute.xlu0 1
      %1354 = vperm.xlu0 %1353, %v310
      %v1355 = vpop.permute.xlu0 %1354
      %1357 = vset.pattern.permute.xlu0 1
      %1358 = vperm.xlu0 %1357, %v311
      %v1359 = vpop.permute.xlu0 %1358
      %1361 = vset.pattern.permute.xlu0 1
      %1362 = vperm.xlu0 %1361, %v312
      %v1363 = vpop.permute.xlu0 %1362
      %1365 = vset.pattern.permute.xlu0 1
      %1366 = vperm.xlu0 %1365, %v313
      %v1367 = vpop.permute.xlu0 %1366
      %1369 = vset.pattern.permute.xlu0 1
      %1370 = vperm.xlu0 %1369, %v314
      %v1371 = vpop.permute.xlu0 %1370
      %1373 = vset.pattern.permute.xlu0 1
      %1374 = vperm.xlu0 %1373, %v315
      %v1375 = vpop.permute.xlu0 %1374
      %1377 = vset.pattern.permute.xlu0 1
      %1378 = vperm.xlu0 %1377, %v316
      %v1379 = vpop.permute.xlu0 %1378
      %1381 = vset.pattern.permute.xlu0 1
      %1382 = vperm.xlu0 %1381, %v317
      %v1383 = vpop.permute.xlu0 %1382
      %1385 = vset.pattern.permute.xlu0 1
      %1386 = vperm.xlu0 %1385, %v318
      %v1387 = vpop.permute.xlu0 %1386
      %1389 = vset.pattern.permute.xlu0 1
      %1390 = vperm.xlu0 %1389, %v319
      %v1391 = vpop.permute.xlu0 %1390
      %1393 = vset.pattern.permute.xlu0 1
      %1394 = vperm.xlu0 %1393, %v320
      %v1395 = vpop.permute.xlu0 %1394
      %1397 = vset.pattern.permute.xlu0 1
      %1398 = vperm.xlu0 %1397, %v321
      %v1399 = vpop.permute.xlu0 %1398
      %1401 = vset.pattern.permute.xlu0 1
      %1402 = vperm.xlu0 %1401, %v322
      %v1403 = vpop.permute.xlu0 %1402
      %1405 = vset.pattern.permute.xlu0 1
      %1406 = vperm.xlu0 %1405, %v323
      %v1407 = vpop.permute.xlu0 %1406
      %1409 = vset.pattern.permute.xlu0 1
      %1410 = vperm.xlu0 %1409, %v324
      %v1411 = vpop.permute.xlu0 %1410
      %1413 = vset.pattern.permute.xlu0 1
      %1414 = vperm.xlu0 %1413, %v325
      %v1415 = vpop.permute.xlu0 %1414
      %1417 = vset.pattern.permute.xlu0 1
      %1418 = vperm.xlu0 %1417, %v326
      %v1419 = vpop.permute.xlu0 %1418
      %1421 = vset.pattern.permute.xlu0 1
      %1422 = vperm.xlu0 %1421, %v327
      %v1423 = vpop.permute.xlu0 %1422
      %1425 = vset.pattern.permute.xlu0 1
      %1426 = vperm.xlu0 %1425, %v328
      %v1427 = vpop.permute.xlu0 %1426
      %1429 = vset.pattern.permute.xlu0 1
      %1430 = vperm.xlu0 %1429, %v329
      %v1431 = vpop.permute.xlu0 %1430
      %1433 = vset.pattern.permute.xlu0 1
      %1434 = vperm.xlu0 %1433, %v330
      %v1435 = vpop.permute.xlu0 %1434
      %1437 = vset.pattern.permute.xlu0 1
      %1438 = vperm.xlu0 %1437, %v331
      %v1439 = vpop.permute.xlu0 %1438
      %1441 = vset.pattern.permute.xlu0 1
      %1442 = vperm.xlu0 %1441, %v332
      %v1443 = vpop.permute.xlu0 %1442
      %1445 = vset.pattern.permute.xlu0 1
      %1446 = vperm.xlu0 %1445, %v333
      %v1447 = vpop.permute.xlu0 %1446
      %1449 = vset.pattern.permute.xlu0 1
      %1450 = vperm.xlu0 %1449, %v334
      %v1451 = vpop.permute.xlu0 %1450
      %1453 = vset.pattern.permute.xlu0 1
      %1454 = vperm.xlu0 %1453, %v335
      %v1455 = vpop.permute.xlu0 %1454
      %1457 = vset.pattern.permute.xlu0 1
      %1458 = vperm.xlu0 %1457, %v336
      %v1459 = vpop.permute.xlu0 %1458
      %1461 = vset.pattern.permute.xlu0 1
      %1462 = vperm.xlu0 %1461, %v337
      %v1463 = vpop.permute.xlu0 %1462
      %1465 = vset.pattern.permute.xlu0 1
      %1466 = vperm.xlu0 %1465, %v338
      %v1467 = vpop.permute.xlu0 %1466
      %1469 = vset.pattern.permute.xlu0 1
      %1470 = vperm.xlu0 %1469, %v339
      %v1471 = vpop.permute.xlu0 %1470
      %1473 = vset.pattern.permute.xlu0 1
      %1474 = vperm.xlu0 %1473, %v340
      %v1475 = vpop.permute.xlu0 %1474
      %1477 = vset.pattern.permute.xlu0 1
      %1478 = vperm.xlu0 %1477, %v341
      %v1479 = vpop.permute.xlu0 %1478
      %1481 = vset.pattern.permute.xlu0 1
      %1482 = vperm.xlu0 %1481, %v342
      %v1483 = vpop.permute.xlu0 %1482
      %1485 = vset.pattern.permute.xlu0 1
      %1486 = vperm.xlu0 %1485, %v343
      %v1487 = vpop.permute.xlu0 %1486
      %1489 = vset.pattern.permute.xlu0 1
      %1490 = vperm.xlu0 %1489, %v344
      %v1491 = vpop.permute.xlu0 %1490
      %1493 = vset.pattern.permute.xlu0 1
      %1494 = vperm.xlu0 %1493, %v345
      %v1495 = vpop.permute.xlu0 %1494
      %1497 = vset.pattern.permute.xlu0 1
      %1498 = vperm.xlu0 %1497, %v346
      %v1499 = vpop.permute.xlu0 %1498
      %1501 = vset.pattern.permute.xlu0 1
      %1502 = vperm.xlu0 %1501, %v347
      %v1503 = vpop.permute.xlu0 %1502
      %1505 = vset.pattern.permute.xlu0 1
      %1506 = vperm.xlu0 %1505, %v348
      %v1507 = vpop.permute.xlu0 %1506
      %1509 = vset.pattern.permute.xlu0 1
      %1510 = vperm.xlu0 %1509, %v349
      %v1511 = vpop.permute.xlu0 %1510
      %1513 = vset.pattern.permute.xlu0 1
      %1514 = vperm.xlu0 %1513, %v350
      %v1515 = vpop.permute.xlu0 %1514
      %1517 = vset.pattern.permute.xlu0 1
      %1518 = vperm.xlu0 %1517, %v351
      %v1519 = vpop.permute.xlu0 %1518
      %1521 = vset.pattern.permute.xlu0 1
      %1522 = vperm.xlu0 %1521, %v352
      %v1523 = vpop.permute.xlu0 %1522
      %1525 = vset.pattern.permute.xlu0 1
      %1526 = vperm.xlu0 %1525, %v353
      %v1527 = vpop.permute.xlu0 %1526
      %1529 = vset.pattern.permute.xlu0 1
      %1530 = vperm.xlu0 %1529, %v354
      %v1531 = vpop.permute.xlu0 %1530
      %1533 = vset.pattern.permute.xlu0 1
      %1534 = vperm.xlu0 %1533, %v355
      %v1535 = vpop.permute.xlu0 %1534
      %1537 = vset.pattern.permute.xlu0 1
      %1538 = vperm.xlu0 %1537, %v356
      %v1539 = vpop.permute.xlu0 %1538
      %1541 = vset.pattern.permute.xlu0 1
      %1542 = vperm.xlu0 %1541, %v357
      %v1543 = vpop.permute.xlu0 %1542
      %1545 = vset.pattern.permute.xlu0 1
      %1546 = vperm.xlu0 %1545, %v358
      %v1547 = vpop.permute.xlu0 %1546
      %1549 = vset.pattern.permute.xlu0 1
      %1550 = vperm.xlu0 %1549, %v359
      %v1551 = vpop.permute.xlu0 %1550
      %1553 = vset.pattern.permute.xlu0 1
      %1554 = vperm.xlu0 %1553, %v360
      %v1555 = vpop.permute.xlu0 %1554
      %1557 = vset.pattern.permute.xlu0 1
      %1558 = vperm.xlu0 %1557, %v361
      %v1559 = vpop.permute.xlu0 %1558
      %1561 = vset.pattern.permute.xlu0 1
      %1562 = vperm.xlu0 %1561, %v362
      %v1563 = vpop.permute.xlu0 %1562
      %1565 = vset.pattern.permute.xlu0 1
      %1566 = vperm.xlu0 %1565, %v363
      %v1567 = vpop.permute.xlu0 %1566
      %1569 = vset.pattern.permute.xlu0 1
      %1570 = vperm.xlu0 %1569, %v364
      %v1571 = vpop.permute.xlu0 %1570
      %1573 = vset.pattern.permute.xlu0 1
      %1574 = vperm.xlu0 %1573, %v365
      %v1575 = vpop.permute.xlu0 %1574
      %1577 = vset.pattern.permute.xlu0 1
      %1578 = vperm.xlu0 %1577, %v366
      %v1579 = vpop.permute.xlu0 %1578
      %1581 = vset.pattern.permute.xlu0 1
      %1582 = vperm.xlu0 %1581, %v367
      %v1583 = vpop.permute.xlu0 %1582
      %1585 = vset.pattern.permute.xlu0 1
      %1586 = vperm.xlu0 %1585, %v368
      %v1587 = vpop.permute.xlu0 %1586
      %1589 = vset.pattern.permute.xlu0 1
      %1590 = vperm.xlu0 %1589, %v369
      %v1591 = vpop.permute.xlu0 %1590
      %1593 = vset.pattern.permute.xlu0 1
      %1594 = vperm.xlu0 %1593, %v370
      %v1595 = vpop.permute.xlu0 %1594
      %1597 = vset.pattern.permute.xlu0 1
      %1598 = vperm.xlu0 %1597, %v371
      %v1599 = vpop.permute.xlu0 %1598
      %1601 = vset.pattern.permute.xlu0 1
      %1602 = vperm.xlu0 %1601, %v372
      %v1603 = vpop.permute.xlu0 %1602
      %1605 = vset.pattern.permute.xlu0 1
      %1606 = vperm.xlu0 %1605, %v373
      %v1607 = vpop.permute.xlu0 %1606
      %1609 = vset.pattern.permute.xlu0 1
      %1610 = vperm.xlu0 %1609, %v374
      %v1611 = vpop.permute.xlu0 %1610
      %1613 = vset.pattern.permute.xlu0 1
      %1614 = vperm.xlu0 %1613, %v375
      %v1615 = vpop.permute.xlu0 %1614
      %1617 = vset.pattern.permute.xlu0 1
      %1618 = vperm.xlu0 %1617, %v376
      %v1619 = vpop.permute.xlu0 %1618
      %1621 = vset.pattern.permute.xlu0 1
      %1622 = vperm.xlu0 %1621, %v377
      %v1623 = vpop.permute.xlu0 %1622
      %1625 = vset.pattern.permute.xlu0 1
      %1626 = vperm.xlu0 %1625, %v378
      %v1627 = vpop.permute.xlu0 %1626
      %1629 = vset.pattern.permute.xlu0 1
      %1630 = vperm.xlu0 %1629, %v379
      %v1631 = vpop.permute.xlu0 %1630
      %1633 = vset.pattern.permute.xlu0 1
      %1634 = vperm.xlu0 %1633, %v380
      %v1635 = vpop.permute.xlu0 %1634
      %1637 = vset.pattern.permute.xlu0 1
      %1638 = vperm.xlu0 %1637, %v381
      %v1639 = vpop.permute.xlu0 %1638
      %1641 = vset.pattern.permute.xlu0 1
      %1642 = vperm.xlu0 %1641, %v382
      %v1643 = vpop.permute.xlu0 %1642
      %1645 = vset.pattern.permute.xlu0 1
      %1646 = vperm.xlu0 %1645, %v383
      %v1647 = vpop.permute.xlu0 %1646
      %1649 = vset.pattern.permute.xlu0 1
      %1650 = vperm.xlu0 %1649, %v384
      %v1651 = vpop.permute.xlu0 %1650
      %1653 = vset.pattern.permute.xlu0 1
      %1654 = vperm.xlu0 %1653, %v385
      %v1655 = vpop.permute.xlu0 %1654
      %1657 = vset.pattern.permute.xlu0 1
      %1658 = vperm.xlu0 %1657, %v386
      %v1659 = vpop.permute.xlu0 %1658
      %1661 = vset.pattern.permute.xlu0 1
      %1662 = vperm.xlu0 %1661, %v387
      %v1663 = vpop.permute.xlu0 %1662
      %1665 = vset.pattern.permute.xlu0 1
      %1666 = vperm.xlu0 %1665, %v388
      %v1667 = vpop.permute.xlu0 %1666
      %1669 = vset.pattern.permute.xlu0 1
      %1670 = vperm.xlu0 %1669, %v389
      %v1671 = vpop.permute.xlu0 %1670
      %1673 = vset.pattern.permute.xlu0 1
      %1674 = vperm.xlu0 %1673, %v390
      %v1675 = vpop.permute.xlu0 %1674
      %1677 = vset.pattern.permute.xlu0 1
      %1678 = vperm.xlu0 %1677, %v391
      %v1679 = vpop.permute.xlu0 %1678
      %1681 = vset.pattern.permute.xlu0 1
      %1682 = vperm.xlu0 %1681, %v392
      %v1683 = vpop.permute.xlu0 %1682
      %1685 = vset.pattern.permute.xlu0 1
      %1686 = vperm.xlu0 %1685, %v393
      %v1687 = vpop.permute.xlu0 %1686
      %1689 = vset.pattern.permute.xlu0 1
      %1690 = vperm.xlu0 %1689, %v394
      %v1691 = vpop.permute.xlu0 %1690
      %1693 = vset.pattern.permute.xlu0 1
      %1694 = vperm.xlu0 %1693, %v395
      %v1695 = vpop.permute.xlu0 %1694
      %1697 = vset.pattern.permute.xlu0 1
      %1698 = vperm.xlu0 %1697, %v396
      %v1699 = vpop.permute.xlu0 %1698
      %1701 = vset.pattern.permute.xlu0 1
      %1702 = vperm.xlu0 %1701, %v397
      %v1703 = vpop.permute.xlu0 %1702
      %1705 = vset.pattern.permute.xlu0 1
      %1706 = vperm.xlu0 %1705, %v398
      %v1707 = vpop.permute.xlu0 %1706
      %1709 = vset.pattern.permute.xlu0 1
      %1710 = vperm.xlu0 %1709, %v399
      %v1711 = vpop.permute.xlu0 %1710
      %1713 = vset.pattern.permute.xlu0 1
      %1714 = vperm.xlu0 %1713, %v400
      %v1715 = vpop.permute.xlu0 %1714
      %1717 = vset.pattern.permute.xlu0 1
      %1718 = vperm.xlu0 %1717, %v401
      %v1719 = vpop.permute.xlu0 %1718
      %1721 = vset.pattern.permute.xlu0 1
      %1722 = vperm.xlu0 %1721, %v402
      %v1723 = vpop.permute.xlu0 %1722
      %1725 = vset.pattern.permute.xlu0 1
      %1726 = vperm.xlu0 %1725, %v403
      %v1727 = vpop.permute.xlu0 %1726
      %1729 = vset.pattern.permute.xlu0 1
      %1730 = vperm.xlu0 %1729, %v404
      %v1731 = vpop.permute.xlu0 %1730
      %1733 = vset.pattern.permute.xlu0 1
      %1734 = vperm.xlu0 %1733, %v405
      %v1735 = vpop.permute.xlu0 %1734
      %1737 = vset.pattern.permute.xlu0 1
      %1738 = vperm.xlu0 %1737, %v406
      %v1739 = vpop.permute.xlu0 %1738
      %1741 = vset.pattern.permute.xlu0 1
      %1742 = vperm.xlu0 %1741, %v407
      %v1743 = vpop.permute.xlu0 %1742
      %1745 = vset.pattern.permute.xlu0 1
      %1746 = vperm.xlu0 %1745, %v408
      %v1747 = vpop.permute.xlu0 %1746
      %1749 = vset.pattern.permute.xlu0 1
      %1750 = vperm.xlu0 %1749, %v409
      %v1751 = vpop.permute.xlu0 %1750
      %1753 = vset.pattern.permute.xlu0 1
      %1754 = vperm.xlu0 %1753, %v410
      %v1755 = vpop.permute.xlu0 %1754
      %1757 = vset.pattern.permute.xlu0 1
      %1758 = vperm.xlu0 %1757, %v411
      %v1759 = vpop.permute.xlu0 %1758
      %1761 = vset.pattern.permute.xlu0 1
      %1762 = vperm.xlu0 %1761, %v412
      %v1763 = vpop.permute.xlu0 %1762
      %1765 = vset.pattern.permute.xlu0 1
      %1766 = vperm.xlu0 %1765, %v413
      %v1767 = vpop.permute.xlu0 %1766
      %1769 = vset.pattern.permute.xlu0 1
      %1770 = vperm.xlu0 %1769, %v414
      %v1771 = vpop.permute.xlu0 %1770
      %1773 = vset.pattern.permute.xlu0 1
      %1774 = vperm.xlu0 %1773, %v415
      %v1775 = vpop.permute.xlu0 %1774
      %1777 = vset.pattern.permute.xlu0 1
      %1778 = vperm.xlu0 %1777, %v416
      %v1779 = vpop.permute.xlu0 %1778
      %1781 = vset.pattern.permute.xlu0 1
      %1782 = vperm.xlu0 %1781, %v417
      %v1783 = vpop.permute.xlu0 %1782
      %1785 = vset.pattern.permute.xlu0 1
      %1786 = vperm.xlu0 %1785, %v418
      %v1787 = vpop.permute.xlu0 %1786
      %1789 = vset.pattern.permute.xlu0 1
      %1790 = vperm.xlu0 %1789, %v419
      %v1791 = vpop.permute.xlu0 %1790
      %1793 = vset.pattern.permute.xlu0 1
      %1794 = vperm.xlu0 %1793, %v420
      %v1795 = vpop.permute.xlu0 %1794
      %1797 = vset.pattern.permute.xlu0 1
      %1798 = vperm.xlu0 %1797, %v421
      %v1799 = vpop.permute.xlu0 %1798
      %1801 = vset.pattern.permute.xlu0 1
      %1802 = vperm.xlu0 %1801, %v422
      %v1803 = vpop.permute.xlu0 %1802
      %1805 = vset.pattern.permute.xlu0 1
      %1806 = vperm.xlu0 %1805, %v423
      %v1807 = vpop.permute.xlu0 %1806
      %1809 = vset.pattern.permute.xlu0 1
      %1810 = vperm.xlu0 %1809, %v424
      %v1811 = vpop.permute.xlu0 %1810
      %1813 = vset.pattern.permute.xlu0 1
      %1814 = vperm.xlu0 %1813, %v425
      %v1815 = vpop.permute.xlu0 %1814
      %1817 = vset.pattern.permute.xlu0 1
      %1818 = vperm.xlu0 %1817, %v426
      %v1819 = vpop.permute.xlu0 %1818
      %1821 = vset.pattern.permute.xlu0 1
      %1822 = vperm.xlu0 %1821, %v427
      %v1823 = vpop.permute.xlu0 %1822
      %1825 = vset.pattern.permute.xlu0 1
      %1826 = vperm.xlu0 %1825, %v428
      %v1827 = vpop.permute.xlu0 %1826
      %1829 = vset.pattern.permute.xlu0 1
      %1830 = vperm.xlu0 %1829, %v429
      %v1831 = vpop.permute.xlu0 %1830
      %1833 = vset.pattern.permute.xlu0 1
      %1834 = vperm.xlu0 %1833, %v430
      %v1835 = vpop.permute.xlu0 %1834
      %1837 = vset.pattern.permute.xlu0 1
      %1838 = vperm.xlu0 %1837, %v431
      %v1839 = vpop.permute.xlu0 %1838
      %1841 = vset.pattern.permute.xlu0 1
      %1842 = vperm.xlu0 %1841, %v432
      %v1843 = vpop.permute.xlu0 %1842
      %1845 = vset.pattern.permute.xlu0 1
      %1846 = vperm.xlu0 %1845, %v433
      %v1847 = vpop.permute.xlu0 %1846
      %1849 = vset.pattern.permute.xlu0 1
      %1850 = vperm.xlu0 %1849, %v434
      %v1851 = vpop.permute.xlu0 %1850
      %1853 = vset.pattern.permute.xlu0 1
      %1854 = vperm.xlu0 %1853, %v435
      %v1855 = vpop.permute.xlu0 %1854
      %v1857 = vlaneseq
      %v1858 = vshrl.u32 %v1857, 7
      %v1859 = vsub.s32 0, %v1858
      %v1860 = vrot.slane %v1344, %v1859
      %v1861 = vmul.f32 %v1347, %v1860
      %v1862 = vmul.f32 %v1351, %v1860
      %v1863 = vmul.f32 %v1355, %v1860
      %v1864 = vmul.f32 %v1359, %v1860
      %v1865 = vmul.f32 %v1363, %v1860
      %v1866 = vmul.f32 %v1367, %v1860
      %v1867 = vmul.f32 %v1371, %v1860
      %v1868 = vmul.f32 %v1375, %v1860
      %v1869 = vmul.f32 %v1379, %v1860
      %v1870 = vmul.f32 %v1383, %v1860
      %v1871 = vmul.f32 %v1387, %v1860
      %v1872 = vmul.f32 %v1391, %v1860
      %v1873 = vmul.f32 %v1395, %v1860
      %v1874 = vmul.f32 %v1399, %v1860
      %v1875 = vmul.f32 %v1403, %v1860
      %v1876 = vmul.f32 %v1407, %v1860
      %v1877 = vmul.f32 %v1411, %v1860
      %v1878 = vmul.f32 %v1415, %v1860
      %v1879 = vmul.f32 %v1419, %v1860
      %v1880 = vmul.f32 %v1423, %v1860
      %v1881 = vmul.f32 %v1427, %v1860
      %v1882 = vmul.f32 %v1431, %v1860
      %v1883 = vmul.f32 %v1435, %v1860
      %v1884 = vmul.f32 %v1439, %v1860
      %v1885 = vmul.f32 %v1443, %v1860
      %v1886 = vmul.f32 %v1447, %v1860
      %v1887 = vmul.f32 %v1451, %v1860
      %v1888 = vmul.f32 %v1455, %v1860
      %v1889 = vmul.f32 %v1459, %v1860
      %v1890 = vmul.f32 %v1463, %v1860
      %v1891 = vmul.f32 %v1467, %v1860
      %v1892 = vmul.f32 %v1471, %v1860
      %v1893 = vmul.f32 %v1475, %v1860
      %v1894 = vmul.f32 %v1479, %v1860
      %v1895 = vmul.f32 %v1483, %v1860
      %v1896 = vmul.f32 %v1487, %v1860
      %v1897 = vmul.f32 %v1491, %v1860
      %v1898 = vmul.f32 %v1495, %v1860
      %v1899 = vmul.f32 %v1499, %v1860
      %v1900 = vmul.f32 %v1503, %v1860
      %v1901 = vmul.f32 %v1507, %v1860
      %v1902 = vmul.f32 %v1511, %v1860
      %v1903 = vmul.f32 %v1515, %v1860
      %v1904 = vmul.f32 %v1519, %v1860
      %v1905 = vmul.f32 %v1523, %v1860
      %v1906 = vmul.f32 %v1527, %v1860
      %v1907 = vmul.f32 %v1531, %v1860
      %v1908 = vmul.f32 %v1535, %v1860
      %v1909 = vmul.f32 %v1539, %v1860
      %v1910 = vmul.f32 %v1543, %v1860
      %v1911 = vmul.f32 %v1547, %v1860
      %v1912 = vmul.f32 %v1551, %v1860
      %v1913 = vmul.f32 %v1555, %v1860
      %v1914 = vmul.f32 %v1559, %v1860
      %v1915 = vmul.f32 %v1563, %v1860
      %v1916 = vmul.f32 %v1567, %v1860
      %v1917 = vmul.f32 %v1571, %v1860
      %v1918 = vmul.f32 %v1575, %v1860
      %v1919 = vmul.f32 %v1579, %v1860
      %v1920 = vmul.f32 %v1583, %v1860
      %v1921 = vmul.f32 %v1587, %v1860
      %v1922 = vmul.f32 %v1591, %v1860
      %v1923 = vmul.f32 %v1595, %v1860
      %v1924 = vmul.f32 %v1599, %v1860
      %v1925 = vmul.f32 %v1603, %v1860
      %v1926 = vmul.f32 %v1607, %v1860
      %v1927 = vmul.f32 %v1611, %v1860
      %v1928 = vmul.f32 %v1615, %v1860
      %v1929 = vmul.f32 %v1619, %v1860
      %v1930 = vmul.f32 %v1623, %v1860
      %v1931 = vmul.f32 %v1627, %v1860
      %v1932 = vmul.f32 %v1631, %v1860
      %v1933 = vmul.f32 %v1635, %v1860
      %v1934 = vmul.f32 %v1639, %v1860
      %v1935 = vmul.f32 %v1643, %v1860
      %v1936 = vmul.f32 %v1647, %v1860
      %v1937 = vmul.f32 %v1651, %v1860
      %v1938 = vmul.f32 %v1655, %v1860
      %v1939 = vmul.f32 %v1659, %v1860
      %v1940 = vmul.f32 %v1663, %v1860
      %v1941 = vmul.f32 %v1667, %v1860
      %v1942 = vmul.f32 %v1671, %v1860
      %v1943 = vmul.f32 %v1675, %v1860
      %v1944 = vmul.f32 %v1679, %v1860
      %v1945 = vmul.f32 %v1683, %v1860
      %v1946 = vmul.f32 %v1687, %v1860
      %v1947 = vmul.f32 %v1691, %v1860
      %v1948 = vmul.f32 %v1695, %v1860
      %v1949 = vmul.f32 %v1699, %v1860
      %v1950 = vmul.f32 %v1703, %v1860
      %v1951 = vmul.f32 %v1707, %v1860
      %v1952 = vmul.f32 %v1711, %v1860
      %v1953 = vmul.f32 %v1715, %v1860
      %v1954 = vmul.f32 %v1719, %v1860
      %v1955 = vmul.f32 %v1723, %v1860
      %v1956 = vmul.f32 %v1727, %v1860
      %v1957 = vmul.f32 %v1731, %v1860
      %v1958 = vmul.f32 %v1735, %v1860
      %v1959 = vmul.f32 %v1739, %v1860
      %v1960 = vmul.f32 %v1743, %v1860
      %v1961 = vmul.f32 %v1747, %v1860
      %v1962 = vmul.f32 %v1751, %v1860
      %v1963 = vmul.f32 %v1755, %v1860
      %v1964 = vmul.f32 %v1759, %v1860
      %v1965 = vmul.f32 %v1763, %v1860
      %v1966 = vmul.f32 %v1767, %v1860
      %v1967 = vmul.f32 %v1771, %v1860
      %v1968 = vmul.f32 %v1775, %v1860
      %v1969 = vmul.f32 %v1779, %v1860
      %v1970 = vmul.f32 %v1783, %v1860
      %v1971 = vmul.f32 %v1787, %v1860
      %v1972 = vmul.f32 %v1791, %v1860
      %v1973 = vmul.f32 %v1795, %v1860
      %v1974 = vmul.f32 %v1799, %v1860
      %v1975 = vmul.f32 %v1803, %v1860
      %v1976 = vmul.f32 %v1807, %v1860
      %v1977 = vmul.f32 %v1811, %v1860
      %v1978 = vmul.f32 %v1815, %v1860
      %v1979 = vmul.f32 %v1819, %v1860
      %v1980 = vmul.f32 %v1823, %v1860
      %v1981 = vmul.f32 %v1827, %v1860
      %v1982 = vmul.f32 %v1831, %v1860
      %v1983 = vmul.f32 %v1835, %v1860
      %v1984 = vmul.f32 %v1839, %v1860
      %v1985 = vmul.f32 %v1843, %v1860
      %v1986 = vmul.f32 %v1847, %v1860
      %v1987 = vmul.f32 %v1851, %v1860
      %v1988 = vmul.f32 %v1855, %v1860
      %v1989 = vadd.f32 %v1216, %v1861
      %v1990 = vadd.f32 %v1217, %v1862
      %v1991 = vadd.f32 %v1218, %v1863
      %v1992 = vadd.f32 %v1219, %v1864
      %v1993 = vadd.f32 %v1220, %v1865
      %v1994 = vadd.f32 %v1221, %v1866
      %v1995 = vadd.f32 %v1222, %v1867
      %v1996 = vadd.f32 %v1223, %v1868
      %v1997 = vadd.f32 %v1224, %v1869
      %v1998 = vadd.f32 %v1225, %v1870
      %v1999 = vadd.f32 %v1226, %v1871
      %v2000 = vadd.f32 %v1227, %v1872
      %v2001 = vadd.f32 %v1228, %v1873
      %v2002 = vadd.f32 %v1229, %v1874
      %v2003 = vadd.f32 %v1230, %v1875
      %v2004 = vadd.f32 %v1231, %v1876
      %v2005 = vadd.f32 %v1232, %v1877
      %v2006 = vadd.f32 %v1233, %v1878
      %v2007 = vadd.f32 %v1234, %v1879
      %v2008 = vadd.f32 %v1235, %v1880
      %v2009 = vadd.f32 %v1236, %v1881
      %v2010 = vadd.f32 %v1237, %v1882
      %v2011 = vadd.f32 %v1238, %v1883
      %v2012 = vadd.f32 %v1239, %v1884
      %v2013 = vadd.f32 %v1240, %v1885
      %v2014 = vadd.f32 %v1241, %v1886
      %v2015 = vadd.f32 %v1242, %v1887
      %v2016 = vadd.f32 %v1243, %v1888
      %v2017 = vadd.f32 %v1244, %v1889
      %v2018 = vadd.f32 %v1245, %v1890
      %v2019 = vadd.f32 %v1246, %v1891
      %v2020 = vadd.f32 %v1247, %v1892
      %v2021 = vadd.f32 %v1248, %v1893
      %v2022 = vadd.f32 %v1249, %v1894
      %v2023 = vadd.f32 %v1250, %v1895
      %v2024 = vadd.f32 %v1251, %v1896
      %v2025 = vadd.f32 %v1252, %v1897
      %v2026 = vadd.f32 %v1253, %v1898
      %v2027 = vadd.f32 %v1254, %v1899
      %v2028 = vadd.f32 %v1255, %v1900
      %v2029 = vadd.f32 %v1256, %v1901
      %v2030 = vadd.f32 %v1257, %v1902
      %v2031 = vadd.f32 %v1258, %v1903
      %v2032 = vadd.f32 %v1259, %v1904
      %v2033 = vadd.f32 %v1260, %v1905
      %v2034 = vadd.f32 %v1261, %v1906
      %v2035 = vadd.f32 %v1262, %v1907
      %v2036 = vadd.f32 %v1263, %v1908
      %v2037 = vadd.f32 %v1264, %v1909
      %v2038 = vadd.f32 %v1265, %v1910
      %v2039 = vadd.f32 %v1266, %v1911
      %v2040 = vadd.f32 %v1267, %v1912
      %v2041 = vadd.f32 %v1268, %v1913
      %v2042 = vadd.f32 %v1269, %v1914
      %v2043 = vadd.f32 %v1270, %v1915
      %v2044 = vadd.f32 %v1271, %v1916
      %v2045 = vadd.f32 %v1272, %v1917
      %v2046 = vadd.f32 %v1273, %v1918
      %v2047 = vadd.f32 %v1274, %v1919
      %v2048 = vadd.f32 %v1275, %v1920
      %v2049 = vadd.f32 %v1276, %v1921
      %v2050 = vadd.f32 %v1277, %v1922
      %v2051 = vadd.f32 %v1278, %v1923
      %v2052 = vadd.f32 %v1279, %v1924
      %v2053 = vadd.f32 %v1280, %v1925
      %v2054 = vadd.f32 %v1281, %v1926
      %v2055 = vadd.f32 %v1282, %v1927
      %v2056 = vadd.f32 %v1283, %v1928
      %v2057 = vadd.f32 %v1284, %v1929
      %v2058 = vadd.f32 %v1285, %v1930
      %v2059 = vadd.f32 %v1286, %v1931
      %v2060 = vadd.f32 %v1287, %v1932
      %v2061 = vadd.f32 %v1288, %v1933
      %v2062 = vadd.f32 %v1289, %v1934
      %v2063 = vadd.f32 %v1290, %v1935
      %v2064 = vadd.f32 %v1291, %v1936
      %v2065 = vadd.f32 %v1292, %v1937
      %v2066 = vadd.f32 %v1293, %v1938
      %v2067 = vadd.f32 %v1294, %v1939
      %v2068 = vadd.f32 %v1295, %v1940
      %v2069 = vadd.f32 %v1296, %v1941
      %v2070 = vadd.f32 %v1297, %v1942
      %v2071 = vadd.f32 %v1298, %v1943
      %v2072 = vadd.f32 %v1299, %v1944
      %v2073 = vadd.f32 %v1300, %v1945
      %v2074 = vadd.f32 %v1301, %v1946
      %v2075 = vadd.f32 %v1302, %v1947
      %v2076 = vadd.f32 %v1303, %v1948
      %v2077 = vadd.f32 %v1304, %v1949
      %v2078 = vadd.f32 %v1305, %v1950
      %v2079 = vadd.f32 %v1306, %v1951
      %v2080 = vadd.f32 %v1307, %v1952
      %v2081 = vadd.f32 %v1308, %v1953
      %v2082 = vadd.f32 %v1309, %v1954
      %v2083 = vadd.f32 %v1310, %v1955
      %v2084 = vadd.f32 %v1311, %v1956
      %v2085 = vadd.f32 %v1312, %v1957
      %v2086 = vadd.f32 %v1313, %v1958
      %v2087 = vadd.f32 %v1314, %v1959
      %v2088 = vadd.f32 %v1315, %v1960
      %v2089 = vadd.f32 %v1316, %v1961
      %v2090 = vadd.f32 %v1317, %v1962
      %v2091 = vadd.f32 %v1318, %v1963
      %v2092 = vadd.f32 %v1319, %v1964
      %v2093 = vadd.f32 %v1320, %v1965
      %v2094 = vadd.f32 %v1321, %v1966
      %v2095 = vadd.f32 %v1322, %v1967
      %v2096 = vadd.f32 %v1323, %v1968
      %v2097 = vadd.f32 %v1324, %v1969
      %v2098 = vadd.f32 %v1325, %v1970
      %v2099 = vadd.f32 %v1326, %v1971
      %v2100 = vadd.f32 %v1327, %v1972
      %v2101 = vadd.f32 %v1328, %v1973
      %v2102 = vadd.f32 %v1329, %v1974
      %v2103 = vadd.f32 %v1330, %v1975
      %v2104 = vadd.f32 %v1331, %v1976
      %v2105 = vadd.f32 %v1332, %v1977
      %v2106 = vadd.f32 %v1333, %v1978
      %v2107 = vadd.f32 %v1334, %v1979
      %v2108 = vadd.f32 %v1335, %v1980
      %v2109 = vadd.f32 %v1336, %v1981
      %v2110 = vadd.f32 %v1337, %v1982
      %v2111 = vadd.f32 %v1338, %v1983
      %v2112 = vadd.f32 %v1339, %v1984
      %v2113 = vadd.f32 %v1340, %v1985
      %v2114 = vadd.f32 %v1341, %v1986
      %v2115 = vadd.f32 %v1342, %v1987
      %v2116 = vadd.f32 %v1343, %v1988
      %v2117 = vld [vmem:[%s1 + $0x2] sm:$0x1]
      %2118 = vset.pattern.permute.xlu0 2
      %2119 = vperm.xlu0 %2118, %v308
      %v2120 = vpop.permute.xlu0 %2119
      %2122 = vset.pattern.permute.xlu0 2
      %2123 = vperm.xlu0 %2122, %v309
      %v2124 = vpop.permute.xlu0 %2123
      %2126 = vset.pattern.permute.xlu0 2
      %2127 = vperm.xlu0 %2126, %v310
      %v2128 = vpop.permute.xlu0 %2127
      %2130 = vset.pattern.permute.xlu0 2
      %2131 = vperm.xlu0 %2130, %v311
      %v2132 = vpop.permute.xlu0 %2131
      %2134 = vset.pattern.permute.xlu0 2
      %2135 = vperm.xlu0 %2134, %v312
      %v2136 = vpop.permute.xlu0 %2135
      %2138 = vset.pattern.permute.xlu0 2
      %2139 = vperm.xlu0 %2138, %v313
      %v2140 = vpop.permute.xlu0 %2139
      %2142 = vset.pattern.permute.xlu0 2
      %2143 = vperm.xlu0 %2142, %v314
      %v2144 = vpop.permute.xlu0 %2143
      %2146 = vset.pattern.permute.xlu0 2
      %2147 = vperm.xlu0 %2146, %v315
      %v2148 = vpop.permute.xlu0 %2147
      %2150 = vset.pattern.permute.xlu0 2
      %2151 = vperm.xlu0 %2150, %v316
      %v2152 = vpop.permute.xlu0 %2151
      %2154 = vset.pattern.permute.xlu0 2
      %2155 = vperm.xlu0 %2154, %v317
      %v2156 = vpop.permute.xlu0 %2155
      %2158 = vset.pattern.permute.xlu0 2
      %2159 = vperm.xlu0 %2158, %v318
      %v2160 = vpop.permute.xlu0 %2159
      %2162 = vset.pattern.permute.xlu0 2
      %2163 = vperm.xlu0 %2162, %v319
      %v2164 = vpop.permute.xlu0 %2163
      %2166 = vset.pattern.permute.xlu0 2
      %2167 = vperm.xlu0 %2166, %v320
      %v2168 = vpop.permute.xlu0 %2167
      %2170 = vset.pattern.permute.xlu0 2
      %2171 = vperm.xlu0 %2170, %v321
      %v2172 = vpop.permute.xlu0 %2171
      %2174 = vset.pattern.permute.xlu0 2
      %2175 = vperm.xlu0 %2174, %v322
      %v2176 = vpop.permute.xlu0 %2175
      %2178 = vset.pattern.permute.xlu0 2
      %2179 = vperm.xlu0 %2178, %v323
      %v2180 = vpop.permute.xlu0 %2179
      %2182 = vset.pattern.permute.xlu0 2
      %2183 = vperm.xlu0 %2182, %v324
      %v2184 = vpop.permute.xlu0 %2183
      %2186 = vset.pattern.permute.xlu0 2
      %2187 = vperm.xlu0 %2186, %v325
      %v2188 = vpop.permute.xlu0 %2187
      %2190 = vset.pattern.permute.xlu0 2
      %2191 = vperm.xlu0 %2190, %v326
      %v2192 = vpop.permute.xlu0 %2191
      %2194 = vset.pattern.permute.xlu0 2
      %2195 = vperm.xlu0 %2194, %v327
      %v2196 = vpop.permute.xlu0 %2195
      %2198 = vset.pattern.permute.xlu0 2
      %2199 = vperm.xlu0 %2198, %v328
      %v2200 = vpop.permute.xlu0 %2199
      %2202 = vset.pattern.permute.xlu0 2
      %2203 = vperm.xlu0 %2202, %v329
      %v2204 = vpop.permute.xlu0 %2203
      %2206 = vset.pattern.permute.xlu0 2
      %2207 = vperm.xlu0 %2206, %v330
      %v2208 = vpop.permute.xlu0 %2207
      %2210 = vset.pattern.permute.xlu0 2
      %2211 = vperm.xlu0 %2210, %v331
      %v2212 = vpop.permute.xlu0 %2211
      %2214 = vset.pattern.permute.xlu0 2
      %2215 = vperm.xlu0 %2214, %v332
      %v2216 = vpop.permute.xlu0 %2215
      %2218 = vset.pattern.permute.xlu0 2
      %2219 = vperm.xlu0 %2218, %v333
      %v2220 = vpop.permute.xlu0 %2219
      %2222 = vset.pattern.permute.xlu0 2
      %2223 = vperm.xlu0 %2222, %v334
      %v2224 = vpop.permute.xlu0 %2223
      %2226 = vset.pattern.permute.xlu0 2
      %2227 = vperm.xlu0 %2226, %v335
      %v2228 = vpop.permute.xlu0 %2227
      %2230 = vset.pattern.permute.xlu0 2
      %2231 = vperm.xlu0 %2230, %v336
      %v2232 = vpop.permute.xlu0 %2231
      %2234 = vset.pattern.permute.xlu0 2
      %2235 = vperm.xlu0 %2234, %v337
      %v2236 = vpop.permute.xlu0 %2235
      %2238 = vset.pattern.permute.xlu0 2
      %2239 = vperm.xlu0 %2238, %v338
      %v2240 = vpop.permute.xlu0 %2239
      %2242 = vset.pattern.permute.xlu0 2
      %2243 = vperm.xlu0 %2242, %v339
      %v2244 = vpop.permute.xlu0 %2243
      %2246 = vset.pattern.permute.xlu0 2
      %2247 = vperm.xlu0 %2246, %v340
      %v2248 = vpop.permute.xlu0 %2247
      %2250 = vset.pattern.permute.xlu0 2
      %2251 = vperm.xlu0 %2250, %v341
      %v2252 = vpop.permute.xlu0 %2251
      %2254 = vset.pattern.permute.xlu0 2
      %2255 = vperm.xlu0 %2254, %v342
      %v2256 = vpop.permute.xlu0 %2255
      %2258 = vset.pattern.permute.xlu0 2
      %2259 = vperm.xlu0 %2258, %v343
      %v2260 = vpop.permute.xlu0 %2259
      %2262 = vset.pattern.permute.xlu0 2
      %2263 = vperm.xlu0 %2262, %v344
      %v2264 = vpop.permute.xlu0 %2263
      %2266 = vset.pattern.permute.xlu0 2
      %2267 = vperm.xlu0 %2266, %v345
      %v2268 = vpop.permute.xlu0 %2267
      %2270 = vset.pattern.permute.xlu0 2
      %2271 = vperm.xlu0 %2270, %v346
      %v2272 = vpop.permute.xlu0 %2271
      %2274 = vset.pattern.permute.xlu0 2
      %2275 = vperm.xlu0 %2274, %v347
      %v2276 = vpop.permute.xlu0 %2275
      %2278 = vset.pattern.permute.xlu0 2
      %2279 = vperm.xlu0 %2278, %v348
      %v2280 = vpop.permute.xlu0 %2279
      %2282 = vset.pattern.permute.xlu0 2
      %2283 = vperm.xlu0 %2282, %v349
      %v2284 = vpop.permute.xlu0 %2283
      %2286 = vset.pattern.permute.xlu0 2
      %2287 = vperm.xlu0 %2286, %v350
      %v2288 = vpop.permute.xlu0 %2287
      %2290 = vset.pattern.permute.xlu0 2
      %2291 = vperm.xlu0 %2290, %v351
      %v2292 = vpop.permute.xlu0 %2291
      %2294 = vset.pattern.permute.xlu0 2
      %2295 = vperm.xlu0 %2294, %v352
      %v2296 = vpop.permute.xlu0 %2295
      %2298 = vset.pattern.permute.xlu0 2
      %2299 = vperm.xlu0 %2298, %v353
      %v2300 = vpop.permute.xlu0 %2299
      %2302 = vset.pattern.permute.xlu0 2
      %2303 = vperm.xlu0 %2302, %v354
      %v2304 = vpop.permute.xlu0 %2303
      %2306 = vset.pattern.permute.xlu0 2
      %2307 = vperm.xlu0 %2306, %v355
      %v2308 = vpop.permute.xlu0 %2307
      %2310 = vset.pattern.permute.xlu0 2
      %2311 = vperm.xlu0 %2310, %v356
      %v2312 = vpop.permute.xlu0 %2311
      %2314 = vset.pattern.permute.xlu0 2
      %2315 = vperm.xlu0 %2314, %v357
      %v2316 = vpop.permute.xlu0 %2315
      %2318 = vset.pattern.permute.xlu0 2
      %2319 = vperm.xlu0 %2318, %v358
      %v2320 = vpop.permute.xlu0 %2319
      %2322 = vset.pattern.permute.xlu0 2
      %2323 = vperm.xlu0 %2322, %v359
      %v2324 = vpop.permute.xlu0 %2323
      %2326 = vset.pattern.permute.xlu0 2
      %2327 = vperm.xlu0 %2326, %v360
      %v2328 = vpop.permute.xlu0 %2327
      %2330 = vset.pattern.permute.xlu0 2
      %2331 = vperm.xlu0 %2330, %v361
      %v2332 = vpop.permute.xlu0 %2331
      %2334 = vset.pattern.permute.xlu0 2
      %2335 = vperm.xlu0 %2334, %v362
      %v2336 = vpop.permute.xlu0 %2335
      %2338 = vset.pattern.permute.xlu0 2
      %2339 = vperm.xlu0 %2338, %v363
      %v2340 = vpop.permute.xlu0 %2339
      %2342 = vset.pattern.permute.xlu0 2
      %2343 = vperm.xlu0 %2342, %v364
      %v2344 = vpop.permute.xlu0 %2343
      %2346 = vset.pattern.permute.xlu0 2
      %2347 = vperm.xlu0 %2346, %v365
      %v2348 = vpop.permute.xlu0 %2347
      %2350 = vset.pattern.permute.xlu0 2
      %2351 = vperm.xlu0 %2350, %v366
      %v2352 = vpop.permute.xlu0 %2351
      %2354 = vset.pattern.permute.xlu0 2
      %2355 = vperm.xlu0 %2354, %v367
      %v2356 = vpop.permute.xlu0 %2355
      %2358 = vset.pattern.permute.xlu0 2
      %2359 = vperm.xlu0 %2358, %v368
      %v2360 = vpop.permute.xlu0 %2359
      %2362 = vset.pattern.permute.xlu0 2
      %2363 = vperm.xlu0 %2362, %v369
      %v2364 = vpop.permute.xlu0 %2363
      %2366 = vset.pattern.permute.xlu0 2
      %2367 = vperm.xlu0 %2366, %v370
      %v2368 = vpop.permute.xlu0 %2367
      %2370 = vset.pattern.permute.xlu0 2
      %2371 = vperm.xlu0 %2370, %v371
      %v2372 = vpop.permute.xlu0 %2371
      %2374 = vset.pattern.permute.xlu0 2
      %2375 = vperm.xlu0 %2374, %v372
      %v2376 = vpop.permute.xlu0 %2375
      %2378 = vset.pattern.permute.xlu0 2
      %2379 = vperm.xlu0 %2378, %v373
      %v2380 = vpop.permute.xlu0 %2379
      %2382 = vset.pattern.permute.xlu0 2
      %2383 = vperm.xlu0 %2382, %v374
      %v2384 = vpop.permute.xlu0 %2383
      %2386 = vset.pattern.permute.xlu0 2
      %2387 = vperm.xlu0 %2386, %v375
      %v2388 = vpop.permute.xlu0 %2387
      %2390 = vset.pattern.permute.xlu0 2
      %2391 = vperm.xlu0 %2390, %v376
      %v2392 = vpop.permute.xlu0 %2391
      %2394 = vset.pattern.permute.xlu0 2
      %2395 = vperm.xlu0 %2394, %v377
      %v2396 = vpop.permute.xlu0 %2395
      %2398 = vset.pattern.permute.xlu0 2
      %2399 = vperm.xlu0 %2398, %v378
      %v2400 = vpop.permute.xlu0 %2399
      %2402 = vset.pattern.permute.xlu0 2
      %2403 = vperm.xlu0 %2402, %v379
      %v2404 = vpop.permute.xlu0 %2403
      %2406 = vset.pattern.permute.xlu0 2
      %2407 = vperm.xlu0 %2406, %v380
      %v2408 = vpop.permute.xlu0 %2407
      %2410 = vset.pattern.permute.xlu0 2
      %2411 = vperm.xlu0 %2410, %v381
      %v2412 = vpop.permute.xlu0 %2411
      %2414 = vset.pattern.permute.xlu0 2
      %2415 = vperm.xlu0 %2414, %v382
      %v2416 = vpop.permute.xlu0 %2415
      %2418 = vset.pattern.permute.xlu0 2
      %2419 = vperm.xlu0 %2418, %v383
      %v2420 = vpop.permute.xlu0 %2419
      %2422 = vset.pattern.permute.xlu0 2
      %2423 = vperm.xlu0 %2422, %v384
      %v2424 = vpop.permute.xlu0 %2423
      %2426 = vset.pattern.permute.xlu0 2
      %2427 = vperm.xlu0 %2426, %v385
      %v2428 = vpop.permute.xlu0 %2427
      %2430 = vset.pattern.permute.xlu0 2
      %2431 = vperm.xlu0 %2430, %v386
      %v2432 = vpop.permute.xlu0 %2431
      %2434 = vset.pattern.permute.xlu0 2
      %2435 = vperm.xlu0 %2434, %v387
      %v2436 = vpop.permute.xlu0 %2435
      %2438 = vset.pattern.permute.xlu0 2
      %2439 = vperm.xlu0 %2438, %v388
      %v2440 = vpop.permute.xlu0 %2439
      %2442 = vset.pattern.permute.xlu0 2
      %2443 = vperm.xlu0 %2442, %v389
      %v2444 = vpop.permute.xlu0 %2443
      %2446 = vset.pattern.permute.xlu0 2
      %2447 = vperm.xlu0 %2446, %v390
      %v2448 = vpop.permute.xlu0 %2447
      %2450 = vset.pattern.permute.xlu0 2
      %2451 = vperm.xlu0 %2450, %v391
      %v2452 = vpop.permute.xlu0 %2451
      %2454 = vset.pattern.permute.xlu0 2
      %2455 = vperm.xlu0 %2454, %v392
      %v2456 = vpop.permute.xlu0 %2455
      %2458 = vset.pattern.permute.xlu0 2
      %2459 = vperm.xlu0 %2458, %v393
      %v2460 = vpop.permute.xlu0 %2459
      %2462 = vset.pattern.permute.xlu0 2
      %2463 = vperm.xlu0 %2462, %v394
      %v2464 = vpop.permute.xlu0 %2463
      %2466 = vset.pattern.permute.xlu0 2
      %2467 = vperm.xlu0 %2466, %v395
      %v2468 = vpop.permute.xlu0 %2467
      %2470 = vset.pattern.permute.xlu0 2
      %2471 = vperm.xlu0 %2470, %v396
      %v2472 = vpop.permute.xlu0 %2471
      %2474 = vset.pattern.permute.xlu0 2
      %2475 = vperm.xlu0 %2474, %v397
      %v2476 = vpop.permute.xlu0 %2475
      %2478 = vset.pattern.permute.xlu0 2
      %2479 = vperm.xlu0 %2478, %v398
      %v2480 = vpop.permute.xlu0 %2479
      %2482 = vset.pattern.permute.xlu0 2
      %2483 = vperm.xlu0 %2482, %v399
      %v2484 = vpop.permute.xlu0 %2483
      %2486 = vset.pattern.permute.xlu0 2
      %2487 = vperm.xlu0 %2486, %v400
      %v2488 = vpop.permute.xlu0 %2487
      %2490 = vset.pattern.permute.xlu0 2
      %2491 = vperm.xlu0 %2490, %v401
      %v2492 = vpop.permute.xlu0 %2491
      %2494 = vset.pattern.permute.xlu0 2
      %2495 = vperm.xlu0 %2494, %v402
      %v2496 = vpop.permute.xlu0 %2495
      %2498 = vset.pattern.permute.xlu0 2
      %2499 = vperm.xlu0 %2498, %v403
      %v2500 = vpop.permute.xlu0 %2499
      %2502 = vset.pattern.permute.xlu0 2
      %2503 = vperm.xlu0 %2502, %v404
      %v2504 = vpop.permute.xlu0 %2503
      %2506 = vset.pattern.permute.xlu0 2
      %2507 = vperm.xlu0 %2506, %v405
      %v2508 = vpop.permute.xlu0 %2507
      %2510 = vset.pattern.permute.xlu0 2
      %2511 = vperm.xlu0 %2510, %v406
      %v2512 = vpop.permute.xlu0 %2511
      %2514 = vset.pattern.permute.xlu0 2
      %2515 = vperm.xlu0 %2514, %v407
      %v2516 = vpop.permute.xlu0 %2515
      %2518 = vset.pattern.permute.xlu0 2
      %2519 = vperm.xlu0 %2518, %v408
      %v2520 = vpop.permute.xlu0 %2519
      %2522 = vset.pattern.permute.xlu0 2
      %2523 = vperm.xlu0 %2522, %v409
      %v2524 = vpop.permute.xlu0 %2523
      %2526 = vset.pattern.permute.xlu0 2
      %2527 = vperm.xlu0 %2526, %v410
      %v2528 = vpop.permute.xlu0 %2527
      %2530 = vset.pattern.permute.xlu0 2
      %2531 = vperm.xlu0 %2530, %v411
      %v2532 = vpop.permute.xlu0 %2531
      %2534 = vset.pattern.permute.xlu0 2
      %2535 = vperm.xlu0 %2534, %v412
      %v2536 = vpop.permute.xlu0 %2535
      %2538 = vset.pattern.permute.xlu0 2
      %2539 = vperm.xlu0 %2538, %v413
      %v2540 = vpop.permute.xlu0 %2539
      %2542 = vset.pattern.permute.xlu0 2
      %2543 = vperm.xlu0 %2542, %v414
      %v2544 = vpop.permute.xlu0 %2543
      %2546 = vset.pattern.permute.xlu0 2
      %2547 = vperm.xlu0 %2546, %v415
      %v2548 = vpop.permute.xlu0 %2547
      %2550 = vset.pattern.permute.xlu0 2
      %2551 = vperm.xlu0 %2550, %v416
      %v2552 = vpop.permute.xlu0 %2551
      %2554 = vset.pattern.permute.xlu0 2
      %2555 = vperm.xlu0 %2554, %v417
      %v2556 = vpop.permute.xlu0 %2555
      %2558 = vset.pattern.permute.xlu0 2
      %2559 = vperm.xlu0 %2558, %v418
      %v2560 = vpop.permute.xlu0 %2559
      %2562 = vset.pattern.permute.xlu0 2
      %2563 = vperm.xlu0 %2562, %v419
      %v2564 = vpop.permute.xlu0 %2563
      %2566 = vset.pattern.permute.xlu0 2
      %2567 = vperm.xlu0 %2566, %v420
      %v2568 = vpop.permute.xlu0 %2567
      %2570 = vset.pattern.permute.xlu0 2
      %2571 = vperm.xlu0 %2570, %v421
      %v2572 = vpop.permute.xlu0 %2571
      %2574 = vset.pattern.permute.xlu0 2
      %2575 = vperm.xlu0 %2574, %v422
      %v2576 = vpop.permute.xlu0 %2575
      %2578 = vset.pattern.permute.xlu0 2
      %2579 = vperm.xlu0 %2578, %v423
      %v2580 = vpop.permute.xlu0 %2579
      %2582 = vset.pattern.permute.xlu0 2
      %2583 = vperm.xlu0 %2582, %v424
      %v2584 = vpop.permute.xlu0 %2583
      %2586 = vset.pattern.permute.xlu0 2
      %2587 = vperm.xlu0 %2586, %v425
      %v2588 = vpop.permute.xlu0 %2587
      %2590 = vset.pattern.permute.xlu0 2
      %2591 = vperm.xlu0 %2590, %v426
      %v2592 = vpop.permute.xlu0 %2591
      %2594 = vset.pattern.permute.xlu0 2
      %2595 = vperm.xlu0 %2594, %v427
      %v2596 = vpop.permute.xlu0 %2595
      %2598 = vset.pattern.permute.xlu0 2
      %2599 = vperm.xlu0 %2598, %v428
      %v2600 = vpop.permute.xlu0 %2599
      %2602 = vset.pattern.permute.xlu0 2
      %2603 = vperm.xlu0 %2602, %v429
      %v2604 = vpop.permute.xlu0 %2603
      %2606 = vset.pattern.permute.xlu0 2
      %2607 = vperm.xlu0 %2606, %v430
      %v2608 = vpop.permute.xlu0 %2607
      %2610 = vset.pattern.permute.xlu0 2
      %2611 = vperm.xlu0 %2610, %v431
      %v2612 = vpop.permute.xlu0 %2611
      %2614 = vset.pattern.permute.xlu0 2
      %2615 = vperm.xlu0 %2614, %v432
      %v2616 = vpop.permute.xlu0 %2615
      %2618 = vset.pattern.permute.xlu0 2
      %2619 = vperm.xlu0 %2618, %v433
      %v2620 = vpop.permute.xlu0 %2619
      %2622 = vset.pattern.permute.xlu0 2
      %2623 = vperm.xlu0 %2622, %v434
      %v2624 = vpop.permute.xlu0 %2623
      %2626 = vset.pattern.permute.xlu0 2
      %2627 = vperm.xlu0 %2626, %v435
      %v2628 = vpop.permute.xlu0 %2627
      %v2630 = vlaneseq
      %v2631 = vshrl.u32 %v2630, 7
      %v2632 = vsub.s32 0, %v2631
      %v2633 = vrot.slane %v2117, %v2632
      %v2634 = vmul.f32 %v2120, %v2633
      %v2635 = vmul.f32 %v2124, %v2633
      %v2636 = vmul.f32 %v2128, %v2633
      %v2637 = vmul.f32 %v2132, %v2633
      %v2638 = vmul.f32 %v2136, %v2633
      %v2639 = vmul.f32 %v2140, %v2633
      %v2640 = vmul.f32 %v2144, %v2633
      %v2641 = vmul.f32 %v2148, %v2633
      %v2642 = vmul.f32 %v2152, %v2633
      %v2643 = vmul.f32 %v2156, %v2633
      %v2644 = vmul.f32 %v2160, %v2633
      %v2645 = vmul.f32 %v2164, %v2633
      %v2646 = vmul.f32 %v2168, %v2633
      %v2647 = vmul.f32 %v2172, %v2633
      %v2648 = vmul.f32 %v2176, %v2633
      %v2649 = vmul.f32 %v2180, %v2633
      %v2650 = vmul.f32 %v2184, %v2633
      %v2651 = vmul.f32 %v2188, %v2633
      %v2652 = vmul.f32 %v2192, %v2633
      %v2653 = vmul.f32 %v2196, %v2633
      %v2654 = vmul.f32 %v2200, %v2633
      %v2655 = vmul.f32 %v2204, %v2633
      %v2656 = vmul.f32 %v2208, %v2633
      %v2657 = vmul.f32 %v2212, %v2633
      %v2658 = vmul.f32 %v2216, %v2633
      %v2659 = vmul.f32 %v2220, %v2633
      %v2660 = vmul.f32 %v2224, %v2633
      %v2661 = vmul.f32 %v2228, %v2633
      %v2662 = vmul.f32 %v2232, %v2633
      %v2663 = vmul.f32 %v2236, %v2633
      %v2664 = vmul.f32 %v2240, %v2633
      %v2665 = vmul.f32 %v2244, %v2633
      %v2666 = vmul.f32 %v2248, %v2633
      %v2667 = vmul.f32 %v2252, %v2633
      %v2668 = vmul.f32 %v2256, %v2633
      %v2669 = vmul.f32 %v2260, %v2633
      %v2670 = vmul.f32 %v2264, %v2633
      %v2671 = vmul.f32 %v2268, %v2633
      %v2672 = vmul.f32 %v2272, %v2633
      %v2673 = vmul.f32 %v2276, %v2633
      %v2674 = vmul.f32 %v2280, %v2633
      %v2675 = vmul.f32 %v2284, %v2633
      %v2676 = vmul.f32 %v2288, %v2633
      %v2677 = vmul.f32 %v2292, %v2633
      %v2678 = vmul.f32 %v2296, %v2633
      %v2679 = vmul.f32 %v2300, %v2633
      %v2680 = vmul.f32 %v2304, %v2633
      %v2681 = vmul.f32 %v2308, %v2633
      %v2682 = vmul.f32 %v2312, %v2633
      %v2683 = vmul.f32 %v2316, %v2633
      %v2684 = vmul.f32 %v2320, %v2633
      %v2685 = vmul.f32 %v2324, %v2633
      %v2686 = vmul.f32 %v2328, %v2633
      %v2687 = vmul.f32 %v2332, %v2633
      %v2688 = vmul.f32 %v2336, %v2633
      %v2689 = vmul.f32 %v2340, %v2633
      %v2690 = vmul.f32 %v2344, %v2633
      %v2691 = vmul.f32 %v2348, %v2633
      %v2692 = vmul.f32 %v2352, %v2633
      %v2693 = vmul.f32 %v2356, %v2633
      %v2694 = vmul.f32 %v2360, %v2633
      %v2695 = vmul.f32 %v2364, %v2633
      %v2696 = vmul.f32 %v2368, %v2633
      %v2697 = vmul.f32 %v2372, %v2633
      %v2698 = vmul.f32 %v2376, %v2633
      %v2699 = vmul.f32 %v2380, %v2633
      %v2700 = vmul.f32 %v2384, %v2633
      %v2701 = vmul.f32 %v2388, %v2633
      %v2702 = vmul.f32 %v2392, %v2633
      %v2703 = vmul.f32 %v2396, %v2633
      %v2704 = vmul.f32 %v2400, %v2633
      %v2705 = vmul.f32 %v2404, %v2633
      %v2706 = vmul.f32 %v2408, %v2633
      %v2707 = vmul.f32 %v2412, %v2633
      %v2708 = vmul.f32 %v2416, %v2633
      %v2709 = vmul.f32 %v2420, %v2633
      %v2710 = vmul.f32 %v2424, %v2633
      %v2711 = vmul.f32 %v2428, %v2633
      %v2712 = vmul.f32 %v2432, %v2633
      %v2713 = vmul.f32 %v2436, %v2633
      %v2714 = vmul.f32 %v2440, %v2633
      %v2715 = vmul.f32 %v2444, %v2633
      %v2716 = vmul.f32 %v2448, %v2633
      %v2717 = vmul.f32 %v2452, %v2633
      %v2718 = vmul.f32 %v2456, %v2633
      %v2719 = vmul.f32 %v2460, %v2633
      %v2720 = vmul.f32 %v2464, %v2633
      %v2721 = vmul.f32 %v2468, %v2633
      %v2722 = vmul.f32 %v2472, %v2633
      %v2723 = vmul.f32 %v2476, %v2633
      %v2724 = vmul.f32 %v2480, %v2633
      %v2725 = vmul.f32 %v2484, %v2633
      %v2726 = vmul.f32 %v2488, %v2633
      %v2727 = vmul.f32 %v2492, %v2633
      %v2728 = vmul.f32 %v2496, %v2633
      %v2729 = vmul.f32 %v2500, %v2633
      %v2730 = vmul.f32 %v2504, %v2633
      %v2731 = vmul.f32 %v2508, %v2633
      %v2732 = vmul.f32 %v2512, %v2633
      %v2733 = vmul.f32 %v2516, %v2633
      %v2734 = vmul.f32 %v2520, %v2633
      %v2735 = vmul.f32 %v2524, %v2633
      %v2736 = vmul.f32 %v2528, %v2633
      %v2737 = vmul.f32 %v2532, %v2633
      %v2738 = vmul.f32 %v2536, %v2633
      %v2739 = vmul.f32 %v2540, %v2633
      %v2740 = vmul.f32 %v2544, %v2633
      %v2741 = vmul.f32 %v2548, %v2633
      %v2742 = vmul.f32 %v2552, %v2633
      %v2743 = vmul.f32 %v2556, %v2633
      %v2744 = vmul.f32 %v2560, %v2633
      %v2745 = vmul.f32 %v2564, %v2633
      %v2746 = vmul.f32 %v2568, %v2633
      %v2747 = vmul.f32 %v2572, %v2633
      %v2748 = vmul.f32 %v2576, %v2633
      %v2749 = vmul.f32 %v2580, %v2633
      %v2750 = vmul.f32 %v2584, %v2633
      %v2751 = vmul.f32 %v2588, %v2633
      %v2752 = vmul.f32 %v2592, %v2633
      %v2753 = vmul.f32 %v2596, %v2633
      %v2754 = vmul.f32 %v2600, %v2633
      %v2755 = vmul.f32 %v2604, %v2633
      %v2756 = vmul.f32 %v2608, %v2633
      %v2757 = vmul.f32 %v2612, %v2633
      %v2758 = vmul.f32 %v2616, %v2633
      %v2759 = vmul.f32 %v2620, %v2633
      %v2760 = vmul.f32 %v2624, %v2633
      %v2761 = vmul.f32 %v2628, %v2633
      %v2762 = vadd.f32 %v1989, %v2634
      %v2763 = vadd.f32 %v1990, %v2635
      %v2764 = vadd.f32 %v1991, %v2636
      %v2765 = vadd.f32 %v1992, %v2637
      %v2766 = vadd.f32 %v1993, %v2638
      %v2767 = vadd.f32 %v1994, %v2639
      %v2768 = vadd.f32 %v1995, %v2640
      %v2769 = vadd.f32 %v1996, %v2641
      %v2770 = vadd.f32 %v1997, %v2642
      %v2771 = vadd.f32 %v1998, %v2643
      %v2772 = vadd.f32 %v1999, %v2644
      %v2773 = vadd.f32 %v2000, %v2645
      %v2774 = vadd.f32 %v2001, %v2646
      %v2775 = vadd.f32 %v2002, %v2647
      %v2776 = vadd.f32 %v2003, %v2648
      %v2777 = vadd.f32 %v2004, %v2649
      %v2778 = vadd.f32 %v2005, %v2650
      %v2779 = vadd.f32 %v2006, %v2651
      %v2780 = vadd.f32 %v2007, %v2652
      %v2781 = vadd.f32 %v2008, %v2653
      %v2782 = vadd.f32 %v2009, %v2654
      %v2783 = vadd.f32 %v2010, %v2655
      %v2784 = vadd.f32 %v2011, %v2656
      %v2785 = vadd.f32 %v2012, %v2657
      %v2786 = vadd.f32 %v2013, %v2658
      %v2787 = vadd.f32 %v2014, %v2659
      %v2788 = vadd.f32 %v2015, %v2660
      %v2789 = vadd.f32 %v2016, %v2661
      %v2790 = vadd.f32 %v2017, %v2662
      %v2791 = vadd.f32 %v2018, %v2663
      %v2792 = vadd.f32 %v2019, %v2664
      %v2793 = vadd.f32 %v2020, %v2665
      %v2794 = vadd.f32 %v2021, %v2666
      %v2795 = vadd.f32 %v2022, %v2667
      %v2796 = vadd.f32 %v2023, %v2668
      %v2797 = vadd.f32 %v2024, %v2669
      %v2798 = vadd.f32 %v2025, %v2670
      %v2799 = vadd.f32 %v2026, %v2671
      %v2800 = vadd.f32 %v2027, %v2672
      %v2801 = vadd.f32 %v2028, %v2673
      %v2802 = vadd.f32 %v2029, %v2674
      %v2803 = vadd.f32 %v2030, %v2675
      %v2804 = vadd.f32 %v2031, %v2676
      %v2805 = vadd.f32 %v2032, %v2677
      %v2806 = vadd.f32 %v2033, %v2678
      %v2807 = vadd.f32 %v2034, %v2679
      %v2808 = vadd.f32 %v2035, %v2680
      %v2809 = vadd.f32 %v2036, %v2681
      %v2810 = vadd.f32 %v2037, %v2682
      %v2811 = vadd.f32 %v2038, %v2683
      %v2812 = vadd.f32 %v2039, %v2684
      %v2813 = vadd.f32 %v2040, %v2685
      %v2814 = vadd.f32 %v2041, %v2686
      %v2815 = vadd.f32 %v2042, %v2687
      %v2816 = vadd.f32 %v2043, %v2688
      %v2817 = vadd.f32 %v2044, %v2689
      %v2818 = vadd.f32 %v2045, %v2690
      %v2819 = vadd.f32 %v2046, %v2691
      %v2820 = vadd.f32 %v2047, %v2692
      %v2821 = vadd.f32 %v2048, %v2693
      %v2822 = vadd.f32 %v2049, %v2694
      %v2823 = vadd.f32 %v2050, %v2695
      %v2824 = vadd.f32 %v2051, %v2696
      %v2825 = vadd.f32 %v2052, %v2697
      %v2826 = vadd.f32 %v2053, %v2698
      %v2827 = vadd.f32 %v2054, %v2699
      %v2828 = vadd.f32 %v2055, %v2700
      %v2829 = vadd.f32 %v2056, %v2701
      %v2830 = vadd.f32 %v2057, %v2702
      %v2831 = vadd.f32 %v2058, %v2703
      %v2832 = vadd.f32 %v2059, %v2704
      %v2833 = vadd.f32 %v2060, %v2705
      %v2834 = vadd.f32 %v2061, %v2706
      %v2835 = vadd.f32 %v2062, %v2707
      %v2836 = vadd.f32 %v2063, %v2708
      %v2837 = vadd.f32 %v2064, %v2709
      %v2838 = vadd.f32 %v2065, %v2710
      %v2839 = vadd.f32 %v2066, %v2711
      %v2840 = vadd.f32 %v2067, %v2712
      %v2841 = vadd.f32 %v2068, %v2713
      %v2842 = vadd.f32 %v2069, %v2714
      %v2843 = vadd.f32 %v2070, %v2715
      %v2844 = vadd.f32 %v2071, %v2716
      %v2845 = vadd.f32 %v2072, %v2717
      %v2846 = vadd.f32 %v2073, %v2718
      %v2847 = vadd.f32 %v2074, %v2719
      %v2848 = vadd.f32 %v2075, %v2720
      %v2849 = vadd.f32 %v2076, %v2721
      %v2850 = vadd.f32 %v2077, %v2722
      %v2851 = vadd.f32 %v2078, %v2723
      %v2852 = vadd.f32 %v2079, %v2724
      %v2853 = vadd.f32 %v2080, %v2725
      %v2854 = vadd.f32 %v2081, %v2726
      %v2855 = vadd.f32 %v2082, %v2727
      %v2856 = vadd.f32 %v2083, %v2728
      %v2857 = vadd.f32 %v2084, %v2729
      %v2858 = vadd.f32 %v2085, %v2730
      %v2859 = vadd.f32 %v2086, %v2731
      %v2860 = vadd.f32 %v2087, %v2732
      %v2861 = vadd.f32 %v2088, %v2733
      %v2862 = vadd.f32 %v2089, %v2734
      %v2863 = vadd.f32 %v2090, %v2735
      %v2864 = vadd.f32 %v2091, %v2736
      %v2865 = vadd.f32 %v2092, %v2737
      %v2866 = vadd.f32 %v2093, %v2738
      %v2867 = vadd.f32 %v2094, %v2739
      %v2868 = vadd.f32 %v2095, %v2740
      %v2869 = vadd.f32 %v2096, %v2741
      %v2870 = vadd.f32 %v2097, %v2742
      %v2871 = vadd.f32 %v2098, %v2743
      %v2872 = vadd.f32 %v2099, %v2744
      %v2873 = vadd.f32 %v2100, %v2745
      %v2874 = vadd.f32 %v2101, %v2746
      %v2875 = vadd.f32 %v2102, %v2747
      %v2876 = vadd.f32 %v2103, %v2748
      %v2877 = vadd.f32 %v2104, %v2749
      %v2878 = vadd.f32 %v2105, %v2750
      %v2879 = vadd.f32 %v2106, %v2751
      %v2880 = vadd.f32 %v2107, %v2752
      %v2881 = vadd.f32 %v2108, %v2753
      %v2882 = vadd.f32 %v2109, %v2754
      %v2883 = vadd.f32 %v2110, %v2755
      %v2884 = vadd.f32 %v2111, %v2756
      %v2885 = vadd.f32 %v2112, %v2757
      %v2886 = vadd.f32 %v2113, %v2758
      %v2887 = vadd.f32 %v2114, %v2759
      %v2888 = vadd.f32 %v2115, %v2760
      %v2889 = vadd.f32 %v2116, %v2761
      %v2890 = vmul.f32 %v2762, 0.2
      %v2891 = vmul.f32 %v2763, 0.2
      %v2892 = vmul.f32 %v2764, 0.2
      %v2893 = vmul.f32 %v2765, 0.2
      %v2894 = vmul.f32 %v2766, 0.2
      %v2895 = vmul.f32 %v2767, 0.2
      %v2896 = vmul.f32 %v2768, 0.2
      %v2897 = vmul.f32 %v2769, 0.2
      %v2898 = vmul.f32 %v2770, 0.2
      %v2899 = vmul.f32 %v2771, 0.2
      %v2900 = vmul.f32 %v2772, 0.2
      %v2901 = vmul.f32 %v2773, 0.2
      %v2902 = vmul.f32 %v2774, 0.2
      %v2903 = vmul.f32 %v2775, 0.2
      %v2904 = vmul.f32 %v2776, 0.2
      %v2905 = vmul.f32 %v2777, 0.2
      %v2906 = vmul.f32 %v2778, 0.2
      %v2907 = vmul.f32 %v2779, 0.2
      %v2908 = vmul.f32 %v2780, 0.2
      %v2909 = vmul.f32 %v2781, 0.2
      %v2910 = vmul.f32 %v2782, 0.2
      %v2911 = vmul.f32 %v2783, 0.2
      %v2912 = vmul.f32 %v2784, 0.2
      %v2913 = vmul.f32 %v2785, 0.2
      %v2914 = vmul.f32 %v2786, 0.2
      %v2915 = vmul.f32 %v2787, 0.2
      %v2916 = vmul.f32 %v2788, 0.2
      %v2917 = vmul.f32 %v2789, 0.2
      %v2918 = vmul.f32 %v2790, 0.2
      %v2919 = vmul.f32 %v2791, 0.2
      %v2920 = vmul.f32 %v2792, 0.2
      %v2921 = vmul.f32 %v2793, 0.2
      %v2922 = vmul.f32 %v2794, 0.2
      %v2923 = vmul.f32 %v2795, 0.2
      %v2924 = vmul.f32 %v2796, 0.2
      %v2925 = vmul.f32 %v2797, 0.2
      %v2926 = vmul.f32 %v2798, 0.2
      %v2927 = vmul.f32 %v2799, 0.2
      %v2928 = vmul.f32 %v2800, 0.2
      %v2929 = vmul.f32 %v2801, 0.2
      %v2930 = vmul.f32 %v2802, 0.2
      %v2931 = vmul.f32 %v2803, 0.2
      %v2932 = vmul.f32 %v2804, 0.2
      %v2933 = vmul.f32 %v2805, 0.2
      %v2934 = vmul.f32 %v2806, 0.2
      %v2935 = vmul.f32 %v2807, 0.2
      %v2936 = vmul.f32 %v2808, 0.2
      %v2937 = vmul.f32 %v2809, 0.2
      %v2938 = vmul.f32 %v2810, 0.2
      %v2939 = vmul.f32 %v2811, 0.2
      %v2940 = vmul.f32 %v2812, 0.2
      %v2941 = vmul.f32 %v2813, 0.2
      %v2942 = vmul.f32 %v2814, 0.2
      %v2943 = vmul.f32 %v2815, 0.2
      %v2944 = vmul.f32 %v2816, 0.2
      %v2945 = vmul.f32 %v2817, 0.2
      %v2946 = vmul.f32 %v2818, 0.2
      %v2947 = vmul.f32 %v2819, 0.2
      %v2948 = vmul.f32 %v2820, 0.2
      %v2949 = vmul.f32 %v2821, 0.2
      %v2950 = vmul.f32 %v2822, 0.2
      %v2951 = vmul.f32 %v2823, 0.2
      %v2952 = vmul.f32 %v2824, 0.2
      %v2953 = vmul.f32 %v2825, 0.2
      %v2954 = vmul.f32 %v2826, 0.2
      %v2955 = vmul.f32 %v2827, 0.2
      %v2956 = vmul.f32 %v2828, 0.2
      %v2957 = vmul.f32 %v2829, 0.2
      %v2958 = vmul.f32 %v2830, 0.2
      %v2959 = vmul.f32 %v2831, 0.2
      %v2960 = vmul.f32 %v2832, 0.2
      %v2961 = vmul.f32 %v2833, 0.2
      %v2962 = vmul.f32 %v2834, 0.2
      %v2963 = vmul.f32 %v2835, 0.2
      %v2964 = vmul.f32 %v2836, 0.2
      %v2965 = vmul.f32 %v2837, 0.2
      %v2966 = vmul.f32 %v2838, 0.2
      %v2967 = vmul.f32 %v2839, 0.2
      %v2968 = vmul.f32 %v2840, 0.2
      %v2969 = vmul.f32 %v2841, 0.2
      %v2970 = vmul.f32 %v2842, 0.2
      %v2971 = vmul.f32 %v2843, 0.2
      %v2972 = vmul.f32 %v2844, 0.2
      %v2973 = vmul.f32 %v2845, 0.2
      %v2974 = vmul.f32 %v2846, 0.2
      %v2975 = vmul.f32 %v2847, 0.2
      %v2976 = vmul.f32 %v2848, 0.2
      %v2977 = vmul.f32 %v2849, 0.2
      %v2978 = vmul.f32 %v2850, 0.2
      %v2979 = vmul.f32 %v2851, 0.2
      %v2980 = vmul.f32 %v2852, 0.2
      %v2981 = vmul.f32 %v2853, 0.2
      %v2982 = vmul.f32 %v2854, 0.2
      %v2983 = vmul.f32 %v2855, 0.2
      %v2984 = vmul.f32 %v2856, 0.2
      %v2985 = vmul.f32 %v2857, 0.2
      %v2986 = vmul.f32 %v2858, 0.2
      %v2987 = vmul.f32 %v2859, 0.2
      %v2988 = vmul.f32 %v2860, 0.2
      %v2989 = vmul.f32 %v2861, 0.2
      %v2990 = vmul.f32 %v2862, 0.2
      %v2991 = vmul.f32 %v2863, 0.2
      %v2992 = vmul.f32 %v2864, 0.2
      %v2993 = vmul.f32 %v2865, 0.2
      %v2994 = vmul.f32 %v2866, 0.2
      %v2995 = vmul.f32 %v2867, 0.2
      %v2996 = vmul.f32 %v2868, 0.2
      %v2997 = vmul.f32 %v2869, 0.2
      %v2998 = vmul.f32 %v2870, 0.2
      %v2999 = vmul.f32 %v2871, 0.2
      %v3000 = vmul.f32 %v2872, 0.2
      %v3001 = vmul.f32 %v2873, 0.2
      %v3002 = vmul.f32 %v2874, 0.2
      %v3003 = vmul.f32 %v2875, 0.2
      %v3004 = vmul.f32 %v2876, 0.2
      %v3005 = vmul.f32 %v2877, 0.2
      %v3006 = vmul.f32 %v2878, 0.2
      %v3007 = vmul.f32 %v2879, 0.2
      %v3008 = vmul.f32 %v2880, 0.2
      %v3009 = vmul.f32 %v2881, 0.2
      %v3010 = vmul.f32 %v2882, 0.2
      %v3011 = vmul.f32 %v2883, 0.2
      %v3012 = vmul.f32 %v2884, 0.2
      %v3013 = vmul.f32 %v2885, 0.2
      %v3014 = vmul.f32 %v2886, 0.2
      %v3015 = vmul.f32 %v2887, 0.2
      %v3016 = vmul.f32 %v2888, 0.2
      %v3017 = vmul.f32 %v2889, 0.2
      %v3018 = vmax.f32 %v2762, %v2890
      %v3019 = vmax.f32 %v2763, %v2891
      %v3020 = vmax.f32 %v2764, %v2892
      %v3021 = vmax.f32 %v2765, %v2893
      %v3022 = vmax.f32 %v2766, %v2894
      %v3023 = vmax.f32 %v2767, %v2895
      %v3024 = vmax.f32 %v2768, %v2896
      %v3025 = vmax.f32 %v2769, %v2897
      %v3026 = vmax.f32 %v2770, %v2898
      %v3027 = vmax.f32 %v2771, %v2899
      %v3028 = vmax.f32 %v2772, %v2900
      %v3029 = vmax.f32 %v2773, %v2901
      %v3030 = vmax.f32 %v2774, %v2902
      %v3031 = vmax.f32 %v2775, %v2903
      %v3032 = vmax.f32 %v2776, %v2904
      %v3033 = vmax.f32 %v2777, %v2905
      %v3034 = vmax.f32 %v2778, %v2906
      %v3035 = vmax.f32 %v2779, %v2907
      %v3036 = vmax.f32 %v2780, %v2908
      %v3037 = vmax.f32 %v2781, %v2909
      %v3038 = vmax.f32 %v2782, %v2910
      %v3039 = vmax.f32 %v2783, %v2911
      %v3040 = vmax.f32 %v2784, %v2912
      %v3041 = vmax.f32 %v2785, %v2913
      %v3042 = vmax.f32 %v2786, %v2914
      %v3043 = vmax.f32 %v2787, %v2915
      %v3044 = vmax.f32 %v2788, %v2916
      %v3045 = vmax.f32 %v2789, %v2917
      %v3046 = vmax.f32 %v2790, %v2918
      %v3047 = vmax.f32 %v2791, %v2919
      %v3048 = vmax.f32 %v2792, %v2920
      %v3049 = vmax.f32 %v2793, %v2921
      %v3050 = vmax.f32 %v2794, %v2922
      %v3051 = vmax.f32 %v2795, %v2923
      %v3052 = vmax.f32 %v2796, %v2924
      %v3053 = vmax.f32 %v2797, %v2925
      %v3054 = vmax.f32 %v2798, %v2926
      %v3055 = vmax.f32 %v2799, %v2927
      %v3056 = vmax.f32 %v2800, %v2928
      %v3057 = vmax.f32 %v2801, %v2929
      %v3058 = vmax.f32 %v2802, %v2930
      %v3059 = vmax.f32 %v2803, %v2931
      %v3060 = vmax.f32 %v2804, %v2932
      %v3061 = vmax.f32 %v2805, %v2933
      %v3062 = vmax.f32 %v2806, %v2934
      %v3063 = vmax.f32 %v2807, %v2935
      %v3064 = vmax.f32 %v2808, %v2936
      %v3065 = vmax.f32 %v2809, %v2937
      %v3066 = vmax.f32 %v2810, %v2938
      %v3067 = vmax.f32 %v2811, %v2939
      %v3068 = vmax.f32 %v2812, %v2940
      %v3069 = vmax.f32 %v2813, %v2941
      %v3070 = vmax.f32 %v2814, %v2942
      %v3071 = vmax.f32 %v2815, %v2943
      %v3072 = vmax.f32 %v2816, %v2944
      %v3073 = vmax.f32 %v2817, %v2945
      %v3074 = vmax.f32 %v2818, %v2946
      %v3075 = vmax.f32 %v2819, %v2947
      %v3076 = vmax.f32 %v2820, %v2948
      %v3077 = vmax.f32 %v2821, %v2949
      %v3078 = vmax.f32 %v2822, %v2950
      %v3079 = vmax.f32 %v2823, %v2951
      %v3080 = vmax.f32 %v2824, %v2952
      %v3081 = vmax.f32 %v2825, %v2953
      %v3082 = vmax.f32 %v2826, %v2954
      %v3083 = vmax.f32 %v2827, %v2955
      %v3084 = vmax.f32 %v2828, %v2956
      %v3085 = vmax.f32 %v2829, %v2957
      %v3086 = vmax.f32 %v2830, %v2958
      %v3087 = vmax.f32 %v2831, %v2959
      %v3088 = vmax.f32 %v2832, %v2960
      %v3089 = vmax.f32 %v2833, %v2961
      %v3090 = vmax.f32 %v2834, %v2962
      %v3091 = vmax.f32 %v2835, %v2963
      %v3092 = vmax.f32 %v2836, %v2964
      %v3093 = vmax.f32 %v2837, %v2965
      %v3094 = vmax.f32 %v2838, %v2966
      %v3095 = vmax.f32 %v2839, %v2967
      %v3096 = vmax.f32 %v2840, %v2968
      %v3097 = vmax.f32 %v2841, %v2969
      %v3098 = vmax.f32 %v2842, %v2970
      %v3099 = vmax.f32 %v2843, %v2971
      %v3100 = vmax.f32 %v2844, %v2972
      %v3101 = vmax.f32 %v2845, %v2973
      %v3102 = vmax.f32 %v2846, %v2974
      %v3103 = vmax.f32 %v2847, %v2975
      %v3104 = vmax.f32 %v2848, %v2976
      %v3105 = vmax.f32 %v2849, %v2977
      %v3106 = vmax.f32 %v2850, %v2978
      %v3107 = vmax.f32 %v2851, %v2979
      %v3108 = vmax.f32 %v2852, %v2980
      %v3109 = vmax.f32 %v2853, %v2981
      %v3110 = vmax.f32 %v2854, %v2982
      %v3111 = vmax.f32 %v2855, %v2983
      %v3112 = vmax.f32 %v2856, %v2984
      %v3113 = vmax.f32 %v2857, %v2985
      %v3114 = vmax.f32 %v2858, %v2986
      %v3115 = vmax.f32 %v2859, %v2987
      %v3116 = vmax.f32 %v2860, %v2988
      %v3117 = vmax.f32 %v2861, %v2989
      %v3118 = vmax.f32 %v2862, %v2990
      %v3119 = vmax.f32 %v2863, %v2991
      %v3120 = vmax.f32 %v2864, %v2992
      %v3121 = vmax.f32 %v2865, %v2993
      %v3122 = vmax.f32 %v2866, %v2994
      %v3123 = vmax.f32 %v2867, %v2995
      %v3124 = vmax.f32 %v2868, %v2996
      %v3125 = vmax.f32 %v2869, %v2997
      %v3126 = vmax.f32 %v2870, %v2998
      %v3127 = vmax.f32 %v2871, %v2999
      %v3128 = vmax.f32 %v2872, %v3000
      %v3129 = vmax.f32 %v2873, %v3001
      %v3130 = vmax.f32 %v2874, %v3002
      %v3131 = vmax.f32 %v2875, %v3003
      %v3132 = vmax.f32 %v2876, %v3004
      %v3133 = vmax.f32 %v2877, %v3005
      %v3134 = vmax.f32 %v2878, %v3006
      %v3135 = vmax.f32 %v2879, %v3007
      %v3136 = vmax.f32 %v2880, %v3008
      %v3137 = vmax.f32 %v2881, %v3009
      %v3138 = vmax.f32 %v2882, %v3010
      %v3139 = vmax.f32 %v2883, %v3011
      %v3140 = vmax.f32 %v2884, %v3012
      %v3141 = vmax.f32 %v2885, %v3013
      %v3142 = vmax.f32 %v2886, %v3014
      %v3143 = vmax.f32 %v2887, %v3015
      %v3144 = vmax.f32 %v2888, %v3016
      %v3145 = vmax.f32 %v2889, %v3017
      %v3146 = vpack.c.bf16 %v3019, %v3018
      %v3147 = vpack.c.bf16 %v3021, %v3020
      %v3148 = vpack.c.bf16 %v3023, %v3022
      %v3149 = vpack.c.bf16 %v3025, %v3024
      %v3150 = vpack.c.bf16 %v3027, %v3026
      %v3151 = vpack.c.bf16 %v3029, %v3028
      %v3152 = vpack.c.bf16 %v3031, %v3030
      %v3153 = vpack.c.bf16 %v3033, %v3032
      %v3154 = vpack.c.bf16 %v3035, %v3034
      %v3155 = vpack.c.bf16 %v3037, %v3036
      %v3156 = vpack.c.bf16 %v3039, %v3038
      %v3157 = vpack.c.bf16 %v3041, %v3040
      %v3158 = vpack.c.bf16 %v3043, %v3042
      %v3159 = vpack.c.bf16 %v3045, %v3044
      %v3160 = vpack.c.bf16 %v3047, %v3046
      %v3161 = vpack.c.bf16 %v3049, %v3048
      %v3162 = vpack.c.bf16 %v3051, %v3050
      %v3163 = vpack.c.bf16 %v3053, %v3052
      %v3164 = vpack.c.bf16 %v3055, %v3054
      %v3165 = vpack.c.bf16 %v3057, %v3056
      %v3166 = vpack.c.bf16 %v3059, %v3058
      %v3167 = vpack.c.bf16 %v3061, %v3060
      %v3168 = vpack.c.bf16 %v3063, %v3062
      %v3169 = vpack.c.bf16 %v3065, %v3064
      %v3170 = vpack.c.bf16 %v3067, %v3066
      %v3171 = vpack.c.bf16 %v3069, %v3068
      %v3172 = vpack.c.bf16 %v3071, %v3070
      %v3173 = vpack.c.bf16 %v3073, %v3072
      %v3174 = vpack.c.bf16 %v3075, %v3074
      %v3175 = vpack.c.bf16 %v3077, %v3076
      %v3176 = vpack.c.bf16 %v3079, %v3078
      %v3177 = vpack.c.bf16 %v3081, %v3080
      %v3178 = vpack.c.bf16 %v3083, %v3082
      %v3179 = vpack.c.bf16 %v3085, %v3084
      %v3180 = vpack.c.bf16 %v3087, %v3086
      %v3181 = vpack.c.bf16 %v3089, %v3088
      %v3182 = vpack.c.bf16 %v3091, %v3090
      %v3183 = vpack.c.bf16 %v3093, %v3092
      %v3184 = vpack.c.bf16 %v3095, %v3094
      %v3185 = vpack.c.bf16 %v3097, %v3096
      %v3186 = vpack.c.bf16 %v3099, %v3098
      %v3187 = vpack.c.bf16 %v3101, %v3100
      %v3188 = vpack.c.bf16 %v3103, %v3102
      %v3189 = vpack.c.bf16 %v3105, %v3104
      %v3190 = vpack.c.bf16 %v3107, %v3106
      %v3191 = vpack.c.bf16 %v3109, %v3108
      %v3192 = vpack.c.bf16 %v3111, %v3110
      %v3193 = vpack.c.bf16 %v3113, %v3112
      %v3194 = vpack.c.bf16 %v3115, %v3114
      %v3195 = vpack.c.bf16 %v3117, %v3116
      %v3196 = vpack.c.bf16 %v3119, %v3118
      %v3197 = vpack.c.bf16 %v3121, %v3120
      %v3198 = vpack.c.bf16 %v3123, %v3122
      %v3199 = vpack.c.bf16 %v3125, %v3124
      %v3200 = vpack.c.bf16 %v3127, %v3126
      %v3201 = vpack.c.bf16 %v3129, %v3128
      %v3202 = vpack.c.bf16 %v3131, %v3130
      %v3203 = vpack.c.bf16 %v3133, %v3132
      %v3204 = vpack.c.bf16 %v3135, %v3134
      %v3205 = vpack.c.bf16 %v3137, %v3136
      %v3206 = vpack.c.bf16 %v3139, %v3138
      %v3207 = vpack.c.bf16 %v3141, %v3140
      %v3208 = vpack.c.bf16 %v3143, %v3142
      %v3209 = vpack.c.bf16 %v3145, %v3144
      %v3210 = vld [vmem:[%s3] sm:$0xf]
      %v3211 = vld [vmem:[%s3 + $0x4] sm:$0xf]
      %v3212 = vld [vmem:[%s3 + $0x8] sm:$0xf]
      %v3213 = vld [vmem:[%s3 + $0xc] sm:$0xf]
      %v3214 = vld [vmem:[%s3 + $0x10] sm:$0xf]
      %v3215 = vld [vmem:[%s3 + $0x14] sm:$0xf]
      %v3216 = vld [vmem:[%s3 + $0x18] sm:$0xf]
      %v3217 = vld [vmem:[%s3 + $0x1c] sm:$0xf]
      %v3226 = vunpack.c.l.b16 %v3210
      %v3227 = vunpack.c.l.b16 %v3211
      %v3228 = vunpack.c.l.b16 %v3212
      %v3229 = vunpack.c.l.b16 %v3213
      %v3230 = vunpack.c.l.b16 %v3214
      %v3231 = vunpack.c.l.b16 %v3215
      %v3232 = vunpack.c.l.b16 %v3216
      %v3233 = vunpack.c.l.b16 %v3217
      %v3234 = vpack.c.b16 %v3227, %v3226
      %v3235 = vpack.c.b16 %v3229, %v3228
      %v3236 = vpack.c.b16 %v3231, %v3230
      %v3237 = vpack.c.b16 %v3233, %v3232
      %vm3242 = vcmask 523264
      %v3244 = vsel %vm3242, %v3146, 0
      %v3247 = vsel %vm3242, %v3147, 0
      %v3250 = vsel %vm3242, %v3148, 0
      %v3253 = vsel %vm3242, %v3149, 0
      %v3256 = vsel %vm3242, %v3150, 0
      %v3259 = vsel %vm3242, %v3151, 0
      %v3262 = vsel %vm3242, %v3152, 0
      %v3265 = vsel %vm3242, %v3153, 0
      %v3268 = vsel %vm3242, %v3154, 0
      %v3271 = vsel %vm3242, %v3155, 0
      %v3274 = vsel %vm3242, %v3156, 0
      %v3277 = vsel %vm3242, %v3157, 0
      %v3280 = vsel %vm3242, %v3158, 0
      %v3283 = vsel %vm3242, %v3159, 0
      %v3286 = vsel %vm3242, %v3160, 0
      %v3289 = vsel %vm3242, %v3161, 0
      %v3292 = vsel %vm3242, %v3162, 0
      %v3295 = vsel %vm3242, %v3163, 0
      %v3298 = vsel %vm3242, %v3164, 0
      %v3301 = vsel %vm3242, %v3165, 0
      %v3304 = vsel %vm3242, %v3166, 0
      %v3307 = vsel %vm3242, %v3167, 0
      %v3310 = vsel %vm3242, %v3168, 0
      %v3313 = vsel %vm3242, %v3169, 0
      %v3316 = vsel %vm3242, %v3170, 0
      %v3319 = vsel %vm3242, %v3171, 0
      %v3322 = vsel %vm3242, %v3172, 0
      %v3325 = vsel %vm3242, %v3173, 0
      %v3328 = vsel %vm3242, %v3174, 0
      %v3331 = vsel %vm3242, %v3175, 0
      %v3334 = vsel %vm3242, %v3176, 0
      %v3337 = vsel %vm3242, %v3177, 0
      %v3340 = vsel %vm3242, %v3178, 0
      %v3343 = vsel %vm3242, %v3179, 0
      %v3346 = vsel %vm3242, %v3180, 0
      %v3349 = vsel %vm3242, %v3181, 0
      %v3352 = vsel %vm3242, %v3182, 0
      %v3355 = vsel %vm3242, %v3183, 0
      %v3358 = vsel %vm3242, %v3184, 0
      %v3361 = vsel %vm3242, %v3185, 0
      %v3364 = vsel %vm3242, %v3186, 0
      %v3367 = vsel %vm3242, %v3187, 0
      %v3370 = vsel %vm3242, %v3188, 0
      %v3373 = vsel %vm3242, %v3189, 0
      %v3376 = vsel %vm3242, %v3190, 0
      %v3379 = vsel %vm3242, %v3191, 0
      %v3382 = vsel %vm3242, %v3192, 0
      %v3385 = vsel %vm3242, %v3193, 0
      %v3388 = vsel %vm3242, %v3194, 0
      %v3391 = vsel %vm3242, %v3195, 0
      %v3394 = vsel %vm3242, %v3196, 0
      %v3397 = vsel %vm3242, %v3197, 0
      %v3400 = vsel %vm3242, %v3198, 0
      %v3403 = vsel %vm3242, %v3199, 0
      %v3406 = vsel %vm3242, %v3200, 0
      %v3409 = vsel %vm3242, %v3201, 0
      %v3412 = vsel %vm3242, %v3202, 0
      %v3415 = vsel %vm3242, %v3203, 0
      %v3418 = vsel %vm3242, %v3204, 0
      %v3421 = vsel %vm3242, %v3205, 0
      %v3424 = vsel %vm3242, %v3206, 0
      %v3427 = vsel %vm3242, %v3207, 0
      %v3430 = vsel %vm3242, %v3208, 0
      %v3433 = vsel %vm3242, %v3209, 0
      %3435 = vmatprep.subr.bf16.mxu0 0
      %3436 = vmatpush1.bf16.msra.mxu0 %v3234
      %3437 = vmatprep.subr.bf16.mxu0 0
      %3438 = vmatpush1.bf16.msra.mxu0 %v3235
      %3439 = vmatprep.subr.bf16.mxu0 0
      %3440 = vmatpush1.bf16.msra.mxu0 %v3236
      %3441 = vmatprep.subr.bf16.mxu0 0
      %3442 = vmatpush1.bf16.msra.mxu0 %v3237
      %3443 = vmatprep.subr.bf16.mxu0 0
      %3444 = vmatpush1.bf16.msra.mxu0 0
      %3445 = vmatprep.subr.bf16.mxu0 0
      %3446 = vmatpush1.bf16.msra.mxu0 0
      %3447 = vmatprep.subr.bf16.mxu0 0
      %3448 = vmatpush1.bf16.msra.mxu0 0
      %3449 = vmatprep.subr.bf16.mxu0 0
      %3450 = vmatpush1.bf16.msra.mxu0 0
      %3451 = vmatprep.subr.bf16.mxu0 0
      %3452 = vmatpush1.bf16.msra.mxu0 0
      %3453 = vmatprep.subr.bf16.mxu0 0
      %3454 = vmatpush1.bf16.msra.mxu0 0
      %3455 = vmatprep.subr.bf16.mxu0 0
      %3456 = vmatpush1.bf16.msra.mxu0 0
      %3457 = vmatprep.subr.bf16.mxu0 0
      %3458 = vmatpush1.bf16.msra.mxu0 0
      %3459 = vmatprep.subr.bf16.mxu0 0
      %3460 = vmatpush1.bf16.msra.mxu0 0
      %3461 = vmatprep.subr.bf16.mxu0 0
      %3462 = vmatpush1.bf16.msra.mxu0 0
      %3463 = vmatprep.subr.bf16.mxu0 0
      %3464 = vmatpush1.bf16.msra.mxu0 0
      %3465 = vmatprep.subr.bf16.mxu0 0
      %3466 = vmatpush1.bf16.msra.mxu0 0
      %3467 = vmatprep.mubr.bf16.mxu0 0
      %3468 = vmatmul.mubr.bf16.gmra.mrb[0].mxu0 %v3244
      %v3469 = vpop.f32.mrb[0].mxu0
      %v3470 = vadd.f32 0.0, %v3469
      %v3471 = vpop.f32.mrb[0].mxu0
      %v3472 = vpop.f32.mrb[0].mxu0
      %v3473 = vadd.f32 0.0, %v3472
      %v3474 = vpop.f32.mrb[0].mxu0
      %3475 = vmatprep.mubr.bf16.mxu0 0
      %3476 = vmatmul.mubr.bf16.gmra.mrb[0].mxu0 %v3247
      %v3477 = vpop.f32.mrb[0].mxu0
      %v3478 = vadd.f32 0.0, %v3477
      %v3479 = vpop.f32.mrb[0].mxu0
      %v3480 = vpop.f32.mrb[0].mxu0
      %v3481 = vadd.f32 0.0, %v3480
      %v3482 = vpop.f32.mrb[0].mxu0
      %3483 = vmatprep.mubr.bf16.mxu0 0
      %3484 = vmatmul.mubr.bf16.gmra.mrb[0].mxu0 %v3250
      %v3485 = vpop.f32.mrb[0].mxu0
      %v3486 = vadd.f32 0.0, %v3485
      %v3487 = vpop.f32.mrb[0].mxu0
      %v3488 = vpop.f32.mrb[0].mxu0
      %v3489 = vadd.f32 0.0, %v3488
      %v3490 = vpop.f32.mrb[0].mxu0
      %3491 = vmatprep.mubr.bf16.mxu0 0
      %3492 = vmatmul.mubr.bf16.gmra.mrb[0].mxu0 %v3253
      %v3493 = vpop.f32.mrb[0].mxu0
      %v3494 = vadd.f32 0.0, %v3493
      %v3495 = vpop.f32.mrb[0].mxu0
      %v3496 = vpop.f32.mrb[0].mxu0
      %v3497 = vadd.f32 0.0, %v3496
      %v3498 = vpop.f32.mrb[0].mxu0
      %3499 = vmatprep.mubr.bf16.mxu0 0
      %3500 = vmatmul.mubr.bf16.gmra.mrb[0].mxu0 %v3256
      %v3501 = vpop.f32.mrb[0].mxu0
      %v3502 = vadd.f32 0.0, %v3501
      %v3503 = vpop.f32.mrb[0].mxu0
      %v3504 = vpop.f32.mrb[0].mxu0
      %v3505 = vadd.f32 0.0, %v3504
      %v3506 = vpop.f32.mrb[0].mxu0
      %3507 = vmatprep.mubr.bf16.mxu0 0
      %3508 = vmatmul.mubr.bf16.gmra.mrb[0].mxu0 %v3259
      %v3509 = vpop.f32.mrb[0].mxu0
      %v3510 = vadd.f32 0.0, %v3509
      %v3511 = vpop.f32.mrb[0].mxu0
      %v3512 = vpop.f32.mrb[0].mxu0
      %v3513 = vadd.f32 0.0, %v3512
      %v3514 = vpop.f32.mrb[0].mxu0
      %3515 = vmatprep.mubr.bf16.mxu0 0
      %3516 = vmatmul.mubr.bf16.gmra.mrb[0].mxu0 %v3262
      %v3517 = vpop.f32.mrb[0].mxu0
      %v3518 = vadd.f32 0.0, %v3517
      %v3519 = vpop.f32.mrb[0].mxu0
      %v3520 = vpop.f32.mrb[0].mxu0
      %v3521 = vadd.f32 0.0, %v3520
      %v3522 = vpop.f32.mrb[0].mxu0
      %3523 = vmatprep.mubr.bf16.mxu0 0
      %3524 = vmatmul.mubr.bf16.gmra.mrb[0].mxu0 %v3265
      %v3525 = vpop.f32.mrb[0].mxu0
      %v3526 = vadd.f32 0.0, %v3525
      %v3527 = vpop.f32.mrb[0].mxu0
      %v3528 = vpop.f32.mrb[0].mxu0
      %v3529 = vadd.f32 0.0, %v3528
      %v3530 = vpop.f32.mrb[0].mxu0
      %3531 = vmatprep.mubr.bf16.mxu0 0
      %3532 = vmatmul.mubr.bf16.gmra.mrb[0].mxu0 %v3268
      %v3533 = vpop.f32.mrb[0].mxu0
      %v3534 = vadd.f32 0.0, %v3533
      %v3535 = vpop.f32.mrb[0].mxu0
      %v3536 = vpop.f32.mrb[0].mxu0
      %v3537 = vadd.f32 0.0, %v3536
      %v3538 = vpop.f32.mrb[0].mxu0
      %3539 = vmatprep.mubr.bf16.mxu0 0
      %3540 = vmatmul.mubr.bf16.gmra.mrb[0].mxu0 %v3271
      %v3541 = vpop.f32.mrb[0].mxu0
      %v3542 = vadd.f32 0.0, %v3541
      %v3543 = vpop.f32.mrb[0].mxu0
      %v3544 = vpop.f32.mrb[0].mxu0
      %v3545 = vadd.f32 0.0, %v3544
      %v3546 = vpop.f32.mrb[0].mxu0
      %3547 = vmatprep.mubr.bf16.mxu0 0
      %3548 = vmatmul.mubr.bf16.gmra.mrb[0].mxu0 %v3274
      %v3549 = vpop.f32.mrb[0].mxu0
      %v3550 = vadd.f32 0.0, %v3549
      %v3551 = vpop.f32.mrb[0].mxu0
      %v3552 = vpop.f32.mrb[0].mxu0
      %v3553 = vadd.f32 0.0, %v3552
      %v3554 = vpop.f32.mrb[0].mxu0
      %3555 = vmatprep.mubr.bf16.mxu0 0
      %3556 = vmatmul.mubr.bf16.gmra.mrb[0].mxu0 %v3277
      %v3557 = vpop.f32.mrb[0].mxu0
      %v3558 = vadd.f32 0.0, %v3557
      %v3559 = vpop.f32.mrb[0].mxu0
      %v3560 = vpop.f32.mrb[0].mxu0
      %v3561 = vadd.f32 0.0, %v3560
      %v3562 = vpop.f32.mrb[0].mxu0
      %3563 = vmatprep.mubr.bf16.mxu0 0
      %3564 = vmatmul.mubr.bf16.gmra.mrb[0].mxu0 %v3280
      %v3565 = vpop.f32.mrb[0].mxu0
      %v3566 = vadd.f32 0.0, %v3565
      %v3567 = vpop.f32.mrb[0].mxu0
      %v3568 = vpop.f32.mrb[0].mxu0
      %v3569 = vadd.f32 0.0, %v3568
      %v3570 = vpop.f32.mrb[0].mxu0
      %3571 = vmatprep.mubr.bf16.mxu0 0
      %3572 = vmatmul.mubr.bf16.gmra.mrb[0].mxu0 %v3283
      %v3573 = vpop.f32.mrb[0].mxu0
      %v3574 = vadd.f32 0.0, %v3573
      %v3575 = vpop.f32.mrb[0].mxu0
      %v3576 = vpop.f32.mrb[0].mxu0
      %v3577 = vadd.f32 0.0, %v3576
      %v3578 = vpop.f32.mrb[0].mxu0
      %3579 = vmatprep.mubr.bf16.mxu0 0
      %3580 = vmatmul.mubr.bf16.gmra.mrb[0].mxu0 %v3286
      %v3581 = vpop.f32.mrb[0].mxu0
      %v3582 = vadd.f32 0.0, %v3581
      %v3583 = vpop.f32.mrb[0].mxu0
      %v3584 = vpop.f32.mrb[0].mxu0
      %v3585 = vadd.f32 0.0, %v3584
      %v3586 = vpop.f32.mrb[0].mxu0
      %3587 = vmatprep.mubr.bf16.mxu0 0
      %3588 = vmatmul.mubr.bf16.gmra.mrb[0].mxu0 %v3289
      %v3589 = vpop.f32.mrb[0].mxu0
      %v3590 = vadd.f32 0.0, %v3589
      %v3591 = vpop.f32.mrb[0].mxu0
      %v3592 = vpop.f32.mrb[0].mxu0
      %v3593 = vadd.f32 0.0, %v3592
      %v3594 = vpop.f32.mrb[0].mxu0
      %3595 = vmatprep.mubr.bf16.mxu0 0
      %3596 = vmatmul.mubr.bf16.gmra.mrb[0].mxu0 %v3292
      %v3597 = vpop.f32.mrb[0].mxu0
      %v3598 = vadd.f32 0.0, %v3597
      %v3599 = vpop.f32.mrb[0].mxu0
      %v3600 = vpop.f32.mrb[0].mxu0
      %v3601 = vadd.f32 0.0, %v3600
      %v3602 = vpop.f32.mrb[0].mxu0
      %3603 = vmatprep.mubr.bf16.mxu0 0
      %3604 = vmatmul.mubr.bf16.gmra.mrb[0].mxu0 %v3295
      %v3605 = vpop.f32.mrb[0].mxu0
      %v3606 = vadd.f32 0.0, %v3605
      %v3607 = vpop.f32.mrb[0].mxu0
      %v3608 = vpop.f32.mrb[0].mxu0
      %v3609 = vadd.f32 0.0, %v3608
      %v3610 = vpop.f32.mrb[0].mxu0
      %3611 = vmatprep.mubr.bf16.mxu0 0
      %3612 = vmatmul.mubr.bf16.gmra.mrb[0].mxu0 %v3298
      %v3613 = vpop.f32.mrb[0].mxu0
      %v3614 = vadd.f32 0.0, %v3613
      %v3615 = vpop.f32.mrb[0].mxu0
      %v3616 = vpop.f32.mrb[0].mxu0
      %v3617 = vadd.f32 0.0, %v3616
      %v3618 = vpop.f32.mrb[0].mxu0
      %3619 = vmatprep.mubr.bf16.mxu0 0
      %3620 = vmatmul.mubr.bf16.gmra.mrb[0].mxu0 %v3301
      %v3621 = vpop.f32.mrb[0].mxu0
      %v3622 = vadd.f32 0.0, %v3621
      %v3623 = vpop.f32.mrb[0].mxu0
      %v3624 = vpop.f32.mrb[0].mxu0
      %v3625 = vadd.f32 0.0, %v3624
      %v3626 = vpop.f32.mrb[0].mxu0
      %3627 = vmatprep.mubr.bf16.mxu0 0
      %3628 = vmatmul.mubr.bf16.gmra.mrb[0].mxu0 %v3304
      %v3629 = vpop.f32.mrb[0].mxu0
      %v3630 = vadd.f32 0.0, %v3629
      %v3631 = vpop.f32.mrb[0].mxu0
      %v3632 = vpop.f32.mrb[0].mxu0
      %v3633 = vadd.f32 0.0, %v3632
      %v3634 = vpop.f32.mrb[0].mxu0
      %3635 = vmatprep.mubr.bf16.mxu0 0
      %3636 = vmatmul.mubr.bf16.gmra.mrb[0].mxu0 %v3307
      %v3637 = vpop.f32.mrb[0].mxu0
      %v3638 = vadd.f32 0.0, %v3637
      %v3639 = vpop.f32.mrb[0].mxu0
      %v3640 = vpop.f32.mrb[0].mxu0
      %v3641 = vadd.f32 0.0, %v3640
      %v3642 = vpop.f32.mrb[0].mxu0
      %3643 = vmatprep.mubr.bf16.mxu0 0
      %3644 = vmatmul.mubr.bf16.gmra.mrb[0].mxu0 %v3310
      %v3645 = vpop.f32.mrb[0].mxu0
      %v3646 = vadd.f32 0.0, %v3645
      %v3647 = vpop.f32.mrb[0].mxu0
      %v3648 = vpop.f32.mrb[0].mxu0
      %v3649 = vadd.f32 0.0, %v3648
      %v3650 = vpop.f32.mrb[0].mxu0
      %3651 = vmatprep.mubr.bf16.mxu0 0
      %3652 = vmatmul.mubr.bf16.gmra.mrb[0].mxu0 %v3313
      %v3653 = vpop.f32.mrb[0].mxu0
      %v3654 = vadd.f32 0.0, %v3653
      %v3655 = vpop.f32.mrb[0].mxu0
      %v3656 = vpop.f32.mrb[0].mxu0
      %v3657 = vadd.f32 0.0, %v3656
      %v3658 = vpop.f32.mrb[0].mxu0
      %3659 = vmatprep.mubr.bf16.mxu0 0
      %3660 = vmatmul.mubr.bf16.gmra.mrb[0].mxu0 %v3316
      %v3661 = vpop.f32.mrb[0].mxu0
      %v3662 = vadd.f32 0.0, %v3661
      %v3663 = vpop.f32.mrb[0].mxu0
      %v3664 = vpop.f32.mrb[0].mxu0
      %v3665 = vadd.f32 0.0, %v3664
      %v3666 = vpop.f32.mrb[0].mxu0
      %3667 = vmatprep.mubr.bf16.mxu0 0
      %3668 = vmatmul.mubr.bf16.gmra.mrb[0].mxu0 %v3319
      %v3669 = vpop.f32.mrb[0].mxu0
      %v3670 = vadd.f32 0.0, %v3669
      %v3671 = vpop.f32.mrb[0].mxu0
      %v3672 = vpop.f32.mrb[0].mxu0
      %v3673 = vadd.f32 0.0, %v3672
      %v3674 = vpop.f32.mrb[0].mxu0
      %3675 = vmatprep.mubr.bf16.mxu0 0
      %3676 = vmatmul.mubr.bf16.gmra.mrb[0].mxu0 %v3322
      %v3677 = vpop.f32.mrb[0].mxu0
      %v3678 = vadd.f32 0.0, %v3677
      %v3679 = vpop.f32.mrb[0].mxu0
      %v3680 = vpop.f32.mrb[0].mxu0
      %v3681 = vadd.f32 0.0, %v3680
      %v3682 = vpop.f32.mrb[0].mxu0
      %3683 = vmatprep.mubr.bf16.mxu0 0
      %3684 = vmatmul.mubr.bf16.gmra.mrb[0].mxu0 %v3325
      %v3685 = vpop.f32.mrb[0].mxu0
      %v3686 = vadd.f32 0.0, %v3685
      %v3687 = vpop.f32.mrb[0].mxu0
      %v3688 = vpop.f32.mrb[0].mxu0
      %v3689 = vadd.f32 0.0, %v3688
      %v3690 = vpop.f32.mrb[0].mxu0
      %3691 = vmatprep.mubr.bf16.mxu0 0
      %3692 = vmatmul.mubr.bf16.gmra.mrb[0].mxu0 %v3328
      %v3693 = vpop.f32.mrb[0].mxu0
      %v3694 = vadd.f32 0.0, %v3693
      %v3695 = vpop.f32.mrb[0].mxu0
      %v3696 = vpop.f32.mrb[0].mxu0
      %v3697 = vadd.f32 0.0, %v3696
      %v3698 = vpop.f32.mrb[0].mxu0
      %3699 = vmatprep.mubr.bf16.mxu0 0
      %3700 = vmatmul.mubr.bf16.gmra.mrb[0].mxu0 %v3331
      %v3701 = vpop.f32.mrb[0].mxu0
      %v3702 = vadd.f32 0.0, %v3701
      %v3703 = vpop.f32.mrb[0].mxu0
      %v3704 = vpop.f32.mrb[0].mxu0
      %v3705 = vadd.f32 0.0, %v3704
      %v3706 = vpop.f32.mrb[0].mxu0
      %3707 = vmatprep.mubr.bf16.mxu0 0
      %3708 = vmatmul.mubr.bf16.gmra.mrb[0].mxu0 %v3334
      %v3709 = vpop.f32.mrb[0].mxu0
      %v3710 = vadd.f32 0.0, %v3709
      %v3711 = vpop.f32.mrb[0].mxu0
      %v3712 = vpop.f32.mrb[0].mxu0
      %v3713 = vadd.f32 0.0, %v3712
      %v3714 = vpop.f32.mrb[0].mxu0
      %3715 = vmatprep.mubr.bf16.mxu0 0
      %3716 = vmatmul.mubr.bf16.gmra.mrb[0].mxu0 %v3337
      %v3717 = vpop.f32.mrb[0].mxu0
      %v3718 = vadd.f32 0.0, %v3717
      %v3719 = vpop.f32.mrb[0].mxu0
      %v3720 = vpop.f32.mrb[0].mxu0
      %v3721 = vadd.f32 0.0, %v3720
      %v3722 = vpop.f32.mrb[0].mxu0
      %3723 = vmatprep.mubr.bf16.mxu0 0
      %3724 = vmatmul.mubr.bf16.gmra.mrb[0].mxu0 %v3340
      %v3725 = vpop.f32.mrb[0].mxu0
      %v3726 = vadd.f32 0.0, %v3725
      %v3727 = vpop.f32.mrb[0].mxu0
      %v3728 = vpop.f32.mrb[0].mxu0
      %v3729 = vadd.f32 0.0, %v3728
      %v3730 = vpop.f32.mrb[0].mxu0
      %3731 = vmatprep.mubr.bf16.mxu0 0
      %3732 = vmatmul.mubr.bf16.gmra.mrb[0].mxu0 %v3343
      %v3733 = vpop.f32.mrb[0].mxu0
      %v3734 = vadd.f32 0.0, %v3733
      %v3735 = vpop.f32.mrb[0].mxu0
      %v3736 = vpop.f32.mrb[0].mxu0
      %v3737 = vadd.f32 0.0, %v3736
      %v3738 = vpop.f32.mrb[0].mxu0
      %3739 = vmatprep.mubr.bf16.mxu0 0
      %3740 = vmatmul.mubr.bf16.gmra.mrb[0].mxu0 %v3346
      %v3741 = vpop.f32.mrb[0].mxu0
      %v3742 = vadd.f32 0.0, %v3741
      %v3743 = vpop.f32.mrb[0].mxu0
      %v3744 = vpop.f32.mrb[0].mxu0
      %v3745 = vadd.f32 0.0, %v3744
      %v3746 = vpop.f32.mrb[0].mxu0
      %3747 = vmatprep.mubr.bf16.mxu0 0
      %3748 = vmatmul.mubr.bf16.gmra.mrb[0].mxu0 %v3349
      %v3749 = vpop.f32.mrb[0].mxu0
      %v3750 = vadd.f32 0.0, %v3749
      %v3751 = vpop.f32.mrb[0].mxu0
      %v3752 = vpop.f32.mrb[0].mxu0
      %v3753 = vadd.f32 0.0, %v3752
      %v3754 = vpop.f32.mrb[0].mxu0
      %3755 = vmatprep.mubr.bf16.mxu0 0
      %3756 = vmatmul.mubr.bf16.gmra.mrb[0].mxu0 %v3352
      %v3757 = vpop.f32.mrb[0].mxu0
      %v3758 = vadd.f32 0.0, %v3757
      %v3759 = vpop.f32.mrb[0].mxu0
      %v3760 = vpop.f32.mrb[0].mxu0
      %v3761 = vadd.f32 0.0, %v3760
      %v3762 = vpop.f32.mrb[0].mxu0
      %3763 = vmatprep.mubr.bf16.mxu0 0
      %3764 = vmatmul.mubr.bf16.gmra.mrb[0].mxu0 %v3355
      %v3765 = vpop.f32.mrb[0].mxu0
      %v3766 = vadd.f32 0.0, %v3765
      %v3767 = vpop.f32.mrb[0].mxu0
      %v3768 = vpop.f32.mrb[0].mxu0
      %v3769 = vadd.f32 0.0, %v3768
      %v3770 = vpop.f32.mrb[0].mxu0
      %3771 = vmatprep.mubr.bf16.mxu0 0
      %3772 = vmatmul.mubr.bf16.gmra.mrb[0].mxu0 %v3358
      %v3773 = vpop.f32.mrb[0].mxu0
      %v3774 = vadd.f32 0.0, %v3773
      %v3775 = vpop.f32.mrb[0].mxu0
      %v3776 = vpop.f32.mrb[0].mxu0
      %v3777 = vadd.f32 0.0, %v3776
      %v3778 = vpop.f32.mrb[0].mxu0
      %3779 = vmatprep.mubr.bf16.mxu0 0
      %3780 = vmatmul.mubr.bf16.gmra.mrb[0].mxu0 %v3361
      %v3781 = vpop.f32.mrb[0].mxu0
      %v3782 = vadd.f32 0.0, %v3781
      %v3783 = vpop.f32.mrb[0].mxu0
      %v3784 = vpop.f32.mrb[0].mxu0
      %v3785 = vadd.f32 0.0, %v3784
      %v3786 = vpop.f32.mrb[0].mxu0
      %3787 = vmatprep.mubr.bf16.mxu0 0
      %3788 = vmatmul.mubr.bf16.gmra.mrb[0].mxu0 %v3364
      %v3789 = vpop.f32.mrb[0].mxu0
      %v3790 = vadd.f32 0.0, %v3789
      %v3791 = vpop.f32.mrb[0].mxu0
      %v3792 = vpop.f32.mrb[0].mxu0
      %v3793 = vadd.f32 0.0, %v3792
      %v3794 = vpop.f32.mrb[0].mxu0
      %3795 = vmatprep.mubr.bf16.mxu0 0
      %3796 = vmatmul.mubr.bf16.gmra.mrb[0].mxu0 %v3367
      %v3797 = vpop.f32.mrb[0].mxu0
      %v3798 = vadd.f32 0.0, %v3797
      %v3799 = vpop.f32.mrb[0].mxu0
      %v3800 = vpop.f32.mrb[0].mxu0
      %v3801 = vadd.f32 0.0, %v3800
      %v3802 = vpop.f32.mrb[0].mxu0
      %3803 = vmatprep.mubr.bf16.mxu0 0
      %3804 = vmatmul.mubr.bf16.gmra.mrb[0].mxu0 %v3370
      %v3805 = vpop.f32.mrb[0].mxu0
      %v3806 = vadd.f32 0.0, %v3805
      %v3807 = vpop.f32.mrb[0].mxu0
      %v3808 = vpop.f32.mrb[0].mxu0
      %v3809 = vadd.f32 0.0, %v3808
      %v3810 = vpop.f32.mrb[0].mxu0
      %3811 = vmatprep.mubr.bf16.mxu0 0
      %3812 = vmatmul.mubr.bf16.gmra.mrb[0].mxu0 %v3373
      %v3813 = vpop.f32.mrb[0].mxu0
      %v3814 = vadd.f32 0.0, %v3813
      %v3815 = vpop.f32.mrb[0].mxu0
      %v3816 = vpop.f32.mrb[0].mxu0
      %v3817 = vadd.f32 0.0, %v3816
      %v3818 = vpop.f32.mrb[0].mxu0
      %3819 = vmatprep.mubr.bf16.mxu0 0
      %3820 = vmatmul.mubr.bf16.gmra.mrb[0].mxu0 %v3376
      %v3821 = vpop.f32.mrb[0].mxu0
      %v3822 = vadd.f32 0.0, %v3821
      %v3823 = vpop.f32.mrb[0].mxu0
      %v3824 = vpop.f32.mrb[0].mxu0
      %v3825 = vadd.f32 0.0, %v3824
      %v3826 = vpop.f32.mrb[0].mxu0
      %3827 = vmatprep.mubr.bf16.mxu0 0
      %3828 = vmatmul.mubr.bf16.gmra.mrb[0].mxu0 %v3379
      %v3829 = vpop.f32.mrb[0].mxu0
      %v3830 = vadd.f32 0.0, %v3829
      %v3831 = vpop.f32.mrb[0].mxu0
      %v3832 = vpop.f32.mrb[0].mxu0
      %v3833 = vadd.f32 0.0, %v3832
      %v3834 = vpop.f32.mrb[0].mxu0
      %3835 = vmatprep.mubr.bf16.mxu0 0
      %3836 = vmatmul.mubr.bf16.gmra.mrb[0].mxu0 %v3382
      %v3837 = vpop.f32.mrb[0].mxu0
      %v3838 = vadd.f32 0.0, %v3837
      %v3839 = vpop.f32.mrb[0].mxu0
      %v3840 = vpop.f32.mrb[0].mxu0
      %v3841 = vadd.f32 0.0, %v3840
      %v3842 = vpop.f32.mrb[0].mxu0
      %3843 = vmatprep.mubr.bf16.mxu0 0
      %3844 = vmatmul.mubr.bf16.gmra.mrb[0].mxu0 %v3385
      %v3845 = vpop.f32.mrb[0].mxu0
      %v3846 = vadd.f32 0.0, %v3845
      %v3847 = vpop.f32.mrb[0].mxu0
      %v3848 = vpop.f32.mrb[0].mxu0
      %v3849 = vadd.f32 0.0, %v3848
      %v3850 = vpop.f32.mrb[0].mxu0
      %3851 = vmatprep.mubr.bf16.mxu0 0
      %3852 = vmatmul.mubr.bf16.gmra.mrb[0].mxu0 %v3388
      %v3853 = vpop.f32.mrb[0].mxu0
      %v3854 = vadd.f32 0.0, %v3853
      %v3855 = vpop.f32.mrb[0].mxu0
      %v3856 = vpop.f32.mrb[0].mxu0
      %v3857 = vadd.f32 0.0, %v3856
      %v3858 = vpop.f32.mrb[0].mxu0
      %3859 = vmatprep.mubr.bf16.mxu0 0
      %3860 = vmatmul.mubr.bf16.gmra.mrb[0].mxu0 %v3391
      %v3861 = vpop.f32.mrb[0].mxu0
      %v3862 = vadd.f32 0.0, %v3861
      %v3863 = vpop.f32.mrb[0].mxu0
      %v3864 = vpop.f32.mrb[0].mxu0
      %v3865 = vadd.f32 0.0, %v3864
      %v3866 = vpop.f32.mrb[0].mxu0
      %3867 = vmatprep.mubr.bf16.mxu0 0
      %3868 = vmatmul.mubr.bf16.gmra.mrb[0].mxu0 %v3394
      %v3869 = vpop.f32.mrb[0].mxu0
      %v3870 = vadd.f32 0.0, %v3869
      %v3871 = vpop.f32.mrb[0].mxu0
      %v3872 = vpop.f32.mrb[0].mxu0
      %v3873 = vadd.f32 0.0, %v3872
      %v3874 = vpop.f32.mrb[0].mxu0
      %3875 = vmatprep.mubr.bf16.mxu0 0
      %3876 = vmatmul.mubr.bf16.gmra.mrb[0].mxu0 %v3397
      %v3877 = vpop.f32.mrb[0].mxu0
      %v3878 = vadd.f32 0.0, %v3877
      %v3879 = vpop.f32.mrb[0].mxu0
      %v3880 = vpop.f32.mrb[0].mxu0
      %v3881 = vadd.f32 0.0, %v3880
      %v3882 = vpop.f32.mrb[0].mxu0
      %3883 = vmatprep.mubr.bf16.mxu0 0
      %3884 = vmatmul.mubr.bf16.gmra.mrb[0].mxu0 %v3400
      %v3885 = vpop.f32.mrb[0].mxu0
      %v3886 = vadd.f32 0.0, %v3885
      %v3887 = vpop.f32.mrb[0].mxu0
      %v3888 = vpop.f32.mrb[0].mxu0
      %v3889 = vadd.f32 0.0, %v3888
      %v3890 = vpop.f32.mrb[0].mxu0
      %3891 = vmatprep.mubr.bf16.mxu0 0
      %3892 = vmatmul.mubr.bf16.gmra.mrb[0].mxu0 %v3403
      %v3893 = vpop.f32.mrb[0].mxu0
      %v3894 = vadd.f32 0.0, %v3893
      %v3895 = vpop.f32.mrb[0].mxu0
      %v3896 = vpop.f32.mrb[0].mxu0
      %v3897 = vadd.f32 0.0, %v3896
      %v3898 = vpop.f32.mrb[0].mxu0
      %3899 = vmatprep.mubr.bf16.mxu0 0
      %3900 = vmatmul.mubr.bf16.gmra.mrb[0].mxu0 %v3406
      %v3901 = vpop.f32.mrb[0].mxu0
      %v3902 = vadd.f32 0.0, %v3901
      %v3903 = vpop.f32.mrb[0].mxu0
      %v3904 = vpop.f32.mrb[0].mxu0
      %v3905 = vadd.f32 0.0, %v3904
      %v3906 = vpop.f32.mrb[0].mxu0
      %3907 = vmatprep.mubr.bf16.mxu0 0
      %3908 = vmatmul.mubr.bf16.gmra.mrb[0].mxu0 %v3409
      %v3909 = vpop.f32.mrb[0].mxu0
      %v3910 = vadd.f32 0.0, %v3909
      %v3911 = vpop.f32.mrb[0].mxu0
      %v3912 = vpop.f32.mrb[0].mxu0
      %v3913 = vadd.f32 0.0, %v3912
      %v3914 = vpop.f32.mrb[0].mxu0
      %3915 = vmatprep.mubr.bf16.mxu0 0
      %3916 = vmatmul.mubr.bf16.gmra.mrb[0].mxu0 %v3412
      %v3917 = vpop.f32.mrb[0].mxu0
      %v3918 = vadd.f32 0.0, %v3917
      %v3919 = vpop.f32.mrb[0].mxu0
      %v3920 = vpop.f32.mrb[0].mxu0
      %v3921 = vadd.f32 0.0, %v3920
      %v3922 = vpop.f32.mrb[0].mxu0
      %3923 = vmatprep.mubr.bf16.mxu0 0
      %3924 = vmatmul.mubr.bf16.gmra.mrb[0].mxu0 %v3415
      %v3925 = vpop.f32.mrb[0].mxu0
      %v3926 = vadd.f32 0.0, %v3925
      %v3927 = vpop.f32.mrb[0].mxu0
      %v3928 = vpop.f32.mrb[0].mxu0
      %v3929 = vadd.f32 0.0, %v3928
      %v3930 = vpop.f32.mrb[0].mxu0
      %3931 = vmatprep.mubr.bf16.mxu0 0
      %3932 = vmatmul.mubr.bf16.gmra.mrb[0].mxu0 %v3418
      %v3933 = vpop.f32.mrb[0].mxu0
      %v3934 = vadd.f32 0.0, %v3933
      %v3935 = vpop.f32.mrb[0].mxu0
      %v3936 = vpop.f32.mrb[0].mxu0
      %v3937 = vadd.f32 0.0, %v3936
      %v3938 = vpop.f32.mrb[0].mxu0
      %3939 = vmatprep.mubr.bf16.mxu0 0
      %3940 = vmatmul.mubr.bf16.gmra.mrb[0].mxu0 %v3421
      %v3941 = vpop.f32.mrb[0].mxu0
      %v3942 = vadd.f32 0.0, %v3941
      %v3943 = vpop.f32.mrb[0].mxu0
      %v3944 = vpop.f32.mrb[0].mxu0
      %v3945 = vadd.f32 0.0, %v3944
      %v3946 = vpop.f32.mrb[0].mxu0
      %3947 = vmatprep.mubr.bf16.mxu0 0
      %3948 = vmatmul.mubr.bf16.gmra.mrb[0].mxu0 %v3424
      %v3949 = vpop.f32.mrb[0].mxu0
      %v3950 = vadd.f32 0.0, %v3949
      %v3951 = vpop.f32.mrb[0].mxu0
      %v3952 = vpop.f32.mrb[0].mxu0
      %v3953 = vadd.f32 0.0, %v3952
      %v3954 = vpop.f32.mrb[0].mxu0
      %3955 = vmatprep.mubr.bf16.mxu0 0
      %3956 = vmatmul.mubr.bf16.gmra.mrb[0].mxu0 %v3427
      %v3957 = vpop.f32.mrb[0].mxu0
      %v3958 = vadd.f32 0.0, %v3957
      %v3959 = vpop.f32.mrb[0].mxu0
      %v3960 = vpop.f32.mrb[0].mxu0
      %v3961 = vadd.f32 0.0, %v3960
      %v3962 = vpop.f32.mrb[0].mxu0
      %3963 = vmatprep.mubr.bf16.mxu0 0
      %3964 = vmatmul.mubr.bf16.gmra.mrb[0].mxu0 %v3430
      %v3965 = vpop.f32.mrb[0].mxu0
      %v3966 = vadd.f32 0.0, %v3965
      %v3967 = vpop.f32.mrb[0].mxu0
      %v3968 = vpop.f32.mrb[0].mxu0
      %v3969 = vadd.f32 0.0, %v3968
      %v3970 = vpop.f32.mrb[0].mxu0
      %3971 = vmatprep.mubr.bf16.mxu0 0
      %3972 = vmatmul.mubr.bf16.gmra.mrb[0].mxu0 %v3433
      %v3973 = vpop.f32.mrb[0].mxu0
      %v3974 = vadd.f32 0.0, %v3973
      %v3975 = vpop.f32.mrb[0].mxu0
      %v3976 = vpop.f32.mrb[0].mxu0
      %v3977 = vadd.f32 0.0, %v3976
      %v3978 = vpop.f32.mrb[0].mxu0
      %3979 = vdwg.mxu0
      %v3980 = vld [vmem:[%s4] sm:$0x1]
      %v3982 = vlaneseq
      %v3983 = vshrl.u32 %v3982, 7
      %v3984 = vsub.s32 0, %v3983
      %v3985 = vrot.slane %v3980, %v3984
      %v3987 = vmul.f32 %v3470, %v3985
      %v3988 = vmul.f32 %v3473, %v3985
      %v3989 = vmul.f32 %v3478, %v3985
      %v3990 = vmul.f32 %v3481, %v3985
      %v3991 = vmul.f32 %v3486, %v3985
      %v3992 = vmul.f32 %v3489, %v3985
      %v3993 = vmul.f32 %v3494, %v3985
      %v3994 = vmul.f32 %v3497, %v3985
      %v3995 = vmul.f32 %v3502, %v3985
      %v3996 = vmul.f32 %v3505, %v3985
      %v3997 = vmul.f32 %v3510, %v3985
      %v3998 = vmul.f32 %v3513, %v3985
      %v3999 = vmul.f32 %v3518, %v3985
      %v4000 = vmul.f32 %v3521, %v3985
      %v4001 = vmul.f32 %v3526, %v3985
      %v4002 = vmul.f32 %v3529, %v3985
      %v4003 = vmul.f32 %v3534, %v3985
      %v4004 = vmul.f32 %v3537, %v3985
      %v4005 = vmul.f32 %v3542, %v3985
      %v4006 = vmul.f32 %v3545, %v3985
      %v4007 = vmul.f32 %v3550, %v3985
      %v4008 = vmul.f32 %v3553, %v3985
      %v4009 = vmul.f32 %v3558, %v3985
      %v4010 = vmul.f32 %v3561, %v3985
      %v4011 = vmul.f32 %v3566, %v3985
      %v4012 = vmul.f32 %v3569, %v3985
      %v4013 = vmul.f32 %v3574, %v3985
      %v4014 = vmul.f32 %v3577, %v3985
      %v4015 = vmul.f32 %v3582, %v3985
      %v4016 = vmul.f32 %v3585, %v3985
      %v4017 = vmul.f32 %v3590, %v3985
      %v4018 = vmul.f32 %v3593, %v3985
      %v4019 = vmul.f32 %v3598, %v3985
      %v4020 = vmul.f32 %v3601, %v3985
      %v4021 = vmul.f32 %v3606, %v3985
      %v4022 = vmul.f32 %v3609, %v3985
      %v4023 = vmul.f32 %v3614, %v3985
      %v4024 = vmul.f32 %v3617, %v3985
      %v4025 = vmul.f32 %v3622, %v3985
      %v4026 = vmul.f32 %v3625, %v3985
      %v4027 = vmul.f32 %v3630, %v3985
      %v4028 = vmul.f32 %v3633, %v3985
      %v4029 = vmul.f32 %v3638, %v3985
      %v4030 = vmul.f32 %v3641, %v3985
      %v4031 = vmul.f32 %v3646, %v3985
      %v4032 = vmul.f32 %v3649, %v3985
      %v4033 = vmul.f32 %v3654, %v3985
      %v4034 = vmul.f32 %v3657, %v3985
      %v4035 = vmul.f32 %v3662, %v3985
      %v4036 = vmul.f32 %v3665, %v3985
      %v4037 = vmul.f32 %v3670, %v3985
      %v4038 = vmul.f32 %v3673, %v3985
      %v4039 = vmul.f32 %v3678, %v3985
      %v4040 = vmul.f32 %v3681, %v3985
      %v4041 = vmul.f32 %v3686, %v3985
      %v4042 = vmul.f32 %v3689, %v3985
      %v4043 = vmul.f32 %v3694, %v3985
      %v4044 = vmul.f32 %v3697, %v3985
      %v4045 = vmul.f32 %v3702, %v3985
      %v4046 = vmul.f32 %v3705, %v3985
      %v4047 = vmul.f32 %v3710, %v3985
      %v4048 = vmul.f32 %v3713, %v3985
      %v4049 = vmul.f32 %v3718, %v3985
      %v4050 = vmul.f32 %v3721, %v3985
      %v4051 = vmul.f32 %v3726, %v3985
      %v4052 = vmul.f32 %v3729, %v3985
      %v4053 = vmul.f32 %v3734, %v3985
      %v4054 = vmul.f32 %v3737, %v3985
      %v4055 = vmul.f32 %v3742, %v3985
      %v4056 = vmul.f32 %v3745, %v3985
      %v4057 = vmul.f32 %v3750, %v3985
      %v4058 = vmul.f32 %v3753, %v3985
      %v4059 = vmul.f32 %v3758, %v3985
      %v4060 = vmul.f32 %v3761, %v3985
      %v4061 = vmul.f32 %v3766, %v3985
      %v4062 = vmul.f32 %v3769, %v3985
      %v4063 = vmul.f32 %v3774, %v3985
      %v4064 = vmul.f32 %v3777, %v3985
      %v4065 = vmul.f32 %v3782, %v3985
      %v4066 = vmul.f32 %v3785, %v3985
      %v4067 = vmul.f32 %v3790, %v3985
      %v4068 = vmul.f32 %v3793, %v3985
      %v4069 = vmul.f32 %v3798, %v3985
      %v4070 = vmul.f32 %v3801, %v3985
      %v4071 = vmul.f32 %v3806, %v3985
      %v4072 = vmul.f32 %v3809, %v3985
      %v4073 = vmul.f32 %v3814, %v3985
      %v4074 = vmul.f32 %v3817, %v3985
      %v4075 = vmul.f32 %v3822, %v3985
      %v4076 = vmul.f32 %v3825, %v3985
      %v4077 = vmul.f32 %v3830, %v3985
      %v4078 = vmul.f32 %v3833, %v3985
      %v4079 = vmul.f32 %v3838, %v3985
      %v4080 = vmul.f32 %v3841, %v3985
      %v4081 = vmul.f32 %v3846, %v3985
      %v4082 = vmul.f32 %v3849, %v3985
      %v4083 = vmul.f32 %v3854, %v3985
      %v4084 = vmul.f32 %v3857, %v3985
      %v4085 = vmul.f32 %v3862, %v3985
      %v4086 = vmul.f32 %v3865, %v3985
      %v4087 = vmul.f32 %v3870, %v3985
      %v4088 = vmul.f32 %v3873, %v3985
      %v4089 = vmul.f32 %v3878, %v3985
      %v4090 = vmul.f32 %v3881, %v3985
      %v4091 = vmul.f32 %v3886, %v3985
      %v4092 = vmul.f32 %v3889, %v3985
      %v4093 = vmul.f32 %v3894, %v3985
      %v4094 = vmul.f32 %v3897, %v3985
      %v4095 = vmul.f32 %v3902, %v3985
      %v4096 = vmul.f32 %v3905, %v3985
      %v4097 = vmul.f32 %v3910, %v3985
      %v4098 = vmul.f32 %v3913, %v3985
      %v4099 = vmul.f32 %v3918, %v3985
      %v4100 = vmul.f32 %v3921, %v3985
      %v4101 = vmul.f32 %v3926, %v3985
      %v4102 = vmul.f32 %v3929, %v3985
      %v4103 = vmul.f32 %v3934, %v3985
      %v4104 = vmul.f32 %v3937, %v3985
      %v4105 = vmul.f32 %v3942, %v3985
      %v4106 = vmul.f32 %v3945, %v3985
      %v4107 = vmul.f32 %v3950, %v3985
      %v4108 = vmul.f32 %v3953, %v3985
      %v4109 = vmul.f32 %v3958, %v3985
      %v4110 = vmul.f32 %v3961, %v3985
      %v4111 = vmul.f32 %v3966, %v3985
      %v4112 = vmul.f32 %v3969, %v3985
      %v4113 = vmul.f32 %v3974, %v3985
      %v4114 = vmul.f32 %v3977, %v3985
      %v4115 = vld [vmem:[%s5] sm:$0x1]
      %v4117 = vlaneseq
      %v4118 = vshrl.u32 %v4117, 7
      %v4119 = vsub.s32 0, %v4118
      %v4120 = vrot.slane %v4115, %v4119
      %v4122 = vadd.f32 %v3987, %v4120
      %v4123 = vadd.f32 %v3988, %v4120
      %v4124 = vadd.f32 %v3989, %v4120
      %v4125 = vadd.f32 %v3990, %v4120
      %v4126 = vadd.f32 %v3991, %v4120
      %v4127 = vadd.f32 %v3992, %v4120
      %v4128 = vadd.f32 %v3993, %v4120
      %v4129 = vadd.f32 %v3994, %v4120
      %v4130 = vadd.f32 %v3995, %v4120
      %v4131 = vadd.f32 %v3996, %v4120
      %v4132 = vadd.f32 %v3997, %v4120
      %v4133 = vadd.f32 %v3998, %v4120
      %v4134 = vadd.f32 %v3999, %v4120
      %v4135 = vadd.f32 %v4000, %v4120
      %v4136 = vadd.f32 %v4001, %v4120
      %v4137 = vadd.f32 %v4002, %v4120
      %v4138 = vadd.f32 %v4003, %v4120
      %v4139 = vadd.f32 %v4004, %v4120
      %v4140 = vadd.f32 %v4005, %v4120
      %v4141 = vadd.f32 %v4006, %v4120
      %v4142 = vadd.f32 %v4007, %v4120
      %v4143 = vadd.f32 %v4008, %v4120
      %v4144 = vadd.f32 %v4009, %v4120
      %v4145 = vadd.f32 %v4010, %v4120
      %v4146 = vadd.f32 %v4011, %v4120
      %v4147 = vadd.f32 %v4012, %v4120
      %v4148 = vadd.f32 %v4013, %v4120
      %v4149 = vadd.f32 %v4014, %v4120
      %v4150 = vadd.f32 %v4015, %v4120
      %v4151 = vadd.f32 %v4016, %v4120
      %v4152 = vadd.f32 %v4017, %v4120
      %v4153 = vadd.f32 %v4018, %v4120
      %v4154 = vadd.f32 %v4019, %v4120
      %v4155 = vadd.f32 %v4020, %v4120
      %v4156 = vadd.f32 %v4021, %v4120
      %v4157 = vadd.f32 %v4022, %v4120
      %v4158 = vadd.f32 %v4023, %v4120
      %v4159 = vadd.f32 %v4024, %v4120
      %v4160 = vadd.f32 %v4025, %v4120
      %v4161 = vadd.f32 %v4026, %v4120
      %v4162 = vadd.f32 %v4027, %v4120
      %v4163 = vadd.f32 %v4028, %v4120
      %v4164 = vadd.f32 %v4029, %v4120
      %v4165 = vadd.f32 %v4030, %v4120
      %v4166 = vadd.f32 %v4031, %v4120
      %v4167 = vadd.f32 %v4032, %v4120
      %v4168 = vadd.f32 %v4033, %v4120
      %v4169 = vadd.f32 %v4034, %v4120
      %v4170 = vadd.f32 %v4035, %v4120
      %v4171 = vadd.f32 %v4036, %v4120
      %v4172 = vadd.f32 %v4037, %v4120
      %v4173 = vadd.f32 %v4038, %v4120
      %v4174 = vadd.f32 %v4039, %v4120
      %v4175 = vadd.f32 %v4040, %v4120
      %v4176 = vadd.f32 %v4041, %v4120
      %v4177 = vadd.f32 %v4042, %v4120
      %v4178 = vadd.f32 %v4043, %v4120
      %v4179 = vadd.f32 %v4044, %v4120
      %v4180 = vadd.f32 %v4045, %v4120
      %v4181 = vadd.f32 %v4046, %v4120
      %v4182 = vadd.f32 %v4047, %v4120
      %v4183 = vadd.f32 %v4048, %v4120
      %v4184 = vadd.f32 %v4049, %v4120
      %v4185 = vadd.f32 %v4050, %v4120
      %v4186 = vadd.f32 %v4051, %v4120
      %v4187 = vadd.f32 %v4052, %v4120
      %v4188 = vadd.f32 %v4053, %v4120
      %v4189 = vadd.f32 %v4054, %v4120
      %v4190 = vadd.f32 %v4055, %v4120
      %v4191 = vadd.f32 %v4056, %v4120
      %v4192 = vadd.f32 %v4057, %v4120
      %v4193 = vadd.f32 %v4058, %v4120
      %v4194 = vadd.f32 %v4059, %v4120
      %v4195 = vadd.f32 %v4060, %v4120
      %v4196 = vadd.f32 %v4061, %v4120
      %v4197 = vadd.f32 %v4062, %v4120
      %v4198 = vadd.f32 %v4063, %v4120
      %v4199 = vadd.f32 %v4064, %v4120
      %v4200 = vadd.f32 %v4065, %v4120
      %v4201 = vadd.f32 %v4066, %v4120
      %v4202 = vadd.f32 %v4067, %v4120
      %v4203 = vadd.f32 %v4068, %v4120
      %v4204 = vadd.f32 %v4069, %v4120
      %v4205 = vadd.f32 %v4070, %v4120
      %v4206 = vadd.f32 %v4071, %v4120
      %v4207 = vadd.f32 %v4072, %v4120
      %v4208 = vadd.f32 %v4073, %v4120
      %v4209 = vadd.f32 %v4074, %v4120
      %v4210 = vadd.f32 %v4075, %v4120
      %v4211 = vadd.f32 %v4076, %v4120
      %v4212 = vadd.f32 %v4077, %v4120
      %v4213 = vadd.f32 %v4078, %v4120
      %v4214 = vadd.f32 %v4079, %v4120
      %v4215 = vadd.f32 %v4080, %v4120
      %v4216 = vadd.f32 %v4081, %v4120
      %v4217 = vadd.f32 %v4082, %v4120
      %v4218 = vadd.f32 %v4083, %v4120
      %v4219 = vadd.f32 %v4084, %v4120
      %v4220 = vadd.f32 %v4085, %v4120
      %v4221 = vadd.f32 %v4086, %v4120
      %v4222 = vadd.f32 %v4087, %v4120
      %v4223 = vadd.f32 %v4088, %v4120
      %v4224 = vadd.f32 %v4089, %v4120
      %v4225 = vadd.f32 %v4090, %v4120
      %v4226 = vadd.f32 %v4091, %v4120
      %v4227 = vadd.f32 %v4092, %v4120
      %v4228 = vadd.f32 %v4093, %v4120
      %v4229 = vadd.f32 %v4094, %v4120
      %v4230 = vadd.f32 %v4095, %v4120
      %v4231 = vadd.f32 %v4096, %v4120
      %v4232 = vadd.f32 %v4097, %v4120
      %v4233 = vadd.f32 %v4098, %v4120
      %v4234 = vadd.f32 %v4099, %v4120
      %v4235 = vadd.f32 %v4100, %v4120
      %v4236 = vadd.f32 %v4101, %v4120
      %v4237 = vadd.f32 %v4102, %v4120
      %v4238 = vadd.f32 %v4103, %v4120
      %v4239 = vadd.f32 %v4104, %v4120
      %v4240 = vadd.f32 %v4105, %v4120
      %v4241 = vadd.f32 %v4106, %v4120
      %v4242 = vadd.f32 %v4107, %v4120
      %v4243 = vadd.f32 %v4108, %v4120
      %v4244 = vadd.f32 %v4109, %v4120
      %v4245 = vadd.f32 %v4110, %v4120
      %v4246 = vadd.f32 %v4111, %v4120
      %v4247 = vadd.f32 %v4112, %v4120
      %v4248 = vadd.f32 %v4113, %v4120
      %v4249 = vadd.f32 %v4114, %v4120
      %v4250 = vmul.f32 %v4122, 0.2
      %v4251 = vmul.f32 %v4123, 0.2
      %v4252 = vmul.f32 %v4124, 0.2
      %v4253 = vmul.f32 %v4125, 0.2
      %v4254 = vmul.f32 %v4126, 0.2
      %v4255 = vmul.f32 %v4127, 0.2
      %v4256 = vmul.f32 %v4128, 0.2
      %v4257 = vmul.f32 %v4129, 0.2
      %v4258 = vmul.f32 %v4130, 0.2
      %v4259 = vmul.f32 %v4131, 0.2
      %v4260 = vmul.f32 %v4132, 0.2
      %v4261 = vmul.f32 %v4133, 0.2
      %v4262 = vmul.f32 %v4134, 0.2
      %v4263 = vmul.f32 %v4135, 0.2
      %v4264 = vmul.f32 %v4136, 0.2
      %v4265 = vmul.f32 %v4137, 0.2
      %v4266 = vmul.f32 %v4138, 0.2
      %v4267 = vmul.f32 %v4139, 0.2
      %v4268 = vmul.f32 %v4140, 0.2
      %v4269 = vmul.f32 %v4141, 0.2
      %v4270 = vmul.f32 %v4142, 0.2
      %v4271 = vmul.f32 %v4143, 0.2
      %v4272 = vmul.f32 %v4144, 0.2
      %v4273 = vmul.f32 %v4145, 0.2
      %v4274 = vmul.f32 %v4146, 0.2
      %v4275 = vmul.f32 %v4147, 0.2
      %v4276 = vmul.f32 %v4148, 0.2
      %v4277 = vmul.f32 %v4149, 0.2
      %v4278 = vmul.f32 %v4150, 0.2
      %v4279 = vmul.f32 %v4151, 0.2
      %v4280 = vmul.f32 %v4152, 0.2
      %v4281 = vmul.f32 %v4153, 0.2
      %v4282 = vmul.f32 %v4154, 0.2
      %v4283 = vmul.f32 %v4155, 0.2
      %v4284 = vmul.f32 %v4156, 0.2
      %v4285 = vmul.f32 %v4157, 0.2
      %v4286 = vmul.f32 %v4158, 0.2
      %v4287 = vmul.f32 %v4159, 0.2
      %v4288 = vmul.f32 %v4160, 0.2
      %v4289 = vmul.f32 %v4161, 0.2
      %v4290 = vmul.f32 %v4162, 0.2
      %v4291 = vmul.f32 %v4163, 0.2
      %v4292 = vmul.f32 %v4164, 0.2
      %v4293 = vmul.f32 %v4165, 0.2
      %v4294 = vmul.f32 %v4166, 0.2
      %v4295 = vmul.f32 %v4167, 0.2
      %v4296 = vmul.f32 %v4168, 0.2
      %v4297 = vmul.f32 %v4169, 0.2
      %v4298 = vmul.f32 %v4170, 0.2
      %v4299 = vmul.f32 %v4171, 0.2
      %v4300 = vmul.f32 %v4172, 0.2
      %v4301 = vmul.f32 %v4173, 0.2
      %v4302 = vmul.f32 %v4174, 0.2
      %v4303 = vmul.f32 %v4175, 0.2
      %v4304 = vmul.f32 %v4176, 0.2
      %v4305 = vmul.f32 %v4177, 0.2
      %v4306 = vmul.f32 %v4178, 0.2
      %v4307 = vmul.f32 %v4179, 0.2
      %v4308 = vmul.f32 %v4180, 0.2
      %v4309 = vmul.f32 %v4181, 0.2
      %v4310 = vmul.f32 %v4182, 0.2
      %v4311 = vmul.f32 %v4183, 0.2
      %v4312 = vmul.f32 %v4184, 0.2
      %v4313 = vmul.f32 %v4185, 0.2
      %v4314 = vmul.f32 %v4186, 0.2
      %v4315 = vmul.f32 %v4187, 0.2
      %v4316 = vmul.f32 %v4188, 0.2
      %v4317 = vmul.f32 %v4189, 0.2
      %v4318 = vmul.f32 %v4190, 0.2
      %v4319 = vmul.f32 %v4191, 0.2
      %v4320 = vmul.f32 %v4192, 0.2
      %v4321 = vmul.f32 %v4193, 0.2
      %v4322 = vmul.f32 %v4194, 0.2
      %v4323 = vmul.f32 %v4195, 0.2
      %v4324 = vmul.f32 %v4196, 0.2
      %v4325 = vmul.f32 %v4197, 0.2
      %v4326 = vmul.f32 %v4198, 0.2
      %v4327 = vmul.f32 %v4199, 0.2
      %v4328 = vmul.f32 %v4200, 0.2
      %v4329 = vmul.f32 %v4201, 0.2
      %v4330 = vmul.f32 %v4202, 0.2
      %v4331 = vmul.f32 %v4203, 0.2
      %v4332 = vmul.f32 %v4204, 0.2
      %v4333 = vmul.f32 %v4205, 0.2
      %v4334 = vmul.f32 %v4206, 0.2
      %v4335 = vmul.f32 %v4207, 0.2
      %v4336 = vmul.f32 %v4208, 0.2
      %v4337 = vmul.f32 %v4209, 0.2
      %v4338 = vmul.f32 %v4210, 0.2
      %v4339 = vmul.f32 %v4211, 0.2
      %v4340 = vmul.f32 %v4212, 0.2
      %v4341 = vmul.f32 %v4213, 0.2
      %v4342 = vmul.f32 %v4214, 0.2
      %v4343 = vmul.f32 %v4215, 0.2
      %v4344 = vmul.f32 %v4216, 0.2
      %v4345 = vmul.f32 %v4217, 0.2
      %v4346 = vmul.f32 %v4218, 0.2
      %v4347 = vmul.f32 %v4219, 0.2
      %v4348 = vmul.f32 %v4220, 0.2
      %v4349 = vmul.f32 %v4221, 0.2
      %v4350 = vmul.f32 %v4222, 0.2
      %v4351 = vmul.f32 %v4223, 0.2
      %v4352 = vmul.f32 %v4224, 0.2
      %v4353 = vmul.f32 %v4225, 0.2
      %v4354 = vmul.f32 %v4226, 0.2
      %v4355 = vmul.f32 %v4227, 0.2
      %v4356 = vmul.f32 %v4228, 0.2
      %v4357 = vmul.f32 %v4229, 0.2
      %v4358 = vmul.f32 %v4230, 0.2
      %v4359 = vmul.f32 %v4231, 0.2
      %v4360 = vmul.f32 %v4232, 0.2
      %v4361 = vmul.f32 %v4233, 0.2
      %v4362 = vmul.f32 %v4234, 0.2
      %v4363 = vmul.f32 %v4235, 0.2
      %v4364 = vmul.f32 %v4236, 0.2
      %v4365 = vmul.f32 %v4237, 0.2
      %v4366 = vmul.f32 %v4238, 0.2
      %v4367 = vmul.f32 %v4239, 0.2
      %v4368 = vmul.f32 %v4240, 0.2
      %v4369 = vmul.f32 %v4241, 0.2
      %v4370 = vmul.f32 %v4242, 0.2
      %v4371 = vmul.f32 %v4243, 0.2
      %v4372 = vmul.f32 %v4244, 0.2
      %v4373 = vmul.f32 %v4245, 0.2
      %v4374 = vmul.f32 %v4246, 0.2
      %v4375 = vmul.f32 %v4247, 0.2
      %v4376 = vmul.f32 %v4248, 0.2
      %v4377 = vmul.f32 %v4249, 0.2
      %v4378 = vmax.f32 %v4122, %v4250
      %v4379 = vmax.f32 %v4123, %v4251
      %v4380 = vmax.f32 %v4124, %v4252
      %v4381 = vmax.f32 %v4125, %v4253
      %v4382 = vmax.f32 %v4126, %v4254
      %v4383 = vmax.f32 %v4127, %v4255
      %v4384 = vmax.f32 %v4128, %v4256
      %v4385 = vmax.f32 %v4129, %v4257
      %v4386 = vmax.f32 %v4130, %v4258
      %v4387 = vmax.f32 %v4131, %v4259
      %v4388 = vmax.f32 %v4132, %v4260
      %v4389 = vmax.f32 %v4133, %v4261
      %v4390 = vmax.f32 %v4134, %v4262
      %v4391 = vmax.f32 %v4135, %v4263
      %v4392 = vmax.f32 %v4136, %v4264
      %v4393 = vmax.f32 %v4137, %v4265
      %v4394 = vmax.f32 %v4138, %v4266
      %v4395 = vmax.f32 %v4139, %v4267
      %v4396 = vmax.f32 %v4140, %v4268
      %v4397 = vmax.f32 %v4141, %v4269
      %v4398 = vmax.f32 %v4142, %v4270
      %v4399 = vmax.f32 %v4143, %v4271
      %v4400 = vmax.f32 %v4144, %v4272
      %v4401 = vmax.f32 %v4145, %v4273
      %v4402 = vmax.f32 %v4146, %v4274
      %v4403 = vmax.f32 %v4147, %v4275
      %v4404 = vmax.f32 %v4148, %v4276
      %v4405 = vmax.f32 %v4149, %v4277
      %v4406 = vmax.f32 %v4150, %v4278
      %v4407 = vmax.f32 %v4151, %v4279
      %v4408 = vmax.f32 %v4152, %v4280
      %v4409 = vmax.f32 %v4153, %v4281
      %v4410 = vmax.f32 %v4154, %v4282
      %v4411 = vmax.f32 %v4155, %v4283
      %v4412 = vmax.f32 %v4156, %v4284
      %v4413 = vmax.f32 %v4157, %v4285
      %v4414 = vmax.f32 %v4158, %v4286
      %v4415 = vmax.f32 %v4159, %v4287
      %v4416 = vmax.f32 %v4160, %v4288
      %v4417 = vmax.f32 %v4161, %v4289
      %v4418 = vmax.f32 %v4162, %v4290
      %v4419 = vmax.f32 %v4163, %v4291
      %v4420 = vmax.f32 %v4164, %v4292
      %v4421 = vmax.f32 %v4165, %v4293
      %v4422 = vmax.f32 %v4166, %v4294
      %v4423 = vmax.f32 %v4167, %v4295
      %v4424 = vmax.f32 %v4168, %v4296
      %v4425 = vmax.f32 %v4169, %v4297
      %v4426 = vmax.f32 %v4170, %v4298
      %v4427 = vmax.f32 %v4171, %v4299
      %v4428 = vmax.f32 %v4172, %v4300
      %v4429 = vmax.f32 %v4173, %v4301
      %v4430 = vmax.f32 %v4174, %v4302
      %v4431 = vmax.f32 %v4175, %v4303
      %v4432 = vmax.f32 %v4176, %v4304
      %v4433 = vmax.f32 %v4177, %v4305
      %v4434 = vmax.f32 %v4178, %v4306
      %v4435 = vmax.f32 %v4179, %v4307
      %v4436 = vmax.f32 %v4180, %v4308
      %v4437 = vmax.f32 %v4181, %v4309
      %v4438 = vmax.f32 %v4182, %v4310
      %v4439 = vmax.f32 %v4183, %v4311
      %v4440 = vmax.f32 %v4184, %v4312
      %v4441 = vmax.f32 %v4185, %v4313
      %v4442 = vmax.f32 %v4186, %v4314
      %v4443 = vmax.f32 %v4187, %v4315
      %v4444 = vmax.f32 %v4188, %v4316
      %v4445 = vmax.f32 %v4189, %v4317
      %v4446 = vmax.f32 %v4190, %v4318
      %v4447 = vmax.f32 %v4191, %v4319
      %v4448 = vmax.f32 %v4192, %v4320
      %v4449 = vmax.f32 %v4193, %v4321
      %v4450 = vmax.f32 %v4194, %v4322
      %v4451 = vmax.f32 %v4195, %v4323
      %v4452 = vmax.f32 %v4196, %v4324
      %v4453 = vmax.f32 %v4197, %v4325
      %v4454 = vmax.f32 %v4198, %v4326
      %v4455 = vmax.f32 %v4199, %v4327
      %v4456 = vmax.f32 %v4200, %v4328
      %v4457 = vmax.f32 %v4201, %v4329
      %v4458 = vmax.f32 %v4202, %v4330
      %v4459 = vmax.f32 %v4203, %v4331
      %v4460 = vmax.f32 %v4204, %v4332
      %v4461 = vmax.f32 %v4205, %v4333
      %v4462 = vmax.f32 %v4206, %v4334
      %v4463 = vmax.f32 %v4207, %v4335
      %v4464 = vmax.f32 %v4208, %v4336
      %v4465 = vmax.f32 %v4209, %v4337
      %v4466 = vmax.f32 %v4210, %v4338
      %v4467 = vmax.f32 %v4211, %v4339
      %v4468 = vmax.f32 %v4212, %v4340
      %v4469 = vmax.f32 %v4213, %v4341
      %v4470 = vmax.f32 %v4214, %v4342
      %v4471 = vmax.f32 %v4215, %v4343
      %v4472 = vmax.f32 %v4216, %v4344
      %v4473 = vmax.f32 %v4217, %v4345
      %v4474 = vmax.f32 %v4218, %v4346
      %v4475 = vmax.f32 %v4219, %v4347
      %v4476 = vmax.f32 %v4220, %v4348
      %v4477 = vmax.f32 %v4221, %v4349
      %v4478 = vmax.f32 %v4222, %v4350
      %v4479 = vmax.f32 %v4223, %v4351
      %v4480 = vmax.f32 %v4224, %v4352
      %v4481 = vmax.f32 %v4225, %v4353
      %v4482 = vmax.f32 %v4226, %v4354
      %v4483 = vmax.f32 %v4227, %v4355
      %v4484 = vmax.f32 %v4228, %v4356
      %v4485 = vmax.f32 %v4229, %v4357
      %v4486 = vmax.f32 %v4230, %v4358
      %v4487 = vmax.f32 %v4231, %v4359
      %v4488 = vmax.f32 %v4232, %v4360
      %v4489 = vmax.f32 %v4233, %v4361
      %v4490 = vmax.f32 %v4234, %v4362
      %v4491 = vmax.f32 %v4235, %v4363
      %v4492 = vmax.f32 %v4236, %v4364
      %v4493 = vmax.f32 %v4237, %v4365
      %v4494 = vmax.f32 %v4238, %v4366
      %v4495 = vmax.f32 %v4239, %v4367
      %v4496 = vmax.f32 %v4240, %v4368
      %v4497 = vmax.f32 %v4241, %v4369
      %v4498 = vmax.f32 %v4242, %v4370
      %v4499 = vmax.f32 %v4243, %v4371
      %v4500 = vmax.f32 %v4244, %v4372
      %v4501 = vmax.f32 %v4245, %v4373
      %v4502 = vmax.f32 %v4246, %v4374
      %v4503 = vmax.f32 %v4247, %v4375
      %v4504 = vmax.f32 %v4248, %v4376
      %v4505 = vmax.f32 %v4249, %v4377
      %v4506 = vld [vmem:[%s6] sm:$0xff]
      %v4507 = vld [vmem:[%s6 + $0x8] sm:$0xff]
      %v4508 = vld [vmem:[%s6 + $0x10] sm:$0xff]
      %v4509 = vld [vmem:[%s6 + $0x18] sm:$0xff]
      %v4510 = vld [vmem:[%s6 + $0x20] sm:$0xff]
      %v4511 = vld [vmem:[%s6 + $0x28] sm:$0xff]
      %v4512 = vld [vmem:[%s6 + $0x30] sm:$0xff]
      %v4513 = vld [vmem:[%s6 + $0x38] sm:$0xff]
      %v4514 = vld [vmem:[%s6 + $0x40] sm:$0xff]
      %v4515 = vld [vmem:[%s6 + $0x48] sm:$0xff]
      %v4516 = vld [vmem:[%s6 + $0x50] sm:$0xff]
      %v4517 = vld [vmem:[%s6 + $0x58] sm:$0xff]
      %v4518 = vld [vmem:[%s6 + $0x60] sm:$0xff]
      %v4519 = vld [vmem:[%s6 + $0x68] sm:$0xff]
      %v4520 = vld [vmem:[%s6 + $0x70] sm:$0xff]
      %v4521 = vld [vmem:[%s6 + $0x78] sm:$0xff]
      %s4522 = sld [smem:[#allocation2]]
      %4523 = vxpose.xlu0.b32.start [1/16] %v4378, 128
      %4524 = vxpose.xlu0.b32.cont [2/16] %v4379, 128
      %4525 = vxpose.xlu0.b32.cont [3/16] %v4380, 128
      %4526 = vxpose.xlu0.b32.cont [4/16] %v4381, 128
      %4527 = vxpose.xlu0.b32.cont [5/16] %v4382, 128
      %4528 = vxpose.xlu0.b32.cont [6/16] %v4383, 128
      %4529 = vxpose.xlu0.b32.cont [7/16] %v4384, 128
      %4530 = vxpose.xlu0.b32.cont [8/16] %v4385, 128
      %4531 = vxpose.xlu0.b32.cont [9/16] %v4386, 128
      %4532 = vxpose.xlu0.b32.cont [10/16] %v4387, 128
      %4533 = vxpose.xlu0.b32.cont [11/16] %v4388, 128
      %4534 = vxpose.xlu0.b32.cont [12/16] %v4389, 128
      %4535 = vxpose.xlu0.b32.cont [13/16] %v4390, 128
      %4536 = vxpose.xlu0.b32.cont [14/16] %v4391, 128
      %4537 = vxpose.xlu0.b32.cont [15/16] %v4392, 128
      %4538 = vxpose.xlu0.b32.end [16/16] %v4393, 128
      %v4539 = vpop.trf.xlu0
      %v4540 = vpop.trf.xlu0
      %v4541 = vpop.trf.xlu0
      %v4542 = vpop.trf.xlu0
      %v4543 = vpop.trf.xlu0
      %v4544 = vpop.trf.xlu0
      %v4545 = vpop.trf.xlu0
      %v4546 = vpop.trf.xlu0
      %v4547 = vpop.trf.xlu0
      %v4548 = vpop.trf.xlu0
      %v4549 = vpop.trf.xlu0
      %v4550 = vpop.trf.xlu0
      %v4551 = vpop.trf.xlu0
      %v4552 = vpop.trf.xlu0
      %v4553 = vpop.trf.xlu0
      %v4554 = vpop.trf.xlu0
      %4556 = vset.pattern.permute.xlu0 0
      %4557 = vperm.xlu0 %4556, %v4506
      %v4558 = vpop.permute.xlu0 %4557
      %4561 = vset.pattern.permute.xlu0 0
      %4562 = vperm.xlu0 %4561, %v4507
      %v4563 = vpop.permute.xlu0 %4562
      %4566 = vset.pattern.permute.xlu0 0
      %4567 = vperm.xlu0 %4566, %v4508
      %v4568 = vpop.permute.xlu0 %4567
      %4571 = vset.pattern.permute.xlu0 0
      %4572 = vperm.xlu0 %4571, %v4509
      %v4573 = vpop.permute.xlu0 %4572
      %4576 = vset.pattern.permute.xlu0 0
      %4577 = vperm.xlu0 %4576, %v4510
      %v4578 = vpop.permute.xlu0 %4577
      %4581 = vset.pattern.permute.xlu0 0
      %4582 = vperm.xlu0 %4581, %v4511
      %v4583 = vpop.permute.xlu0 %4582
      %4586 = vset.pattern.permute.xlu0 0
      %4587 = vperm.xlu0 %4586, %v4512
      %v4588 = vpop.permute.xlu0 %4587
      %4591 = vset.pattern.permute.xlu0 0
      %4592 = vperm.xlu0 %4591, %v4513
      %v4593 = vpop.permute.xlu0 %4592
      %4596 = vset.pattern.permute.xlu0 0
      %4597 = vperm.xlu0 %4596, %v4514
      %v4598 = vpop.permute.xlu0 %4597
      %4601 = vset.pattern.permute.xlu0 0
      %4602 = vperm.xlu0 %4601, %v4515
      %v4603 = vpop.permute.xlu0 %4602
      %4606 = vset.pattern.permute.xlu0 0
      %4607 = vperm.xlu0 %4606, %v4516
      %v4608 = vpop.permute.xlu0 %4607
      %4611 = vset.pattern.permute.xlu0 0
      %4612 = vperm.xlu0 %4611, %v4517
      %v4613 = vpop.permute.xlu0 %4612
      %4616 = vset.pattern.permute.xlu0 0
      %4617 = vperm.xlu0 %4616, %v4518
      %v4618 = vpop.permute.xlu0 %4617
      %4621 = vset.pattern.permute.xlu0 0
      %4622 = vperm.xlu0 %4621, %v4519
      %v4623 = vpop.permute.xlu0 %4622
      %4626 = vset.pattern.permute.xlu0 0
      %4627 = vperm.xlu0 %4626, %v4520
      %v4628 = vpop.permute.xlu0 %4627
      %4631 = vset.pattern.permute.xlu0 0
      %4632 = vperm.xlu0 %4631, %v4521
      %v4633 = vpop.permute.xlu0 %4632
      %v4635 = vmul.f32 %v4539, %v4558
      %v4636 = vmul.f32 %v4540, %v4563
      %v4637 = vmul.f32 %v4541, %v4568
      %v4638 = vmul.f32 %v4542, %v4573
      %v4639 = vmul.f32 %v4543, %v4578
      %v4640 = vmul.f32 %v4544, %v4583
      %v4641 = vmul.f32 %v4545, %v4588
      %v4642 = vmul.f32 %v4546, %v4593
      %v4643 = vmul.f32 %v4547, %v4598
      %v4644 = vmul.f32 %v4548, %v4603
      %v4645 = vmul.f32 %v4549, %v4608
      %v4646 = vmul.f32 %v4550, %v4613
      %v4647 = vmul.f32 %v4551, %v4618
      %v4648 = vmul.f32 %v4552, %v4623
      %v4649 = vmul.f32 %v4553, %v4628
      %v4650 = vmul.f32 %v4554, %v4633
      %v4651 = vadd.f32 %v4635, %v4636
      %v4652 = vadd.f32 %v4651, %v4637
      %v4653 = vadd.f32 %v4652, %v4638
      %v4654 = vadd.f32 %v4653, %v4639
      %v4655 = vadd.f32 %v4654, %v4640
      %v4656 = vadd.f32 %v4655, %v4641
      %v4657 = vadd.f32 %v4656, %v4642
      %v4658 = vadd.f32 %v4657, %v4643
      %v4659 = vadd.f32 %v4658, %v4644
      %v4660 = vadd.f32 %v4659, %v4645
      %v4661 = vadd.f32 %v4660, %v4646
      %v4662 = vadd.f32 %v4661, %v4647
      %v4663 = vadd.f32 %v4662, %v4648
      %v4664 = vadd.f32 %v4663, %v4649
      %v4665 = vadd.f32 %v4664, %v4650
      %v4666 = vrot.slane %v4665, 4
      %v4667 = vadd.f32 %v4665, %v4666
      %v4668 = vrot.slane %v4667, 2
      %v4669 = vadd.f32 %v4667, %v4668
      %v4670 = vrot.slane %v4669, 1
      %v4671 = vadd.f32 %v4669, %v4670
      %4672 = vxpose.xlu0.b32.start [1/16] %v4394, 128
      %4673 = vxpose.xlu0.b32.cont [2/16] %v4395, 128
      %4674 = vxpose.xlu0.b32.cont [3/16] %v4396, 128
      %4675 = vxpose.xlu0.b32.cont [4/16] %v4397, 128
      %4676 = vxpose.xlu0.b32.cont [5/16] %v4398, 128
      %4677 = vxpose.xlu0.b32.cont [6/16] %v4399, 128
      %4678 = vxpose.xlu0.b32.cont [7/16] %v4400, 128
      %4679 = vxpose.xlu0.b32.cont [8/16] %v4401, 128
      %4680 = vxpose.xlu0.b32.cont [9/16] %v4402, 128
      %4681 = vxpose.xlu0.b32.cont [10/16] %v4403, 128
      %4682 = vxpose.xlu0.b32.cont [11/16] %v4404, 128
      %4683 = vxpose.xlu0.b32.cont [12/16] %v4405, 128
      %4684 = vxpose.xlu0.b32.cont [13/16] %v4406, 128
      %4685 = vxpose.xlu0.b32.cont [14/16] %v4407, 128
      %4686 = vxpose.xlu0.b32.cont [15/16] %v4408, 128
      %4687 = vxpose.xlu0.b32.end [16/16] %v4409, 128
      %v4688 = vpop.trf.xlu0
      %v4689 = vpop.trf.xlu0
      %v4690 = vpop.trf.xlu0
      %v4691 = vpop.trf.xlu0
      %v4692 = vpop.trf.xlu0
      %v4693 = vpop.trf.xlu0
      %v4694 = vpop.trf.xlu0
      %v4695 = vpop.trf.xlu0
      %v4696 = vpop.trf.xlu0
      %v4697 = vpop.trf.xlu0
      %v4698 = vpop.trf.xlu0
      %v4699 = vpop.trf.xlu0
      %v4700 = vpop.trf.xlu0
      %v4701 = vpop.trf.xlu0
      %v4702 = vpop.trf.xlu0
      %v4703 = vpop.trf.xlu0
      %v4704 = vmul.f32 %v4688, %v4558
      %v4705 = vmul.f32 %v4689, %v4563
      %v4706 = vmul.f32 %v4690, %v4568
      %v4707 = vmul.f32 %v4691, %v4573
      %v4708 = vmul.f32 %v4692, %v4578
      %v4709 = vmul.f32 %v4693, %v4583
      %v4710 = vmul.f32 %v4694, %v4588
      %v4711 = vmul.f32 %v4695, %v4593
      %v4712 = vmul.f32 %v4696, %v4598
      %v4713 = vmul.f32 %v4697, %v4603
      %v4714 = vmul.f32 %v4698, %v4608
      %v4715 = vmul.f32 %v4699, %v4613
      %v4716 = vmul.f32 %v4700, %v4618
      %v4717 = vmul.f32 %v4701, %v4623
      %v4718 = vmul.f32 %v4702, %v4628
      %v4719 = vmul.f32 %v4703, %v4633
      %v4720 = vadd.f32 %v4704, %v4705
      %v4721 = vadd.f32 %v4720, %v4706
      %v4722 = vadd.f32 %v4721, %v4707
      %v4723 = vadd.f32 %v4722, %v4708
      %v4724 = vadd.f32 %v4723, %v4709
      %v4725 = vadd.f32 %v4724, %v4710
      %v4726 = vadd.f32 %v4725, %v4711
      %v4727 = vadd.f32 %v4726, %v4712
      %v4728 = vadd.f32 %v4727, %v4713
      %v4729 = vadd.f32 %v4728, %v4714
      %v4730 = vadd.f32 %v4729, %v4715
      %v4731 = vadd.f32 %v4730, %v4716
      %v4732 = vadd.f32 %v4731, %v4717
      %v4733 = vadd.f32 %v4732, %v4718
      %v4734 = vadd.f32 %v4733, %v4719
      %v4735 = vrot.slane %v4734, 4
      %v4736 = vadd.f32 %v4734, %v4735
      %v4737 = vrot.slane %v4736, 2
      %v4738 = vadd.f32 %v4736, %v4737
      %v4739 = vrot.slane %v4738, 1
      %v4740 = vadd.f32 %v4738, %v4739
      %4741 = vxpose.xlu0.b32.start [1/16] %v4410, 128
      %4742 = vxpose.xlu0.b32.cont [2/16] %v4411, 128
      %4743 = vxpose.xlu0.b32.cont [3/16] %v4412, 128
      %4744 = vxpose.xlu0.b32.cont [4/16] %v4413, 128
      %4745 = vxpose.xlu0.b32.cont [5/16] %v4414, 128
      %4746 = vxpose.xlu0.b32.cont [6/16] %v4415, 128
      %4747 = vxpose.xlu0.b32.cont [7/16] %v4416, 128
      %4748 = vxpose.xlu0.b32.cont [8/16] %v4417, 128
      %4749 = vxpose.xlu0.b32.cont [9/16] %v4418, 128
      %4750 = vxpose.xlu0.b32.cont [10/16] %v4419, 128
      %4751 = vxpose.xlu0.b32.cont [11/16] %v4420, 128
      %4752 = vxpose.xlu0.b32.cont [12/16] %v4421, 128
      %4753 = vxpose.xlu0.b32.cont [13/16] %v4422, 128
      %4754 = vxpose.xlu0.b32.cont [14/16] %v4423, 128
      %4755 = vxpose.xlu0.b32.cont [15/16] %v4424, 128
      %4756 = vxpose.xlu0.b32.end [16/16] %v4425, 128
      %v4757 = vpop.trf.xlu0
      %v4758 = vpop.trf.xlu0
      %v4759 = vpop.trf.xlu0
      %v4760 = vpop.trf.xlu0
      %v4761 = vpop.trf.xlu0
      %v4762 = vpop.trf.xlu0
      %v4763 = vpop.trf.xlu0
      %v4764 = vpop.trf.xlu0
      %v4765 = vpop.trf.xlu0
      %v4766 = vpop.trf.xlu0
      %v4767 = vpop.trf.xlu0
      %v4768 = vpop.trf.xlu0
      %v4769 = vpop.trf.xlu0
      %v4770 = vpop.trf.xlu0
      %v4771 = vpop.trf.xlu0
      %v4772 = vpop.trf.xlu0
      %v4773 = vmul.f32 %v4757, %v4558
      %v4774 = vmul.f32 %v4758, %v4563
      %v4775 = vmul.f32 %v4759, %v4568
      %v4776 = vmul.f32 %v4760, %v4573
      %v4777 = vmul.f32 %v4761, %v4578
      %v4778 = vmul.f32 %v4762, %v4583
      %v4779 = vmul.f32 %v4763, %v4588
      %v4780 = vmul.f32 %v4764, %v4593
      %v4781 = vmul.f32 %v4765, %v4598
      %v4782 = vmul.f32 %v4766, %v4603
      %v4783 = vmul.f32 %v4767, %v4608
      %v4784 = vmul.f32 %v4768, %v4613
      %v4785 = vmul.f32 %v4769, %v4618
      %v4786 = vmul.f32 %v4770, %v4623
      %v4787 = vmul.f32 %v4771, %v4628
      %v4788 = vmul.f32 %v4772, %v4633
      %v4789 = vadd.f32 %v4773, %v4774
      %v4790 = vadd.f32 %v4789, %v4775
      %v4791 = vadd.f32 %v4790, %v4776
      %v4792 = vadd.f32 %v4791, %v4777
      %v4793 = vadd.f32 %v4792, %v4778
      %v4794 = vadd.f32 %v4793, %v4779
      %v4795 = vadd.f32 %v4794, %v4780
      %v4796 = vadd.f32 %v4795, %v4781
      %v4797 = vadd.f32 %v4796, %v4782
      %v4798 = vadd.f32 %v4797, %v4783
      %v4799 = vadd.f32 %v4798, %v4784
      %v4800 = vadd.f32 %v4799, %v4785
      %v4801 = vadd.f32 %v4800, %v4786
      %v4802 = vadd.f32 %v4801, %v4787
      %v4803 = vadd.f32 %v4802, %v4788
      %v4804 = vrot.slane %v4803, 4
      %v4805 = vadd.f32 %v4803, %v4804
      %v4806 = vrot.slane %v4805, 2
      %v4807 = vadd.f32 %v4805, %v4806
      %v4808 = vrot.slane %v4807, 1
      %v4809 = vadd.f32 %v4807, %v4808
      %4810 = vxpose.xlu0.b32.start [1/16] %v4426, 128
      %4811 = vxpose.xlu0.b32.cont [2/16] %v4427, 128
      %4812 = vxpose.xlu0.b32.cont [3/16] %v4428, 128
      %4813 = vxpose.xlu0.b32.cont [4/16] %v4429, 128
      %4814 = vxpose.xlu0.b32.cont [5/16] %v4430, 128
      %4815 = vxpose.xlu0.b32.cont [6/16] %v4431, 128
      %4816 = vxpose.xlu0.b32.cont [7/16] %v4432, 128
      %4817 = vxpose.xlu0.b32.cont [8/16] %v4433, 128
      %4818 = vxpose.xlu0.b32.cont [9/16] %v4434, 128
      %4819 = vxpose.xlu0.b32.cont [10/16] %v4435, 128
      %4820 = vxpose.xlu0.b32.cont [11/16] %v4436, 128
      %4821 = vxpose.xlu0.b32.cont [12/16] %v4437, 128
      %4822 = vxpose.xlu0.b32.cont [13/16] %v4438, 128
      %4823 = vxpose.xlu0.b32.cont [14/16] %v4439, 128
      %4824 = vxpose.xlu0.b32.cont [15/16] %v4440, 128
      %4825 = vxpose.xlu0.b32.end [16/16] %v4441, 128
      %v4826 = vpop.trf.xlu0
      %v4827 = vpop.trf.xlu0
      %v4828 = vpop.trf.xlu0
      %v4829 = vpop.trf.xlu0
      %v4830 = vpop.trf.xlu0
      %v4831 = vpop.trf.xlu0
      %v4832 = vpop.trf.xlu0
      %v4833 = vpop.trf.xlu0
      %v4834 = vpop.trf.xlu0
      %v4835 = vpop.trf.xlu0
      %v4836 = vpop.trf.xlu0
      %v4837 = vpop.trf.xlu0
      %v4838 = vpop.trf.xlu0
      %v4839 = vpop.trf.xlu0
      %v4840 = vpop.trf.xlu0
      %v4841 = vpop.trf.xlu0
      %v4842 = vmul.f32 %v4826, %v4558
      %v4843 = vmul.f32 %v4827, %v4563
      %v4844 = vmul.f32 %v4828, %v4568
      %v4845 = vmul.f32 %v4829, %v4573
      %v4846 = vmul.f32 %v4830, %v4578
      %v4847 = vmul.f32 %v4831, %v4583
      %v4848 = vmul.f32 %v4832, %v4588
      %v4849 = vmul.f32 %v4833, %v4593
      %v4850 = vmul.f32 %v4834, %v4598
      %v4851 = vmul.f32 %v4835, %v4603
      %v4852 = vmul.f32 %v4836, %v4608
      %v4853 = vmul.f32 %v4837, %v4613
      %v4854 = vmul.f32 %v4838, %v4618
      %v4855 = vmul.f32 %v4839, %v4623
      %v4856 = vmul.f32 %v4840, %v4628
      %v4857 = vmul.f32 %v4841, %v4633
      %v4858 = vadd.f32 %v4842, %v4843
      %v4859 = vadd.f32 %v4858, %v4844
      %v4860 = vadd.f32 %v4859, %v4845
      %v4861 = vadd.f32 %v4860, %v4846
      %v4862 = vadd.f32 %v4861, %v4847
      %v4863 = vadd.f32 %v4862, %v4848
      %v4864 = vadd.f32 %v4863, %v4849
      %v4865 = vadd.f32 %v4864, %v4850
      %v4866 = vadd.f32 %v4865, %v4851
      %v4867 = vadd.f32 %v4866, %v4852
      %v4868 = vadd.f32 %v4867, %v4853
      %v4869 = vadd.f32 %v4868, %v4854
      %v4870 = vadd.f32 %v4869, %v4855
      %v4871 = vadd.f32 %v4870, %v4856
      %v4872 = vadd.f32 %v4871, %v4857
      %v4873 = vrot.slane %v4872, 4
      %v4874 = vadd.f32 %v4872, %v4873
      %v4875 = vrot.slane %v4874, 2
      %v4876 = vadd.f32 %v4874, %v4875
      %v4877 = vrot.slane %v4876, 1
      %v4878 = vadd.f32 %v4876, %v4877
      %4879 = vxpose.xlu0.b32.start [1/16] %v4442, 128
      %4880 = vxpose.xlu0.b32.cont [2/16] %v4443, 128
      %4881 = vxpose.xlu0.b32.cont [3/16] %v4444, 128
      %4882 = vxpose.xlu0.b32.cont [4/16] %v4445, 128
      %4883 = vxpose.xlu0.b32.cont [5/16] %v4446, 128
      %4884 = vxpose.xlu0.b32.cont [6/16] %v4447, 128
      %4885 = vxpose.xlu0.b32.cont [7/16] %v4448, 128
      %4886 = vxpose.xlu0.b32.cont [8/16] %v4449, 128
      %4887 = vxpose.xlu0.b32.cont [9/16] %v4450, 128
      %4888 = vxpose.xlu0.b32.cont [10/16] %v4451, 128
      %4889 = vxpose.xlu0.b32.cont [11/16] %v4452, 128
      %4890 = vxpose.xlu0.b32.cont [12/16] %v4453, 128
      %4891 = vxpose.xlu0.b32.cont [13/16] %v4454, 128
      %4892 = vxpose.xlu0.b32.cont [14/16] %v4455, 128
      %4893 = vxpose.xlu0.b32.cont [15/16] %v4456, 128
      %4894 = vxpose.xlu0.b32.end [16/16] %v4457, 128
      %v4895 = vpop.trf.xlu0
      %v4896 = vpop.trf.xlu0
      %v4897 = vpop.trf.xlu0
      %v4898 = vpop.trf.xlu0
      %v4899 = vpop.trf.xlu0
      %v4900 = vpop.trf.xlu0
      %v4901 = vpop.trf.xlu0
      %v4902 = vpop.trf.xlu0
      %v4903 = vpop.trf.xlu0
      %v4904 = vpop.trf.xlu0
      %v4905 = vpop.trf.xlu0
      %v4906 = vpop.trf.xlu0
      %v4907 = vpop.trf.xlu0
      %v4908 = vpop.trf.xlu0
      %v4909 = vpop.trf.xlu0
      %v4910 = vpop.trf.xlu0
      %v4911 = vmul.f32 %v4895, %v4558
      %v4912 = vmul.f32 %v4896, %v4563
      %v4913 = vmul.f32 %v4897, %v4568
      %v4914 = vmul.f32 %v4898, %v4573
      %v4915 = vmul.f32 %v4899, %v4578
      %v4916 = vmul.f32 %v4900, %v4583
      %v4917 = vmul.f32 %v4901, %v4588
      %v4918 = vmul.f32 %v4902, %v4593
      %v4919 = vmul.f32 %v4903, %v4598
      %v4920 = vmul.f32 %v4904, %v4603
      %v4921 = vmul.f32 %v4905, %v4608
      %v4922 = vmul.f32 %v4906, %v4613
      %v4923 = vmul.f32 %v4907, %v4618
      %v4924 = vmul.f32 %v4908, %v4623
      %v4925 = vmul.f32 %v4909, %v4628
      %v4926 = vmul.f32 %v4910, %v4633
      %v4927 = vadd.f32 %v4911, %v4912
      %v4928 = vadd.f32 %v4927, %v4913
      %v4929 = vadd.f32 %v4928, %v4914
      %v4930 = vadd.f32 %v4929, %v4915
      %v4931 = vadd.f32 %v4930, %v4916
      %v4932 = vadd.f32 %v4931, %v4917
      %v4933 = vadd.f32 %v4932, %v4918
      %v4934 = vadd.f32 %v4933, %v4919
      %v4935 = vadd.f32 %v4934, %v4920
      %v4936 = vadd.f32 %v4935, %v4921
      %v4937 = vadd.f32 %v4936, %v4922
      %v4938 = vadd.f32 %v4937, %v4923
      %v4939 = vadd.f32 %v4938, %v4924
      %v4940 = vadd.f32 %v4939, %v4925
      %v4941 = vadd.f32 %v4940, %v4926
      %v4942 = vrot.slane %v4941, 4
      %v4943 = vadd.f32 %v4941, %v4942
      %v4944 = vrot.slane %v4943, 2
      %v4945 = vadd.f32 %v4943, %v4944
      %v4946 = vrot.slane %v4945, 1
      %v4947 = vadd.f32 %v4945, %v4946
      %4948 = vxpose.xlu0.b32.start [1/16] %v4458, 128
      %4949 = vxpose.xlu0.b32.cont [2/16] %v4459, 128
      %4950 = vxpose.xlu0.b32.cont [3/16] %v4460, 128
      %4951 = vxpose.xlu0.b32.cont [4/16] %v4461, 128
      %4952 = vxpose.xlu0.b32.cont [5/16] %v4462, 128
      %4953 = vxpose.xlu0.b32.cont [6/16] %v4463, 128
      %4954 = vxpose.xlu0.b32.cont [7/16] %v4464, 128
      %4955 = vxpose.xlu0.b32.cont [8/16] %v4465, 128
      %4956 = vxpose.xlu0.b32.cont [9/16] %v4466, 128
      %4957 = vxpose.xlu0.b32.cont [10/16] %v4467, 128
      %4958 = vxpose.xlu0.b32.cont [11/16] %v4468, 128
      %4959 = vxpose.xlu0.b32.cont [12/16] %v4469, 128
      %4960 = vxpose.xlu0.b32.cont [13/16] %v4470, 128
      %4961 = vxpose.xlu0.b32.cont [14/16] %v4471, 128
      %4962 = vxpose.xlu0.b32.cont [15/16] %v4472, 128
      %4963 = vxpose.xlu0.b32.end [16/16] %v4473, 128
      %v4964 = vpop.trf.xlu0
      %v4965 = vpop.trf.xlu0
      %v4966 = vpop.trf.xlu0
      %v4967 = vpop.trf.xlu0
      %v4968 = vpop.trf.xlu0
      %v4969 = vpop.trf.xlu0
      %v4970 = vpop.trf.xlu0
      %v4971 = vpop.trf.xlu0
      %v4972 = vpop.trf.xlu0
      %v4973 = vpop.trf.xlu0
      %v4974 = vpop.trf.xlu0
      %v4975 = vpop.trf.xlu0
      %v4976 = vpop.trf.xlu0
      %v4977 = vpop.trf.xlu0
      %v4978 = vpop.trf.xlu0
      %v4979 = vpop.trf.xlu0
      %v4980 = vmul.f32 %v4964, %v4558
      %v4981 = vmul.f32 %v4965, %v4563
      %v4982 = vmul.f32 %v4966, %v4568
      %v4983 = vmul.f32 %v4967, %v4573
      %v4984 = vmul.f32 %v4968, %v4578
      %v4985 = vmul.f32 %v4969, %v4583
      %v4986 = vmul.f32 %v4970, %v4588
      %v4987 = vmul.f32 %v4971, %v4593
      %v4988 = vmul.f32 %v4972, %v4598
      %v4989 = vmul.f32 %v4973, %v4603
      %v4990 = vmul.f32 %v4974, %v4608
      %v4991 = vmul.f32 %v4975, %v4613
      %v4992 = vmul.f32 %v4976, %v4618
      %v4993 = vmul.f32 %v4977, %v4623
      %v4994 = vmul.f32 %v4978, %v4628
      %v4995 = vmul.f32 %v4979, %v4633
      %v4996 = vadd.f32 %v4980, %v4981
      %v4997 = vadd.f32 %v4996, %v4982
      %v4998 = vadd.f32 %v4997, %v4983
      %v4999 = vadd.f32 %v4998, %v4984
      %v5000 = vadd.f32 %v4999, %v4985
      %v5001 = vadd.f32 %v5000, %v4986
      %v5002 = vadd.f32 %v5001, %v4987
      %v5003 = vadd.f32 %v5002, %v4988
      %v5004 = vadd.f32 %v5003, %v4989
      %v5005 = vadd.f32 %v5004, %v4990
      %v5006 = vadd.f32 %v5005, %v4991
      %v5007 = vadd.f32 %v5006, %v4992
      %v5008 = vadd.f32 %v5007, %v4993
      %v5009 = vadd.f32 %v5008, %v4994
      %v5010 = vadd.f32 %v5009, %v4995
      %v5011 = vrot.slane %v5010, 4
      %v5012 = vadd.f32 %v5010, %v5011
      %v5013 = vrot.slane %v5012, 2
      %v5014 = vadd.f32 %v5012, %v5013
      %v5015 = vrot.slane %v5014, 1
      %v5016 = vadd.f32 %v5014, %v5015
      %5017 = vxpose.xlu0.b32.start [1/16] %v4474, 128
      %5018 = vxpose.xlu0.b32.cont [2/16] %v4475, 128
      %5019 = vxpose.xlu0.b32.cont [3/16] %v4476, 128
      %5020 = vxpose.xlu0.b32.cont [4/16] %v4477, 128
      %5021 = vxpose.xlu0.b32.cont [5/16] %v4478, 128
      %5022 = vxpose.xlu0.b32.cont [6/16] %v4479, 128
      %5023 = vxpose.xlu0.b32.cont [7/16] %v4480, 128
      %5024 = vxpose.xlu0.b32.cont [8/16] %v4481, 128
      %5025 = vxpose.xlu0.b32.cont [9/16] %v4482, 128
      %5026 = vxpose.xlu0.b32.cont [10/16] %v4483, 128
      %5027 = vxpose.xlu0.b32.cont [11/16] %v4484, 128
      %5028 = vxpose.xlu0.b32.cont [12/16] %v4485, 128
      %5029 = vxpose.xlu0.b32.cont [13/16] %v4486, 128
      %5030 = vxpose.xlu0.b32.cont [14/16] %v4487, 128
      %5031 = vxpose.xlu0.b32.cont [15/16] %v4488, 128
      %5032 = vxpose.xlu0.b32.end [16/16] %v4489, 128
      %v5033 = vpop.trf.xlu0
      %v5034 = vpop.trf.xlu0
      %v5035 = vpop.trf.xlu0
      %v5036 = vpop.trf.xlu0
      %v5037 = vpop.trf.xlu0
      %v5038 = vpop.trf.xlu0
      %v5039 = vpop.trf.xlu0
      %v5040 = vpop.trf.xlu0
      %v5041 = vpop.trf.xlu0
      %v5042 = vpop.trf.xlu0
      %v5043 = vpop.trf.xlu0
      %v5044 = vpop.trf.xlu0
      %v5045 = vpop.trf.xlu0
      %v5046 = vpop.trf.xlu0
      %v5047 = vpop.trf.xlu0
      %v5048 = vpop.trf.xlu0
      %v5049 = vmul.f32 %v5033, %v4558
      %v5050 = vmul.f32 %v5034, %v4563
      %v5051 = vmul.f32 %v5035, %v4568
      %v5052 = vmul.f32 %v5036, %v4573
      %v5053 = vmul.f32 %v5037, %v4578
      %v5054 = vmul.f32 %v5038, %v4583
      %v5055 = vmul.f32 %v5039, %v4588
      %v5056 = vmul.f32 %v5040, %v4593
      %v5057 = vmul.f32 %v5041, %v4598
      %v5058 = vmul.f32 %v5042, %v4603
      %v5059 = vmul.f32 %v5043, %v4608
      %v5060 = vmul.f32 %v5044, %v4613
      %v5061 = vmul.f32 %v5045, %v4618
      %v5062 = vmul.f32 %v5046, %v4623
      %v5063 = vmul.f32 %v5047, %v4628
      %v5064 = vmul.f32 %v5048, %v4633
      %v5065 = vadd.f32 %v5049, %v5050
      %v5066 = vadd.f32 %v5065, %v5051
      %v5067 = vadd.f32 %v5066, %v5052
      %v5068 = vadd.f32 %v5067, %v5053
      %v5069 = vadd.f32 %v5068, %v5054
      %v5070 = vadd.f32 %v5069, %v5055
      %v5071 = vadd.f32 %v5070, %v5056
      %v5072 = vadd.f32 %v5071, %v5057
      %v5073 = vadd.f32 %v5072, %v5058
      %v5074 = vadd.f32 %v5073, %v5059
      %v5075 = vadd.f32 %v5074, %v5060
      %v5076 = vadd.f32 %v5075, %v5061
      %v5077 = vadd.f32 %v5076, %v5062
      %v5078 = vadd.f32 %v5077, %v5063
      %v5079 = vadd.f32 %v5078, %v5064
      %v5080 = vrot.slane %v5079, 4
      %v5081 = vadd.f32 %v5079, %v5080
      %v5082 = vrot.slane %v5081, 2
      %v5083 = vadd.f32 %v5081, %v5082
      %v5084 = vrot.slane %v5083, 1
      %v5085 = vadd.f32 %v5083, %v5084
      %5086 = vxpose.xlu0.b32.start [1/16] %v4490, 128
      %5087 = vxpose.xlu0.b32.cont [2/16] %v4491, 128
      %5088 = vxpose.xlu0.b32.cont [3/16] %v4492, 128
      %5089 = vxpose.xlu0.b32.cont [4/16] %v4493, 128
      %5090 = vxpose.xlu0.b32.cont [5/16] %v4494, 128
      %5091 = vxpose.xlu0.b32.cont [6/16] %v4495, 128
      %5092 = vxpose.xlu0.b32.cont [7/16] %v4496, 128
      %5093 = vxpose.xlu0.b32.cont [8/16] %v4497, 128
      %5094 = vxpose.xlu0.b32.cont [9/16] %v4498, 128
      %5095 = vxpose.xlu0.b32.cont [10/16] %v4499, 128
      %5096 = vxpose.xlu0.b32.cont [11/16] %v4500, 128
      %5097 = vxpose.xlu0.b32.cont [12/16] %v4501, 128
      %5098 = vxpose.xlu0.b32.cont [13/16] %v4502, 128
      %5099 = vxpose.xlu0.b32.cont [14/16] %v4503, 128
      %5100 = vxpose.xlu0.b32.cont [15/16] %v4504, 128
      %5101 = vxpose.xlu0.b32.end [16/16] %v4505, 128
      %v5102 = vpop.trf.xlu0
      %v5103 = vpop.trf.xlu0
      %v5104 = vpop.trf.xlu0
      %v5105 = vpop.trf.xlu0
      %v5106 = vpop.trf.xlu0
      %v5107 = vpop.trf.xlu0
      %v5108 = vpop.trf.xlu0
      %v5109 = vpop.trf.xlu0
      %v5110 = vpop.trf.xlu0
      %v5111 = vpop.trf.xlu0
      %v5112 = vpop.trf.xlu0
      %v5113 = vpop.trf.xlu0
      %v5114 = vpop.trf.xlu0
      %v5115 = vpop.trf.xlu0
      %v5116 = vpop.trf.xlu0
      %v5117 = vpop.trf.xlu0
      %v5118 = vmul.f32 %v5102, %v4558
      %v5119 = vmul.f32 %v5103, %v4563
      %v5120 = vmul.f32 %v5104, %v4568
      %v5121 = vmul.f32 %v5105, %v4573
      %v5122 = vmul.f32 %v5106, %v4578
      %v5123 = vmul.f32 %v5107, %v4583
      %v5124 = vmul.f32 %v5108, %v4588
      %v5125 = vmul.f32 %v5109, %v4593
      %v5126 = vmul.f32 %v5110, %v4598
      %v5127 = vmul.f32 %v5111, %v4603
      %v5128 = vmul.f32 %v5112, %v4608
      %v5129 = vmul.f32 %v5113, %v4613
      %v5130 = vmul.f32 %v5114, %v4618
      %v5131 = vmul.f32 %v5115, %v4623
      %v5132 = vmul.f32 %v5116, %v4628
      %v5133 = vmul.f32 %v5117, %v4633
      %v5134 = vadd.f32 %v5118, %v5119
      %v5135 = vadd.f32 %v5134, %v5120
      %v5136 = vadd.f32 %v5135, %v5121
      %v5137 = vadd.f32 %v5136, %v5122
      %v5138 = vadd.f32 %v5137, %v5123
      %v5139 = vadd.f32 %v5138, %v5124
      %v5140 = vadd.f32 %v5139, %v5125
      %v5141 = vadd.f32 %v5140, %v5126
      %v5142 = vadd.f32 %v5141, %v5127
      %v5143 = vadd.f32 %v5142, %v5128
      %v5144 = vadd.f32 %v5143, %v5129
      %v5145 = vadd.f32 %v5144, %v5130
      %v5146 = vadd.f32 %v5145, %v5131
      %v5147 = vadd.f32 %v5146, %v5132
      %v5148 = vadd.f32 %v5147, %v5133
      %v5149 = vrot.slane %v5148, 4
      %v5150 = vadd.f32 %v5148, %v5149
      %v5151 = vrot.slane %v5150, 2
      %v5152 = vadd.f32 %v5150, %v5151
      %v5153 = vrot.slane %v5152, 1
      %v5154 = vadd.f32 %v5152, %v5153
      %vm5155 = vcmask 1040384
      %v5156 = vsel %vm5155, %v4671, %v4740
      %vm5157 = vcmask 1041408
      %v5158 = vsel %vm5157, %v5156, %v4809
      %vm5159 = vcmask 1042432
      %v5160 = vsel %vm5159, %v5158, %v4878
      %vm5161 = vcmask 1043456
      %v5162 = vsel %vm5161, %v5160, %v4947
      %vm5163 = vcmask 1044480
      %v5164 = vsel %vm5163, %v5162, %v5016
      %vm5165 = vcmask 1045504
      %v5166 = vsel %vm5165, %v5164, %v5085
      %vm5167 = vcmask 1046528
      %v5168 = vsel %vm5167, %v5166, %v5154
      %v5169 = vstv %s4522
      %v5170 = vadd.f32 %v5168, %v5169
      %5171 = vst [vmem:[%s306] sm:$0xff] %v5170
      %p5172 = scmp.lt.s32.totalorder %s20, 1
      %s5173 = scalar_select %p5172, %s20, 1
      %s5174 = smul.addr %s5173, 8
      %s5175 = scalar_lea.vmem %s8, %s5174
      // Predicated region
      $region53: #{pixel_discriminator_pallas.3} parent=51 // pred_check
        %p5176 = pneg %p211
      $region54: #{pixel_discriminator_pallas.3} parent=51 // pred_check_branch
        %5178 = sbr.rel (%p5176) target = $region56
      $region55: #{pixel_discriminator_pallas.3} parent=51 // pred_region
        _
      $region56: #{pixel_discriminator_pallas.3} parent=51 // pred_fallthru
        _
    $region52: #{pixel_discriminator_pallas.3} parent=5 // pred_fallthru
      _
    %p5179 = scmp.le.s32.totalorder 2, %s15
    // Predicated region
    $region57: #{pixel_discriminator_pallas.3} parent=5 // pred_check
      %p5180 = pneg %p5179
    $region58: #{pixel_discriminator_pallas.3} parent=5 // pred_check_branch
      %5182 = sbr.rel (%p5180) target = $region60
    $region59: #{pixel_discriminator_pallas.3} parent=5 // pred_region
      %s5183 = ssub.s32 %s15, 2
      // Predicated region
      $region61: #{pixel_discriminator_pallas.3} parent=59 // pred_check
        %p5184 = pneg %p217
      $region62: #{pixel_discriminator_pallas.3} parent=59 // pred_check_branch
        %5186 = sbr.rel (%p5184) target = $region64
      $region63: #{pixel_discriminator_pallas.3} parent=59 // pred_region
        %p5187 = scmp.lt.s32.totalorder %s21, 1
        %s5188 = scalar_select %p5187, %s21, 1
        %s5189 = smul.addr %s5188, 8
        %s5190 = scalar_lea.vmem %s8, %s5189
      $region64: #{pixel_discriminator_pallas.3} parent=59 // pred_fallthru
        _
    $region60: #{pixel_discriminator_pallas.3} parent=5 // pred_fallthru
      _
  $region6: #{pixel_discriminator_pallas.3} parent=0 // loop_footer
    %s19 = sadd.s32 1, %s15
  $region7: #{pixel_discriminator_pallas.3} parent=0 // loop_footer_branch
    %14 = sbr.rel target = $region3
  $region8: #{pixel_discriminator_pallas.3} parent=0 // loop_exit
    _

// kernel: pixel_discriminator_pallas.2
$region0: #{pixel_discriminator_pallas.2}
  #allocation0 [shape = 'u32[]', space=smem, size = 0x4, offset = 0x4, fixed_abs, tag = 'smem constant byte address 0x4 - core index']
  #allocation1 [shape = 'u32[144,128]{1,0:T(1,128)}', space=vmem, size = 0x12000, scoped, tag = 'internal scratch']
  %s0 = inlined_call_operand.vmem [shape: f32[2048,3], index: 0, kind: input, shape index: {}]
  %s1 = inlined_call_operand.vmem [shape: f32[3,64], index: 1, kind: input, shape index: {}]
  %s2 = inlined_call_operand.vmem [shape: f32[1,64], index: 2, kind: input, shape index: {}]
  %s3 = inlined_call_operand.vmem [shape: bf16[64,128], index: 3, kind: input, shape index: {}]
  %s4 = inlined_call_operand.vmem [shape: f32[2,128], index: 4, kind: output, shape index: {}]
  %s5 = sld [smem:[#allocation0]]
  $region53: #{pixel_discriminator_pallas.2} parent=0
    _
  %s7 = ssub.s32 1, %s5
  %s8 = scalar_select 0, %s7, %s5
  loop: start=0, step=1, limit=4
  $region2: #{pixel_discriminator_pallas.2} parent=0 // loop_pre_header
    _
  $region3: #{pixel_discriminator_pallas.2} parent=0 // loop_header
    %s10 = sphi 0, %s14
    %p11 = scmp.ge.s32.totalorder %s10, 4
    %s20 = sphi 0, %s22
    %s23 = sphi 0, %s20
    %s24 = sphi 0, %s23
    %s40 = sphi 0, %s24
    %s44 = sphi 0, %s44
    %s46 = sphi 0, %s44
    %s47 = sphi 0, %s46
    %s61 = sphi 0, %s47
    %s65 = sphi 0, %s65
    %s67 = sphi 0, %s65
    %s68 = sphi 0, %s67
    %s82 = sphi 0, %s68
    %s86 = sphi 0, %s86
    %s88 = sphi 0, %s86
    %s89 = sphi 0, %s88
    %s103 = sphi 0, %s89
    %s107 = sphi 0, %s107
    %s109 = sphi 0, %s107
    %s110 = sphi 0, %s109
    %s124 = sphi 0, %s110
  $region4: #{pixel_discriminator_pallas.2} parent=0 // loop_header_branch
    %13 = sbr.rel (%p11) target = $region8
  $region5: #{pixel_discriminator_pallas.2} parent=0 // loop_body
    %s15 = ssub.s32 %s10, 1
    %s16 = ssub.s32 %s10, 2
    %s17 = sadd.s32 %s10, 1
    %s18 = ssub.s32 %s10, %s17
    %p19 = scmp.eq.s32.totalorder %s18, 0
    %s21 = sadd.s32 %s20, 1
    %s22 = scalar_select %p19, %s20, %s21
    %p25 = pneg %p19
    %p26 = scmp.eq.s32.totalorder %s10, 1
    %p27 = por %p25, %p26
    %p28 = scmp.ne.s32.totalorder %s20, %s23
    %p29 = scmp.eq.s32.totalorder %s10, 0
    %p30 = por %p28, %p29
    %p31 = scmp.ne.s32.totalorder %s20, %s23
    %p32 = scmp.eq.s32.totalorder %s15, 1
    %p33 = por %p31, %p32
    %p34 = scmp.ne.s32.totalorder %s23, %s24
    %p35 = scmp.eq.s32.totalorder %s15, 0
    %p36 = por %p34, %p35
    %p37 = scmp.ne.s32.totalorder %s23, %s24
    %p38 = scmp.eq.s32.totalorder %s16, 1
    %p39 = por %p37, %p38
    %p41 = scmp.ne.s32.totalorder %s24, %s40
    %p42 = scmp.eq.s32.totalorder %s16, 0
    %p43 = por %p41, %p42
    %s45 = sadd.s32 %s44, 1
    %p48 = scmp.eq.s32.totalorder %s10, 1
    %p49 = scmp.ne.s32.totalorder %s44, %s46
    %p50 = scmp.eq.s32.totalorder %s10, 0
    %p51 = por %p49, %p50
    %p52 = scmp.ne.s32.totalorder %s44, %s46
    %p53 = scmp.eq.s32.totalorder %s15, 1
    %p54 = por %p52, %p53
    %p55 = scmp.ne.s32.totalorder %s46, %s47
    %p56 = scmp.eq.s32.totalorder %s15, 0
    %p57 = por %p55, %p56
    %p58 = scmp.ne.s32.totalorder %s46, %s47
    %p59 = scmp.eq.s32.totalorder %s16, 1
    %p60 = por %p58, %p59
    %p62 = scmp.ne.s32.totalorder %s47, %s61
    %p63 = scmp.eq.s32.totalorder %s16, 0
    %p64 = por %p62, %p63
    %s66 = sadd.s32 %s65, 1
    %p69 = scmp.eq.s32.totalorder %s10, 1
    %p70 = scmp.ne.s32.totalorder %s65, %s67
    %p71 = scmp.eq.s32.totalorder %s10, 0
    %p72 = por %p70, %p71
    %p73 = scmp.ne.s32.totalorder %s65, %s67
    %p74 = scmp.eq.s32.totalorder %s15, 1
    %p75 = por %p73, %p74
    %p76 = scmp.ne.s32.totalorder %s67, %s68
    %p77 = scmp.eq.s32.totalorder %s15, 0
    %p78 = por %p76, %p77
    %p79 = scmp.ne.s32.totalorder %s67, %s68
    %p80 = scmp.eq.s32.totalorder %s16, 1
    %p81 = por %p79, %p80
    %p83 = scmp.ne.s32.totalorder %s68, %s82
    %p84 = scmp.eq.s32.totalorder %s16, 0
    %p85 = por %p83, %p84
    %s87 = sadd.s32 %s86, 1
    %p90 = scmp.eq.s32.totalorder %s10, 1
    %p91 = scmp.ne.s32.totalorder %s86, %s88
    %p92 = scmp.eq.s32.totalorder %s10, 0
    %p93 = por %p91, %p92
    %p94 = scmp.ne.s32.totalorder %s86, %s88
    %p95 = scmp.eq.s32.totalorder %s15, 1
    %p96 = por %p94, %p95
    %p97 = scmp.ne.s32.totalorder %s88, %s89
    %p98 = scmp.eq.s32.totalorder %s15, 0
    %p99 = por %p97, %p98
    %p100 = scmp.ne.s32.totalorder %s88, %s89
    %p101 = scmp.eq.s32.totalorder %s16, 1
    %p102 = por %p100, %p101
    %p104 = scmp.ne.s32.totalorder %s89, %s103
    %p105 = scmp.eq.s32.totalorder %s16, 0
    %p106 = por %p104, %p105
    %s108 = sadd.s32 %s107, 1
    %p111 = scmp.eq.s32.totalorder %s10, 1
    %p112 = scmp.ne.s32.totalorder %s107, %s109
    %p113 = scmp.eq.s32.totalorder %s10, 0
    %p114 = por %p112, %p113
    %p115 = scmp.ne.s32.totalorder %s107, %s109
    %p116 = scmp.eq.s32.totalorder %s15, 1
    %p117 = por %p115, %p116
    %p118 = scmp.ne.s32.totalorder %s109, %s110
    %p119 = scmp.eq.s32.totalorder %s15, 0
    %p120 = por %p118, %p119
    %p121 = scmp.ne.s32.totalorder %s109, %s110
    %p122 = scmp.eq.s32.totalorder %s16, 1
    %p123 = por %p121, %p122
    %p125 = scmp.ne.s32.totalorder %s110, %s124
    %p126 = scmp.eq.s32.totalorder %s16, 0
    %p127 = por %p125, %p126
    %p128 = scmp.le.s32.totalorder 1, %s10
    %p129 = scmp.lt.s32.totalorder %s10, 3
    %p130 = pnand %p128, %p129
    %p131 = pneg %p130
    // Predicated region
    $region9: #{pixel_discriminator_pallas.2} parent=5 // pred_check
      _
    $region10: #{pixel_discriminator_pallas.2} parent=5 // pred_check_branch
      %133 = sbr.rel (%p130) target = $region12
    $region11: #{pixel_discriminator_pallas.2} parent=5 // pred_region
      %s134 = ssub.s32 %s10, 1
      // Predicated region
      $region13: #{pixel_discriminator_pallas.2} parent=11 // pred_check
        %p135 = pneg %p57
      $region14: #{pixel_discriminator_pallas.2} parent=11 // pred_check_branch
        %137 = sbr.rel (%p135) target = $region16
      $region15: #{pixel_discriminator_pallas.2} parent=11 // pred_region
        _
      $region16: #{pixel_discriminator_pallas.2} parent=11 // pred_fallthru
        _
      // Predicated region
      $region17: #{pixel_discriminator_pallas.2} parent=11 // pred_check
        %p138 = pneg %p78
      $region18: #{pixel_discriminator_pallas.2} parent=11 // pred_check_branch
        %140 = sbr.rel (%p138) target = $region20
      $region19: #{pixel_discriminator_pallas.2} parent=11 // pred_region
        _
      $region20: #{pixel_discriminator_pallas.2} parent=11 // pred_fallthru
        _
      // Predicated region
      $region21: #{pixel_discriminator_pallas.2} parent=11 // pred_check
        %p141 = pneg %p99
      $region22: #{pixel_discriminator_pallas.2} parent=11 // pred_check_branch
        %143 = sbr.rel (%p141) target = $region24
      $region23: #{pixel_discriminator_pallas.2} parent=11 // pred_region
        _
      $region24: #{pixel_discriminator_pallas.2} parent=11 // pred_fallthru
        _
    $region12: #{pixel_discriminator_pallas.2} parent=5 // pred_fallthru
      _
    %p144 = scmp.lt.s32.totalorder %s10, 2
    // Predicated region
    $region25: #{pixel_discriminator_pallas.2} parent=5 // pred_check
      %p145 = pneg %p144
    $region26: #{pixel_discriminator_pallas.2} parent=5 // pred_check_branch
      %147 = sbr.rel (%p145) target = $region28
    $region27: #{pixel_discriminator_pallas.2} parent=5 // pred_region
      // Predicated region
      $region29: #{pixel_discriminator_pallas.2} parent=27 // pred_check
        %p148 = pneg %p30
      $region30: #{pixel_discriminator_pallas.2} parent=27 // pred_check_branch
        %150 = sbr.rel (%p148) target = $region32
      $region31: #{pixel_discriminator_pallas.2} parent=27 // pred_region
        %s151 = smul.u32 128, %s10
        %p152 = scmp.lt.s32.totalorder %s151, 255
        %s153 = scalar_select %p152, %s151, 255
        %s154 = smul.addr %s153, 8
        %s155 = scalar_lea.vmem %s0, %s154
        %s156 = smul.u32 128, %s10
      $region32: #{pixel_discriminator_pallas.2} parent=27 // pred_fallthru
        _
    $region28: #{pixel_discriminator_pallas.2} parent=5 // pred_fallthru
      _
    %p157 = scmp.le.s32.totalorder 1, %s10
    %p158 = scmp.lt.s32.totalorder %s10, 3
    %p159 = pnand %p157, %p158
    %p160 = pneg %p159
    // Predicated region
    $region33: #{pixel_discriminator_pallas.2} parent=5 // pred_check
      _
    $region34: #{pixel_discriminator_pallas.2} parent=5 // pred_check_branch
      %162 = sbr.rel (%p159) target = $region36
    $region35: #{pixel_discriminator_pallas.2} parent=5 // pred_region
      %s163 = ssub.s32 %s10, 1
      %s164 = smul.u32 128, %s15
      %p165 = scmp.lt.s32.totalorder %s164, 255
      %s166 = scalar_select %p165, %s164, 255
      %s167 = smul.addr %s166, 8
      %s168 = scalar_lea.vmem %s0, %s167
      %p169 = pneg %p36
      %p170 = pneg %p33
      %p171 = pneg %p57
      %p172 = pneg %p54
      %p173 = pneg %p78
      %p174 = pneg %p75
      %p175 = pneg %p99
      %p176 = pneg %p96
      %p177 = pneg %p120
      %p178 = pneg %p117
      %s179 = smul.u32 128, %s15
      %p180 = scmp.lt.s32.totalorder %s179, 255
      %s181 = scalar_select %p180, %s179, 255
      %s182 = smul.addr %s181, 8
      %s183 = scalar_lea.vmem %s0, %s182
      %s184 = smul.u32 128, %s15
      %p186 = scmp.eq.s32.totalorder %s15, 0
      // Predicated region
      $region37: #{pixel_discriminator_pallas.2} parent=35 // pred_check
        %p187 = pneg %p186
      $region38: #{pixel_discriminator_pallas.2} parent=35 // pred_check_branch
        %189 = sbr.rel (%p187) target = $region40
      $region39: #{pixel_discriminator_pallas.2} parent=35 // pred_region
        %190 = vst [vmem:[%s4] sm:$0x3] 0.0
      $region40: #{pixel_discriminator_pallas.2} parent=35 // pred_fallthru
        _
      %v191 = vld [vmem:[%s183] sm:$0xff]
      %v192 = vld [vmem:[%s183 + $0x8] sm:$0xff]
      %v193 = vld [vmem:[%s183 + $0x10] sm:$0xff]
      %v194 = vld [vmem:[%s183 + $0x18] sm:$0xff]
      %v195 = vld [vmem:[%s183 + $0x20] sm:$0xff]
      %v196 = vld [vmem:[%s183 + $0x28] sm:$0xff]
      %v197 = vld [vmem:[%s183 + $0x30] sm:$0xff]
      %v198 = vld [vmem:[%s183 + $0x38] sm:$0xff]
      %v199 = vld [vmem:[%s183 + $0x40] sm:$0xff]
      %v200 = vld [vmem:[%s183 + $0x48] sm:$0xff]
      %v201 = vld [vmem:[%s183 + $0x50] sm:$0xff]
      %v202 = vld [vmem:[%s183 + $0x58] sm:$0xff]
      %v203 = vld [vmem:[%s183 + $0x60] sm:$0xff]
      %v204 = vld [vmem:[%s183 + $0x68] sm:$0xff]
      %v205 = vld [vmem:[%s183 + $0x70] sm:$0xff]
      %v206 = vld [vmem:[%s183 + $0x78] sm:$0xff]
      %v207 = vld [vmem:[%s183 + $0x80] sm:$0xff]
      %v208 = vld [vmem:[%s183 + $0x88] sm:$0xff]
      %v209 = vld [vmem:[%s183 + $0x90] sm:$0xff]
      %v210 = vld [vmem:[%s183 + $0x98] sm:$0xff]
      %v211 = vld [vmem:[%s183 + $0xa0] sm:$0xff]
      %v212 = vld [vmem:[%s183 + $0xa8] sm:$0xff]
      %v213 = vld [vmem:[%s183 + $0xb0] sm:$0xff]
      %v214 = vld [vmem:[%s183 + $0xb8] sm:$0xff]
      %v215 = vld [vmem:[%s183 + $0xc0] sm:$0xff]
      %v216 = vld [vmem:[%s183 + $0xc8] sm:$0xff]
      %v217 = vld [vmem:[%s183 + $0xd0] sm:$0xff]
      %v218 = vld [vmem:[%s183 + $0xd8] sm:$0xff]
      %v219 = vld [vmem:[%s183 + $0xe0] sm:$0xff]
      %v220 = vld [vmem:[%s183 + $0xe8] sm:$0xff]
      %v221 = vld [vmem:[%s183 + $0xf0] sm:$0xff]
      %v222 = vld [vmem:[%s183 + $0xf8] sm:$0xff]
      %v223 = vld [vmem:[%s183 + $0x100] sm:$0xff]
      %v224 = vld [vmem:[%s183 + $0x108] sm:$0xff]
      %v225 = vld [vmem:[%s183 + $0x110] sm:$0xff]
      %v226 = vld [vmem:[%s183 + $0x118] sm:$0xff]
      %v227 = vld [vmem:[%s183 + $0x120] sm:$0xff]
      %v228 = vld [vmem:[%s183 + $0x128] sm:$0xff]
      %v229 = vld [vmem:[%s183 + $0x130] sm:$0xff]
      %v230 = vld [vmem:[%s183 + $0x138] sm:$0xff]
      %v231 = vld [vmem:[%s183 + $0x140] sm:$0xff]
      %v232 = vld [vmem:[%s183 + $0x148] sm:$0xff]
      %v233 = vld [vmem:[%s183 + $0x150] sm:$0xff]
      %v234 = vld [vmem:[%s183 + $0x158] sm:$0xff]
      %v235 = vld [vmem:[%s183 + $0x160] sm:$0xff]
      %v236 = vld [vmem:[%s183 + $0x168] sm:$0xff]
      %v237 = vld [vmem:[%s183 + $0x170] sm:$0xff]
      %v238 = vld [vmem:[%s183 + $0x178] sm:$0xff]
      %v239 = vld [vmem:[%s183 + $0x180] sm:$0xff]
      %v240 = vld [vmem:[%s183 + $0x188] sm:$0xff]
      %v241 = vld [vmem:[%s183 + $0x190] sm:$0xff]
      %v242 = vld [vmem:[%s183 + $0x198] sm:$0xff]
      %v243 = vld [vmem:[%s183 + $0x1a0] sm:$0xff]
      %v244 = vld [vmem:[%s183 + $0x1a8] sm:$0xff]
      %v245 = vld [vmem:[%s183 + $0x1b0] sm:$0xff]
      %v246 = vld [vmem:[%s183 + $0x1b8] sm:$0xff]
      %v247 = vld [vmem:[%s183 + $0x1c0] sm:$0xff]
      %v248 = vld [vmem:[%s183 + $0x1c8] sm:$0xff]
      %v249 = vld [vmem:[%s183 + $0x1d0] sm:$0xff]
      %v250 = vld [vmem:[%s183 + $0x1d8] sm:$0xff]
      %v251 = vld [vmem:[%s183 + $0x1e0] sm:$0xff]
      %v252 = vld [vmem:[%s183 + $0x1e8] sm:$0xff]
      %v253 = vld [vmem:[%s183 + $0x1f0] sm:$0xff]
      %v254 = vld [vmem:[%s183 + $0x1f8] sm:$0xff]
      %v255 = vld [vmem:[%s183 + $0x200] sm:$0xff]
      %v256 = vld [vmem:[%s183 + $0x208] sm:$0xff]
      %v257 = vld [vmem:[%s183 + $0x210] sm:$0xff]
      %v258 = vld [vmem:[%s183 + $0x218] sm:$0xff]
      %v259 = vld [vmem:[%s183 + $0x220] sm:$0xff]
      %v260 = vld [vmem:[%s183 + $0x228] sm:$0xff]
      %v261 = vld [vmem:[%s183 + $0x230] sm:$0xff]
      %v262 = vld [vmem:[%s183 + $0x238] sm:$0xff]
      %v263 = vld [vmem:[%s183 + $0x240] sm:$0xff]
      %v264 = vld [vmem:[%s183 + $0x248] sm:$0xff]
      %v265 = vld [vmem:[%s183 + $0x250] sm:$0xff]
      %v266 = vld [vmem:[%s183 + $0x258] sm:$0xff]
      %v267 = vld [vmem:[%s183 + $0x260] sm:$0xff]
      %v268 = vld [vmem:[%s183 + $0x268] sm:$0xff]
      %v269 = vld [vmem:[%s183 + $0x270] sm:$0xff]
      %v270 = vld [vmem:[%s183 + $0x278] sm:$0xff]
      %v271 = vld [vmem:[%s183 + $0x280] sm:$0xff]
      %v272 = vld [vmem:[%s183 + $0x288] sm:$0xff]
      %v273 = vld [vmem:[%s183 + $0x290] sm:$0xff]
      %v274 = vld [vmem:[%s183 + $0x298] sm:$0xff]
      %v275 = vld [vmem:[%s183 + $0x2a0] sm:$0xff]
      %v276 = vld [vmem:[%s183 + $0x2a8] sm:$0xff]
      %v277 = vld [vmem:[%s183 + $0x2b0] sm:$0xff]
      %v278 = vld [vmem:[%s183 + $0x2b8] sm:$0xff]
      %v279 = vld [vmem:[%s183 + $0x2c0] sm:$0xff]
      %v280 = vld [vmem:[%s183 + $0x2c8] sm:$0xff]
      %v281 = vld [vmem:[%s183 + $0x2d0] sm:$0xff]
      %v282 = vld [vmem:[%s183 + $0x2d8] sm:$0xff]
      %v283 = vld [vmem:[%s183 + $0x2e0] sm:$0xff]
      %v284 = vld [vmem:[%s183 + $0x2e8] sm:$0xff]
      %v285 = vld [vmem:[%s183 + $0x2f0] sm:$0xff]
      %v286 = vld [vmem:[%s183 + $0x2f8] sm:$0xff]
      %v287 = vld [vmem:[%s183 + $0x300] sm:$0xff]
      %v288 = vld [vmem:[%s183 + $0x308] sm:$0xff]
      %v289 = vld [vmem:[%s183 + $0x310] sm:$0xff]
      %v290 = vld [vmem:[%s183 + $0x318] sm:$0xff]
      %v291 = vld [vmem:[%s183 + $0x320] sm:$0xff]
      %v292 = vld [vmem:[%s183 + $0x328] sm:$0xff]
      %v293 = vld [vmem:[%s183 + $0x330] sm:$0xff]
      %v294 = vld [vmem:[%s183 + $0x338] sm:$0xff]
      %v295 = vld [vmem:[%s183 + $0x340] sm:$0xff]
      %v296 = vld [vmem:[%s183 + $0x348] sm:$0xff]
      %v297 = vld [vmem:[%s183 + $0x350] sm:$0xff]
      %v298 = vld [vmem:[%s183 + $0x358] sm:$0xff]
      %v299 = vld [vmem:[%s183 + $0x360] sm:$0xff]
      %v300 = vld [vmem:[%s183 + $0x368] sm:$0xff]
      %v301 = vld [vmem:[%s183 + $0x370] sm:$0xff]
      %v302 = vld [vmem:[%s183 + $0x378] sm:$0xff]
      %v303 = vld [vmem:[%s183 + $0x380] sm:$0xff]
      %v304 = vld [vmem:[%s183 + $0x388] sm:$0xff]
      %v305 = vld [vmem:[%s183 + $0x390] sm:$0xff]
      %v306 = vld [vmem:[%s183 + $0x398] sm:$0xff]
      %v307 = vld [vmem:[%s183 + $0x3a0] sm:$0xff]
      %v308 = vld [vmem:[%s183 + $0x3a8] sm:$0xff]
      %v309 = vld [vmem:[%s183 + $0x3b0] sm:$0xff]
      %v310 = vld [vmem:[%s183 + $0x3b8] sm:$0xff]
      %v311 = vld [vmem:[%s183 + $0x3c0] sm:$0xff]
      %v312 = vld [vmem:[%s183 + $0x3c8] sm:$0xff]
      %v313 = vld [vmem:[%s183 + $0x3d0] sm:$0xff]
      %v314 = vld [vmem:[%s183 + $0x3d8] sm:$0xff]
      %v315 = vld [vmem:[%s183 + $0x3e0] sm:$0xff]
      %v316 = vld [vmem:[%s183 + $0x3e8] sm:$0xff]
      %v317 = vld [vmem:[%s183 + $0x3f0] sm:$0xff]
      %v318 = vld [vmem:[%s183 + $0x3f8] sm:$0xff]
      %v319 = vld [vmem:[%s2] sm:$0x1]
      %v320 = vld [vmem:[%s1] sm:$0x1]
      %322 = vset.pattern.permute.xlu0 0
      %323 = vperm.xlu0 %322, %v191
      %v324 = vpop.permute.xlu0 %323
      %327 = vset.pattern.permute.xlu0 0
      %328 = vperm.xlu0 %327, %v192
      %v329 = vpop.permute.xlu0 %328
      %332 = vset.pattern.permute.xlu0 0
      %333 = vperm.xlu0 %332, %v193
      %v334 = vpop.permute.xlu0 %333
      %337 = vset.pattern.permute.xlu0 0
      %338 = vperm.xlu0 %337, %v194
      %v339 = vpop.permute.xlu0 %338
      %342 = vset.pattern.permute.xlu0 0
      %343 = vperm.xlu0 %342, %v195
      %v344 = vpop.permute.xlu0 %343
      %347 = vset.pattern.permute.xlu0 0
      %348 = vperm.xlu0 %347, %v196
      %v349 = vpop.permute.xlu0 %348
      %352 = vset.pattern.permute.xlu0 0
      %353 = vperm.xlu0 %352, %v197
      %v354 = vpop.permute.xlu0 %353
      %357 = vset.pattern.permute.xlu0 0
      %358 = vperm.xlu0 %357, %v198
      %v359 = vpop.permute.xlu0 %358
      %362 = vset.pattern.permute.xlu0 0
      %363 = vperm.xlu0 %362, %v199
      %v364 = vpop.permute.xlu0 %363
      %367 = vset.pattern.permute.xlu0 0
      %368 = vperm.xlu0 %367, %v200
      %v369 = vpop.permute.xlu0 %368
      %372 = vset.pattern.permute.xlu0 0
      %373 = vperm.xlu0 %372, %v201
      %v374 = vpop.permute.xlu0 %373
      %377 = vset.pattern.permute.xlu0 0
      %378 = vperm.xlu0 %377, %v202
      %v379 = vpop.permute.xlu0 %378
      %382 = vset.pattern.permute.xlu0 0
      %383 = vperm.xlu0 %382, %v203
      %v384 = vpop.permute.xlu0 %383
      %387 = vset.pattern.permute.xlu0 0
      %388 = vperm.xlu0 %387, %v204
      %v389 = vpop.permute.xlu0 %388
      %392 = vset.pattern.permute.xlu0 0
      %393 = vperm.xlu0 %392, %v205
      %v394 = vpop.permute.xlu0 %393
      %397 = vset.pattern.permute.xlu0 0
      %398 = vperm.xlu0 %397, %v206
      %v399 = vpop.permute.xlu0 %398
      %402 = vset.pattern.permute.xlu0 0
      %403 = vperm.xlu0 %402, %v207
      %v404 = vpop.permute.xlu0 %403
      %407 = vset.pattern.permute.xlu0 0
      %408 = vperm.xlu0 %407, %v208
      %v409 = vpop.permute.xlu0 %408
      %412 = vset.pattern.permute.xlu0 0
      %413 = vperm.xlu0 %412, %v209
      %v414 = vpop.permute.xlu0 %413
      %417 = vset.pattern.permute.xlu0 0
      %418 = vperm.xlu0 %417, %v210
      %v419 = vpop.permute.xlu0 %418
      %422 = vset.pattern.permute.xlu0 0
      %423 = vperm.xlu0 %422, %v211
      %v424 = vpop.permute.xlu0 %423
      %427 = vset.pattern.permute.xlu0 0
      %428 = vperm.xlu0 %427, %v212
      %v429 = vpop.permute.xlu0 %428
      %432 = vset.pattern.permute.xlu0 0
      %433 = vperm.xlu0 %432, %v213
      %v434 = vpop.permute.xlu0 %433
      %437 = vset.pattern.permute.xlu0 0
      %438 = vperm.xlu0 %437, %v214
      %v439 = vpop.permute.xlu0 %438
      %442 = vset.pattern.permute.xlu0 0
      %443 = vperm.xlu0 %442, %v215
      %v444 = vpop.permute.xlu0 %443
      %447 = vset.pattern.permute.xlu0 0
      %448 = vperm.xlu0 %447, %v216
      %v449 = vpop.permute.xlu0 %448
      %452 = vset.pattern.permute.xlu0 0
      %453 = vperm.xlu0 %452, %v217
      %v454 = vpop.permute.xlu0 %453
      %457 = vset.pattern.permute.xlu0 0
      %458 = vperm.xlu0 %457, %v218
      %v459 = vpop.permute.xlu0 %458
      %462 = vset.pattern.permute.xlu0 0
      %463 = vperm.xlu0 %462, %v219
      %v464 = vpop.permute.xlu0 %463
      %467 = vset.pattern.permute.xlu0 0
      %468 = vperm.xlu0 %467, %v220
      %v469 = vpop.permute.xlu0 %468
      %472 = vset.pattern.permute.xlu0 0
      %473 = vperm.xlu0 %472, %v221
      %v474 = vpop.permute.xlu0 %473
      %477 = vset.pattern.permute.xlu0 0
      %478 = vperm.xlu0 %477, %v222
      %v479 = vpop.permute.xlu0 %478
      %482 = vset.pattern.permute.xlu0 0
      %483 = vperm.xlu0 %482, %v223
      %v484 = vpop.permute.xlu0 %483
      %487 = vset.pattern.permute.xlu0 0
      %488 = vperm.xlu0 %487, %v224
      %v489 = vpop.permute.xlu0 %488
      %492 = vset.pattern.permute.xlu0 0
      %493 = vperm.xlu0 %492, %v225
      %v494 = vpop.permute.xlu0 %493
      %497 = vset.pattern.permute.xlu0 0
      %498 = vperm.xlu0 %497, %v226
      %v499 = vpop.permute.xlu0 %498
      %502 = vset.pattern.permute.xlu0 0
      %503 = vperm.xlu0 %502, %v227
      %v504 = vpop.permute.xlu0 %503
      %507 = vset.pattern.permute.xlu0 0
      %508 = vperm.xlu0 %507, %v228
      %v509 = vpop.permute.xlu0 %508
      %512 = vset.pattern.permute.xlu0 0
      %513 = vperm.xlu0 %512, %v229
      %v514 = vpop.permute.xlu0 %513
      %517 = vset.pattern.permute.xlu0 0
      %518 = vperm.xlu0 %517, %v230
      %v519 = vpop.permute.xlu0 %518
      %522 = vset.pattern.permute.xlu0 0
      %523 = vperm.xlu0 %522, %v231
      %v524 = vpop.permute.xlu0 %523
      %527 = vset.pattern.permute.xlu0 0
      %528 = vperm.xlu0 %527, %v232
      %v529 = vpop.permute.xlu0 %528
      %532 = vset.pattern.permute.xlu0 0
      %533 = vperm.xlu0 %532, %v233
      %v534 = vpop.permute.xlu0 %533
      %537 = vset.pattern.permute.xlu0 0
      %538 = vperm.xlu0 %537, %v234
      %v539 = vpop.permute.xlu0 %538
      %542 = vset.pattern.permute.xlu0 0
      %543 = vperm.xlu0 %542, %v235
      %v544 = vpop.permute.xlu0 %543
      %547 = vset.pattern.permute.xlu0 0
      %548 = vperm.xlu0 %547, %v236
      %v549 = vpop.permute.xlu0 %548
      %552 = vset.pattern.permute.xlu0 0
      %553 = vperm.xlu0 %552, %v237
      %v554 = vpop.permute.xlu0 %553
      %557 = vset.pattern.permute.xlu0 0
      %558 = vperm.xlu0 %557, %v238
      %v559 = vpop.permute.xlu0 %558
      %562 = vset.pattern.permute.xlu0 0
      %563 = vperm.xlu0 %562, %v239
      %v564 = vpop.permute.xlu0 %563
      %567 = vset.pattern.permute.xlu0 0
      %568 = vperm.xlu0 %567, %v240
      %v569 = vpop.permute.xlu0 %568
      %572 = vset.pattern.permute.xlu0 0
      %573 = vperm.xlu0 %572, %v241
      %v574 = vpop.permute.xlu0 %573
      %577 = vset.pattern.permute.xlu0 0
      %578 = vperm.xlu0 %577, %v242
      %v579 = vpop.permute.xlu0 %578
      %582 = vset.pattern.permute.xlu0 0
      %583 = vperm.xlu0 %582, %v243
      %v584 = vpop.permute.xlu0 %583
      %587 = vset.pattern.permute.xlu0 0
      %588 = vperm.xlu0 %587, %v244
      %v589 = vpop.permute.xlu0 %588
      %592 = vset.pattern.permute.xlu0 0
      %593 = vperm.xlu0 %592, %v245
      %v594 = vpop.permute.xlu0 %593
      %597 = vset.pattern.permute.xlu0 0
      %598 = vperm.xlu0 %597, %v246
      %v599 = vpop.permute.xlu0 %598
      %602 = vset.pattern.permute.xlu0 0
      %603 = vperm.xlu0 %602, %v247
      %v604 = vpop.permute.xlu0 %603
      %607 = vset.pattern.permute.xlu0 0
      %608 = vperm.xlu0 %607, %v248
      %v609 = vpop.permute.xlu0 %608
      %612 = vset.pattern.permute.xlu0 0
      %613 = vperm.xlu0 %612, %v249
      %v614 = vpop.permute.xlu0 %613
      %617 = vset.pattern.permute.xlu0 0
      %618 = vperm.xlu0 %617, %v250
      %v619 = vpop.permute.xlu0 %618
      %622 = vset.pattern.permute.xlu0 0
      %623 = vperm.xlu0 %622, %v251
      %v624 = vpop.permute.xlu0 %623
      %627 = vset.pattern.permute.xlu0 0
      %628 = vperm.xlu0 %627, %v252
      %v629 = vpop.permute.xlu0 %628
      %632 = vset.pattern.permute.xlu0 0
      %633 = vperm.xlu0 %632, %v253
      %v634 = vpop.permute.xlu0 %633
      %637 = vset.pattern.permute.xlu0 0
      %638 = vperm.xlu0 %637, %v254
      %v639 = vpop.permute.xlu0 %638
      %642 = vset.pattern.permute.xlu0 0
      %643 = vperm.xlu0 %642, %v255
      %v644 = vpop.permute.xlu0 %643
      %647 = vset.pattern.permute.xlu0 0
      %648 = vperm.xlu0 %647, %v256
      %v649 = vpop.permute.xlu0 %648
      %652 = vset.pattern.permute.xlu0 0
      %653 = vperm.xlu0 %652, %v257
      %v654 = vpop.permute.xlu0 %653
      %657 = vset.pattern.permute.xlu0 0
      %658 = vperm.xlu0 %657, %v258
      %v659 = vpop.permute.xlu0 %658
      %662 = vset.pattern.permute.xlu0 0
      %663 = vperm.xlu0 %662, %v259
      %v664 = vpop.permute.xlu0 %663
      %667 = vset.pattern.permute.xlu0 0
      %668 = vperm.xlu0 %667, %v260
      %v669 = vpop.permute.xlu0 %668
      %672 = vset.pattern.permute.xlu0 0
      %673 = vperm.xlu0 %672, %v261
      %v674 = vpop.permute.xlu0 %673
      %677 = vset.pattern.permute.xlu0 0
      %678 = vperm.xlu0 %677, %v262
      %v679 = vpop.permute.xlu0 %678
      %682 = vset.pattern.permute.xlu0 0
      %683 = vperm.xlu0 %682, %v263
      %v684 = vpop.permute.xlu0 %683
      %687 = vset.pattern.permute.xlu0 0
      %688 = vperm.xlu0 %687, %v264
      %v689 = vpop.permute.xlu0 %688
      %692 = vset.pattern.permute.xlu0 0
      %693 = vperm.xlu0 %692, %v265
      %v694 = vpop.permute.xlu0 %693
      %697 = vset.pattern.permute.xlu0 0
      %698 = vperm.xlu0 %697, %v266
      %v699 = vpop.permute.xlu0 %698
      %702 = vset.pattern.permute.xlu0 0
      %703 = vperm.xlu0 %702, %v267
      %v704 = vpop.permute.xlu0 %703
      %707 = vset.pattern.permute.xlu0 0
      %708 = vperm.xlu0 %707, %v268
      %v709 = vpop.permute.xlu0 %708
      %712 = vset.pattern.permute.xlu0 0
      %713 = vperm.xlu0 %712, %v269
      %v714 = vpop.permute.xlu0 %713
      %717 = vset.pattern.permute.xlu0 0
      %718 = vperm.xlu0 %717, %v270
      %v719 = vpop.permute.xlu0 %718
      %722 = vset.pattern.permute.xlu0 0
      %723 = vperm.xlu0 %722, %v271
      %v724 = vpop.permute.xlu0 %723
      %727 = vset.pattern.permute.xlu0 0
      %728 = vperm.xlu0 %727, %v272
      %v729 = vpop.permute.xlu0 %728
      %732 = vset.pattern.permute.xlu0 0
      %733 = vperm.xlu0 %732, %v273
      %v734 = vpop.permute.xlu0 %733
      %737 = vset.pattern.permute.xlu0 0
      %738 = vperm.xlu0 %737, %v274
      %v739 = vpop.permute.xlu0 %738
      %742 = vset.pattern.permute.xlu0 0
      %743 = vperm.xlu0 %742, %v275
      %v744 = vpop.permute.xlu0 %743
      %747 = vset.pattern.permute.xlu0 0
      %748 = vperm.xlu0 %747, %v276
      %v749 = vpop.permute.xlu0 %748
      %752 = vset.pattern.permute.xlu0 0
      %753 = vperm.xlu0 %752, %v277
      %v754 = vpop.permute.xlu0 %753
      %757 = vset.pattern.permute.xlu0 0
      %758 = vperm.xlu0 %757, %v278
      %v759 = vpop.permute.xlu0 %758
      %762 = vset.pattern.permute.xlu0 0
      %763 = vperm.xlu0 %762, %v279
      %v764 = vpop.permute.xlu0 %763
      %767 = vset.pattern.permute.xlu0 0
      %768 = vperm.xlu0 %767, %v280
      %v769 = vpop.permute.xlu0 %768
      %772 = vset.pattern.permute.xlu0 0
      %773 = vperm.xlu0 %772, %v281
      %v774 = vpop.permute.xlu0 %773
      %777 = vset.pattern.permute.xlu0 0
      %778 = vperm.xlu0 %777, %v282
      %v779 = vpop.permute.xlu0 %778
      %782 = vset.pattern.permute.xlu0 0
      %783 = vperm.xlu0 %782, %v283
      %v784 = vpop.permute.xlu0 %783
      %787 = vset.pattern.permute.xlu0 0
      %788 = vperm.xlu0 %787, %v284
      %v789 = vpop.permute.xlu0 %788
      %792 = vset.pattern.permute.xlu0 0
      %793 = vperm.xlu0 %792, %v285
      %v794 = vpop.permute.xlu0 %793
      %797 = vset.pattern.permute.xlu0 0
      %798 = vperm.xlu0 %797, %v286
      %v799 = vpop.permute.xlu0 %798
      %802 = vset.pattern.permute.xlu0 0
      %803 = vperm.xlu0 %802, %v287
      %v804 = vpop.permute.xlu0 %803
      %807 = vset.pattern.permute.xlu0 0
      %808 = vperm.xlu0 %807, %v288
      %v809 = vpop.permute.xlu0 %808
      %812 = vset.pattern.permute.xlu0 0
      %813 = vperm.xlu0 %812, %v289
      %v814 = vpop.permute.xlu0 %813
      %817 = vset.pattern.permute.xlu0 0
      %818 = vperm.xlu0 %817, %v290
      %v819 = vpop.permute.xlu0 %818
      %822 = vset.pattern.permute.xlu0 0
      %823 = vperm.xlu0 %822, %v291
      %v824 = vpop.permute.xlu0 %823
      %827 = vset.pattern.permute.xlu0 0
      %828 = vperm.xlu0 %827, %v292
      %v829 = vpop.permute.xlu0 %828
      %832 = vset.pattern.permute.xlu0 0
      %833 = vperm.xlu0 %832, %v293
      %v834 = vpop.permute.xlu0 %833
      %837 = vset.pattern.permute.xlu0 0
      %838 = vperm.xlu0 %837, %v294
      %v839 = vpop.permute.xlu0 %838
      %842 = vset.pattern.permute.xlu0 0
      %843 = vperm.xlu0 %842, %v295
      %v844 = vpop.permute.xlu0 %843
      %847 = vset.pattern.permute.xlu0 0
      %848 = vperm.xlu0 %847, %v296
      %v849 = vpop.permute.xlu0 %848
      %852 = vset.pattern.permute.xlu0 0
      %853 = vperm.xlu0 %852, %v297
      %v854 = vpop.permute.xlu0 %853
      %857 = vset.pattern.permute.xlu0 0
      %858 = vperm.xlu0 %857, %v298
      %v859 = vpop.permute.xlu0 %858
      %862 = vset.pattern.permute.xlu0 0
      %863 = vperm.xlu0 %862, %v299
      %v864 = vpop.permute.xlu0 %863
      %867 = vset.pattern.permute.xlu0 0
      %868 = vperm.xlu0 %867, %v300
      %v869 = vpop.permute.xlu0 %868
      %872 = vset.pattern.permute.xlu0 0
      %873 = vperm.xlu0 %872, %v301
      %v874 = vpop.permute.xlu0 %873
      %877 = vset.pattern.permute.xlu0 0
      %878 = vperm.xlu0 %877, %v302
      %v879 = vpop.permute.xlu0 %878
      %882 = vset.pattern.permute.xlu0 0
      %883 = vperm.xlu0 %882, %v303
      %v884 = vpop.permute.xlu0 %883
      %887 = vset.pattern.permute.xlu0 0
      %888 = vperm.xlu0 %887, %v304
      %v889 = vpop.permute.xlu0 %888
      %892 = vset.pattern.permute.xlu0 0
      %893 = vperm.xlu0 %892, %v305
      %v894 = vpop.permute.xlu0 %893
      %897 = vset.pattern.permute.xlu0 0
      %898 = vperm.xlu0 %897, %v306
      %v899 = vpop.permute.xlu0 %898
      %902 = vset.pattern.permute.xlu0 0
      %903 = vperm.xlu0 %902, %v307
      %v904 = vpop.permute.xlu0 %903
      %907 = vset.pattern.permute.xlu0 0
      %908 = vperm.xlu0 %907, %v308
      %v909 = vpop.permute.xlu0 %908
      %912 = vset.pattern.permute.xlu0 0
      %913 = vperm.xlu0 %912, %v309
      %v914 = vpop.permute.xlu0 %913
      %917 = vset.pattern.permute.xlu0 0
      %918 = vperm.xlu0 %917, %v310
      %v919 = vpop.permute.xlu0 %918
      %922 = vset.pattern.permute.xlu0 0
      %923 = vperm.xlu0 %922, %v311
      %v924 = vpop.permute.xlu0 %923
      %927 = vset.pattern.permute.xlu0 0
      %928 = vperm.xlu0 %927, %v312
      %v929 = vpop.permute.xlu0 %928
      %932 = vset.pattern.permute.xlu0 0
      %933 = vperm.xlu0 %932, %v313
      %v934 = vpop.permute.xlu0 %933
      %937 = vset.pattern.permute.xlu0 0
      %938 = vperm.xlu0 %937, %v314
      %v939 = vpop.permute.xlu0 %938
      %942 = vset.pattern.permute.xlu0 0
      %943 = vperm.xlu0 %942, %v315
      %v944 = vpop.permute.xlu0 %943
      %947 = vset.pattern.permute.xlu0 0
      %948 = vperm.xlu0 %947, %v316
      %v949 = vpop.permute.xlu0 %948
      %952 = vset.pattern.permute.xlu0 0
      %953 = vperm.xlu0 %952, %v317
      %v954 = vpop.permute.xlu0 %953
      %957 = vset.pattern.permute.xlu0 0
      %958 = vperm.xlu0 %957, %v318
      %v959 = vpop.permute.xlu0 %958
      %v961 = vlaneseq
      %v962 = vshrl.u32 %v961, 7
      %v963 = vsub.s32 0, %v962
      %v964 = vrot.slane %v320, %v963
      %v965 = vmul.f32 %v324, %v964
      %v966 = vmul.f32 %v329, %v964
      %v967 = vmul.f32 %v334, %v964
      %v968 = vmul.f32 %v339, %v964
      %v969 = vmul.f32 %v344, %v964
      %v970 = vmul.f32 %v349, %v964
      %v971 = vmul.f32 %v354, %v964
      %v972 = vmul.f32 %v359, %v964
      %v973 = vmul.f32 %v364, %v964
      %v974 = vmul.f32 %v369, %v964
      %v975 = vmul.f32 %v374, %v964
      %v976 = vmul.f32 %v379, %v964
      %v977 = vmul.f32 %v384, %v964
      %v978 = vmul.f32 %v389, %v964
      %v979 = vmul.f32 %v394, %v964
      %v980 = vmul.f32 %v399, %v964
      %v981 = vmul.f32 %v404, %v964
      %v982 = vmul.f32 %v409, %v964
      %v983 = vmul.f32 %v414, %v964
      %v984 = vmul.f32 %v419, %v964
      %v985 = vmul.f32 %v424, %v964
      %v986 = vmul.f32 %v429, %v964
      %v987 = vmul.f32 %v434, %v964
      %v988 = vmul.f32 %v439, %v964
      %v989 = vmul.f32 %v444, %v964
      %v990 = vmul.f32 %v449, %v964
      %v991 = vmul.f32 %v454, %v964
      %v992 = vmul.f32 %v459, %v964
      %v993 = vmul.f32 %v464, %v964
      %v994 = vmul.f32 %v469, %v964
      %v995 = vmul.f32 %v474, %v964
      %v996 = vmul.f32 %v479, %v964
      %v997 = vmul.f32 %v484, %v964
      %v998 = vmul.f32 %v489, %v964
      %v999 = vmul.f32 %v494, %v964
      %v1000 = vmul.f32 %v499, %v964
      %v1001 = vmul.f32 %v504, %v964
      %v1002 = vmul.f32 %v509, %v964
      %v1003 = vmul.f32 %v514, %v964
      %v1004 = vmul.f32 %v519, %v964
      %v1005 = vmul.f32 %v524, %v964
      %v1006 = vmul.f32 %v529, %v964
      %v1007 = vmul.f32 %v534, %v964
      %v1008 = vmul.f32 %v539, %v964
      %v1009 = vmul.f32 %v544, %v964
      %v1010 = vmul.f32 %v549, %v964
      %v1011 = vmul.f32 %v554, %v964
      %v1012 = vmul.f32 %v559, %v964
      %v1013 = vmul.f32 %v564, %v964
      %v1014 = vmul.f32 %v569, %v964
      %v1015 = vmul.f32 %v574, %v964
      %v1016 = vmul.f32 %v579, %v964
      %v1017 = vmul.f32 %v584, %v964
      %v1018 = vmul.f32 %v589, %v964
      %v1019 = vmul.f32 %v594, %v964
      %v1020 = vmul.f32 %v599, %v964
      %v1021 = vmul.f32 %v604, %v964
      %v1022 = vmul.f32 %v609, %v964
      %v1023 = vmul.f32 %v614, %v964
      %v1024 = vmul.f32 %v619, %v964
      %v1025 = vmul.f32 %v624, %v964
      %v1026 = vmul.f32 %v629, %v964
      %v1027 = vmul.f32 %v634, %v964
      %v1028 = vmul.f32 %v639, %v964
      %v1029 = vmul.f32 %v644, %v964
      %v1030 = vmul.f32 %v649, %v964
      %v1031 = vmul.f32 %v654, %v964
      %v1032 = vmul.f32 %v659, %v964
      %v1033 = vmul.f32 %v664, %v964
      %v1034 = vmul.f32 %v669, %v964
      %v1035 = vmul.f32 %v674, %v964
      %v1036 = vmul.f32 %v679, %v964
      %v1037 = vmul.f32 %v684, %v964
      %v1038 = vmul.f32 %v689, %v964
      %v1039 = vmul.f32 %v694, %v964
      %v1040 = vmul.f32 %v699, %v964
      %v1041 = vmul.f32 %v704, %v964
      %v1042 = vmul.f32 %v709, %v964
      %v1043 = vmul.f32 %v714, %v964
      %v1044 = vmul.f32 %v719, %v964
      %v1045 = vmul.f32 %v724, %v964
      %v1046 = vmul.f32 %v729, %v964
      %v1047 = vmul.f32 %v734, %v964
      %v1048 = vmul.f32 %v739, %v964
      %v1049 = vmul.f32 %v744, %v964
      %v1050 = vmul.f32 %v749, %v964
      %v1051 = vmul.f32 %v754, %v964
      %v1052 = vmul.f32 %v759, %v964
      %v1053 = vmul.f32 %v764, %v964
      %v1054 = vmul.f32 %v769, %v964
      %v1055 = vmul.f32 %v774, %v964
      %v1056 = vmul.f32 %v779, %v964
      %v1057 = vmul.f32 %v784, %v964
      %v1058 = vmul.f32 %v789, %v964
      %v1059 = vmul.f32 %v794, %v964
      %v1060 = vmul.f32 %v799, %v964
      %v1061 = vmul.f32 %v804, %v964
      %v1062 = vmul.f32 %v809, %v964
      %v1063 = vmul.f32 %v814, %v964
      %v1064 = vmul.f32 %v819, %v964
      %v1065 = vmul.f32 %v824, %v964
      %v1066 = vmul.f32 %v829, %v964
      %v1067 = vmul.f32 %v834, %v964
      %v1068 = vmul.f32 %v839, %v964
      %v1069 = vmul.f32 %v844, %v964
      %v1070 = vmul.f32 %v849, %v964
      %v1071 = vmul.f32 %v854, %v964
      %v1072 = vmul.f32 %v859, %v964
      %v1073 = vmul.f32 %v864, %v964
      %v1074 = vmul.f32 %v869, %v964
      %v1075 = vmul.f32 %v874, %v964
      %v1076 = vmul.f32 %v879, %v964
      %v1077 = vmul.f32 %v884, %v964
      %v1078 = vmul.f32 %v889, %v964
      %v1079 = vmul.f32 %v894, %v964
      %v1080 = vmul.f32 %v899, %v964
      %v1081 = vmul.f32 %v904, %v964
      %v1082 = vmul.f32 %v909, %v964
      %v1083 = vmul.f32 %v914, %v964
      %v1084 = vmul.f32 %v919, %v964
      %v1085 = vmul.f32 %v924, %v964
      %v1086 = vmul.f32 %v929, %v964
      %v1087 = vmul.f32 %v934, %v964
      %v1088 = vmul.f32 %v939, %v964
      %v1089 = vmul.f32 %v944, %v964
      %v1090 = vmul.f32 %v949, %v964
      %v1091 = vmul.f32 %v954, %v964
      %v1092 = vmul.f32 %v959, %v964
      %v1094 = vlaneseq
      %v1095 = vshrl.u32 %v1094, 7
      %v1096 = vsub.s32 0, %v1095
      %v1097 = vrot.slane %v319, %v1096
      %v1099 = vadd.f32 %v1097, %v965
      %v1100 = vadd.f32 %v1097, %v966
      %v1101 = vadd.f32 %v1097, %v967
      %v1102 = vadd.f32 %v1097, %v968
      %v1103 = vadd.f32 %v1097, %v969
      %v1104 = vadd.f32 %v1097, %v970
      %v1105 = vadd.f32 %v1097, %v971
      %v1106 = vadd.f32 %v1097, %v972
      %v1107 = vadd.f32 %v1097, %v973
      %v1108 = vadd.f32 %v1097, %v974
      %v1109 = vadd.f32 %v1097, %v975
      %v1110 = vadd.f32 %v1097, %v976
      %v1111 = vadd.f32 %v1097, %v977
      %v1112 = vadd.f32 %v1097, %v978
      %v1113 = vadd.f32 %v1097, %v979
      %v1114 = vadd.f32 %v1097, %v980
      %v1115 = vadd.f32 %v1097, %v981
      %v1116 = vadd.f32 %v1097, %v982
      %v1117 = vadd.f32 %v1097, %v983
      %v1118 = vadd.f32 %v1097, %v984
      %v1119 = vadd.f32 %v1097, %v985
      %v1120 = vadd.f32 %v1097, %v986
      %v1121 = vadd.f32 %v1097, %v987
      %v1122 = vadd.f32 %v1097, %v988
      %v1123 = vadd.f32 %v1097, %v989
      %v1124 = vadd.f32 %v1097, %v990
      %v1125 = vadd.f32 %v1097, %v991
      %v1126 = vadd.f32 %v1097, %v992
      %v1127 = vadd.f32 %v1097, %v993
      %v1128 = vadd.f32 %v1097, %v994
      %v1129 = vadd.f32 %v1097, %v995
      %v1130 = vadd.f32 %v1097, %v996
      %v1131 = vadd.f32 %v1097, %v997
      %v1132 = vadd.f32 %v1097, %v998
      %v1133 = vadd.f32 %v1097, %v999
      %v1134 = vadd.f32 %v1097, %v1000
      %v1135 = vadd.f32 %v1097, %v1001
      %v1136 = vadd.f32 %v1097, %v1002
      %v1137 = vadd.f32 %v1097, %v1003
      %v1138 = vadd.f32 %v1097, %v1004
      %v1139 = vadd.f32 %v1097, %v1005
      %v1140 = vadd.f32 %v1097, %v1006
      %v1141 = vadd.f32 %v1097, %v1007
      %v1142 = vadd.f32 %v1097, %v1008
      %v1143 = vadd.f32 %v1097, %v1009
      %v1144 = vadd.f32 %v1097, %v1010
      %v1145 = vadd.f32 %v1097, %v1011
      %v1146 = vadd.f32 %v1097, %v1012
      %v1147 = vadd.f32 %v1097, %v1013
      %v1148 = vadd.f32 %v1097, %v1014
      %v1149 = vadd.f32 %v1097, %v1015
      %v1150 = vadd.f32 %v1097, %v1016
      %v1151 = vadd.f32 %v1097, %v1017
      %v1152 = vadd.f32 %v1097, %v1018
      %v1153 = vadd.f32 %v1097, %v1019
      %v1154 = vadd.f32 %v1097, %v1020
      %v1155 = vadd.f32 %v1097, %v1021
      %v1156 = vadd.f32 %v1097, %v1022
      %v1157 = vadd.f32 %v1097, %v1023
      %v1158 = vadd.f32 %v1097, %v1024
      %v1159 = vadd.f32 %v1097, %v1025
      %v1160 = vadd.f32 %v1097, %v1026
      %v1161 = vadd.f32 %v1097, %v1027
      %v1162 = vadd.f32 %v1097, %v1028
      %v1163 = vadd.f32 %v1097, %v1029
      %v1164 = vadd.f32 %v1097, %v1030
      %v1165 = vadd.f32 %v1097, %v1031
      %v1166 = vadd.f32 %v1097, %v1032
      %v1167 = vadd.f32 %v1097, %v1033
      %v1168 = vadd.f32 %v1097, %v1034
      %v1169 = vadd.f32 %v1097, %v1035
      %v1170 = vadd.f32 %v1097, %v1036
      %v1171 = vadd.f32 %v1097, %v1037
      %v1172 = vadd.f32 %v1097, %v1038
      %v1173 = vadd.f32 %v1097, %v1039
      %v1174 = vadd.f32 %v1097, %v1040
      %v1175 = vadd.f32 %v1097, %v1041
      %v1176 = vadd.f32 %v1097, %v1042
      %v1177 = vadd.f32 %v1097, %v1043
      %v1178 = vadd.f32 %v1097, %v1044
      %v1179 = vadd.f32 %v1097, %v1045
      %v1180 = vadd.f32 %v1097, %v1046
      %v1181 = vadd.f32 %v1097, %v1047
      %v1182 = vadd.f32 %v1097, %v1048
      %v1183 = vadd.f32 %v1097, %v1049
      %v1184 = vadd.f32 %v1097, %v1050
      %v1185 = vadd.f32 %v1097, %v1051
      %v1186 = vadd.f32 %v1097, %v1052
      %v1187 = vadd.f32 %v1097, %v1053
      %v1188 = vadd.f32 %v1097, %v1054
      %v1189 = vadd.f32 %v1097, %v1055
      %v1190 = vadd.f32 %v1097, %v1056
      %v1191 = vadd.f32 %v1097, %v1057
      %v1192 = vadd.f32 %v1097, %v1058
      %v1193 = vadd.f32 %v1097, %v1059
      %v1194 = vadd.f32 %v1097, %v1060
      %v1195 = vadd.f32 %v1097, %v1061
      %v1196 = vadd.f32 %v1097, %v1062
      %v1197 = vadd.f32 %v1097, %v1063
      %v1198 = vadd.f32 %v1097, %v1064
      %v1199 = vadd.f32 %v1097, %v1065
      %v1200 = vadd.f32 %v1097, %v1066
      %v1201 = vadd.f32 %v1097, %v1067
      %v1202 = vadd.f32 %v1097, %v1068
      %v1203 = vadd.f32 %v1097, %v1069
      %v1204 = vadd.f32 %v1097, %v1070
      %v1205 = vadd.f32 %v1097, %v1071
      %v1206 = vadd.f32 %v1097, %v1072
      %v1207 = vadd.f32 %v1097, %v1073
      %v1208 = vadd.f32 %v1097, %v1074
      %v1209 = vadd.f32 %v1097, %v1075
      %v1210 = vadd.f32 %v1097, %v1076
      %v1211 = vadd.f32 %v1097, %v1077
      %v1212 = vadd.f32 %v1097, %v1078
      %v1213 = vadd.f32 %v1097, %v1079
      %v1214 = vadd.f32 %v1097, %v1080
      %v1215 = vadd.f32 %v1097, %v1081
      %v1216 = vadd.f32 %v1097, %v1082
      %v1217 = vadd.f32 %v1097, %v1083
      %v1218 = vadd.f32 %v1097, %v1084
      %v1219 = vadd.f32 %v1097, %v1085
      %v1220 = vadd.f32 %v1097, %v1086
      %v1221 = vadd.f32 %v1097, %v1087
      %v1222 = vadd.f32 %v1097, %v1088
      %v1223 = vadd.f32 %v1097, %v1089
      %v1224 = vadd.f32 %v1097, %v1090
      %v1225 = vadd.f32 %v1097, %v1091
      %v1226 = vadd.f32 %v1097, %v1092
      %v1227 = vld [vmem:[%s1 + $0x1] sm:$0x1]
      %1228 = vset.pattern.permute.xlu0 1
      %1229 = vperm.xlu0 %1228, %v191
      %v1230 = vpop.permute.xlu0 %1229
      %1232 = vset.pattern.permute.xlu0 1
      %1233 = vperm.xlu0 %1232, %v192
      %v1234 = vpop.permute.xlu0 %1233
      %1236 = vset.pattern.permute.xlu0 1
      %1237 = vperm.xlu0 %1236, %v193
      %v1238 = vpop.permute.xlu0 %1237
      %1240 = vset.pattern.permute.xlu0 1
      %1241 = vperm.xlu0 %1240, %v194
      %v1242 = vpop.permute.xlu0 %1241
      %1244 = vset.pattern.permute.xlu0 1
      %1245 = vperm.xlu0 %1244, %v195
      %v1246 = vpop.permute.xlu0 %1245
      %1248 = vset.pattern.permute.xlu0 1
      %1249 = vperm.xlu0 %1248, %v196
      %v1250 = vpop.permute.xlu0 %1249
      %1252 = vset.pattern.permute.xlu0 1
      %1253 = vperm.xlu0 %1252, %v197
      %v1254 = vpop.permute.xlu0 %1253
      %1256 = vset.pattern.permute.xlu0 1
      %1257 = vperm.xlu0 %1256, %v198
      %v1258 = vpop.permute.xlu0 %1257
      %1260 = vset.pattern.permute.xlu0 1
      %1261 = vperm.xlu0 %1260, %v199
      %v1262 = vpop.permute.xlu0 %1261
      %1264 = vset.pattern.permute.xlu0 1
      %1265 = vperm.xlu0 %1264, %v200
      %v1266 = vpop.permute.xlu0 %1265
      %1268 = vset.pattern.permute.xlu0 1
      %1269 = vperm.xlu0 %1268, %v201
      %v1270 = vpop.permute.xlu0 %1269
      %1272 = vset.pattern.permute.xlu0 1
      %1273 = vperm.xlu0 %1272, %v202
      %v1274 = vpop.permute.xlu0 %1273
      %1276 = vset.pattern.permute.xlu0 1
      %1277 = vperm.xlu0 %1276, %v203
      %v1278 = vpop.permute.xlu0 %1277
      %1280 = vset.pattern.permute.xlu0 1
      %1281 = vperm.xlu0 %1280, %v204
      %v1282 = vpop.permute.xlu0 %1281
      %1284 = vset.pattern.permute.xlu0 1
      %1285 = vperm.xlu0 %1284, %v205
      %v1286 = vpop.permute.xlu0 %1285
      %1288 = vset.pattern.permute.xlu0 1
      %1289 = vperm.xlu0 %1288, %v206
      %v1290 = vpop.permute.xlu0 %1289
      %1292 = vset.pattern.permute.xlu0 1
      %1293 = vperm.xlu0 %1292, %v207
      %v1294 = vpop.permute.xlu0 %1293
      %1296 = vset.pattern.permute.xlu0 1
      %1297 = vperm.xlu0 %1296, %v208
      %v1298 = vpop.permute.xlu0 %1297
      %1300 = vset.pattern.permute.xlu0 1
      %1301 = vperm.xlu0 %1300, %v209
      %v1302 = vpop.permute.xlu0 %1301
      %1304 = vset.pattern.permute.xlu0 1
      %1305 = vperm.xlu0 %1304, %v210
      %v1306 = vpop.permute.xlu0 %1305
      %1308 = vset.pattern.permute.xlu0 1
      %1309 = vperm.xlu0 %1308, %v211
      %v1310 = vpop.permute.xlu0 %1309
      %1312 = vset.pattern.permute.xlu0 1
      %1313 = vperm.xlu0 %1312, %v212
      %v1314 = vpop.permute.xlu0 %1313
      %1316 = vset.pattern.permute.xlu0 1
      %1317 = vperm.xlu0 %1316, %v213
      %v1318 = vpop.permute.xlu0 %1317
      %1320 = vset.pattern.permute.xlu0 1
      %1321 = vperm.xlu0 %1320, %v214
      %v1322 = vpop.permute.xlu0 %1321
      %1324 = vset.pattern.permute.xlu0 1
      %1325 = vperm.xlu0 %1324, %v215
      %v1326 = vpop.permute.xlu0 %1325
      %1328 = vset.pattern.permute.xlu0 1
      %1329 = vperm.xlu0 %1328, %v216
      %v1330 = vpop.permute.xlu0 %1329
      %1332 = vset.pattern.permute.xlu0 1
      %1333 = vperm.xlu0 %1332, %v217
      %v1334 = vpop.permute.xlu0 %1333
      %1336 = vset.pattern.permute.xlu0 1
      %1337 = vperm.xlu0 %1336, %v218
      %v1338 = vpop.permute.xlu0 %1337
      %1340 = vset.pattern.permute.xlu0 1
      %1341 = vperm.xlu0 %1340, %v219
      %v1342 = vpop.permute.xlu0 %1341
      %1344 = vset.pattern.permute.xlu0 1
      %1345 = vperm.xlu0 %1344, %v220
      %v1346 = vpop.permute.xlu0 %1345
      %1348 = vset.pattern.permute.xlu0 1
      %1349 = vperm.xlu0 %1348, %v221
      %v1350 = vpop.permute.xlu0 %1349
      %1352 = vset.pattern.permute.xlu0 1
      %1353 = vperm.xlu0 %1352, %v222
      %v1354 = vpop.permute.xlu0 %1353
      %1356 = vset.pattern.permute.xlu0 1
      %1357 = vperm.xlu0 %1356, %v223
      %v1358 = vpop.permute.xlu0 %1357
      %1360 = vset.pattern.permute.xlu0 1
      %1361 = vperm.xlu0 %1360, %v224
      %v1362 = vpop.permute.xlu0 %1361
      %1364 = vset.pattern.permute.xlu0 1
      %1365 = vperm.xlu0 %1364, %v225
      %v1366 = vpop.permute.xlu0 %1365
      %1368 = vset.pattern.permute.xlu0 1
      %1369 = vperm.xlu0 %1368, %v226
      %v1370 = vpop.permute.xlu0 %1369
      %1372 = vset.pattern.permute.xlu0 1
      %1373 = vperm.xlu0 %1372, %v227
      %v1374 = vpop.permute.xlu0 %1373
      %1376 = vset.pattern.permute.xlu0 1
      %1377 = vperm.xlu0 %1376, %v228
      %v1378 = vpop.permute.xlu0 %1377
      %1380 = vset.pattern.permute.xlu0 1
      %1381 = vperm.xlu0 %1380, %v229
      %v1382 = vpop.permute.xlu0 %1381
      %1384 = vset.pattern.permute.xlu0 1
      %1385 = vperm.xlu0 %1384, %v230
      %v1386 = vpop.permute.xlu0 %1385
      %1388 = vset.pattern.permute.xlu0 1
      %1389 = vperm.xlu0 %1388, %v231
      %v1390 = vpop.permute.xlu0 %1389
      %1392 = vset.pattern.permute.xlu0 1
      %1393 = vperm.xlu0 %1392, %v232
      %v1394 = vpop.permute.xlu0 %1393
      %1396 = vset.pattern.permute.xlu0 1
      %1397 = vperm.xlu0 %1396, %v233
      %v1398 = vpop.permute.xlu0 %1397
      %1400 = vset.pattern.permute.xlu0 1
      %1401 = vperm.xlu0 %1400, %v234
      %v1402 = vpop.permute.xlu0 %1401
      %1404 = vset.pattern.permute.xlu0 1
      %1405 = vperm.xlu0 %1404, %v235
      %v1406 = vpop.permute.xlu0 %1405
      %1408 = vset.pattern.permute.xlu0 1
      %1409 = vperm.xlu0 %1408, %v236
      %v1410 = vpop.permute.xlu0 %1409
      %1412 = vset.pattern.permute.xlu0 1
      %1413 = vperm.xlu0 %1412, %v237
      %v1414 = vpop.permute.xlu0 %1413
      %1416 = vset.pattern.permute.xlu0 1
      %1417 = vperm.xlu0 %1416, %v238
      %v1418 = vpop.permute.xlu0 %1417
      %1420 = vset.pattern.permute.xlu0 1
      %1421 = vperm.xlu0 %1420, %v239
      %v1422 = vpop.permute.xlu0 %1421
      %1424 = vset.pattern.permute.xlu0 1
      %1425 = vperm.xlu0 %1424, %v240
      %v1426 = vpop.permute.xlu0 %1425
      %1428 = vset.pattern.permute.xlu0 1
      %1429 = vperm.xlu0 %1428, %v241
      %v1430 = vpop.permute.xlu0 %1429
      %1432 = vset.pattern.permute.xlu0 1
      %1433 = vperm.xlu0 %1432, %v242
      %v1434 = vpop.permute.xlu0 %1433
      %1436 = vset.pattern.permute.xlu0 1
      %1437 = vperm.xlu0 %1436, %v243
      %v1438 = vpop.permute.xlu0 %1437
      %1440 = vset.pattern.permute.xlu0 1
      %1441 = vperm.xlu0 %1440, %v244
      %v1442 = vpop.permute.xlu0 %1441
      %1444 = vset.pattern.permute.xlu0 1
      %1445 = vperm.xlu0 %1444, %v245
      %v1446 = vpop.permute.xlu0 %1445
      %1448 = vset.pattern.permute.xlu0 1
      %1449 = vperm.xlu0 %1448, %v246
      %v1450 = vpop.permute.xlu0 %1449
      %1452 = vset.pattern.permute.xlu0 1
      %1453 = vperm.xlu0 %1452, %v247
      %v1454 = vpop.permute.xlu0 %1453
      %1456 = vset.pattern.permute.xlu0 1
      %1457 = vperm.xlu0 %1456, %v248
      %v1458 = vpop.permute.xlu0 %1457
      %1460 = vset.pattern.permute.xlu0 1
      %1461 = vperm.xlu0 %1460, %v249
      %v1462 = vpop.permute.xlu0 %1461
      %1464 = vset.pattern.permute.xlu0 1
      %1465 = vperm.xlu0 %1464, %v250
      %v1466 = vpop.permute.xlu0 %1465
      %1468 = vset.pattern.permute.xlu0 1
      %1469 = vperm.xlu0 %1468, %v251
      %v1470 = vpop.permute.xlu0 %1469
      %1472 = vset.pattern.permute.xlu0 1
      %1473 = vperm.xlu0 %1472, %v252
      %v1474 = vpop.permute.xlu0 %1473
      %1476 = vset.pattern.permute.xlu0 1
      %1477 = vperm.xlu0 %1476, %v253
      %v1478 = vpop.permute.xlu0 %1477
      %1480 = vset.pattern.permute.xlu0 1
      %1481 = vperm.xlu0 %1480, %v254
      %v1482 = vpop.permute.xlu0 %1481
      %1484 = vset.pattern.permute.xlu0 1
      %1485 = vperm.xlu0 %1484, %v255
      %v1486 = vpop.permute.xlu0 %1485
      %1488 = vset.pattern.permute.xlu0 1
      %1489 = vperm.xlu0 %1488, %v256
      %v1490 = vpop.permute.xlu0 %1489
      %1492 = vset.pattern.permute.xlu0 1
      %1493 = vperm.xlu0 %1492, %v257
      %v1494 = vpop.permute.xlu0 %1493
      %1496 = vset.pattern.permute.xlu0 1
      %1497 = vperm.xlu0 %1496, %v258
      %v1498 = vpop.permute.xlu0 %1497
      %1500 = vset.pattern.permute.xlu0 1
      %1501 = vperm.xlu0 %1500, %v259
      %v1502 = vpop.permute.xlu0 %1501
      %1504 = vset.pattern.permute.xlu0 1
      %1505 = vperm.xlu0 %1504, %v260
      %v1506 = vpop.permute.xlu0 %1505
      %1508 = vset.pattern.permute.xlu0 1
      %1509 = vperm.xlu0 %1508, %v261
      %v1510 = vpop.permute.xlu0 %1509
      %1512 = vset.pattern.permute.xlu0 1
      %1513 = vperm.xlu0 %1512, %v262
      %v1514 = vpop.permute.xlu0 %1513
      %1516 = vset.pattern.permute.xlu0 1
      %1517 = vperm.xlu0 %1516, %v263
      %v1518 = vpop.permute.xlu0 %1517
      %1520 = vset.pattern.permute.xlu0 1
      %1521 = vperm.xlu0 %1520, %v264
      %v1522 = vpop.permute.xlu0 %1521
      %1524 = vset.pattern.permute.xlu0 1
      %1525 = vperm.xlu0 %1524, %v265
      %v1526 = vpop.permute.xlu0 %1525
      %1528 = vset.pattern.permute.xlu0 1
      %1529 = vperm.xlu0 %1528, %v266
      %v1530 = vpop.permute.xlu0 %1529
      %1532 = vset.pattern.permute.xlu0 1
      %1533 = vperm.xlu0 %1532, %v267
      %v1534 = vpop.permute.xlu0 %1533
      %1536 = vset.pattern.permute.xlu0 1
      %1537 = vperm.xlu0 %1536, %v268
      %v1538 = vpop.permute.xlu0 %1537
      %1540 = vset.pattern.permute.xlu0 1
      %1541 = vperm.xlu0 %1540, %v269
      %v1542 = vpop.permute.xlu0 %1541
      %1544 = vset.pattern.permute.xlu0 1
      %1545 = vperm.xlu0 %1544, %v270
      %v1546 = vpop.permute.xlu0 %1545
      %1548 = vset.pattern.permute.xlu0 1
      %1549 = vperm.xlu0 %1548, %v271
      %v1550 = vpop.permute.xlu0 %1549
      %1552 = vset.pattern.permute.xlu0 1
      %1553 = vperm.xlu0 %1552, %v272
      %v1554 = vpop.permute.xlu0 %1553
      %1556 = vset.pattern.permute.xlu0 1
      %1557 = vperm.xlu0 %1556, %v273
      %v1558 = vpop.permute.xlu0 %1557
      %1560 = vset.pattern.permute.xlu0 1
      %1561 = vperm.xlu0 %1560, %v274
      %v1562 = vpop.permute.xlu0 %1561
      %1564 = vset.pattern.permute.xlu0 1
      %1565 = vperm.xlu0 %1564, %v275
      %v1566 = vpop.permute.xlu0 %1565
      %1568 = vset.pattern.permute.xlu0 1
      %1569 = vperm.xlu0 %1568, %v276
      %v1570 = vpop.permute.xlu0 %1569
      %1572 = vset.pattern.permute.xlu0 1
      %1573 = vperm.xlu0 %1572, %v277
      %v1574 = vpop.permute.xlu0 %1573
      %1576 = vset.pattern.permute.xlu0 1
      %1577 = vperm.xlu0 %1576, %v278
      %v1578 = vpop.permute.xlu0 %1577
      %1580 = vset.pattern.permute.xlu0 1
      %1581 = vperm.xlu0 %1580, %v279
      %v1582 = vpop.permute.xlu0 %1581
      %1584 = vset.pattern.permute.xlu0 1
      %1585 = vperm.xlu0 %1584, %v280
      %v1586 = vpop.permute.xlu0 %1585
      %1588 = vset.pattern.permute.xlu0 1
      %1589 = vperm.xlu0 %1588, %v281
      %v1590 = vpop.permute.xlu0 %1589
      %1592 = vset.pattern.permute.xlu0 1
      %1593 = vperm.xlu0 %1592, %v282
      %v1594 = vpop.permute.xlu0 %1593
      %1596 = vset.pattern.permute.xlu0 1
      %1597 = vperm.xlu0 %1596, %v283
      %v1598 = vpop.permute.xlu0 %1597
      %1600 = vset.pattern.permute.xlu0 1
      %1601 = vperm.xlu0 %1600, %v284
      %v1602 = vpop.permute.xlu0 %1601
      %1604 = vset.pattern.permute.xlu0 1
      %1605 = vperm.xlu0 %1604, %v285
      %v1606 = vpop.permute.xlu0 %1605
      %1608 = vset.pattern.permute.xlu0 1
      %1609 = vperm.xlu0 %1608, %v286
      %v1610 = vpop.permute.xlu0 %1609
      %1612 = vset.pattern.permute.xlu0 1
      %1613 = vperm.xlu0 %1612, %v287
      %v1614 = vpop.permute.xlu0 %1613
      %1616 = vset.pattern.permute.xlu0 1
      %1617 = vperm.xlu0 %1616, %v288
      %v1618 = vpop.permute.xlu0 %1617
      %1620 = vset.pattern.permute.xlu0 1
      %1621 = vperm.xlu0 %1620, %v289
      %v1622 = vpop.permute.xlu0 %1621
      %1624 = vset.pattern.permute.xlu0 1
      %1625 = vperm.xlu0 %1624, %v290
      %v1626 = vpop.permute.xlu0 %1625
      %1628 = vset.pattern.permute.xlu0 1
      %1629 = vperm.xlu0 %1628, %v291
      %v1630 = vpop.permute.xlu0 %1629
      %1632 = vset.pattern.permute.xlu0 1
      %1633 = vperm.xlu0 %1632, %v292
      %v1634 = vpop.permute.xlu0 %1633
      %1636 = vset.pattern.permute.xlu0 1
      %1637 = vperm.xlu0 %1636, %v293
      %v1638 = vpop.permute.xlu0 %1637
      %1640 = vset.pattern.permute.xlu0 1
      %1641 = vperm.xlu0 %1640, %v294
      %v1642 = vpop.permute.xlu0 %1641
      %1644 = vset.pattern.permute.xlu0 1
      %1645 = vperm.xlu0 %1644, %v295
      %v1646 = vpop.permute.xlu0 %1645
      %1648 = vset.pattern.permute.xlu0 1
      %1649 = vperm.xlu0 %1648, %v296
      %v1650 = vpop.permute.xlu0 %1649
      %1652 = vset.pattern.permute.xlu0 1
      %1653 = vperm.xlu0 %1652, %v297
      %v1654 = vpop.permute.xlu0 %1653
      %1656 = vset.pattern.permute.xlu0 1
      %1657 = vperm.xlu0 %1656, %v298
      %v1658 = vpop.permute.xlu0 %1657
      %1660 = vset.pattern.permute.xlu0 1
      %1661 = vperm.xlu0 %1660, %v299
      %v1662 = vpop.permute.xlu0 %1661
      %1664 = vset.pattern.permute.xlu0 1
      %1665 = vperm.xlu0 %1664, %v300
      %v1666 = vpop.permute.xlu0 %1665
      %1668 = vset.pattern.permute.xlu0 1
      %1669 = vperm.xlu0 %1668, %v301
      %v1670 = vpop.permute.xlu0 %1669
      %1672 = vset.pattern.permute.xlu0 1
      %1673 = vperm.xlu0 %1672, %v302
      %v1674 = vpop.permute.xlu0 %1673
      %1676 = vset.pattern.permute.xlu0 1
      %1677 = vperm.xlu0 %1676, %v303
      %v1678 = vpop.permute.xlu0 %1677
      %1680 = vset.pattern.permute.xlu0 1
      %1681 = vperm.xlu0 %1680, %v304
      %v1682 = vpop.permute.xlu0 %1681
      %1684 = vset.pattern.permute.xlu0 1
      %1685 = vperm.xlu0 %1684, %v305
      %v1686 = vpop.permute.xlu0 %1685
      %1688 = vset.pattern.permute.xlu0 1
      %1689 = vperm.xlu0 %1688, %v306
      %v1690 = vpop.permute.xlu0 %1689
      %1692 = vset.pattern.permute.xlu0 1
      %1693 = vperm.xlu0 %1692, %v307
      %v1694 = vpop.permute.xlu0 %1693
      %1696 = vset.pattern.permute.xlu0 1
      %1697 = vperm.xlu0 %1696, %v308
      %v1698 = vpop.permute.xlu0 %1697
      %1700 = vset.pattern.permute.xlu0 1
      %1701 = vperm.xlu0 %1700, %v309
      %v1702 = vpop.permute.xlu0 %1701
      %1704 = vset.pattern.permute.xlu0 1
      %1705 = vperm.xlu0 %1704, %v310
      %v1706 = vpop.permute.xlu0 %1705
      %1708 = vset.pattern.permute.xlu0 1
      %1709 = vperm.xlu0 %1708, %v311
      %v1710 = vpop.permute.xlu0 %1709
      %1712 = vset.pattern.permute.xlu0 1
      %1713 = vperm.xlu0 %1712, %v312
      %v1714 = vpop.permute.xlu0 %1713
      %1716 = vset.pattern.permute.xlu0 1
      %1717 = vperm.xlu0 %1716, %v313
      %v1718 = vpop.permute.xlu0 %1717
      %1720 = vset.pattern.permute.xlu0 1
      %1721 = vperm.xlu0 %1720, %v314
      %v1722 = vpop.permute.xlu0 %1721
      %1724 = vset.pattern.permute.xlu0 1
      %1725 = vperm.xlu0 %1724, %v315
      %v1726 = vpop.permute.xlu0 %1725
      %1728 = vset.pattern.permute.xlu0 1
      %1729 = vperm.xlu0 %1728, %v316
      %v1730 = vpop.permute.xlu0 %1729
      %1732 = vset.pattern.permute.xlu0 1
      %1733 = vperm.xlu0 %1732, %v317
      %v1734 = vpop.permute.xlu0 %1733
      %1736 = vset.pattern.permute.xlu0 1
      %1737 = vperm.xlu0 %1736, %v318
      %v1738 = vpop.permute.xlu0 %1737
      %v1740 = vlaneseq
      %v1741 = vshrl.u32 %v1740, 7
      %v1742 = vsub.s32 0, %v1741
      %v1743 = vrot.slane %v1227, %v1742
      %v1744 = vmul.f32 %v1230, %v1743
      %v1745 = vmul.f32 %v1234, %v1743
      %v1746 = vmul.f32 %v1238, %v1743
      %v1747 = vmul.f32 %v1242, %v1743
      %v1748 = vmul.f32 %v1246, %v1743
      %v1749 = vmul.f32 %v1250, %v1743
      %v1750 = vmul.f32 %v1254, %v1743
      %v1751 = vmul.f32 %v1258, %v1743
      %v1752 = vmul.f32 %v1262, %v1743
      %v1753 = vmul.f32 %v1266, %v1743
      %v1754 = vmul.f32 %v1270, %v1743
      %v1755 = vmul.f32 %v1274, %v1743
      %v1756 = vmul.f32 %v1278, %v1743
      %v1757 = vmul.f32 %v1282, %v1743
      %v1758 = vmul.f32 %v1286, %v1743
      %v1759 = vmul.f32 %v1290, %v1743
      %v1760 = vmul.f32 %v1294, %v1743
      %v1761 = vmul.f32 %v1298, %v1743
      %v1762 = vmul.f32 %v1302, %v1743
      %v1763 = vmul.f32 %v1306, %v1743
      %v1764 = vmul.f32 %v1310, %v1743
      %v1765 = vmul.f32 %v1314, %v1743
      %v1766 = vmul.f32 %v1318, %v1743
      %v1767 = vmul.f32 %v1322, %v1743
      %v1768 = vmul.f32 %v1326, %v1743
      %v1769 = vmul.f32 %v1330, %v1743
      %v1770 = vmul.f32 %v1334, %v1743
      %v1771 = vmul.f32 %v1338, %v1743
      %v1772 = vmul.f32 %v1342, %v1743
      %v1773 = vmul.f32 %v1346, %v1743
      %v1774 = vmul.f32 %v1350, %v1743
      %v1775 = vmul.f32 %v1354, %v1743
      %v1776 = vmul.f32 %v1358, %v1743
      %v1777 = vmul.f32 %v1362, %v1743
      %v1778 = vmul.f32 %v1366, %v1743
      %v1779 = vmul.f32 %v1370, %v1743
      %v1780 = vmul.f32 %v1374, %v1743
      %v1781 = vmul.f32 %v1378, %v1743
      %v1782 = vmul.f32 %v1382, %v1743
      %v1783 = vmul.f32 %v1386, %v1743
      %v1784 = vmul.f32 %v1390, %v1743
      %v1785 = vmul.f32 %v1394, %v1743
      %v1786 = vmul.f32 %v1398, %v1743
      %v1787 = vmul.f32 %v1402, %v1743
      %v1788 = vmul.f32 %v1406, %v1743
      %v1789 = vmul.f32 %v1410, %v1743
      %v1790 = vmul.f32 %v1414, %v1743
      %v1791 = vmul.f32 %v1418, %v1743
      %v1792 = vmul.f32 %v1422, %v1743
      %v1793 = vmul.f32 %v1426, %v1743
      %v1794 = vmul.f32 %v1430, %v1743
      %v1795 = vmul.f32 %v1434, %v1743
      %v1796 = vmul.f32 %v1438, %v1743
      %v1797 = vmul.f32 %v1442, %v1743
      %v1798 = vmul.f32 %v1446, %v1743
      %v1799 = vmul.f32 %v1450, %v1743
      %v1800 = vmul.f32 %v1454, %v1743
      %v1801 = vmul.f32 %v1458, %v1743
      %v1802 = vmul.f32 %v1462, %v1743
      %v1803 = vmul.f32 %v1466, %v1743
      %v1804 = vmul.f32 %v1470, %v1743
      %v1805 = vmul.f32 %v1474, %v1743
      %v1806 = vmul.f32 %v1478, %v1743
      %v1807 = vmul.f32 %v1482, %v1743
      %v1808 = vmul.f32 %v1486, %v1743
      %v1809 = vmul.f32 %v1490, %v1743
      %v1810 = vmul.f32 %v1494, %v1743
      %v1811 = vmul.f32 %v1498, %v1743
      %v1812 = vmul.f32 %v1502, %v1743
      %v1813 = vmul.f32 %v1506, %v1743
      %v1814 = vmul.f32 %v1510, %v1743
      %v1815 = vmul.f32 %v1514, %v1743
      %v1816 = vmul.f32 %v1518, %v1743
      %v1817 = vmul.f32 %v1522, %v1743
      %v1818 = vmul.f32 %v1526, %v1743
      %v1819 = vmul.f32 %v1530, %v1743
      %v1820 = vmul.f32 %v1534, %v1743
      %v1821 = vmul.f32 %v1538, %v1743
      %v1822 = vmul.f32 %v1542, %v1743
      %v1823 = vmul.f32 %v1546, %v1743
      %v1824 = vmul.f32 %v1550, %v1743
      %v1825 = vmul.f32 %v1554, %v1743
      %v1826 = vmul.f32 %v1558, %v1743
      %v1827 = vmul.f32 %v1562, %v1743
      %v1828 = vmul.f32 %v1566, %v1743
      %v1829 = vmul.f32 %v1570, %v1743
      %v1830 = vmul.f32 %v1574, %v1743
      %v1831 = vmul.f32 %v1578, %v1743
      %v1832 = vmul.f32 %v1582, %v1743
      %v1833 = vmul.f32 %v1586, %v1743
      %v1834 = vmul.f32 %v1590, %v1743
      %v1835 = vmul.f32 %v1594, %v1743
      %v1836 = vmul.f32 %v1598, %v1743
      %v1837 = vmul.f32 %v1602, %v1743
      %v1838 = vmul.f32 %v1606, %v1743
      %v1839 = vmul.f32 %v1610, %v1743
      %v1840 = vmul.f32 %v1614, %v1743
      %v1841 = vmul.f32 %v1618, %v1743
      %v1842 = vmul.f32 %v1622, %v1743
      %v1843 = vmul.f32 %v1626, %v1743
      %v1844 = vmul.f32 %v1630, %v1743
      %v1845 = vmul.f32 %v1634, %v1743
      %v1846 = vmul.f32 %v1638, %v1743
      %v1847 = vmul.f32 %v1642, %v1743
      %v1848 = vmul.f32 %v1646, %v1743
      %v1849 = vmul.f32 %v1650, %v1743
      %v1850 = vmul.f32 %v1654, %v1743
      %v1851 = vmul.f32 %v1658, %v1743
      %v1852 = vmul.f32 %v1662, %v1743
      %v1853 = vmul.f32 %v1666, %v1743
      %v1854 = vmul.f32 %v1670, %v1743
      %v1855 = vmul.f32 %v1674, %v1743
      %v1856 = vmul.f32 %v1678, %v1743
      %v1857 = vmul.f32 %v1682, %v1743
      %v1858 = vmul.f32 %v1686, %v1743
      %v1859 = vmul.f32 %v1690, %v1743
      %v1860 = vmul.f32 %v1694, %v1743
      %v1861 = vmul.f32 %v1698, %v1743
      %v1862 = vmul.f32 %v1702, %v1743
      %v1863 = vmul.f32 %v1706, %v1743
      %v1864 = vmul.f32 %v1710, %v1743
      %v1865 = vmul.f32 %v1714, %v1743
      %v1866 = vmul.f32 %v1718, %v1743
      %v1867 = vmul.f32 %v1722, %v1743
      %v1868 = vmul.f32 %v1726, %v1743
      %v1869 = vmul.f32 %v1730, %v1743
      %v1870 = vmul.f32 %v1734, %v1743
      %v1871 = vmul.f32 %v1738, %v1743
      %v1872 = vadd.f32 %v1099, %v1744
      %v1873 = vadd.f32 %v1100, %v1745
      %v1874 = vadd.f32 %v1101, %v1746
      %v1875 = vadd.f32 %v1102, %v1747
      %v1876 = vadd.f32 %v1103, %v1748
      %v1877 = vadd.f32 %v1104, %v1749
      %v1878 = vadd.f32 %v1105, %v1750
      %v1879 = vadd.f32 %v1106, %v1751
      %v1880 = vadd.f32 %v1107, %v1752
      %v1881 = vadd.f32 %v1108, %v1753
      %v1882 = vadd.f32 %v1109, %v1754
      %v1883 = vadd.f32 %v1110, %v1755
      %v1884 = vadd.f32 %v1111, %v1756
      %v1885 = vadd.f32 %v1112, %v1757
      %v1886 = vadd.f32 %v1113, %v1758
      %v1887 = vadd.f32 %v1114, %v1759
      %v1888 = vadd.f32 %v1115, %v1760
      %v1889 = vadd.f32 %v1116, %v1761
      %v1890 = vadd.f32 %v1117, %v1762
      %v1891 = vadd.f32 %v1118, %v1763
      %v1892 = vadd.f32 %v1119, %v1764
      %v1893 = vadd.f32 %v1120, %v1765
      %v1894 = vadd.f32 %v1121, %v1766
      %v1895 = vadd.f32 %v1122, %v1767
      %v1896 = vadd.f32 %v1123, %v1768
      %v1897 = vadd.f32 %v1124, %v1769
      %v1898 = vadd.f32 %v1125, %v1770
      %v1899 = vadd.f32 %v1126, %v1771
      %v1900 = vadd.f32 %v1127, %v1772
      %v1901 = vadd.f32 %v1128, %v1773
      %v1902 = vadd.f32 %v1129, %v1774
      %v1903 = vadd.f32 %v1130, %v1775
      %v1904 = vadd.f32 %v1131, %v1776
      %v1905 = vadd.f32 %v1132, %v1777
      %v1906 = vadd.f32 %v1133, %v1778
      %v1907 = vadd.f32 %v1134, %v1779
      %v1908 = vadd.f32 %v1135, %v1780
      %v1909 = vadd.f32 %v1136, %v1781
      %v1910 = vadd.f32 %v1137, %v1782
      %v1911 = vadd.f32 %v1138, %v1783
      %v1912 = vadd.f32 %v1139, %v1784
      %v1913 = vadd.f32 %v1140, %v1785
      %v1914 = vadd.f32 %v1141, %v1786
      %v1915 = vadd.f32 %v1142, %v1787
      %v1916 = vadd.f32 %v1143, %v1788
      %v1917 = vadd.f32 %v1144, %v1789
      %v1918 = vadd.f32 %v1145, %v1790
      %v1919 = vadd.f32 %v1146, %v1791
      %v1920 = vadd.f32 %v1147, %v1792
      %v1921 = vadd.f32 %v1148, %v1793
      %v1922 = vadd.f32 %v1149, %v1794
      %v1923 = vadd.f32 %v1150, %v1795
      %v1924 = vadd.f32 %v1151, %v1796
      %v1925 = vadd.f32 %v1152, %v1797
      %v1926 = vadd.f32 %v1153, %v1798
      %v1927 = vadd.f32 %v1154, %v1799
      %v1928 = vadd.f32 %v1155, %v1800
      %v1929 = vadd.f32 %v1156, %v1801
      %v1930 = vadd.f32 %v1157, %v1802
      %v1931 = vadd.f32 %v1158, %v1803
      %v1932 = vadd.f32 %v1159, %v1804
      %v1933 = vadd.f32 %v1160, %v1805
      %v1934 = vadd.f32 %v1161, %v1806
      %v1935 = vadd.f32 %v1162, %v1807
      %v1936 = vadd.f32 %v1163, %v1808
      %v1937 = vadd.f32 %v1164, %v1809
      %v1938 = vadd.f32 %v1165, %v1810
      %v1939 = vadd.f32 %v1166, %v1811
      %v1940 = vadd.f32 %v1167, %v1812
      %v1941 = vadd.f32 %v1168, %v1813
      %v1942 = vadd.f32 %v1169, %v1814
      %v1943 = vadd.f32 %v1170, %v1815
      %v1944 = vadd.f32 %v1171, %v1816
      %v1945 = vadd.f32 %v1172, %v1817
      %v1946 = vadd.f32 %v1173, %v1818
      %v1947 = vadd.f32 %v1174, %v1819
      %v1948 = vadd.f32 %v1175, %v1820
      %v1949 = vadd.f32 %v1176, %v1821
      %v1950 = vadd.f32 %v1177, %v1822
      %v1951 = vadd.f32 %v1178, %v1823
      %v1952 = vadd.f32 %v1179, %v1824
      %v1953 = vadd.f32 %v1180, %v1825
      %v1954 = vadd.f32 %v1181, %v1826
      %v1955 = vadd.f32 %v1182, %v1827
      %v1956 = vadd.f32 %v1183, %v1828
      %v1957 = vadd.f32 %v1184, %v1829
      %v1958 = vadd.f32 %v1185, %v1830
      %v1959 = vadd.f32 %v1186, %v1831
      %v1960 = vadd.f32 %v1187, %v1832
      %v1961 = vadd.f32 %v1188, %v1833
      %v1962 = vadd.f32 %v1189, %v1834
      %v1963 = vadd.f32 %v1190, %v1835
      %v1964 = vadd.f32 %v1191, %v1836
      %v1965 = vadd.f32 %v1192, %v1837
      %v1966 = vadd.f32 %v1193, %v1838
      %v1967 = vadd.f32 %v1194, %v1839
      %v1968 = vadd.f32 %v1195, %v1840
      %v1969 = vadd.f32 %v1196, %v1841
      %v1970 = vadd.f32 %v1197, %v1842
      %v1971 = vadd.f32 %v1198, %v1843
      %v1972 = vadd.f32 %v1199, %v1844
      %v1973 = vadd.f32 %v1200, %v1845
      %v1974 = vadd.f32 %v1201, %v1846
      %v1975 = vadd.f32 %v1202, %v1847
      %v1976 = vadd.f32 %v1203, %v1848
      %v1977 = vadd.f32 %v1204, %v1849
      %v1978 = vadd.f32 %v1205, %v1850
      %v1979 = vadd.f32 %v1206, %v1851
      %v1980 = vadd.f32 %v1207, %v1852
      %v1981 = vadd.f32 %v1208, %v1853
      %v1982 = vadd.f32 %v1209, %v1854
      %v1983 = vadd.f32 %v1210, %v1855
      %v1984 = vadd.f32 %v1211, %v1856
      %v1985 = vadd.f32 %v1212, %v1857
      %v1986 = vadd.f32 %v1213, %v1858
      %v1987 = vadd.f32 %v1214, %v1859
      %v1988 = vadd.f32 %v1215, %v1860
      %v1989 = vadd.f32 %v1216, %v1861
      %v1990 = vadd.f32 %v1217, %v1862
      %v1991 = vadd.f32 %v1218, %v1863
      %v1992 = vadd.f32 %v1219, %v1864
      %v1993 = vadd.f32 %v1220, %v1865
      %v1994 = vadd.f32 %v1221, %v1866
      %v1995 = vadd.f32 %v1222, %v1867
      %v1996 = vadd.f32 %v1223, %v1868
      %v1997 = vadd.f32 %v1224, %v1869
      %v1998 = vadd.f32 %v1225, %v1870
      %v1999 = vadd.f32 %v1226, %v1871
      %v2000 = vld [vmem:[%s1 + $0x2] sm:$0x1]
      %2001 = vset.pattern.permute.xlu0 2
      %2002 = vperm.xlu0 %2001, %v191
      %v2003 = vpop.permute.xlu0 %2002
      %2005 = vset.pattern.permute.xlu0 2
      %2006 = vperm.xlu0 %2005, %v192
      %v2007 = vpop.permute.xlu0 %2006
      %2009 = vset.pattern.permute.xlu0 2
      %2010 = vperm.xlu0 %2009, %v193
      %v2011 = vpop.permute.xlu0 %2010
      %2013 = vset.pattern.permute.xlu0 2
      %2014 = vperm.xlu0 %2013, %v194
      %v2015 = vpop.permute.xlu0 %2014
      %2017 = vset.pattern.permute.xlu0 2
      %2018 = vperm.xlu0 %2017, %v195
      %v2019 = vpop.permute.xlu0 %2018
      %2021 = vset.pattern.permute.xlu0 2
      %2022 = vperm.xlu0 %2021, %v196
      %v2023 = vpop.permute.xlu0 %2022
      %2025 = vset.pattern.permute.xlu0 2
      %2026 = vperm.xlu0 %2025, %v197
      %v2027 = vpop.permute.xlu0 %2026
      %2029 = vset.pattern.permute.xlu0 2
      %2030 = vperm.xlu0 %2029, %v198
      %v2031 = vpop.permute.xlu0 %2030
      %2033 = vset.pattern.permute.xlu0 2
      %2034 = vperm.xlu0 %2033, %v199
      %v2035 = vpop.permute.xlu0 %2034
      %2037 = vset.pattern.permute.xlu0 2
      %2038 = vperm.xlu0 %2037, %v200
      %v2039 = vpop.permute.xlu0 %2038
      %2041 = vset.pattern.permute.xlu0 2
      %2042 = vperm.xlu0 %2041, %v201
      %v2043 = vpop.permute.xlu0 %2042
      %2045 = vset.pattern.permute.xlu0 2
      %2046 = vperm.xlu0 %2045, %v202
      %v2047 = vpop.permute.xlu0 %2046
      %2049 = vset.pattern.permute.xlu0 2
      %2050 = vperm.xlu0 %2049, %v203
      %v2051 = vpop.permute.xlu0 %2050
      %2053 = vset.pattern.permute.xlu0 2
      %2054 = vperm.xlu0 %2053, %v204
      %v2055 = vpop.permute.xlu0 %2054
      %2057 = vset.pattern.permute.xlu0 2
      %2058 = vperm.xlu0 %2057, %v205
      %v2059 = vpop.permute.xlu0 %2058
      %2061 = vset.pattern.permute.xlu0 2
      %2062 = vperm.xlu0 %2061, %v206
      %v2063 = vpop.permute.xlu0 %2062
      %2065 = vset.pattern.permute.xlu0 2
      %2066 = vperm.xlu0 %2065, %v207
      %v2067 = vpop.permute.xlu0 %2066
      %2069 = vset.pattern.permute.xlu0 2
      %2070 = vperm.xlu0 %2069, %v208
      %v2071 = vpop.permute.xlu0 %2070
      %2073 = vset.pattern.permute.xlu0 2
      %2074 = vperm.xlu0 %2073, %v209
      %v2075 = vpop.permute.xlu0 %2074
      %2077 = vset.pattern.permute.xlu0 2
      %2078 = vperm.xlu0 %2077, %v210
      %v2079 = vpop.permute.xlu0 %2078
      %2081 = vset.pattern.permute.xlu0 2
      %2082 = vperm.xlu0 %2081, %v211
      %v2083 = vpop.permute.xlu0 %2082
      %2085 = vset.pattern.permute.xlu0 2
      %2086 = vperm.xlu0 %2085, %v212
      %v2087 = vpop.permute.xlu0 %2086
      %2089 = vset.pattern.permute.xlu0 2
      %2090 = vperm.xlu0 %2089, %v213
      %v2091 = vpop.permute.xlu0 %2090
      %2093 = vset.pattern.permute.xlu0 2
      %2094 = vperm.xlu0 %2093, %v214
      %v2095 = vpop.permute.xlu0 %2094
      %2097 = vset.pattern.permute.xlu0 2
      %2098 = vperm.xlu0 %2097, %v215
      %v2099 = vpop.permute.xlu0 %2098
      %2101 = vset.pattern.permute.xlu0 2
      %2102 = vperm.xlu0 %2101, %v216
      %v2103 = vpop.permute.xlu0 %2102
      %2105 = vset.pattern.permute.xlu0 2
      %2106 = vperm.xlu0 %2105, %v217
      %v2107 = vpop.permute.xlu0 %2106
      %2109 = vset.pattern.permute.xlu0 2
      %2110 = vperm.xlu0 %2109, %v218
      %v2111 = vpop.permute.xlu0 %2110
      %2113 = vset.pattern.permute.xlu0 2
      %2114 = vperm.xlu0 %2113, %v219
      %v2115 = vpop.permute.xlu0 %2114
      %2117 = vset.pattern.permute.xlu0 2
      %2118 = vperm.xlu0 %2117, %v220
      %v2119 = vpop.permute.xlu0 %2118
      %2121 = vset.pattern.permute.xlu0 2
      %2122 = vperm.xlu0 %2121, %v221
      %v2123 = vpop.permute.xlu0 %2122
      %2125 = vset.pattern.permute.xlu0 2
      %2126 = vperm.xlu0 %2125, %v222
      %v2127 = vpop.permute.xlu0 %2126
      %2129 = vset.pattern.permute.xlu0 2
      %2130 = vperm.xlu0 %2129, %v223
      %v2131 = vpop.permute.xlu0 %2130
      %2133 = vset.pattern.permute.xlu0 2
      %2134 = vperm.xlu0 %2133, %v224
      %v2135 = vpop.permute.xlu0 %2134
      %2137 = vset.pattern.permute.xlu0 2
      %2138 = vperm.xlu0 %2137, %v225
      %v2139 = vpop.permute.xlu0 %2138
      %2141 = vset.pattern.permute.xlu0 2
      %2142 = vperm.xlu0 %2141, %v226
      %v2143 = vpop.permute.xlu0 %2142
      %2145 = vset.pattern.permute.xlu0 2
      %2146 = vperm.xlu0 %2145, %v227
      %v2147 = vpop.permute.xlu0 %2146
      %2149 = vset.pattern.permute.xlu0 2
      %2150 = vperm.xlu0 %2149, %v228
      %v2151 = vpop.permute.xlu0 %2150
      %2153 = vset.pattern.permute.xlu0 2
      %2154 = vperm.xlu0 %2153, %v229
      %v2155 = vpop.permute.xlu0 %2154
      %2157 = vset.pattern.permute.xlu0 2
      %2158 = vperm.xlu0 %2157, %v230
      %v2159 = vpop.permute.xlu0 %2158
      %2161 = vset.pattern.permute.xlu0 2
      %2162 = vperm.xlu0 %2161, %v231
      %v2163 = vpop.permute.xlu0 %2162
      %2165 = vset.pattern.permute.xlu0 2
      %2166 = vperm.xlu0 %2165, %v232
      %v2167 = vpop.permute.xlu0 %2166
      %2169 = vset.pattern.permute.xlu0 2
      %2170 = vperm.xlu0 %2169, %v233
      %v2171 = vpop.permute.xlu0 %2170
      %2173 = vset.pattern.permute.xlu0 2
      %2174 = vperm.xlu0 %2173, %v234
      %v2175 = vpop.permute.xlu0 %2174
      %2177 = vset.pattern.permute.xlu0 2
      %2178 = vperm.xlu0 %2177, %v235
      %v2179 = vpop.permute.xlu0 %2178
      %2181 = vset.pattern.permute.xlu0 2
      %2182 = vperm.xlu0 %2181, %v236
      %v2183 = vpop.permute.xlu0 %2182
      %2185 = vset.pattern.permute.xlu0 2
      %2186 = vperm.xlu0 %2185, %v237
      %v2187 = vpop.permute.xlu0 %2186
      %2189 = vset.pattern.permute.xlu0 2
      %2190 = vperm.xlu0 %2189, %v238
      %v2191 = vpop.permute.xlu0 %2190
      %2193 = vset.pattern.permute.xlu0 2
      %2194 = vperm.xlu0 %2193, %v239
      %v2195 = vpop.permute.xlu0 %2194
      %2197 = vset.pattern.permute.xlu0 2
      %2198 = vperm.xlu0 %2197, %v240
      %v2199 = vpop.permute.xlu0 %2198
      %2201 = vset.pattern.permute.xlu0 2
      %2202 = vperm.xlu0 %2201, %v241
      %v2203 = vpop.permute.xlu0 %2202
      %2205 = vset.pattern.permute.xlu0 2
      %2206 = vperm.xlu0 %2205, %v242
      %v2207 = vpop.permute.xlu0 %2206
      %2209 = vset.pattern.permute.xlu0 2
      %2210 = vperm.xlu0 %2209, %v243
      %v2211 = vpop.permute.xlu0 %2210
      %2213 = vset.pattern.permute.xlu0 2
      %2214 = vperm.xlu0 %2213, %v244
      %v2215 = vpop.permute.xlu0 %2214
      %2217 = vset.pattern.permute.xlu0 2
      %2218 = vperm.xlu0 %2217, %v245
      %v2219 = vpop.permute.xlu0 %2218
      %2221 = vset.pattern.permute.xlu0 2
      %2222 = vperm.xlu0 %2221, %v246
      %v2223 = vpop.permute.xlu0 %2222
      %2225 = vset.pattern.permute.xlu0 2
      %2226 = vperm.xlu0 %2225, %v247
      %v2227 = vpop.permute.xlu0 %2226
      %2229 = vset.pattern.permute.xlu0 2
      %2230 = vperm.xlu0 %2229, %v248
      %v2231 = vpop.permute.xlu0 %2230
      %2233 = vset.pattern.permute.xlu0 2
      %2234 = vperm.xlu0 %2233, %v249
      %v2235 = vpop.permute.xlu0 %2234
      %2237 = vset.pattern.permute.xlu0 2
      %2238 = vperm.xlu0 %2237, %v250
      %v2239 = vpop.permute.xlu0 %2238
      %2241 = vset.pattern.permute.xlu0 2
      %2242 = vperm.xlu0 %2241, %v251
      %v2243 = vpop.permute.xlu0 %2242
      %2245 = vset.pattern.permute.xlu0 2
      %2246 = vperm.xlu0 %2245, %v252
      %v2247 = vpop.permute.xlu0 %2246
      %2249 = vset.pattern.permute.xlu0 2
      %2250 = vperm.xlu0 %2249, %v253
      %v2251 = vpop.permute.xlu0 %2250
      %2253 = vset.pattern.permute.xlu0 2
      %2254 = vperm.xlu0 %2253, %v254
      %v2255 = vpop.permute.xlu0 %2254
      %2257 = vset.pattern.permute.xlu0 2
      %2258 = vperm.xlu0 %2257, %v255
      %v2259 = vpop.permute.xlu0 %2258
      %2261 = vset.pattern.permute.xlu0 2
      %2262 = vperm.xlu0 %2261, %v256
      %v2263 = vpop.permute.xlu0 %2262
      %2265 = vset.pattern.permute.xlu0 2
      %2266 = vperm.xlu0 %2265, %v257
      %v2267 = vpop.permute.xlu0 %2266
      %2269 = vset.pattern.permute.xlu0 2
      %2270 = vperm.xlu0 %2269, %v258
      %v2271 = vpop.permute.xlu0 %2270
      %2273 = vset.pattern.permute.xlu0 2
      %2274 = vperm.xlu0 %2273, %v259
      %v2275 = vpop.permute.xlu0 %2274
      %2277 = vset.pattern.permute.xlu0 2
      %2278 = vperm.xlu0 %2277, %v260
      %v2279 = vpop.permute.xlu0 %2278
      %2281 = vset.pattern.permute.xlu0 2
      %2282 = vperm.xlu0 %2281, %v261
      %v2283 = vpop.permute.xlu0 %2282
      %2285 = vset.pattern.permute.xlu0 2
      %2286 = vperm.xlu0 %2285, %v262
      %v2287 = vpop.permute.xlu0 %2286
      %2289 = vset.pattern.permute.xlu0 2
      %2290 = vperm.xlu0 %2289, %v263
      %v2291 = vpop.permute.xlu0 %2290
      %2293 = vset.pattern.permute.xlu0 2
      %2294 = vperm.xlu0 %2293, %v264
      %v2295 = vpop.permute.xlu0 %2294
      %2297 = vset.pattern.permute.xlu0 2
      %2298 = vperm.xlu0 %2297, %v265
      %v2299 = vpop.permute.xlu0 %2298
      %2301 = vset.pattern.permute.xlu0 2
      %2302 = vperm.xlu0 %2301, %v266
      %v2303 = vpop.permute.xlu0 %2302
      %2305 = vset.pattern.permute.xlu0 2
      %2306 = vperm.xlu0 %2305, %v267
      %v2307 = vpop.permute.xlu0 %2306
      %2309 = vset.pattern.permute.xlu0 2
      %2310 = vperm.xlu0 %2309, %v268
      %v2311 = vpop.permute.xlu0 %2310
      %2313 = vset.pattern.permute.xlu0 2
      %2314 = vperm.xlu0 %2313, %v269
      %v2315 = vpop.permute.xlu0 %2314
      %2317 = vset.pattern.permute.xlu0 2
      %2318 = vperm.xlu0 %2317, %v270
      %v2319 = vpop.permute.xlu0 %2318
      %2321 = vset.pattern.permute.xlu0 2
      %2322 = vperm.xlu0 %2321, %v271
      %v2323 = vpop.permute.xlu0 %2322
      %2325 = vset.pattern.permute.xlu0 2
      %2326 = vperm.xlu0 %2325, %v272
      %v2327 = vpop.permute.xlu0 %2326
      %2329 = vset.pattern.permute.xlu0 2
      %2330 = vperm.xlu0 %2329, %v273
      %v2331 = vpop.permute.xlu0 %2330
      %2333 = vset.pattern.permute.xlu0 2
      %2334 = vperm.xlu0 %2333, %v274
      %v2335 = vpop.permute.xlu0 %2334
      %2337 = vset.pattern.permute.xlu0 2
      %2338 = vperm.xlu0 %2337, %v275
      %v2339 = vpop.permute.xlu0 %2338
      %2341 = vset.pattern.permute.xlu0 2
      %2342 = vperm.xlu0 %2341, %v276
      %v2343 = vpop.permute.xlu0 %2342
      %2345 = vset.pattern.permute.xlu0 2
      %2346 = vperm.xlu0 %2345, %v277
      %v2347 = vpop.permute.xlu0 %2346
      %2349 = vset.pattern.permute.xlu0 2
      %2350 = vperm.xlu0 %2349, %v278
      %v2351 = vpop.permute.xlu0 %2350
      %2353 = vset.pattern.permute.xlu0 2
      %2354 = vperm.xlu0 %2353, %v279
      %v2355 = vpop.permute.xlu0 %2354
      %2357 = vset.pattern.permute.xlu0 2
      %2358 = vperm.xlu0 %2357, %v280
      %v2359 = vpop.permute.xlu0 %2358
      %2361 = vset.pattern.permute.xlu0 2
      %2362 = vperm.xlu0 %2361, %v281
      %v2363 = vpop.permute.xlu0 %2362
      %2365 = vset.pattern.permute.xlu0 2
      %2366 = vperm.xlu0 %2365, %v282
      %v2367 = vpop.permute.xlu0 %2366
      %2369 = vset.pattern.permute.xlu0 2
      %2370 = vperm.xlu0 %2369, %v283
      %v2371 = vpop.permute.xlu0 %2370
      %2373 = vset.pattern.permute.xlu0 2
      %2374 = vperm.xlu0 %2373, %v284
      %v2375 = vpop.permute.xlu0 %2374
      %2377 = vset.pattern.permute.xlu0 2
      %2378 = vperm.xlu0 %2377, %v285
      %v2379 = vpop.permute.xlu0 %2378
      %2381 = vset.pattern.permute.xlu0 2
      %2382 = vperm.xlu0 %2381, %v286
      %v2383 = vpop.permute.xlu0 %2382
      %2385 = vset.pattern.permute.xlu0 2
      %2386 = vperm.xlu0 %2385, %v287
      %v2387 = vpop.permute.xlu0 %2386
      %2389 = vset.pattern.permute.xlu0 2
      %2390 = vperm.xlu0 %2389, %v288
      %v2391 = vpop.permute.xlu0 %2390
      %2393 = vset.pattern.permute.xlu0 2
      %2394 = vperm.xlu0 %2393, %v289
      %v2395 = vpop.permute.xlu0 %2394
      %2397 = vset.pattern.permute.xlu0 2
      %2398 = vperm.xlu0 %2397, %v290
      %v2399 = vpop.permute.xlu0 %2398
      %2401 = vset.pattern.permute.xlu0 2
      %2402 = vperm.xlu0 %2401, %v291
      %v2403 = vpop.permute.xlu0 %2402
      %2405 = vset.pattern.permute.xlu0 2
      %2406 = vperm.xlu0 %2405, %v292
      %v2407 = vpop.permute.xlu0 %2406
      %2409 = vset.pattern.permute.xlu0 2
      %2410 = vperm.xlu0 %2409, %v293
      %v2411 = vpop.permute.xlu0 %2410
      %2413 = vset.pattern.permute.xlu0 2
      %2414 = vperm.xlu0 %2413, %v294
      %v2415 = vpop.permute.xlu0 %2414
      %2417 = vset.pattern.permute.xlu0 2
      %2418 = vperm.xlu0 %2417, %v295
      %v2419 = vpop.permute.xlu0 %2418
      %2421 = vset.pattern.permute.xlu0 2
      %2422 = vperm.xlu0 %2421, %v296
      %v2423 = vpop.permute.xlu0 %2422
      %2425 = vset.pattern.permute.xlu0 2
      %2426 = vperm.xlu0 %2425, %v297
      %v2427 = vpop.permute.xlu0 %2426
      %2429 = vset.pattern.permute.xlu0 2
      %2430 = vperm.xlu0 %2429, %v298
      %v2431 = vpop.permute.xlu0 %2430
      %2433 = vset.pattern.permute.xlu0 2
      %2434 = vperm.xlu0 %2433, %v299
      %v2435 = vpop.permute.xlu0 %2434
      %2437 = vset.pattern.permute.xlu0 2
      %2438 = vperm.xlu0 %2437, %v300
      %v2439 = vpop.permute.xlu0 %2438
      %2441 = vset.pattern.permute.xlu0 2
      %2442 = vperm.xlu0 %2441, %v301
      %v2443 = vpop.permute.xlu0 %2442
      %2445 = vset.pattern.permute.xlu0 2
      %2446 = vperm.xlu0 %2445, %v302
      %v2447 = vpop.permute.xlu0 %2446
      %2449 = vset.pattern.permute.xlu0 2
      %2450 = vperm.xlu0 %2449, %v303
      %v2451 = vpop.permute.xlu0 %2450
      %2453 = vset.pattern.permute.xlu0 2
      %2454 = vperm.xlu0 %2453, %v304
      %v2455 = vpop.permute.xlu0 %2454
      %2457 = vset.pattern.permute.xlu0 2
      %2458 = vperm.xlu0 %2457, %v305
      %v2459 = vpop.permute.xlu0 %2458
      %2461 = vset.pattern.permute.xlu0 2
      %2462 = vperm.xlu0 %2461, %v306
      %v2463 = vpop.permute.xlu0 %2462
      %2465 = vset.pattern.permute.xlu0 2
      %2466 = vperm.xlu0 %2465, %v307
      %v2467 = vpop.permute.xlu0 %2466
      %2469 = vset.pattern.permute.xlu0 2
      %2470 = vperm.xlu0 %2469, %v308
      %v2471 = vpop.permute.xlu0 %2470
      %2473 = vset.pattern.permute.xlu0 2
      %2474 = vperm.xlu0 %2473, %v309
      %v2475 = vpop.permute.xlu0 %2474
      %2477 = vset.pattern.permute.xlu0 2
      %2478 = vperm.xlu0 %2477, %v310
      %v2479 = vpop.permute.xlu0 %2478
      %2481 = vset.pattern.permute.xlu0 2
      %2482 = vperm.xlu0 %2481, %v311
      %v2483 = vpop.permute.xlu0 %2482
      %2485 = vset.pattern.permute.xlu0 2
      %2486 = vperm.xlu0 %2485, %v312
      %v2487 = vpop.permute.xlu0 %2486
      %2489 = vset.pattern.permute.xlu0 2
      %2490 = vperm.xlu0 %2489, %v313
      %v2491 = vpop.permute.xlu0 %2490
      %2493 = vset.pattern.permute.xlu0 2
      %2494 = vperm.xlu0 %2493, %v314
      %v2495 = vpop.permute.xlu0 %2494
      %2497 = vset.pattern.permute.xlu0 2
      %2498 = vperm.xlu0 %2497, %v315
      %v2499 = vpop.permute.xlu0 %2498
      %2501 = vset.pattern.permute.xlu0 2
      %2502 = vperm.xlu0 %2501, %v316
      %v2503 = vpop.permute.xlu0 %2502
      %2505 = vset.pattern.permute.xlu0 2
      %2506 = vperm.xlu0 %2505, %v317
      %v2507 = vpop.permute.xlu0 %2506
      %2509 = vset.pattern.permute.xlu0 2
      %2510 = vperm.xlu0 %2509, %v318
      %v2511 = vpop.permute.xlu0 %2510
      %v2513 = vlaneseq
      %v2514 = vshrl.u32 %v2513, 7
      %v2515 = vsub.s32 0, %v2514
      %v2516 = vrot.slane %v2000, %v2515
      %v2517 = vmul.f32 %v2003, %v2516
      %v2518 = vmul.f32 %v2007, %v2516
      %v2519 = vmul.f32 %v2011, %v2516
      %v2520 = vmul.f32 %v2015, %v2516
      %v2521 = vmul.f32 %v2019, %v2516
      %v2522 = vmul.f32 %v2023, %v2516
      %v2523 = vmul.f32 %v2027, %v2516
      %v2524 = vmul.f32 %v2031, %v2516
      %v2525 = vmul.f32 %v2035, %v2516
      %v2526 = vmul.f32 %v2039, %v2516
      %v2527 = vmul.f32 %v2043, %v2516
      %v2528 = vmul.f32 %v2047, %v2516
      %v2529 = vmul.f32 %v2051, %v2516
      %v2530 = vmul.f32 %v2055, %v2516
      %v2531 = vmul.f32 %v2059, %v2516
      %v2532 = vmul.f32 %v2063, %v2516
      %v2533 = vmul.f32 %v2067, %v2516
      %v2534 = vmul.f32 %v2071, %v2516
      %v2535 = vmul.f32 %v2075, %v2516
      %v2536 = vmul.f32 %v2079, %v2516
      %v2537 = vmul.f32 %v2083, %v2516
      %v2538 = vmul.f32 %v2087, %v2516
      %v2539 = vmul.f32 %v2091, %v2516
      %v2540 = vmul.f32 %v2095, %v2516
      %v2541 = vmul.f32 %v2099, %v2516
      %v2542 = vmul.f32 %v2103, %v2516
      %v2543 = vmul.f32 %v2107, %v2516
      %v2544 = vmul.f32 %v2111, %v2516
      %v2545 = vmul.f32 %v2115, %v2516
      %v2546 = vmul.f32 %v2119, %v2516
      %v2547 = vmul.f32 %v2123, %v2516
      %v2548 = vmul.f32 %v2127, %v2516
      %v2549 = vmul.f32 %v2131, %v2516
      %v2550 = vmul.f32 %v2135, %v2516
      %v2551 = vmul.f32 %v2139, %v2516
      %v2552 = vmul.f32 %v2143, %v2516
      %v2553 = vmul.f32 %v2147, %v2516
      %v2554 = vmul.f32 %v2151, %v2516
      %v2555 = vmul.f32 %v2155, %v2516
      %v2556 = vmul.f32 %v2159, %v2516
      %v2557 = vmul.f32 %v2163, %v2516
      %v2558 = vmul.f32 %v2167, %v2516
      %v2559 = vmul.f32 %v2171, %v2516
      %v2560 = vmul.f32 %v2175, %v2516
      %v2561 = vmul.f32 %v2179, %v2516
      %v2562 = vmul.f32 %v2183, %v2516
      %v2563 = vmul.f32 %v2187, %v2516
      %v2564 = vmul.f32 %v2191, %v2516
      %v2565 = vmul.f32 %v2195, %v2516
      %v2566 = vmul.f32 %v2199, %v2516
      %v2567 = vmul.f32 %v2203, %v2516
      %v2568 = vmul.f32 %v2207, %v2516
      %v2569 = vmul.f32 %v2211, %v2516
      %v2570 = vmul.f32 %v2215, %v2516
      %v2571 = vmul.f32 %v2219, %v2516
      %v2572 = vmul.f32 %v2223, %v2516
      %v2573 = vmul.f32 %v2227, %v2516
      %v2574 = vmul.f32 %v2231, %v2516
      %v2575 = vmul.f32 %v2235, %v2516
      %v2576 = vmul.f32 %v2239, %v2516
      %v2577 = vmul.f32 %v2243, %v2516
      %v2578 = vmul.f32 %v2247, %v2516
      %v2579 = vmul.f32 %v2251, %v2516
      %v2580 = vmul.f32 %v2255, %v2516
      %v2581 = vmul.f32 %v2259, %v2516
      %v2582 = vmul.f32 %v2263, %v2516
      %v2583 = vmul.f32 %v2267, %v2516
      %v2584 = vmul.f32 %v2271, %v2516
      %v2585 = vmul.f32 %v2275, %v2516
      %v2586 = vmul.f32 %v2279, %v2516
      %v2587 = vmul.f32 %v2283, %v2516
      %v2588 = vmul.f32 %v2287, %v2516
      %v2589 = vmul.f32 %v2291, %v2516
      %v2590 = vmul.f32 %v2295, %v2516
      %v2591 = vmul.f32 %v2299, %v2516
      %v2592 = vmul.f32 %v2303, %v2516
      %v2593 = vmul.f32 %v2307, %v2516
      %v2594 = vmul.f32 %v2311, %v2516
      %v2595 = vmul.f32 %v2315, %v2516
      %v2596 = vmul.f32 %v2319, %v2516
      %v2597 = vmul.f32 %v2323, %v2516
      %v2598 = vmul.f32 %v2327, %v2516
      %v2599 = vmul.f32 %v2331, %v2516
      %v2600 = vmul.f32 %v2335, %v2516
      %v2601 = vmul.f32 %v2339, %v2516
      %v2602 = vmul.f32 %v2343, %v2516
      %v2603 = vmul.f32 %v2347, %v2516
      %v2604 = vmul.f32 %v2351, %v2516
      %v2605 = vmul.f32 %v2355, %v2516
      %v2606 = vmul.f32 %v2359, %v2516
      %v2607 = vmul.f32 %v2363, %v2516
      %v2608 = vmul.f32 %v2367, %v2516
      %v2609 = vmul.f32 %v2371, %v2516
      %v2610 = vmul.f32 %v2375, %v2516
      %v2611 = vmul.f32 %v2379, %v2516
      %v2612 = vmul.f32 %v2383, %v2516
      %v2613 = vmul.f32 %v2387, %v2516
      %v2614 = vmul.f32 %v2391, %v2516
      %v2615 = vmul.f32 %v2395, %v2516
      %v2616 = vmul.f32 %v2399, %v2516
      %v2617 = vmul.f32 %v2403, %v2516
      %v2618 = vmul.f32 %v2407, %v2516
      %v2619 = vmul.f32 %v2411, %v2516
      %v2620 = vmul.f32 %v2415, %v2516
      %v2621 = vmul.f32 %v2419, %v2516
      %v2622 = vmul.f32 %v2423, %v2516
      %v2623 = vmul.f32 %v2427, %v2516
      %v2624 = vmul.f32 %v2431, %v2516
      %v2625 = vmul.f32 %v2435, %v2516
      %v2626 = vmul.f32 %v2439, %v2516
      %v2627 = vmul.f32 %v2443, %v2516
      %v2628 = vmul.f32 %v2447, %v2516
      %v2629 = vmul.f32 %v2451, %v2516
      %v2630 = vmul.f32 %v2455, %v2516
      %v2631 = vmul.f32 %v2459, %v2516
      %v2632 = vmul.f32 %v2463, %v2516
      %v2633 = vmul.f32 %v2467, %v2516
      %v2634 = vmul.f32 %v2471, %v2516
      %v2635 = vmul.f32 %v2475, %v2516
      %v2636 = vmul.f32 %v2479, %v2516
      %v2637 = vmul.f32 %v2483, %v2516
      %v2638 = vmul.f32 %v2487, %v2516
      %v2639 = vmul.f32 %v2491, %v2516
      %v2640 = vmul.f32 %v2495, %v2516
      %v2641 = vmul.f32 %v2499, %v2516
      %v2642 = vmul.f32 %v2503, %v2516
      %v2643 = vmul.f32 %v2507, %v2516
      %v2644 = vmul.f32 %v2511, %v2516
      %v2645 = vadd.f32 %v1872, %v2517
      %v2646 = vadd.f32 %v1873, %v2518
      %v2647 = vadd.f32 %v1874, %v2519
      %v2648 = vadd.f32 %v1875, %v2520
      %v2649 = vadd.f32 %v1876, %v2521
      %v2650 = vadd.f32 %v1877, %v2522
      %v2651 = vadd.f32 %v1878, %v2523
      %v2652 = vadd.f32 %v1879, %v2524
      %v2653 = vadd.f32 %v1880, %v2525
      %v2654 = vadd.f32 %v1881, %v2526
      %v2655 = vadd.f32 %v1882, %v2527
      %v2656 = vadd.f32 %v1883, %v2528
      %v2657 = vadd.f32 %v1884, %v2529
      %v2658 = vadd.f32 %v1885, %v2530
      %v2659 = vadd.f32 %v1886, %v2531
      %v2660 = vadd.f32 %v1887, %v2532
      %v2661 = vadd.f32 %v1888, %v2533
      %v2662 = vadd.f32 %v1889, %v2534
      %v2663 = vadd.f32 %v1890, %v2535
      %v2664 = vadd.f32 %v1891, %v2536
      %v2665 = vadd.f32 %v1892, %v2537
      %v2666 = vadd.f32 %v1893, %v2538
      %v2667 = vadd.f32 %v1894, %v2539
      %v2668 = vadd.f32 %v1895, %v2540
      %v2669 = vadd.f32 %v1896, %v2541
      %v2670 = vadd.f32 %v1897, %v2542
      %v2671 = vadd.f32 %v1898, %v2543
      %v2672 = vadd.f32 %v1899, %v2544
      %v2673 = vadd.f32 %v1900, %v2545
      %v2674 = vadd.f32 %v1901, %v2546
      %v2675 = vadd.f32 %v1902, %v2547
      %v2676 = vadd.f32 %v1903, %v2548
      %v2677 = vadd.f32 %v1904, %v2549
      %v2678 = vadd.f32 %v1905, %v2550
      %v2679 = vadd.f32 %v1906, %v2551
      %v2680 = vadd.f32 %v1907, %v2552
      %v2681 = vadd.f32 %v1908, %v2553
      %v2682 = vadd.f32 %v1909, %v2554
      %v2683 = vadd.f32 %v1910, %v2555
      %v2684 = vadd.f32 %v1911, %v2556
      %v2685 = vadd.f32 %v1912, %v2557
      %v2686 = vadd.f32 %v1913, %v2558
      %v2687 = vadd.f32 %v1914, %v2559
      %v2688 = vadd.f32 %v1915, %v2560
      %v2689 = vadd.f32 %v1916, %v2561
      %v2690 = vadd.f32 %v1917, %v2562
      %v2691 = vadd.f32 %v1918, %v2563
      %v2692 = vadd.f32 %v1919, %v2564
      %v2693 = vadd.f32 %v1920, %v2565
      %v2694 = vadd.f32 %v1921, %v2566
      %v2695 = vadd.f32 %v1922, %v2567
      %v2696 = vadd.f32 %v1923, %v2568
      %v2697 = vadd.f32 %v1924, %v2569
      %v2698 = vadd.f32 %v1925, %v2570
      %v2699 = vadd.f32 %v1926, %v2571
      %v2700 = vadd.f32 %v1927, %v2572
      %v2701 = vadd.f32 %v1928, %v2573
      %v2702 = vadd.f32 %v1929, %v2574
      %v2703 = vadd.f32 %v1930, %v2575
      %v2704 = vadd.f32 %v1931, %v2576
      %v2705 = vadd.f32 %v1932, %v2577
      %v2706 = vadd.f32 %v1933, %v2578
      %v2707 = vadd.f32 %v1934, %v2579
      %v2708 = vadd.f32 %v1935, %v2580
      %v2709 = vadd.f32 %v1936, %v2581
      %v2710 = vadd.f32 %v1937, %v2582
      %v2711 = vadd.f32 %v1938, %v2583
      %v2712 = vadd.f32 %v1939, %v2584
      %v2713 = vadd.f32 %v1940, %v2585
      %v2714 = vadd.f32 %v1941, %v2586
      %v2715 = vadd.f32 %v1942, %v2587
      %v2716 = vadd.f32 %v1943, %v2588
      %v2717 = vadd.f32 %v1944, %v2589
      %v2718 = vadd.f32 %v1945, %v2590
      %v2719 = vadd.f32 %v1946, %v2591
      %v2720 = vadd.f32 %v1947, %v2592
      %v2721 = vadd.f32 %v1948, %v2593
      %v2722 = vadd.f32 %v1949, %v2594
      %v2723 = vadd.f32 %v1950, %v2595
      %v2724 = vadd.f32 %v1951, %v2596
      %v2725 = vadd.f32 %v1952, %v2597
      %v2726 = vadd.f32 %v1953, %v2598
      %v2727 = vadd.f32 %v1954, %v2599
      %v2728 = vadd.f32 %v1955, %v2600
      %v2729 = vadd.f32 %v1956, %v2601
      %v2730 = vadd.f32 %v1957, %v2602
      %v2731 = vadd.f32 %v1958, %v2603
      %v2732 = vadd.f32 %v1959, %v2604
      %v2733 = vadd.f32 %v1960, %v2605
      %v2734 = vadd.f32 %v1961, %v2606
      %v2735 = vadd.f32 %v1962, %v2607
      %v2736 = vadd.f32 %v1963, %v2608
      %v2737 = vadd.f32 %v1964, %v2609
      %v2738 = vadd.f32 %v1965, %v2610
      %v2739 = vadd.f32 %v1966, %v2611
      %v2740 = vadd.f32 %v1967, %v2612
      %v2741 = vadd.f32 %v1968, %v2613
      %v2742 = vadd.f32 %v1969, %v2614
      %v2743 = vadd.f32 %v1970, %v2615
      %v2744 = vadd.f32 %v1971, %v2616
      %v2745 = vadd.f32 %v1972, %v2617
      %v2746 = vadd.f32 %v1973, %v2618
      %v2747 = vadd.f32 %v1974, %v2619
      %v2748 = vadd.f32 %v1975, %v2620
      %v2749 = vadd.f32 %v1976, %v2621
      %v2750 = vadd.f32 %v1977, %v2622
      %v2751 = vadd.f32 %v1978, %v2623
      %v2752 = vadd.f32 %v1979, %v2624
      %v2753 = vadd.f32 %v1980, %v2625
      %v2754 = vadd.f32 %v1981, %v2626
      %v2755 = vadd.f32 %v1982, %v2627
      %v2756 = vadd.f32 %v1983, %v2628
      %v2757 = vadd.f32 %v1984, %v2629
      %v2758 = vadd.f32 %v1985, %v2630
      %v2759 = vadd.f32 %v1986, %v2631
      %v2760 = vadd.f32 %v1987, %v2632
      %v2761 = vadd.f32 %v1988, %v2633
      %v2762 = vadd.f32 %v1989, %v2634
      %v2763 = vadd.f32 %v1990, %v2635
      %v2764 = vadd.f32 %v1991, %v2636
      %v2765 = vadd.f32 %v1992, %v2637
      %v2766 = vadd.f32 %v1993, %v2638
      %v2767 = vadd.f32 %v1994, %v2639
      %v2768 = vadd.f32 %v1995, %v2640
      %v2769 = vadd.f32 %v1996, %v2641
      %v2770 = vadd.f32 %v1997, %v2642
      %v2771 = vadd.f32 %v1998, %v2643
      %v2772 = vadd.f32 %v1999, %v2644
      %v2773 = vmul.f32 %v2645, 0.2
      %v2774 = vmul.f32 %v2646, 0.2
      %v2775 = vmul.f32 %v2647, 0.2
      %v2776 = vmul.f32 %v2648, 0.2
      %v2777 = vmul.f32 %v2649, 0.2
      %v2778 = vmul.f32 %v2650, 0.2
      %v2779 = vmul.f32 %v2651, 0.2
      %v2780 = vmul.f32 %v2652, 0.2
      %v2781 = vmul.f32 %v2653, 0.2
      %v2782 = vmul.f32 %v2654, 0.2
      %v2783 = vmul.f32 %v2655, 0.2
      %v2784 = vmul.f32 %v2656, 0.2
      %v2785 = vmul.f32 %v2657, 0.2
      %v2786 = vmul.f32 %v2658, 0.2
      %v2787 = vmul.f32 %v2659, 0.2
      %v2788 = vmul.f32 %v2660, 0.2
      %v2789 = vmul.f32 %v2661, 0.2
      %v2790 = vmul.f32 %v2662, 0.2
      %v2791 = vmul.f32 %v2663, 0.2
      %v2792 = vmul.f32 %v2664, 0.2
      %v2793 = vmul.f32 %v2665, 0.2
      %v2794 = vmul.f32 %v2666, 0.2
      %v2795 = vmul.f32 %v2667, 0.2
      %v2796 = vmul.f32 %v2668, 0.2
      %v2797 = vmul.f32 %v2669, 0.2
      %v2798 = vmul.f32 %v2670, 0.2
      %v2799 = vmul.f32 %v2671, 0.2
      %v2800 = vmul.f32 %v2672, 0.2
      %v2801 = vmul.f32 %v2673, 0.2
      %v2802 = vmul.f32 %v2674, 0.2
      %v2803 = vmul.f32 %v2675, 0.2
      %v2804 = vmul.f32 %v2676, 0.2
      %v2805 = vmul.f32 %v2677, 0.2
      %v2806 = vmul.f32 %v2678, 0.2
      %v2807 = vmul.f32 %v2679, 0.2
      %v2808 = vmul.f32 %v2680, 0.2
      %v2809 = vmul.f32 %v2681, 0.2
      %v2810 = vmul.f32 %v2682, 0.2
      %v2811 = vmul.f32 %v2683, 0.2
      %v2812 = vmul.f32 %v2684, 0.2
      %v2813 = vmul.f32 %v2685, 0.2
      %v2814 = vmul.f32 %v2686, 0.2
      %v2815 = vmul.f32 %v2687, 0.2
      %v2816 = vmul.f32 %v2688, 0.2
      %v2817 = vmul.f32 %v2689, 0.2
      %v2818 = vmul.f32 %v2690, 0.2
      %v2819 = vmul.f32 %v2691, 0.2
      %v2820 = vmul.f32 %v2692, 0.2
      %v2821 = vmul.f32 %v2693, 0.2
      %v2822 = vmul.f32 %v2694, 0.2
      %v2823 = vmul.f32 %v2695, 0.2
      %v2824 = vmul.f32 %v2696, 0.2
      %v2825 = vmul.f32 %v2697, 0.2
      %v2826 = vmul.f32 %v2698, 0.2
      %v2827 = vmul.f32 %v2699, 0.2
      %v2828 = vmul.f32 %v2700, 0.2
      %v2829 = vmul.f32 %v2701, 0.2
      %v2830 = vmul.f32 %v2702, 0.2
      %v2831 = vmul.f32 %v2703, 0.2
      %v2832 = vmul.f32 %v2704, 0.2
      %v2833 = vmul.f32 %v2705, 0.2
      %v2834 = vmul.f32 %v2706, 0.2
      %v2835 = vmul.f32 %v2707, 0.2
      %v2836 = vmul.f32 %v2708, 0.2
      %v2837 = vmul.f32 %v2709, 0.2
      %v2838 = vmul.f32 %v2710, 0.2
      %v2839 = vmul.f32 %v2711, 0.2
      %v2840 = vmul.f32 %v2712, 0.2
      %v2841 = vmul.f32 %v2713, 0.2
      %v2842 = vmul.f32 %v2714, 0.2
      %v2843 = vmul.f32 %v2715, 0.2
      %v2844 = vmul.f32 %v2716, 0.2
      %v2845 = vmul.f32 %v2717, 0.2
      %v2846 = vmul.f32 %v2718, 0.2
      %v2847 = vmul.f32 %v2719, 0.2
      %v2848 = vmul.f32 %v2720, 0.2
      %v2849 = vmul.f32 %v2721, 0.2
      %v2850 = vmul.f32 %v2722, 0.2
      %v2851 = vmul.f32 %v2723, 0.2
      %v2852 = vmul.f32 %v2724, 0.2
      %v2853 = vmul.f32 %v2725, 0.2
      %v2854 = vmul.f32 %v2726, 0.2
      %v2855 = vmul.f32 %v2727, 0.2
      %v2856 = vmul.f32 %v2728, 0.2
      %v2857 = vmul.f32 %v2729, 0.2
      %v2858 = vmul.f32 %v2730, 0.2
      %v2859 = vmul.f32 %v2731, 0.2
      %v2860 = vmul.f32 %v2732, 0.2
      %v2861 = vmul.f32 %v2733, 0.2
      %v2862 = vmul.f32 %v2734, 0.2
      %v2863 = vmul.f32 %v2735, 0.2
      %v2864 = vmul.f32 %v2736, 0.2
      %v2865 = vmul.f32 %v2737, 0.2
      %v2866 = vmul.f32 %v2738, 0.2
      %v2867 = vmul.f32 %v2739, 0.2
      %v2868 = vmul.f32 %v2740, 0.2
      %v2869 = vmul.f32 %v2741, 0.2
      %v2870 = vmul.f32 %v2742, 0.2
      %v2871 = vmul.f32 %v2743, 0.2
      %v2872 = vmul.f32 %v2744, 0.2
      %v2873 = vmul.f32 %v2745, 0.2
      %v2874 = vmul.f32 %v2746, 0.2
      %v2875 = vmul.f32 %v2747, 0.2
      %v2876 = vmul.f32 %v2748, 0.2
      %v2877 = vmul.f32 %v2749, 0.2
      %v2878 = vmul.f32 %v2750, 0.2
      %v2879 = vmul.f32 %v2751, 0.2
      %v2880 = vmul.f32 %v2752, 0.2
      %v2881 = vmul.f32 %v2753, 0.2
      %v2882 = vmul.f32 %v2754, 0.2
      %v2883 = vmul.f32 %v2755, 0.2
      %v2884 = vmul.f32 %v2756, 0.2
      %v2885 = vmul.f32 %v2757, 0.2
      %v2886 = vmul.f32 %v2758, 0.2
      %v2887 = vmul.f32 %v2759, 0.2
      %v2888 = vmul.f32 %v2760, 0.2
      %v2889 = vmul.f32 %v2761, 0.2
      %v2890 = vmul.f32 %v2762, 0.2
      %v2891 = vmul.f32 %v2763, 0.2
      %v2892 = vmul.f32 %v2764, 0.2
      %v2893 = vmul.f32 %v2765, 0.2
      %v2894 = vmul.f32 %v2766, 0.2
      %v2895 = vmul.f32 %v2767, 0.2
      %v2896 = vmul.f32 %v2768, 0.2
      %v2897 = vmul.f32 %v2769, 0.2
      %v2898 = vmul.f32 %v2770, 0.2
      %v2899 = vmul.f32 %v2771, 0.2
      %v2900 = vmul.f32 %v2772, 0.2
      %v2901 = vmax.f32 %v2645, %v2773
      %v2902 = vmax.f32 %v2646, %v2774
      %v2903 = vmax.f32 %v2647, %v2775
      %v2904 = vmax.f32 %v2648, %v2776
      %v2905 = vmax.f32 %v2649, %v2777
      %v2906 = vmax.f32 %v2650, %v2778
      %v2907 = vmax.f32 %v2651, %v2779
      %v2908 = vmax.f32 %v2652, %v2780
      %v2909 = vmax.f32 %v2653, %v2781
      %v2910 = vmax.f32 %v2654, %v2782
      %v2911 = vmax.f32 %v2655, %v2783
      %v2912 = vmax.f32 %v2656, %v2784
      %v2913 = vmax.f32 %v2657, %v2785
      %v2914 = vmax.f32 %v2658, %v2786
      %v2915 = vmax.f32 %v2659, %v2787
      %v2916 = vmax.f32 %v2660, %v2788
      %v2917 = vmax.f32 %v2661, %v2789
      %v2918 = vmax.f32 %v2662, %v2790
      %v2919 = vmax.f32 %v2663, %v2791
      %v2920 = vmax.f32 %v2664, %v2792
      %v2921 = vmax.f32 %v2665, %v2793
      %v2922 = vmax.f32 %v2666, %v2794
      %v2923 = vmax.f32 %v2667, %v2795
      %v2924 = vmax.f32 %v2668, %v2796
      %v2925 = vmax.f32 %v2669, %v2797
      %v2926 = vmax.f32 %v2670, %v2798
      %v2927 = vmax.f32 %v2671, %v2799
      %v2928 = vmax.f32 %v2672, %v2800
      %v2929 = vmax.f32 %v2673, %v2801
      %v2930 = vmax.f32 %v2674, %v2802
      %v2931 = vmax.f32 %v2675, %v2803
      %v2932 = vmax.f32 %v2676, %v2804
      %v2933 = vmax.f32 %v2677, %v2805
      %v2934 = vmax.f32 %v2678, %v2806
      %v2935 = vmax.f32 %v2679, %v2807
      %v2936 = vmax.f32 %v2680, %v2808
      %v2937 = vmax.f32 %v2681, %v2809
      %v2938 = vmax.f32 %v2682, %v2810
      %v2939 = vmax.f32 %v2683, %v2811
      %v2940 = vmax.f32 %v2684, %v2812
      %v2941 = vmax.f32 %v2685, %v2813
      %v2942 = vmax.f32 %v2686, %v2814
      %v2943 = vmax.f32 %v2687, %v2815
      %v2944 = vmax.f32 %v2688, %v2816
      %v2945 = vmax.f32 %v2689, %v2817
      %v2946 = vmax.f32 %v2690, %v2818
      %v2947 = vmax.f32 %v2691, %v2819
      %v2948 = vmax.f32 %v2692, %v2820
      %v2949 = vmax.f32 %v2693, %v2821
      %v2950 = vmax.f32 %v2694, %v2822
      %v2951 = vmax.f32 %v2695, %v2823
      %v2952 = vmax.f32 %v2696, %v2824
      %v2953 = vmax.f32 %v2697, %v2825
      %v2954 = vmax.f32 %v2698, %v2826
      %v2955 = vmax.f32 %v2699, %v2827
      %v2956 = vmax.f32 %v2700, %v2828
      %v2957 = vmax.f32 %v2701, %v2829
      %v2958 = vmax.f32 %v2702, %v2830
      %v2959 = vmax.f32 %v2703, %v2831
      %v2960 = vmax.f32 %v2704, %v2832
      %v2961 = vmax.f32 %v2705, %v2833
      %v2962 = vmax.f32 %v2706, %v2834
      %v2963 = vmax.f32 %v2707, %v2835
      %v2964 = vmax.f32 %v2708, %v2836
      %v2965 = vmax.f32 %v2709, %v2837
      %v2966 = vmax.f32 %v2710, %v2838
      %v2967 = vmax.f32 %v2711, %v2839
      %v2968 = vmax.f32 %v2712, %v2840
      %v2969 = vmax.f32 %v2713, %v2841
      %v2970 = vmax.f32 %v2714, %v2842
      %v2971 = vmax.f32 %v2715, %v2843
      %v2972 = vmax.f32 %v2716, %v2844
      %v2973 = vmax.f32 %v2717, %v2845
      %v2974 = vmax.f32 %v2718, %v2846
      %v2975 = vmax.f32 %v2719, %v2847
      %v2976 = vmax.f32 %v2720, %v2848
      %v2977 = vmax.f32 %v2721, %v2849
      %v2978 = vmax.f32 %v2722, %v2850
      %v2979 = vmax.f32 %v2723, %v2851
      %v2980 = vmax.f32 %v2724, %v2852
      %v2981 = vmax.f32 %v2725, %v2853
      %v2982 = vmax.f32 %v2726, %v2854
      %v2983 = vmax.f32 %v2727, %v2855
      %v2984 = vmax.f32 %v2728, %v2856
      %v2985 = vmax.f32 %v2729, %v2857
      %v2986 = vmax.f32 %v2730, %v2858
      %v2987 = vmax.f32 %v2731, %v2859
      %v2988 = vmax.f32 %v2732, %v2860
      %v2989 = vmax.f32 %v2733, %v2861
      %v2990 = vmax.f32 %v2734, %v2862
      %v2991 = vmax.f32 %v2735, %v2863
      %v2992 = vmax.f32 %v2736, %v2864
      %v2993 = vmax.f32 %v2737, %v2865
      %v2994 = vmax.f32 %v2738, %v2866
      %v2995 = vmax.f32 %v2739, %v2867
      %v2996 = vmax.f32 %v2740, %v2868
      %v2997 = vmax.f32 %v2741, %v2869
      %v2998 = vmax.f32 %v2742, %v2870
      %v2999 = vmax.f32 %v2743, %v2871
      %v3000 = vmax.f32 %v2744, %v2872
      %v3001 = vmax.f32 %v2745, %v2873
      %v3002 = vmax.f32 %v2746, %v2874
      %v3003 = vmax.f32 %v2747, %v2875
      %v3004 = vmax.f32 %v2748, %v2876
      %v3005 = vmax.f32 %v2749, %v2877
      %v3006 = vmax.f32 %v2750, %v2878
      %v3007 = vmax.f32 %v2751, %v2879
      %v3008 = vmax.f32 %v2752, %v2880
      %v3009 = vmax.f32 %v2753, %v2881
      %v3010 = vmax.f32 %v2754, %v2882
      %v3011 = vmax.f32 %v2755, %v2883
      %v3012 = vmax.f32 %v2756, %v2884
      %v3013 = vmax.f32 %v2757, %v2885
      %v3014 = vmax.f32 %v2758, %v2886
      %v3015 = vmax.f32 %v2759, %v2887
      %v3016 = vmax.f32 %v2760, %v2888
      %v3017 = vmax.f32 %v2761, %v2889
      %v3018 = vmax.f32 %v2762, %v2890
      %v3019 = vmax.f32 %v2763, %v2891
      %v3020 = vmax.f32 %v2764, %v2892
      %v3021 = vmax.f32 %v2765, %v2893
      %v3022 = vmax.f32 %v2766, %v2894
      %v3023 = vmax.f32 %v2767, %v2895
      %v3024 = vmax.f32 %v2768, %v2896
      %v3025 = vmax.f32 %v2769, %v2897
      %v3026 = vmax.f32 %v2770, %v2898
      %v3027 = vmax.f32 %v2771, %v2899
      %v3028 = vmax.f32 %v2772, %v2900
      %v3029 = vpack.c.bf16 %v2902, %v2901
      %v3030 = vpack.c.bf16 %v2904, %v2903
      %v3031 = vpack.c.bf16 %v2906, %v2905
      %v3032 = vpack.c.bf16 %v2908, %v2907
      %v3033 = vpack.c.bf16 %v2910, %v2909
      %v3034 = vpack.c.bf16 %v2912, %v2911
      %v3035 = vpack.c.bf16 %v2914, %v2913
      %v3036 = vpack.c.bf16 %v2916, %v2915
      %v3037 = vpack.c.bf16 %v2918, %v2917
      %v3038 = vpack.c.bf16 %v2920, %v2919
      %v3039 = vpack.c.bf16 %v2922, %v2921
      %v3040 = vpack.c.bf16 %v2924, %v2923
      %v3041 = vpack.c.bf16 %v2926, %v2925
      %v3042 = vpack.c.bf16 %v2928, %v2927
      %v3043 = vpack.c.bf16 %v2930, %v2929
      %v3044 = vpack.c.bf16 %v2932, %v2931
      %v3045 = vpack.c.bf16 %v2934, %v2933
      %v3046 = vpack.c.bf16 %v2936, %v2935
      %v3047 = vpack.c.bf16 %v2938, %v2937
      %v3048 = vpack.c.bf16 %v2940, %v2939
      %v3049 = vpack.c.bf16 %v2942, %v2941
      %v3050 = vpack.c.bf16 %v2944, %v2943
      %v3051 = vpack.c.bf16 %v2946, %v2945
      %v3052 = vpack.c.bf16 %v2948, %v2947
      %v3053 = vpack.c.bf16 %v2950, %v2949
      %v3054 = vpack.c.bf16 %v2952, %v2951
      %v3055 = vpack.c.bf16 %v2954, %v2953
      %v3056 = vpack.c.bf16 %v2956, %v2955
      %v3057 = vpack.c.bf16 %v2958, %v2957
      %v3058 = vpack.c.bf16 %v2960, %v2959
      %v3059 = vpack.c.bf16 %v2962, %v2961
      %v3060 = vpack.c.bf16 %v2964, %v2963
      %v3061 = vpack.c.bf16 %v2966, %v2965
      %v3062 = vpack.c.bf16 %v2968, %v2967
      %v3063 = vpack.c.bf16 %v2970, %v2969
      %v3064 = vpack.c.bf16 %v2972, %v2971
      %v3065 = vpack.c.bf16 %v2974, %v2973
      %v3066 = vpack.c.bf16 %v2976, %v2975
      %v3067 = vpack.c.bf16 %v2978, %v2977
      %v3068 = vpack.c.bf16 %v2980, %v2979
      %v3069 = vpack.c.bf16 %v2982, %v2981
      %v3070 = vpack.c.bf16 %v2984, %v2983
      %v3071 = vpack.c.bf16 %v2986, %v2985
      %v3072 = vpack.c.bf16 %v2988, %v2987
      %v3073 = vpack.c.bf16 %v2990, %v2989
      %v3074 = vpack.c.bf16 %v2992, %v2991
      %v3075 = vpack.c.bf16 %v2994, %v2993
      %v3076 = vpack.c.bf16 %v2996, %v2995
      %v3077 = vpack.c.bf16 %v2998, %v2997
      %v3078 = vpack.c.bf16 %v3000, %v2999
      %v3079 = vpack.c.bf16 %v3002, %v3001
      %v3080 = vpack.c.bf16 %v3004, %v3003
      %v3081 = vpack.c.bf16 %v3006, %v3005
      %v3082 = vpack.c.bf16 %v3008, %v3007
      %v3083 = vpack.c.bf16 %v3010, %v3009
      %v3084 = vpack.c.bf16 %v3012, %v3011
      %v3085 = vpack.c.bf16 %v3014, %v3013
      %v3086 = vpack.c.bf16 %v3016, %v3015
      %v3087 = vpack.c.bf16 %v3018, %v3017
      %v3088 = vpack.c.bf16 %v3020, %v3019
      %v3089 = vpack.c.bf16 %v3022, %v3021
      %v3090 = vpack.c.bf16 %v3024, %v3023
      %v3091 = vpack.c.bf16 %v3026, %v3025
      %v3092 = vpack.c.bf16 %v3028, %v3027
      %v3093 = vld [vmem:[%s3] sm:$0xf]
      %v3094 = vld [vmem:[%s3 + $0x4] sm:$0xf]
      %v3095 = vld [vmem:[%s3 + $0x8] sm:$0xf]
      %v3096 = vld [vmem:[%s3 + $0xc] sm:$0xf]
      %v3097 = vld [vmem:[%s3 + $0x10] sm:$0xf]
      %v3098 = vld [vmem:[%s3 + $0x14] sm:$0xf]
      %v3099 = vld [vmem:[%s3 + $0x18] sm:$0xf]
      %v3100 = vld [vmem:[%s3 + $0x1c] sm:$0xf]
      %v3109 = vunpack.c.l.b16 %v3093
      %v3110 = vunpack.c.l.b16 %v3094
      %v3111 = vunpack.c.l.b16 %v3095
      %v3112 = vunpack.c.l.b16 %v3096
      %v3113 = vunpack.c.l.b16 %v3097
      %v3114 = vunpack.c.l.b16 %v3098
      %v3115 = vunpack.c.l.b16 %v3099
      %v3116 = vunpack.c.l.b16 %v3100
      %v3117 = vpack.c.b16 %v3110, %v3109
      %v3118 = vpack.c.b16 %v3112, %v3111
      %v3119 = vpack.c.b16 %v3114, %v3113
      %v3120 = vpack.c.b16 %v3116, %v3115
      %vm3125 = vcmask 523264
      %v3127 = vsel %vm3125, %v3029, 0
      %v3130 = vsel %vm3125, %v3030, 0
      %v3133 = vsel %vm3125, %v3031, 0
      %v3136 = vsel %vm3125, %v3032, 0
      %v3139 = vsel %vm3125, %v3033, 0
      %v3142 = vsel %vm3125, %v3034, 0
      %v3145 = vsel %vm3125, %v3035, 0
      %v3148 = vsel %vm3125, %v3036, 0
      %v3151 = vsel %vm3125, %v3037, 0
      %v3154 = vsel %vm3125, %v3038, 0
      %v3157 = vsel %vm3125, %v3039, 0
      %v3160 = vsel %vm3125, %v3040, 0
      %v3163 = vsel %vm3125, %v3041, 0
      %v3166 = vsel %vm3125, %v3042, 0
      %v3169 = vsel %vm3125, %v3043, 0
      %v3172 = vsel %vm3125, %v3044, 0
      %v3175 = vsel %vm3125, %v3045, 0
      %v3178 = vsel %vm3125, %v3046, 0
      %v3181 = vsel %vm3125, %v3047, 0
      %v3184 = vsel %vm3125, %v3048, 0
      %v3187 = vsel %vm3125, %v3049, 0
      %v3190 = vsel %vm3125, %v3050, 0
      %v3193 = vsel %vm3125, %v3051, 0
      %v3196 = vsel %vm3125, %v3052, 0
      %v3199 = vsel %vm3125, %v3053, 0
      %v3202 = vsel %vm3125, %v3054, 0
      %v3205 = vsel %vm3125, %v3055, 0
      %v3208 = vsel %vm3125, %v3056, 0
      %v3211 = vsel %vm3125, %v3057, 0
      %v3214 = vsel %vm3125, %v3058, 0
      %v3217 = vsel %vm3125, %v3059, 0
      %v3220 = vsel %vm3125, %v3060, 0
      %v3223 = vsel %vm3125, %v3061, 0
      %v3226 = vsel %vm3125, %v3062, 0
      %v3229 = vsel %vm3125, %v3063, 0
      %v3232 = vsel %vm3125, %v3064, 0
      %v3235 = vsel %vm3125, %v3065, 0
      %v3238 = vsel %vm3125, %v3066, 0
      %v3241 = vsel %vm3125, %v3067, 0
      %v3244 = vsel %vm3125, %v3068, 0
      %v3247 = vsel %vm3125, %v3069, 0
      %v3250 = vsel %vm3125, %v3070, 0
      %v3253 = vsel %vm3125, %v3071, 0
      %v3256 = vsel %vm3125, %v3072, 0
      %v3259 = vsel %vm3125, %v3073, 0
      %v3262 = vsel %vm3125, %v3074, 0
      %v3265 = vsel %vm3125, %v3075, 0
      %v3268 = vsel %vm3125, %v3076, 0
      %v3271 = vsel %vm3125, %v3077, 0
      %v3274 = vsel %vm3125, %v3078, 0
      %v3277 = vsel %vm3125, %v3079, 0
      %v3280 = vsel %vm3125, %v3080, 0
      %v3283 = vsel %vm3125, %v3081, 0
      %v3286 = vsel %vm3125, %v3082, 0
      %v3289 = vsel %vm3125, %v3083, 0
      %v3292 = vsel %vm3125, %v3084, 0
      %v3295 = vsel %vm3125, %v3085, 0
      %v3298 = vsel %vm3125, %v3086, 0
      %v3301 = vsel %vm3125, %v3087, 0
      %v3304 = vsel %vm3125, %v3088, 0
      %v3307 = vsel %vm3125, %v3089, 0
      %v3310 = vsel %vm3125, %v3090, 0
      %v3313 = vsel %vm3125, %v3091, 0
      %v3316 = vsel %vm3125, %v3092, 0
      %3318 = vmatprep.subr.bf16.mxu0 0
      %3319 = vmatpush1.bf16.msra.mxu0 %v3117
      %3320 = vmatprep.subr.bf16.mxu0 0
      %3321 = vmatpush1.bf16.msra.mxu0 %v3118
      %3322 = vmatprep.subr.bf16.mxu0 0
      %3323 = vmatpush1.bf16.msra.mxu0 %v3119
      %3324 = vmatprep.subr.bf16.mxu0 0
      %3325 = vmatpush1.bf16.msra.mxu0 %v3120
      %3326 = vmatprep.subr.bf16.mxu0 0
      %3327 = vmatpush1.bf16.msra.mxu0 0
      %3328 = vmatprep.subr.bf16.mxu0 0
      %3329 = vmatpush1.bf16.msra.mxu0 0
      %3330 = vmatprep.subr.bf16.mxu0 0
      %3331 = vmatpush1.bf16.msra.mxu0 0
      %3332 = vmatprep.subr.bf16.mxu0 0
      %3333 = vmatpush1.bf16.msra.mxu0 0
      %3334 = vmatprep.subr.bf16.mxu0 0
      %3335 = vmatpush1.bf16.msra.mxu0 0
      %3336 = vmatprep.subr.bf16.mxu0 0
      %3337 = vmatpush1.bf16.msra.mxu0 0
      %3338 = vmatprep.subr.bf16.mxu0 0
      %3339 = vmatpush1.bf16.msra.mxu0 0
      %3340 = vmatprep.subr.bf16.mxu0 0
      %3341 = vmatpush1.bf16.msra.mxu0 0
      %3342 = vmatprep.subr.bf16.mxu0 0
      %3343 = vmatpush1.bf16.msra.mxu0 0
      %3344 = vmatprep.subr.bf16.mxu0 0
      %3345 = vmatpush1.bf16.msra.mxu0 0
      %3346 = vmatprep.subr.bf16.mxu0 0
      %3347 = vmatpush1.bf16.msra.mxu0 0
      %3348 = vmatprep.subr.bf16.mxu0 0
      %3349 = vmatpush1.bf16.msra.mxu0 0
      %3350 = vmatprep.mubr.bf16.mxu0 0
      %3351 = vmatmul.mubr.bf16.gmra.mrb[0].mxu0 %v3127
      %v3352 = vpop.f32.mrb[0].mxu0
      %v3353 = vadd.f32 0.0, %v3352
      %v3354 = vpop.f32.mrb[0].mxu0
      %v3355 = vpop.f32.mrb[0].mxu0
      %v3356 = vadd.f32 0.0, %v3355
      %v3357 = vpop.f32.mrb[0].mxu0
      %3358 = vmatprep.mubr.bf16.mxu0 0
      %3359 = vmatmul.mubr.bf16.gmra.mrb[0].mxu0 %v3130
      %v3360 = vpop.f32.mrb[0].mxu0
      %v3361 = vadd.f32 0.0, %v3360
      %v3362 = vpop.f32.mrb[0].mxu0
      %v3363 = vpop.f32.mrb[0].mxu0
      %v3364 = vadd.f32 0.0, %v3363
      %v3365 = vpop.f32.mrb[0].mxu0
      %3366 = vmatprep.mubr.bf16.mxu0 0
      %3367 = vmatmul.mubr.bf16.gmra.mrb[0].mxu0 %v3133
      %v3368 = vpop.f32.mrb[0].mxu0
      %v3369 = vadd.f32 0.0, %v3368
      %v3370 = vpop.f32.mrb[0].mxu0
      %v3371 = vpop.f32.mrb[0].mxu0
      %v3372 = vadd.f32 0.0, %v3371
      %v3373 = vpop.f32.mrb[0].mxu0
      %3374 = vmatprep.mubr.bf16.mxu0 0
      %3375 = vmatmul.mubr.bf16.gmra.mrb[0].mxu0 %v3136
      %v3376 = vpop.f32.mrb[0].mxu0
      %v3377 = vadd.f32 0.0, %v3376
      %v3378 = vpop.f32.mrb[0].mxu0
      %v3379 = vpop.f32.mrb[0].mxu0
      %v3380 = vadd.f32 0.0, %v3379
      %v3381 = vpop.f32.mrb[0].mxu0
      %3382 = vmatprep.mubr.bf16.mxu0 0
      %3383 = vmatmul.mubr.bf16.gmra.mrb[0].mxu0 %v3139
      %v3384 = vpop.f32.mrb[0].mxu0
      %v3385 = vadd.f32 0.0, %v3384
      %v3386 = vpop.f32.mrb[0].mxu0
      %v3387 = vpop.f32.mrb[0].mxu0
      %v3388 = vadd.f32 0.0, %v3387
      %v3389 = vpop.f32.mrb[0].mxu0
      %3390 = vmatprep.mubr.bf16.mxu0 0
      %3391 = vmatmul.mubr.bf16.gmra.mrb[0].mxu0 %v3142
      %v3392 = vpop.f32.mrb[0].mxu0
      %v3393 = vadd.f32 0.0, %v3392
      %v3394 = vpop.f32.mrb[0].mxu0
      %v3395 = vpop.f32.mrb[0].mxu0
      %v3396 = vadd.f32 0.0, %v3395
      %v3397 = vpop.f32.mrb[0].mxu0
      %3398 = vmatprep.mubr.bf16.mxu0 0
      %3399 = vmatmul.mubr.bf16.gmra.mrb[0].mxu0 %v3145
      %v3400 = vpop.f32.mrb[0].mxu0
      %v3401 = vadd.f32 0.0, %v3400
      %v3402 = vpop.f32.mrb[0].mxu0
      %v3403 = vpop.f32.mrb[0].mxu0
      %v3404 = vadd.f32 0.0, %v3403
      %v3405 = vpop.f32.mrb[0].mxu0
      %3406 = vmatprep.mubr.bf16.mxu0 0
      %3407 = vmatmul.mubr.bf16.gmra.mrb[0].mxu0 %v3148
      %v3408 = vpop.f32.mrb[0].mxu0
      %v3409 = vadd.f32 0.0, %v3408
      %v3410 = vpop.f32.mrb[0].mxu0
      %v3411 = vpop.f32.mrb[0].mxu0
      %v3412 = vadd.f32 0.0, %v3411
      %v3413 = vpop.f32.mrb[0].mxu0
      %3414 = vmatprep.mubr.bf16.mxu0 0
      %3415 = vmatmul.mubr.bf16.gmra.mrb[0].mxu0 %v3151
      %v3416 = vpop.f32.mrb[0].mxu0
      %v3417 = vadd.f32 0.0, %v3416
      %v3418 = vpop.f32.mrb[0].mxu0
      %v3419 = vpop.f32.mrb[0].mxu0
      %v3420 = vadd.f32 0.0, %v3419
      %v3421 = vpop.f32.mrb[0].mxu0
      %3422 = vmatprep.mubr.bf16.mxu0 0
      %3423 = vmatmul.mubr.bf16.gmra.mrb[0].mxu0 %v3154
      %v3424 = vpop.f32.mrb[0].mxu0
      %v3425 = vadd.f32 0.0, %v3424
      %v3426 = vpop.f32.mrb[0].mxu0
      %v3427 = vpop.f32.mrb[0].mxu0
      %v3428 = vadd.f32 0.0, %v3427
      %v3429 = vpop.f32.mrb[0].mxu0
      %3430 = vmatprep.mubr.bf16.mxu0 0
      %3431 = vmatmul.mubr.bf16.gmra.mrb[0].mxu0 %v3157
      %v3432 = vpop.f32.mrb[0].mxu0
      %v3433 = vadd.f32 0.0, %v3432
      %v3434 = vpop.f32.mrb[0].mxu0
      %v3435 = vpop.f32.mrb[0].mxu0
      %v3436 = vadd.f32 0.0, %v3435
      %v3437 = vpop.f32.mrb[0].mxu0
      %3438 = vmatprep.mubr.bf16.mxu0 0
      %3439 = vmatmul.mubr.bf16.gmra.mrb[0].mxu0 %v3160
      %v3440 = vpop.f32.mrb[0].mxu0
      %v3441 = vadd.f32 0.0, %v3440
      %v3442 = vpop.f32.mrb[0].mxu0
      %v3443 = vpop.f32.mrb[0].mxu0
      %v3444 = vadd.f32 0.0, %v3443
      %v3445 = vpop.f32.mrb[0].mxu0
      %3446 = vmatprep.mubr.bf16.mxu0 0
      %3447 = vmatmul.mubr.bf16.gmra.mrb[0].mxu0 %v3163
      %v3448 = vpop.f32.mrb[0].mxu0
      %v3449 = vadd.f32 0.0, %v3448
      %v3450 = vpop.f32.mrb[0].mxu0
      %v3451 = vpop.f32.mrb[0].mxu0
      %v3452 = vadd.f32 0.0, %v3451
      %v3453 = vpop.f32.mrb[0].mxu0
      %3454 = vmatprep.mubr.bf16.mxu0 0
      %3455 = vmatmul.mubr.bf16.gmra.mrb[0].mxu0 %v3166
      %v3456 = vpop.f32.mrb[0].mxu0
      %v3457 = vadd.f32 0.0, %v3456
      %v3458 = vpop.f32.mrb[0].mxu0
      %v3459 = vpop.f32.mrb[0].mxu0
      %v3460 = vadd.f32 0.0, %v3459
      %v3461 = vpop.f32.mrb[0].mxu0
      %3462 = vmatprep.mubr.bf16.mxu0 0
      %3463 = vmatmul.mubr.bf16.gmra.mrb[0].mxu0 %v3169
      %v3464 = vpop.f32.mrb[0].mxu0
      %v3465 = vadd.f32 0.0, %v3464
      %v3466 = vpop.f32.mrb[0].mxu0
      %v3467 = vpop.f32.mrb[0].mxu0
      %v3468 = vadd.f32 0.0, %v3467
      %v3469 = vpop.f32.mrb[0].mxu0
      %3470 = vmatprep.mubr.bf16.mxu0 0
      %3471 = vmatmul.mubr.bf16.gmra.mrb[0].mxu0 %v3172
      %v3472 = vpop.f32.mrb[0].mxu0
      %v3473 = vadd.f32 0.0, %v3472
      %v3474 = vpop.f32.mrb[0].mxu0
      %v3475 = vpop.f32.mrb[0].mxu0
      %v3476 = vadd.f32 0.0, %v3475
      %v3477 = vpop.f32.mrb[0].mxu0
      %3478 = vmatprep.mubr.bf16.mxu0 0
      %3479 = vmatmul.mubr.bf16.gmra.mrb[0].mxu0 %v3175
      %v3480 = vpop.f32.mrb[0].mxu0
      %v3481 = vadd.f32 0.0, %v3480
      %v3482 = vpop.f32.mrb[0].mxu0
      %v3483 = vpop.f32.mrb[0].mxu0
      %v3484 = vadd.f32 0.0, %v3483
      %v3485 = vpop.f32.mrb[0].mxu0
      %3486 = vmatprep.mubr.bf16.mxu0 0
      %3487 = vmatmul.mubr.bf16.gmra.mrb[0].mxu0 %v3178
      %v3488 = vpop.f32.mrb[0].mxu0
      %v3489 = vadd.f32 0.0, %v3488
      %v3490 = vpop.f32.mrb[0].mxu0
      %v3491 = vpop.f32.mrb[0].mxu0
      %v3492 = vadd.f32 0.0, %v3491
      %v3493 = vpop.f32.mrb[0].mxu0
      %3494 = vmatprep.mubr.bf16.mxu0 0
      %3495 = vmatmul.mubr.bf16.gmra.mrb[0].mxu0 %v3181
      %v3496 = vpop.f32.mrb[0].mxu0
      %v3497 = vadd.f32 0.0, %v3496
      %v3498 = vpop.f32.mrb[0].mxu0
      %v3499 = vpop.f32.mrb[0].mxu0
      %v3500 = vadd.f32 0.0, %v3499
      %v3501 = vpop.f32.mrb[0].mxu0
      %3502 = vmatprep.mubr.bf16.mxu0 0
      %3503 = vmatmul.mubr.bf16.gmra.mrb[0].mxu0 %v3184
      %v3504 = vpop.f32.mrb[0].mxu0
      %v3505 = vadd.f32 0.0, %v3504
      %v3506 = vpop.f32.mrb[0].mxu0
      %v3507 = vpop.f32.mrb[0].mxu0
      %v3508 = vadd.f32 0.0, %v3507
      %v3509 = vpop.f32.mrb[0].mxu0
      %3510 = vmatprep.mubr.bf16.mxu0 0
      %3511 = vmatmul.mubr.bf16.gmra.mrb[0].mxu0 %v3187
      %v3512 = vpop.f32.mrb[0].mxu0
      %v3513 = vadd.f32 0.0, %v3512
      %v3514 = vpop.f32.mrb[0].mxu0
      %v3515 = vpop.f32.mrb[0].mxu0
      %v3516 = vadd.f32 0.0, %v3515
      %v3517 = vpop.f32.mrb[0].mxu0
      %3518 = vmatprep.mubr.bf16.mxu0 0
      %3519 = vmatmul.mubr.bf16.gmra.mrb[0].mxu0 %v3190
      %v3520 = vpop.f32.mrb[0].mxu0
      %v3521 = vadd.f32 0.0, %v3520
      %v3522 = vpop.f32.mrb[0].mxu0
      %v3523 = vpop.f32.mrb[0].mxu0
      %v3524 = vadd.f32 0.0, %v3523
      %v3525 = vpop.f32.mrb[0].mxu0
      %3526 = vmatprep.mubr.bf16.mxu0 0
      %3527 = vmatmul.mubr.bf16.gmra.mrb[0].mxu0 %v3193
      %v3528 = vpop.f32.mrb[0].mxu0
      %v3529 = vadd.f32 0.0, %v3528
      %v3530 = vpop.f32.mrb[0].mxu0
      %v3531 = vpop.f32.mrb[0].mxu0
      %v3532 = vadd.f32 0.0, %v3531
      %v3533 = vpop.f32.mrb[0].mxu0
      %3534 = vmatprep.mubr.bf16.mxu0 0
      %3535 = vmatmul.mubr.bf16.gmra.mrb[0].mxu0 %v3196
      %v3536 = vpop.f32.mrb[0].mxu0
      %v3537 = vadd.f32 0.0, %v3536
      %v3538 = vpop.f32.mrb[0].mxu0
      %v3539 = vpop.f32.mrb[0].mxu0
      %v3540 = vadd.f32 0.0, %v3539
      %v3541 = vpop.f32.mrb[0].mxu0
      %3542 = vmatprep.mubr.bf16.mxu0 0
      %3543 = vmatmul.mubr.bf16.gmra.mrb[0].mxu0 %v3199
      %v3544 = vpop.f32.mrb[0].mxu0
      %v3545 = vadd.f32 0.0, %v3544
      %v3546 = vpop.f32.mrb[0].mxu0
      %v3547 = vpop.f32.mrb[0].mxu0
      %v3548 = vadd.f32 0.0, %v3547
      %v3549 = vpop.f32.mrb[0].mxu0
      %3550 = vmatprep.mubr.bf16.mxu0 0
      %3551 = vmatmul.mubr.bf16.gmra.mrb[0].mxu0 %v3202
      %v3552 = vpop.f32.mrb[0].mxu0
      %v3553 = vadd.f32 0.0, %v3552
      %v3554 = vpop.f32.mrb[0].mxu0
      %v3555 = vpop.f32.mrb[0].mxu0
      %v3556 = vadd.f32 0.0, %v3555
      %v3557 = vpop.f32.mrb[0].mxu0
      %3558 = vmatprep.mubr.bf16.mxu0 0
      %3559 = vmatmul.mubr.bf16.gmra.mrb[0].mxu0 %v3205
      %v3560 = vpop.f32.mrb[0].mxu0
      %v3561 = vadd.f32 0.0, %v3560
      %v3562 = vpop.f32.mrb[0].mxu0
      %v3563 = vpop.f32.mrb[0].mxu0
      %v3564 = vadd.f32 0.0, %v3563
      %v3565 = vpop.f32.mrb[0].mxu0
      %3566 = vmatprep.mubr.bf16.mxu0 0
      %3567 = vmatmul.mubr.bf16.gmra.mrb[0].mxu0 %v3208
      %v3568 = vpop.f32.mrb[0].mxu0
      %v3569 = vadd.f32 0.0, %v3568
      %v3570 = vpop.f32.mrb[0].mxu0
      %v3571 = vpop.f32.mrb[0].mxu0
      %v3572 = vadd.f32 0.0, %v3571
      %v3573 = vpop.f32.mrb[0].mxu0
      %3574 = vmatprep.mubr.bf16.mxu0 0
      %3575 = vmatmul.mubr.bf16.gmra.mrb[0].mxu0 %v3211
      %v3576 = vpop.f32.mrb[0].mxu0
      %v3577 = vadd.f32 0.0, %v3576
      %v3578 = vpop.f32.mrb[0].mxu0
      %v3579 = vpop.f32.mrb[0].mxu0
      %v3580 = vadd.f32 0.0, %v3579
      %v3581 = vpop.f32.mrb[0].mxu0
      %3582 = vmatprep.mubr.bf16.mxu0 0
      %3583 = vmatmul.mubr.bf16.gmra.mrb[0].mxu0 %v3214
      %v3584 = vpop.f32.mrb[0].mxu0
      %v3585 = vadd.f32 0.0, %v3584
      %v3586 = vpop.f32.mrb[0].mxu0
      %v3587 = vpop.f32.mrb[0].mxu0
      %v3588 = vadd.f32 0.0, %v3587
      %v3589 = vpop.f32.mrb[0].mxu0
      %3590 = vmatprep.mubr.bf16.mxu0 0
      %3591 = vmatmul.mubr.bf16.gmra.mrb[0].mxu0 %v3217
      %v3592 = vpop.f32.mrb[0].mxu0
      %v3593 = vadd.f32 0.0, %v3592
      %v3594 = vpop.f32.mrb[0].mxu0
      %v3595 = vpop.f32.mrb[0].mxu0
      %v3596 = vadd.f32 0.0, %v3595
      %v3597 = vpop.f32.mrb[0].mxu0
      %3598 = vmatprep.mubr.bf16.mxu0 0
      %3599 = vmatmul.mubr.bf16.gmra.mrb[0].mxu0 %v3220
      %v3600 = vpop.f32.mrb[0].mxu0
      %v3601 = vadd.f32 0.0, %v3600
      %v3602 = vpop.f32.mrb[0].mxu0
      %v3603 = vpop.f32.mrb[0].mxu0
      %v3604 = vadd.f32 0.0, %v3603
      %v3605 = vpop.f32.mrb[0].mxu0
      %3606 = vmatprep.mubr.bf16.mxu0 0
      %3607 = vmatmul.mubr.bf16.gmra.mrb[0].mxu0 %v3223
      %v3608 = vpop.f32.mrb[0].mxu0
      %v3609 = vadd.f32 0.0, %v3608
      %v3610 = vpop.f32.mrb[0].mxu0
      %v3611 = vpop.f32.mrb[0].mxu0
      %v3612 = vadd.f32 0.0, %v3611
      %v3613 = vpop.f32.mrb[0].mxu0
      %3614 = vmatprep.mubr.bf16.mxu0 0
      %3615 = vmatmul.mubr.bf16.gmra.mrb[0].mxu0 %v3226
      %v3616 = vpop.f32.mrb[0].mxu0
      %v3617 = vadd.f32 0.0, %v3616
      %v3618 = vpop.f32.mrb[0].mxu0
      %v3619 = vpop.f32.mrb[0].mxu0
      %v3620 = vadd.f32 0.0, %v3619
      %v3621 = vpop.f32.mrb[0].mxu0
      %3622 = vmatprep.mubr.bf16.mxu0 0
      %3623 = vmatmul.mubr.bf16.gmra.mrb[0].mxu0 %v3229
      %v3624 = vpop.f32.mrb[0].mxu0
      %v3625 = vadd.f32 0.0, %v3624
      %v3626 = vpop.f32.mrb[0].mxu0
      %v3627 = vpop.f32.mrb[0].mxu0
      %v3628 = vadd.f32 0.0, %v3627
      %v3629 = vpop.f32.mrb[0].mxu0
      %3630 = vmatprep.mubr.bf16.mxu0 0
      %3631 = vmatmul.mubr.bf16.gmra.mrb[0].mxu0 %v3232
      %v3632 = vpop.f32.mrb[0].mxu0
      %v3633 = vadd.f32 0.0, %v3632
      %v3634 = vpop.f32.mrb[0].mxu0
      %v3635 = vpop.f32.mrb[0].mxu0
      %v3636 = vadd.f32 0.0, %v3635
      %v3637 = vpop.f32.mrb[0].mxu0
      %3638 = vmatprep.mubr.bf16.mxu0 0
      %3639 = vmatmul.mubr.bf16.gmra.mrb[0].mxu0 %v3235
      %v3640 = vpop.f32.mrb[0].mxu0
      %v3641 = vadd.f32 0.0, %v3640
      %v3642 = vpop.f32.mrb[0].mxu0
      %v3643 = vpop.f32.mrb[0].mxu0
      %v3644 = vadd.f32 0.0, %v3643
      %v3645 = vpop.f32.mrb[0].mxu0
      %3646 = vmatprep.mubr.bf16.mxu0 0
      %3647 = vmatmul.mubr.bf16.gmra.mrb[0].mxu0 %v3238
      %v3648 = vpop.f32.mrb[0].mxu0
      %v3649 = vadd.f32 0.0, %v3648
      %v3650 = vpop.f32.mrb[0].mxu0
      %v3651 = vpop.f32.mrb[0].mxu0
      %v3652 = vadd.f32 0.0, %v3651
      %v3653 = vpop.f32.mrb[0].mxu0
      %3654 = vmatprep.mubr.bf16.mxu0 0
      %3655 = vmatmul.mubr.bf16.gmra.mrb[0].mxu0 %v3241
      %v3656 = vpop.f32.mrb[0].mxu0
      %v3657 = vadd.f32 0.0, %v3656
      %v3658 = vpop.f32.mrb[0].mxu0
      %v3659 = vpop.f32.mrb[0].mxu0
      %v3660 = vadd.f32 0.0, %v3659
      %v3661 = vpop.f32.mrb[0].mxu0
      %3662 = vmatprep.mubr.bf16.mxu0 0
      %3663 = vmatmul.mubr.bf16.gmra.mrb[0].mxu0 %v3244
      %v3664 = vpop.f32.mrb[0].mxu0
      %v3665 = vadd.f32 0.0, %v3664
      %v3666 = vpop.f32.mrb[0].mxu0
      %v3667 = vpop.f32.mrb[0].mxu0
      %v3668 = vadd.f32 0.0, %v3667
      %v3669 = vpop.f32.mrb[0].mxu0
      %3670 = vmatprep.mubr.bf16.mxu0 0
      %3671 = vmatmul.mubr.bf16.gmra.mrb[0].mxu0 %v3247
      %v3672 = vpop.f32.mrb[0].mxu0
      %v3673 = vadd.f32 0.0, %v3672
      %v3674 = vpop.f32.mrb[0].mxu0
      %v3675 = vpop.f32.mrb[0].mxu0
      %v3676 = vadd.f32 0.0, %v3675
      %v3677 = vpop.f32.mrb[0].mxu0
      %3678 = vmatprep.mubr.bf16.mxu0 0
      %3679 = vmatmul.mubr.bf16.gmra.mrb[0].mxu0 %v3250
      %v3680 = vpop.f32.mrb[0].mxu0
      %v3681 = vadd.f32 0.0, %v3680
      %v3682 = vpop.f32.mrb[0].mxu0
      %v3683 = vpop.f32.mrb[0].mxu0
      %v3684 = vadd.f32 0.0, %v3683
      %v3685 = vpop.f32.mrb[0].mxu0
      %3686 = vmatprep.mubr.bf16.mxu0 0
      %3687 = vmatmul.mubr.bf16.gmra.mrb[0].mxu0 %v3253
      %v3688 = vpop.f32.mrb[0].mxu0
      %v3689 = vadd.f32 0.0, %v3688
      %v3690 = vpop.f32.mrb[0].mxu0
      %v3691 = vpop.f32.mrb[0].mxu0
      %v3692 = vadd.f32 0.0, %v3691
      %v3693 = vpop.f32.mrb[0].mxu0
      %3694 = vmatprep.mubr.bf16.mxu0 0
      %3695 = vmatmul.mubr.bf16.gmra.mrb[0].mxu0 %v3256
      %v3696 = vpop.f32.mrb[0].mxu0
      %v3697 = vadd.f32 0.0, %v3696
      %v3698 = vpop.f32.mrb[0].mxu0
      %v3699 = vpop.f32.mrb[0].mxu0
      %v3700 = vadd.f32 0.0, %v3699
      %v3701 = vpop.f32.mrb[0].mxu0
      %3702 = vmatprep.mubr.bf16.mxu0 0
      %3703 = vmatmul.mubr.bf16.gmra.mrb[0].mxu0 %v3259
      %v3704 = vpop.f32.mrb[0].mxu0
      %v3705 = vadd.f32 0.0, %v3704
      %v3706 = vpop.f32.mrb[0].mxu0
      %v3707 = vpop.f32.mrb[0].mxu0
      %v3708 = vadd.f32 0.0, %v3707
      %v3709 = vpop.f32.mrb[0].mxu0
      %3710 = vmatprep.mubr.bf16.mxu0 0
      %3711 = vmatmul.mubr.bf16.gmra.mrb[0].mxu0 %v3262
      %v3712 = vpop.f32.mrb[0].mxu0
      %v3713 = vadd.f32 0.0, %v3712
      %v3714 = vpop.f32.mrb[0].mxu0
      %v3715 = vpop.f32.mrb[0].mxu0
      %v3716 = vadd.f32 0.0, %v3715
      %v3717 = vpop.f32.mrb[0].mxu0
      %3718 = vmatprep.mubr.bf16.mxu0 0
      %3719 = vmatmul.mubr.bf16.gmra.mrb[0].mxu0 %v3265
      %v3720 = vpop.f32.mrb[0].mxu0
      %v3721 = vadd.f32 0.0, %v3720
      %v3722 = vpop.f32.mrb[0].mxu0
      %v3723 = vpop.f32.mrb[0].mxu0
      %v3724 = vadd.f32 0.0, %v3723
      %v3725 = vpop.f32.mrb[0].mxu0
      %3726 = vmatprep.mubr.bf16.mxu0 0
      %3727 = vmatmul.mubr.bf16.gmra.mrb[0].mxu0 %v3268
      %v3728 = vpop.f32.mrb[0].mxu0
      %v3729 = vadd.f32 0.0, %v3728
      %v3730 = vpop.f32.mrb[0].mxu0
      %v3731 = vpop.f32.mrb[0].mxu0
      %v3732 = vadd.f32 0.0, %v3731
      %v3733 = vpop.f32.mrb[0].mxu0
      %3734 = vmatprep.mubr.bf16.mxu0 0
      %3735 = vmatmul.mubr.bf16.gmra.mrb[0].mxu0 %v3271
      %v3736 = vpop.f32.mrb[0].mxu0
      %v3737 = vadd.f32 0.0, %v3736
      %v3738 = vpop.f32.mrb[0].mxu0
      %v3739 = vpop.f32.mrb[0].mxu0
      %v3740 = vadd.f32 0.0, %v3739
      %v3741 = vpop.f32.mrb[0].mxu0
      %3742 = vmatprep.mubr.bf16.mxu0 0
      %3743 = vmatmul.mubr.bf16.gmra.mrb[0].mxu0 %v3274
      %v3744 = vpop.f32.mrb[0].mxu0
      %v3745 = vadd.f32 0.0, %v3744
      %v3746 = vpop.f32.mrb[0].mxu0
      %v3747 = vpop.f32.mrb[0].mxu0
      %v3748 = vadd.f32 0.0, %v3747
      %v3749 = vpop.f32.mrb[0].mxu0
      %3750 = vmatprep.mubr.bf16.mxu0 0
      %3751 = vmatmul.mubr.bf16.gmra.mrb[0].mxu0 %v3277
      %v3752 = vpop.f32.mrb[0].mxu0
      %v3753 = vadd.f32 0.0, %v3752
      %v3754 = vpop.f32.mrb[0].mxu0
      %v3755 = vpop.f32.mrb[0].mxu0
      %v3756 = vadd.f32 0.0, %v3755
      %v3757 = vpop.f32.mrb[0].mxu0
      %3758 = vmatprep.mubr.bf16.mxu0 0
      %3759 = vmatmul.mubr.bf16.gmra.mrb[0].mxu0 %v3280
      %v3760 = vpop.f32.mrb[0].mxu0
      %v3761 = vadd.f32 0.0, %v3760
      %v3762 = vpop.f32.mrb[0].mxu0
      %v3763 = vpop.f32.mrb[0].mxu0
      %v3764 = vadd.f32 0.0, %v3763
      %v3765 = vpop.f32.mrb[0].mxu0
      %3766 = vmatprep.mubr.bf16.mxu0 0
      %3767 = vmatmul.mubr.bf16.gmra.mrb[0].mxu0 %v3283
      %v3768 = vpop.f32.mrb[0].mxu0
      %v3769 = vadd.f32 0.0, %v3768
      %v3770 = vpop.f32.mrb[0].mxu0
      %v3771 = vpop.f32.mrb[0].mxu0
      %v3772 = vadd.f32 0.0, %v3771
      %v3773 = vpop.f32.mrb[0].mxu0
      %3774 = vmatprep.mubr.bf16.mxu0 0
      %3775 = vmatmul.mubr.bf16.gmra.mrb[0].mxu0 %v3286
      %v3776 = vpop.f32.mrb[0].mxu0
      %v3777 = vadd.f32 0.0, %v3776
      %v3778 = vpop.f32.mrb[0].mxu0
      %v3779 = vpop.f32.mrb[0].mxu0
      %v3780 = vadd.f32 0.0, %v3779
      %v3781 = vpop.f32.mrb[0].mxu0
      %3782 = vmatprep.mubr.bf16.mxu0 0
      %3783 = vmatmul.mubr.bf16.gmra.mrb[0].mxu0 %v3289
      %v3784 = vpop.f32.mrb[0].mxu0
      %v3785 = vadd.f32 0.0, %v3784
      %v3786 = vpop.f32.mrb[0].mxu0
      %v3787 = vpop.f32.mrb[0].mxu0
      %v3788 = vadd.f32 0.0, %v3787
      %v3789 = vpop.f32.mrb[0].mxu0
      %3790 = vmatprep.mubr.bf16.mxu0 0
      %3791 = vmatmul.mubr.bf16.gmra.mrb[0].mxu0 %v3292
      %v3792 = vpop.f32.mrb[0].mxu0
      %v3793 = vadd.f32 0.0, %v3792
      %v3794 = vpop.f32.mrb[0].mxu0
      %v3795 = vpop.f32.mrb[0].mxu0
      %v3796 = vadd.f32 0.0, %v3795
      %v3797 = vpop.f32.mrb[0].mxu0
      %3798 = vmatprep.mubr.bf16.mxu0 0
      %3799 = vmatmul.mubr.bf16.gmra.mrb[0].mxu0 %v3295
      %v3800 = vpop.f32.mrb[0].mxu0
      %v3801 = vadd.f32 0.0, %v3800
      %v3802 = vpop.f32.mrb[0].mxu0
      %v3803 = vpop.f32.mrb[0].mxu0
      %v3804 = vadd.f32 0.0, %v3803
      %v3805 = vpop.f32.mrb[0].mxu0
      %3806 = vmatprep.mubr.bf16.mxu0 0
      %3807 = vmatmul.mubr.bf16.gmra.mrb[0].mxu0 %v3298
      %v3808 = vpop.f32.mrb[0].mxu0
      %v3809 = vadd.f32 0.0, %v3808
      %v3810 = vpop.f32.mrb[0].mxu0
      %v3811 = vpop.f32.mrb[0].mxu0
      %v3812 = vadd.f32 0.0, %v3811
      %v3813 = vpop.f32.mrb[0].mxu0
      %3814 = vmatprep.mubr.bf16.mxu0 0
      %3815 = vmatmul.mubr.bf16.gmra.mrb[0].mxu0 %v3301
      %v3816 = vpop.f32.mrb[0].mxu0
      %v3817 = vadd.f32 0.0, %v3816
      %v3818 = vpop.f32.mrb[0].mxu0
      %v3819 = vpop.f32.mrb[0].mxu0
      %v3820 = vadd.f32 0.0, %v3819
      %v3821 = vpop.f32.mrb[0].mxu0
      %3822 = vmatprep.mubr.bf16.mxu0 0
      %3823 = vmatmul.mubr.bf16.gmra.mrb[0].mxu0 %v3304
      %v3824 = vpop.f32.mrb[0].mxu0
      %v3825 = vadd.f32 0.0, %v3824
      %v3826 = vpop.f32.mrb[0].mxu0
      %v3827 = vpop.f32.mrb[0].mxu0
      %v3828 = vadd.f32 0.0, %v3827
      %v3829 = vpop.f32.mrb[0].mxu0
      %3830 = vmatprep.mubr.bf16.mxu0 0
      %3831 = vmatmul.mubr.bf16.gmra.mrb[0].mxu0 %v3307
      %v3832 = vpop.f32.mrb[0].mxu0
      %v3833 = vadd.f32 0.0, %v3832
      %v3834 = vpop.f32.mrb[0].mxu0
      %v3835 = vpop.f32.mrb[0].mxu0
      %v3836 = vadd.f32 0.0, %v3835
      %v3837 = vpop.f32.mrb[0].mxu0
      %3838 = vmatprep.mubr.bf16.mxu0 0
      %3839 = vmatmul.mubr.bf16.gmra.mrb[0].mxu0 %v3310
      %v3840 = vpop.f32.mrb[0].mxu0
      %v3841 = vadd.f32 0.0, %v3840
      %v3842 = vpop.f32.mrb[0].mxu0
      %v3843 = vpop.f32.mrb[0].mxu0
      %v3844 = vadd.f32 0.0, %v3843
      %v3845 = vpop.f32.mrb[0].mxu0
      %3846 = vmatprep.mubr.bf16.mxu0 0
      %3847 = vmatmul.mubr.bf16.gmra.mrb[0].mxu0 %v3313
      %v3848 = vpop.f32.mrb[0].mxu0
      %v3849 = vadd.f32 0.0, %v3848
      %v3850 = vpop.f32.mrb[0].mxu0
      %v3851 = vpop.f32.mrb[0].mxu0
      %v3852 = vadd.f32 0.0, %v3851
      %v3853 = vpop.f32.mrb[0].mxu0
      %3854 = vmatprep.mubr.bf16.mxu0 0
      %3855 = vmatmul.mubr.bf16.gmra.mrb[0].mxu0 %v3316
      %v3856 = vpop.f32.mrb[0].mxu0
      %v3857 = vadd.f32 0.0, %v3856
      %v3858 = vpop.f32.mrb[0].mxu0
      %v3859 = vpop.f32.mrb[0].mxu0
      %v3860 = vadd.f32 0.0, %v3859
      %v3861 = vpop.f32.mrb[0].mxu0
      %3862 = vdwg.mxu0
      %s3863 = smul.u32 %s15, 1024
      %v3864 = vlaneseq
      %v3865 = vshrl.u32 %v3864, 7
      %v3866 = vadd.s32 %v3865, 8
      %v3867 = vadd.s32 %v3865, 16
      %v3868 = vadd.s32 %v3865, 24
      %v3869 = vadd.s32 %v3865, 32
      %v3870 = vadd.s32 %v3865, 40
      %v3871 = vadd.s32 %v3865, 48
      %v3872 = vadd.s32 %v3865, 56
      %v3873 = vadd.s32 %v3865, 64
      %v3874 = vadd.s32 %v3865, 72
      %v3875 = vadd.s32 %v3865, 80
      %v3876 = vadd.s32 %v3865, 88
      %v3877 = vadd.s32 %v3865, 96
      %v3878 = vadd.s32 %v3865, 104
      %v3879 = vadd.s32 %v3865, 112
      %v3880 = vadd.s32 %v3865, 120
      %v3881 = vadd.s32 %v3865, 128
      %v3882 = vadd.s32 %v3865, 136
      %v3883 = vadd.s32 %v3865, 144
      %v3884 = vadd.s32 %v3865, 152
      %v3885 = vadd.s32 %v3865, 160
      %v3886 = vadd.s32 %v3865, 168
      %v3887 = vadd.s32 %v3865, 176
      %v3888 = vadd.s32 %v3865, 184
      %v3889 = vadd.s32 %v3865, 192
      %v3890 = vadd.s32 %v3865, 200
      %v3891 = vadd.s32 %v3865, 208
      %v3892 = vadd.s32 %v3865, 216
      %v3893 = vadd.s32 %v3865, 224
      %v3894 = vadd.s32 %v3865, 232
      %v3895 = vadd.s32 %v3865, 240
      %v3896 = vadd.s32 %v3865, 248
      %v3897 = vadd.s32 %v3865, 256
      %v3898 = vadd.s32 %v3865, 264
      %v3899 = vadd.s32 %v3865, 272
      %v3900 = vadd.s32 %v3865, 280
      %v3901 = vadd.s32 %v3865, 288
      %v3902 = vadd.s32 %v3865, 296
      %v3903 = vadd.s32 %v3865, 304
      %v3904 = vadd.s32 %v3865, 312
      %v3905 = vadd.s32 %v3865, 320
      %v3906 = vadd.s32 %v3865, 328
      %v3907 = vadd.s32 %v3865, 336
      %v3908 = vadd.s32 %v3865, 344
      %v3909 = vadd.s32 %v3865, 352
      %v3910 = vadd.s32 %v3865, 360
      %v3911 = vadd.s32 %v3865, 368
      %v3912 = vadd.s32 %v3865, 376
      %v3913 = vadd.s32 %v3865, 384
      %v3914 = vadd.s32 %v3865, 392
      %v3915 = vadd.s32 %v3865, 400
      %v3916 = vadd.s32 %v3865, 408
      %v3917 = vadd.s32 %v3865, 416
      %v3918 = vadd.s32 %v3865, 424
      %v3919 = vadd.s32 %v3865, 432
      %v3920 = vadd.s32 %v3865, 440
      %v3921 = vadd.s32 %v3865, 448
      %v3922 = vadd.s32 %v3865, 456
      %v3923 = vadd.s32 %v3865, 464
      %v3924 = vadd.s32 %v3865, 472
      %v3925 = vadd.s32 %v3865, 480
      %v3926 = vadd.s32 %v3865, 488
      %v3927 = vadd.s32 %v3865, 496
      %v3928 = vadd.s32 %v3865, 504
      %v3929 = vadd.s32 %v3865, 512
      %v3930 = vadd.s32 %v3865, 520
      %v3931 = vadd.s32 %v3865, 528
      %v3932 = vadd.s32 %v3865, 536
      %v3933 = vadd.s32 %v3865, 544
      %v3934 = vadd.s32 %v3865, 552
      %v3935 = vadd.s32 %v3865, 560
      %v3936 = vadd.s32 %v3865, 568
      %v3937 = vadd.s32 %v3865, 576
      %v3938 = vadd.s32 %v3865, 584
      %v3939 = vadd.s32 %v3865, 592
      %v3940 = vadd.s32 %v3865, 600
      %v3941 = vadd.s32 %v3865, 608
      %v3942 = vadd.s32 %v3865, 616
      %v3943 = vadd.s32 %v3865, 624
      %v3944 = vadd.s32 %v3865, 632
      %v3945 = vadd.s32 %v3865, 640
      %v3946 = vadd.s32 %v3865, 648
      %v3947 = vadd.s32 %v3865, 656
      %v3948 = vadd.s32 %v3865, 664
      %v3949 = vadd.s32 %v3865, 672
      %v3950 = vadd.s32 %v3865, 680
      %v3951 = vadd.s32 %v3865, 688
      %v3952 = vadd.s32 %v3865, 696
      %v3953 = vadd.s32 %v3865, 704
      %v3954 = vadd.s32 %v3865, 712
      %v3955 = vadd.s32 %v3865, 720
      %v3956 = vadd.s32 %v3865, 728
      %v3957 = vadd.s32 %v3865, 736
      %v3958 = vadd.s32 %v3865, 744
      %v3959 = vadd.s32 %v3865, 752
      %v3960 = vadd.s32 %v3865, 760
      %v3961 = vadd.s32 %v3865, 768
      %v3962 = vadd.s32 %v3865, 776
      %v3963 = vadd.s32 %v3865, 784
      %v3964 = vadd.s32 %v3865, 792
      %v3965 = vadd.s32 %v3865, 800
      %v3966 = vadd.s32 %v3865, 808
      %v3967 = vadd.s32 %v3865, 816
      %v3968 = vadd.s32 %v3865, 824
      %v3969 = vadd.s32 %v3865, 832
      %v3970 = vadd.s32 %v3865, 840
      %v3971 = vadd.s32 %v3865, 848
      %v3972 = vadd.s32 %v3865, 856
      %v3973 = vadd.s32 %v3865, 864
      %v3974 = vadd.s32 %v3865, 872
      %v3975 = vadd.s32 %v3865, 880
      %v3976 = vadd.s32 %v3865, 888
      %v3977 = vadd.s32 %v3865, 896
      %v3978 = vadd.s32 %v3865, 904
      %v3979 = vadd.s32 %v3865, 912
      %v3980 = vadd.s32 %v3865, 920
      %v3981 = vadd.s32 %v3865, 928
      %v3982 = vadd.s32 %v3865, 936
      %v3983 = vadd.s32 %v3865, 944
      %v3984 = vadd.s32 %v3865, 952
      %v3985 = vadd.s32 %v3865, 960
      %v3986 = vadd.s32 %v3865, 968
      %v3987 = vadd.s32 %v3865, 976
      %v3988 = vadd.s32 %v3865, 984
      %v3989 = vadd.s32 %v3865, 992
      %v3990 = vadd.s32 %v3865, 1000
      %v3991 = vadd.s32 %v3865, 1008
      %v3992 = vadd.s32 %v3865, 1016
      %v3993 = vstv %s3863
      %v3994 = vadd.s32 %v3993, %v3865
      %v3995 = vadd.s32 %v3993, %v3866
      %v3996 = vadd.s32 %v3993, %v3867
      %v3997 = vadd.s32 %v3993, %v3868
      %v3998 = vadd.s32 %v3993, %v3869
      %v3999 = vadd.s32 %v3993, %v3870
      %v4000 = vadd.s32 %v3993, %v3871
      %v4001 = vadd.s32 %v3993, %v3872
      %v4002 = vadd.s32 %v3993, %v3873
      %v4003 = vadd.s32 %v3993, %v3874
      %v4004 = vadd.s32 %v3993, %v3875
      %v4005 = vadd.s32 %v3993, %v3876
      %v4006 = vadd.s32 %v3993, %v3877
      %v4007 = vadd.s32 %v3993, %v3878
      %v4008 = vadd.s32 %v3993, %v3879
      %v4009 = vadd.s32 %v3993, %v3880
      %v4010 = vadd.s32 %v3993, %v3881
      %v4011 = vadd.s32 %v3993, %v3882
      %v4012 = vadd.s32 %v3993, %v3883
      %v4013 = vadd.s32 %v3993, %v3884
      %v4014 = vadd.s32 %v3993, %v3885
      %v4015 = vadd.s32 %v3993, %v3886
      %v4016 = vadd.s32 %v3993, %v3887
      %v4017 = vadd.s32 %v3993, %v3888
      %v4018 = vadd.s32 %v3993, %v3889
      %v4019 = vadd.s32 %v3993, %v3890
      %v4020 = vadd.s32 %v3993, %v3891
      %v4021 = vadd.s32 %v3993, %v3892
      %v4022 = vadd.s32 %v3993, %v3893
      %v4023 = vadd.s32 %v3993, %v3894
      %v4024 = vadd.s32 %v3993, %v3895
      %v4025 = vadd.s32 %v3993, %v3896
      %v4026 = vadd.s32 %v3993, %v3897
      %v4027 = vadd.s32 %v3993, %v3898
      %v4028 = vadd.s32 %v3993, %v3899
      %v4029 = vadd.s32 %v3993, %v3900
      %v4030 = vadd.s32 %v3993, %v3901
      %v4031 = vadd.s32 %v3993, %v3902
      %v4032 = vadd.s32 %v3993, %v3903
      %v4033 = vadd.s32 %v3993, %v3904
      %v4034 = vadd.s32 %v3993, %v3905
      %v4035 = vadd.s32 %v3993, %v3906
      %v4036 = vadd.s32 %v3993, %v3907
      %v4037 = vadd.s32 %v3993, %v3908
      %v4038 = vadd.s32 %v3993, %v3909
      %v4039 = vadd.s32 %v3993, %v3910
      %v4040 = vadd.s32 %v3993, %v3911
      %v4041 = vadd.s32 %v3993, %v3912
      %v4042 = vadd.s32 %v3993, %v3913
      %v4043 = vadd.s32 %v3993, %v3914
      %v4044 = vadd.s32 %v3993, %v3915
      %v4045 = vadd.s32 %v3993, %v3916
      %v4046 = vadd.s32 %v3993, %v3917
      %v4047 = vadd.s32 %v3993, %v3918
      %v4048 = vadd.s32 %v3993, %v3919
      %v4049 = vadd.s32 %v3993, %v3920
      %v4050 = vadd.s32 %v3993, %v3921
      %v4051 = vadd.s32 %v3993, %v3922
      %v4052 = vadd.s32 %v3993, %v3923
      %v4053 = vadd.s32 %v3993, %v3924
      %v4054 = vadd.s32 %v3993, %v3925
      %v4055 = vadd.s32 %v3993, %v3926
      %v4056 = vadd.s32 %v3993, %v3927
      %v4057 = vadd.s32 %v3993, %v3928
      %v4058 = vadd.s32 %v3993, %v3929
      %v4059 = vadd.s32 %v3993, %v3930
      %v4060 = vadd.s32 %v3993, %v3931
      %v4061 = vadd.s32 %v3993, %v3932
      %v4062 = vadd.s32 %v3993, %v3933
      %v4063 = vadd.s32 %v3993, %v3934
      %v4064 = vadd.s32 %v3993, %v3935
      %v4065 = vadd.s32 %v3993, %v3936
      %v4066 = vadd.s32 %v3993, %v3937
      %v4067 = vadd.s32 %v3993, %v3938
      %v4068 = vadd.s32 %v3993, %v3939
      %v4069 = vadd.s32 %v3993, %v3940
      %v4070 = vadd.s32 %v3993, %v3941
      %v4071 = vadd.s32 %v3993, %v3942
      %v4072 = vadd.s32 %v3993, %v3943
      %v4073 = vadd.s32 %v3993, %v3944
      %v4074 = vadd.s32 %v3993, %v3945
      %v4075 = vadd.s32 %v3993, %v3946
      %v4076 = vadd.s32 %v3993, %v3947
      %v4077 = vadd.s32 %v3993, %v3948
      %v4078 = vadd.s32 %v3993, %v3949
      %v4079 = vadd.s32 %v3993, %v3950
      %v4080 = vadd.s32 %v3993, %v3951
      %v4081 = vadd.s32 %v3993, %v3952
      %v4082 = vadd.s32 %v3993, %v3953
      %v4083 = vadd.s32 %v3993, %v3954
      %v4084 = vadd.s32 %v3993, %v3955
      %v4085 = vadd.s32 %v3993, %v3956
      %v4086 = vadd.s32 %v3993, %v3957
      %v4087 = vadd.s32 %v3993, %v3958
      %v4088 = vadd.s32 %v3993, %v3959
      %v4089 = vadd.s32 %v3993, %v3960
      %v4090 = vadd.s32 %v3993, %v3961
      %v4091 = vadd.s32 %v3993, %v3962
      %v4092 = vadd.s32 %v3993, %v3963
      %v4093 = vadd.s32 %v3993, %v3964
      %v4094 = vadd.s32 %v3993, %v3965
      %v4095 = vadd.s32 %v3993, %v3966
      %v4096 = vadd.s32 %v3993, %v3967
      %v4097 = vadd.s32 %v3993, %v3968
      %v4098 = vadd.s32 %v3993, %v3969
      %v4099 = vadd.s32 %v3993, %v3970
      %v4100 = vadd.s32 %v3993, %v3971
      %v4101 = vadd.s32 %v3993, %v3972
      %v4102 = vadd.s32 %v3993, %v3973
      %v4103 = vadd.s32 %v3993, %v3974
      %v4104 = vadd.s32 %v3993, %v3975
      %v4105 = vadd.s32 %v3993, %v3976
      %v4106 = vadd.s32 %v3993, %v3977
      %v4107 = vadd.s32 %v3993, %v3978
      %v4108 = vadd.s32 %v3993, %v3979
      %v4109 = vadd.s32 %v3993, %v3980
      %v4110 = vadd.s32 %v3993, %v3981
      %v4111 = vadd.s32 %v3993, %v3982
      %v4112 = vadd.s32 %v3993, %v3983
      %v4113 = vadd.s32 %v3993, %v3984
      %v4114 = vadd.s32 %v3993, %v3985
      %v4115 = vadd.s32 %v3993, %v3986
      %v4116 = vadd.s32 %v3993, %v3987
      %v4117 = vadd.s32 %v3993, %v3988
      %v4118 = vadd.s32 %v3993, %v3989
      %v4119 = vadd.s32 %v3993, %v3990
      %v4120 = vadd.s32 %v3993, %v3991
      %v4121 = vadd.s32 %v3993, %v3992
      %vm4122 = vcmp.lt.s32.totalorder %v3994, 2048
      %vm4123 = vcmp.lt.s32.totalorder %v3995, 2048
      %vm4124 = vcmp.lt.s32.totalorder %v3996, 2048
      %vm4125 = vcmp.lt.s32.totalorder %v3997, 2048
      %vm4126 = vcmp.lt.s32.totalorder %v3998, 2048
      %vm4127 = vcmp.lt.s32.totalorder %v3999, 2048
      %vm4128 = vcmp.lt.s32.totalorder %v4000, 2048
      %vm4129 = vcmp.lt.s32.totalorder %v4001, 2048
      %vm4130 = vcmp.lt.s32.totalorder %v4002, 2048
      %vm4131 = vcmp.lt.s32.totalorder %v4003, 2048
      %vm4132 = vcmp.lt.s32.totalorder %v4004, 2048
      %vm4133 = vcmp.lt.s32.totalorder %v4005, 2048
      %vm4134 = vcmp.lt.s32.totalorder %v4006, 2048
      %vm4135 = vcmp.lt.s32.totalorder %v4007, 2048
      %vm4136 = vcmp.lt.s32.totalorder %v4008, 2048
      %vm4137 = vcmp.lt.s32.totalorder %v4009, 2048
      %vm4138 = vcmp.lt.s32.totalorder %v4010, 2048
      %vm4139 = vcmp.lt.s32.totalorder %v4011, 2048
      %vm4140 = vcmp.lt.s32.totalorder %v4012, 2048
      %vm4141 = vcmp.lt.s32.totalorder %v4013, 2048
      %vm4142 = vcmp.lt.s32.totalorder %v4014, 2048
      %vm4143 = vcmp.lt.s32.totalorder %v4015, 2048
      %vm4144 = vcmp.lt.s32.totalorder %v4016, 2048
      %vm4145 = vcmp.lt.s32.totalorder %v4017, 2048
      %vm4146 = vcmp.lt.s32.totalorder %v4018, 2048
      %vm4147 = vcmp.lt.s32.totalorder %v4019, 2048
      %vm4148 = vcmp.lt.s32.totalorder %v4020, 2048
      %vm4149 = vcmp.lt.s32.totalorder %v4021, 2048
      %vm4150 = vcmp.lt.s32.totalorder %v4022, 2048
      %vm4151 = vcmp.lt.s32.totalorder %v4023, 2048
      %vm4152 = vcmp.lt.s32.totalorder %v4024, 2048
      %vm4153 = vcmp.lt.s32.totalorder %v4025, 2048
      %vm4154 = vcmp.lt.s32.totalorder %v4026, 2048
      %vm4155 = vcmp.lt.s32.totalorder %v4027, 2048
      %vm4156 = vcmp.lt.s32.totalorder %v4028, 2048
      %vm4157 = vcmp.lt.s32.totalorder %v4029, 2048
      %vm4158 = vcmp.lt.s32.totalorder %v4030, 2048
      %vm4159 = vcmp.lt.s32.totalorder %v4031, 2048
      %vm4160 = vcmp.lt.s32.totalorder %v4032, 2048
      %vm4161 = vcmp.lt.s32.totalorder %v4033, 2048
      %vm4162 = vcmp.lt.s32.totalorder %v4034, 2048
      %vm4163 = vcmp.lt.s32.totalorder %v4035, 2048
      %vm4164 = vcmp.lt.s32.totalorder %v4036, 2048
      %vm4165 = vcmp.lt.s32.totalorder %v4037, 2048
      %vm4166 = vcmp.lt.s32.totalorder %v4038, 2048
      %vm4167 = vcmp.lt.s32.totalorder %v4039, 2048
      %vm4168 = vcmp.lt.s32.totalorder %v4040, 2048
      %vm4169 = vcmp.lt.s32.totalorder %v4041, 2048
      %vm4170 = vcmp.lt.s32.totalorder %v4042, 2048
      %vm4171 = vcmp.lt.s32.totalorder %v4043, 2048
      %vm4172 = vcmp.lt.s32.totalorder %v4044, 2048
      %vm4173 = vcmp.lt.s32.totalorder %v4045, 2048
      %vm4174 = vcmp.lt.s32.totalorder %v4046, 2048
      %vm4175 = vcmp.lt.s32.totalorder %v4047, 2048
      %vm4176 = vcmp.lt.s32.totalorder %v4048, 2048
      %vm4177 = vcmp.lt.s32.totalorder %v4049, 2048
      %vm4178 = vcmp.lt.s32.totalorder %v4050, 2048
      %vm4179 = vcmp.lt.s32.totalorder %v4051, 2048
      %vm4180 = vcmp.lt.s32.totalorder %v4052, 2048
      %vm4181 = vcmp.lt.s32.totalorder %v4053, 2048
      %vm4182 = vcmp.lt.s32.totalorder %v4054, 2048
      %vm4183 = vcmp.lt.s32.totalorder %v4055, 2048
      %vm4184 = vcmp.lt.s32.totalorder %v4056, 2048
      %vm4185 = vcmp.lt.s32.totalorder %v4057, 2048
      %vm4186 = vcmp.lt.s32.totalorder %v4058, 2048
      %vm4187 = vcmp.lt.s32.totalorder %v4059, 2048
      %vm4188 = vcmp.lt.s32.totalorder %v4060, 2048
      %vm4189 = vcmp.lt.s32.totalorder %v4061, 2048
      %vm4190 = vcmp.lt.s32.totalorder %v4062, 2048
      %vm4191 = vcmp.lt.s32.totalorder %v4063, 2048
      %vm4192 = vcmp.lt.s32.totalorder %v4064, 2048
      %vm4193 = vcmp.lt.s32.totalorder %v4065, 2048
      %vm4194 = vcmp.lt.s32.totalorder %v4066, 2048
      %vm4195 = vcmp.lt.s32.totalorder %v4067, 2048
      %vm4196 = vcmp.lt.s32.totalorder %v4068, 2048
      %vm4197 = vcmp.lt.s32.totalorder %v4069, 2048
      %vm4198 = vcmp.lt.s32.totalorder %v4070, 2048
      %vm4199 = vcmp.lt.s32.totalorder %v4071, 2048
      %vm4200 = vcmp.lt.s32.totalorder %v4072, 2048
      %vm4201 = vcmp.lt.s32.totalorder %v4073, 2048
      %vm4202 = vcmp.lt.s32.totalorder %v4074, 2048
      %vm4203 = vcmp.lt.s32.totalorder %v4075, 2048
      %vm4204 = vcmp.lt.s32.totalorder %v4076, 2048
      %vm4205 = vcmp.lt.s32.totalorder %v4077, 2048
      %vm4206 = vcmp.lt.s32.totalorder %v4078, 2048
      %vm4207 = vcmp.lt.s32.totalorder %v4079, 2048
      %vm4208 = vcmp.lt.s32.totalorder %v4080, 2048
      %vm4209 = vcmp.lt.s32.totalorder %v4081, 2048
      %vm4210 = vcmp.lt.s32.totalorder %v4082, 2048
      %vm4211 = vcmp.lt.s32.totalorder %v4083, 2048
      %vm4212 = vcmp.lt.s32.totalorder %v4084, 2048
      %vm4213 = vcmp.lt.s32.totalorder %v4085, 2048
      %vm4214 = vcmp.lt.s32.totalorder %v4086, 2048
      %vm4215 = vcmp.lt.s32.totalorder %v4087, 2048
      %vm4216 = vcmp.lt.s32.totalorder %v4088, 2048
      %vm4217 = vcmp.lt.s32.totalorder %v4089, 2048
      %vm4218 = vcmp.lt.s32.totalorder %v4090, 2048
      %vm4219 = vcmp.lt.s32.totalorder %v4091, 2048
      %vm4220 = vcmp.lt.s32.totalorder %v4092, 2048
      %vm4221 = vcmp.lt.s32.totalorder %v4093, 2048
      %vm4222 = vcmp.lt.s32.totalorder %v4094, 2048
      %vm4223 = vcmp.lt.s32.totalorder %v4095, 2048
      %vm4224 = vcmp.lt.s32.totalorder %v4096, 2048
      %vm4225 = vcmp.lt.s32.totalorder %v4097, 2048
      %vm4226 = vcmp.lt.s32.totalorder %v4098, 2048
      %vm4227 = vcmp.lt.s32.totalorder %v4099, 2048
      %vm4228 = vcmp.lt.s32.totalorder %v4100, 2048
      %vm4229 = vcmp.lt.s32.totalorder %v4101, 2048
      %vm4230 = vcmp.lt.s32.totalorder %v4102, 2048
      %vm4231 = vcmp.lt.s32.totalorder %v4103, 2048
      %vm4232 = vcmp.lt.s32.totalorder %v4104, 2048
      %vm4233 = vcmp.lt.s32.totalorder %v4105, 2048
      %vm4234 = vcmp.lt.s32.totalorder %v4106, 2048
      %vm4235 = vcmp.lt.s32.totalorder %v4107, 2048
      %vm4236 = vcmp.lt.s32.totalorder %v4108, 2048
      %vm4237 = vcmp.lt.s32.totalorder %v4109, 2048
      %vm4238 = vcmp.lt.s32.totalorder %v4110, 2048
      %vm4239 = vcmp.lt.s32.totalorder %v4111, 2048
      %vm4240 = vcmp.lt.s32.totalorder %v4112, 2048
      %vm4241 = vcmp.lt.s32.totalorder %v4113, 2048
      %vm4242 = vcmp.lt.s32.totalorder %v4114, 2048
      %vm4243 = vcmp.lt.s32.totalorder %v4115, 2048
      %vm4244 = vcmp.lt.s32.totalorder %v4116, 2048
      %vm4245 = vcmp.lt.s32.totalorder %v4117, 2048
      %vm4246 = vcmp.lt.s32.totalorder %v4118, 2048
      %vm4247 = vcmp.lt.s32.totalorder %v4119, 2048
      %vm4248 = vcmp.lt.s32.totalorder %v4120, 2048
      %vm4249 = vcmp.lt.s32.totalorder %v4121, 2048
      %v4250 = vsel %vm4122, %v3353, 0.0
      %v4251 = vsel %vm4123, %v3356, 0.0
      %v4252 = vsel %vm4124, %v3361, 0.0
      %v4253 = vsel %vm4125, %v3364, 0.0
      %v4254 = vsel %vm4126, %v3369, 0.0
      %v4255 = vsel %vm4127, %v3372, 0.0
      %v4256 = vsel %vm4128, %v3377, 0.0
      %v4257 = vsel %vm4129, %v3380, 0.0
      %v4258 = vsel %vm4130, %v3385, 0.0
      %v4259 = vsel %vm4131, %v3388, 0.0
      %v4260 = vsel %vm4132, %v3393, 0.0
      %v4261 = vsel %vm4133, %v3396, 0.0
      %v4262 = vsel %vm4134, %v3401, 0.0
      %v4263 = vsel %vm4135, %v3404, 0.0
      %v4264 = vsel %vm4136, %v3409, 0.0
      %v4265 = vsel %vm4137, %v3412, 0.0
      %v4266 = vsel %vm4138, %v3417, 0.0
      %v4267 = vsel %vm4139, %v3420, 0.0
      %v4268 = vsel %vm4140, %v3425, 0.0
      %v4269 = vsel %vm4141, %v3428, 0.0
      %v4270 = vsel %vm4142, %v3433, 0.0
      %v4271 = vsel %vm4143, %v3436, 0.0
      %v4272 = vsel %vm4144, %v3441, 0.0
      %v4273 = vsel %vm4145, %v3444, 0.0
      %v4274 = vsel %vm4146, %v3449, 0.0
      %v4275 = vsel %vm4147, %v3452, 0.0
      %v4276 = vsel %vm4148, %v3457, 0.0
      %v4277 = vsel %vm4149, %v3460, 0.0
      %v4278 = vsel %vm4150, %v3465, 0.0
      %v4279 = vsel %vm4151, %v3468, 0.0
      %v4280 = vsel %vm4152, %v3473, 0.0
      %v4281 = vsel %vm4153, %v3476, 0.0
      %v4282 = vsel %vm4154, %v3481, 0.0
      %v4283 = vsel %vm4155, %v3484, 0.0
      %v4284 = vsel %vm4156, %v3489, 0.0
      %v4285 = vsel %vm4157, %v3492, 0.0
      %v4286 = vsel %vm4158, %v3497, 0.0
      %v4287 = vsel %vm4159, %v3500, 0.0
      %v4288 = vsel %vm4160, %v3505, 0.0
      %v4289 = vsel %vm4161, %v3508, 0.0
      %v4290 = vsel %vm4162, %v3513, 0.0
      %v4291 = vsel %vm4163, %v3516, 0.0
      %v4292 = vsel %vm4164, %v3521, 0.0
      %v4293 = vsel %vm4165, %v3524, 0.0
      %v4294 = vsel %vm4166, %v3529, 0.0
      %v4295 = vsel %vm4167, %v3532, 0.0
      %v4296 = vsel %vm4168, %v3537, 0.0
      %v4297 = vsel %vm4169, %v3540, 0.0
      %v4298 = vsel %vm4170, %v3545, 0.0
      %v4299 = vsel %vm4171, %v3548, 0.0
      %v4300 = vsel %vm4172, %v3553, 0.0
      %v4301 = vsel %vm4173, %v3556, 0.0
      %v4302 = vsel %vm4174, %v3561, 0.0
      %v4303 = vsel %vm4175, %v3564, 0.0
      %v4304 = vsel %vm4176, %v3569, 0.0
      %v4305 = vsel %vm4177, %v3572, 0.0
      %v4306 = vsel %vm4178, %v3577, 0.0
      %v4307 = vsel %vm4179, %v3580, 0.0
      %v4308 = vsel %vm4180, %v3585, 0.0
      %v4309 = vsel %vm4181, %v3588, 0.0
      %v4310 = vsel %vm4182, %v3593, 0.0
      %v4311 = vsel %vm4183, %v3596, 0.0
      %v4312 = vsel %vm4184, %v3601, 0.0
      %v4313 = vsel %vm4185, %v3604, 0.0
      %v4314 = vsel %vm4186, %v3609, 0.0
      %v4315 = vsel %vm4187, %v3612, 0.0
      %v4316 = vsel %vm4188, %v3617, 0.0
      %v4317 = vsel %vm4189, %v3620, 0.0
      %v4318 = vsel %vm4190, %v3625, 0.0
      %v4319 = vsel %vm4191, %v3628, 0.0
      %v4320 = vsel %vm4192, %v3633, 0.0
      %v4321 = vsel %vm4193, %v3636, 0.0
      %v4322 = vsel %vm4194, %v3641, 0.0
      %v4323 = vsel %vm4195, %v3644, 0.0
      %v4324 = vsel %vm4196, %v3649, 0.0
      %v4325 = vsel %vm4197, %v3652, 0.0
      %v4326 = vsel %vm4198, %v3657, 0.0
      %v4327 = vsel %vm4199, %v3660, 0.0
      %v4328 = vsel %vm4200, %v3665, 0.0
      %v4329 = vsel %vm4201, %v3668, 0.0
      %v4330 = vsel %vm4202, %v3673, 0.0
      %v4331 = vsel %vm4203, %v3676, 0.0
      %v4332 = vsel %vm4204, %v3681, 0.0
      %v4333 = vsel %vm4205, %v3684, 0.0
      %v4334 = vsel %vm4206, %v3689, 0.0
      %v4335 = vsel %vm4207, %v3692, 0.0
      %v4336 = vsel %vm4208, %v3697, 0.0
      %v4337 = vsel %vm4209, %v3700, 0.0
      %v4338 = vsel %vm4210, %v3705, 0.0
      %v4339 = vsel %vm4211, %v3708, 0.0
      %v4340 = vsel %vm4212, %v3713, 0.0
      %v4341 = vsel %vm4213, %v3716, 0.0
      %v4342 = vsel %vm4214, %v3721, 0.0
      %v4343 = vsel %vm4215, %v3724, 0.0
      %v4344 = vsel %vm4216, %v3729, 0.0
      %v4345 = vsel %vm4217, %v3732, 0.0
      %v4346 = vsel %vm4218, %v3737, 0.0
      %v4347 = vsel %vm4219, %v3740, 0.0
      %v4348 = vsel %vm4220, %v3745, 0.0
      %v4349 = vsel %vm4221, %v3748, 0.0
      %v4350 = vsel %vm4222, %v3753, 0.0
      %v4351 = vsel %vm4223, %v3756, 0.0
      %v4352 = vsel %vm4224, %v3761, 0.0
      %v4353 = vsel %vm4225, %v3764, 0.0
      %v4354 = vsel %vm4226, %v3769, 0.0
      %v4355 = vsel %vm4227, %v3772, 0.0
      %v4356 = vsel %vm4228, %v3777, 0.0
      %v4357 = vsel %vm4229, %v3780, 0.0
      %v4358 = vsel %vm4230, %v3785, 0.0
      %v4359 = vsel %vm4231, %v3788, 0.0
      %v4360 = vsel %vm4232, %v3793, 0.0
      %v4361 = vsel %vm4233, %v3796, 0.0
      %v4362 = vsel %vm4234, %v3801, 0.0
      %v4363 = vsel %vm4235, %v3804, 0.0
      %v4364 = vsel %vm4236, %v3809, 0.0
      %v4365 = vsel %vm4237, %v3812, 0.0
      %v4366 = vsel %vm4238, %v3817, 0.0
      %v4367 = vsel %vm4239, %v3820, 0.0
      %v4368 = vsel %vm4240, %v3825, 0.0
      %v4369 = vsel %vm4241, %v3828, 0.0
      %v4370 = vsel %vm4242, %v3833, 0.0
      %v4371 = vsel %vm4243, %v3836, 0.0
      %v4372 = vsel %vm4244, %v3841, 0.0
      %v4373 = vsel %vm4245, %v3844, 0.0
      %v4374 = vsel %vm4246, %v3849, 0.0
      %v4375 = vsel %vm4247, %v3852, 0.0
      %v4376 = vsel %vm4248, %v3857, 0.0
      %v4377 = vsel %vm4249, %v3860, 0.0
      %v4378 = vld [vmem:[%s4] sm:$0x3]
      %v4379 = vadd.f32 %v4250, %v4251
      %v4380 = vadd.f32 %v4379, %v4252
      %v4381 = vadd.f32 %v4380, %v4253
      %v4382 = vadd.f32 %v4381, %v4254
      %v4383 = vadd.f32 %v4382, %v4255
      %v4384 = vadd.f32 %v4383, %v4256
      %v4385 = vadd.f32 %v4384, %v4257
      %v4386 = vadd.f32 %v4385, %v4258
      %v4387 = vadd.f32 %v4386, %v4259
      %v4388 = vadd.f32 %v4387, %v4260
      %v4389 = vadd.f32 %v4388, %v4261
      %v4390 = vadd.f32 %v4389, %v4262
      %v4391 = vadd.f32 %v4390, %v4263
      %v4392 = vadd.f32 %v4391, %v4264
      %v4393 = vadd.f32 %v4392, %v4265
      %v4394 = vadd.f32 %v4393, %v4266
      %v4395 = vadd.f32 %v4394, %v4267
      %v4396 = vadd.f32 %v4395, %v4268
      %v4397 = vadd.f32 %v4396, %v4269
      %v4398 = vadd.f32 %v4397, %v4270
      %v4399 = vadd.f32 %v4398, %v4271
      %v4400 = vadd.f32 %v4399, %v4272
      %v4401 = vadd.f32 %v4400, %v4273
      %v4402 = vadd.f32 %v4401, %v4274
      %v4403 = vadd.f32 %v4402, %v4275
      %v4404 = vadd.f32 %v4403, %v4276
      %v4405 = vadd.f32 %v4404, %v4277
      %v4406 = vadd.f32 %v4405, %v4278
      %v4407 = vadd.f32 %v4406, %v4279
      %v4408 = vadd.f32 %v4407, %v4280
      %v4409 = vadd.f32 %v4408, %v4281
      %v4410 = vadd.f32 %v4409, %v4282
      %v4411 = vadd.f32 %v4410, %v4283
      %v4412 = vadd.f32 %v4411, %v4284
      %v4413 = vadd.f32 %v4412, %v4285
      %v4414 = vadd.f32 %v4413, %v4286
      %v4415 = vadd.f32 %v4414, %v4287
      %v4416 = vadd.f32 %v4415, %v4288
      %v4417 = vadd.f32 %v4416, %v4289
      %v4418 = vadd.f32 %v4417, %v4290
      %v4419 = vadd.f32 %v4418, %v4291
      %v4420 = vadd.f32 %v4419, %v4292
      %v4421 = vadd.f32 %v4420, %v4293
      %v4422 = vadd.f32 %v4421, %v4294
      %v4423 = vadd.f32 %v4422, %v4295
      %v4424 = vadd.f32 %v4423, %v4296
      %v4425 = vadd.f32 %v4424, %v4297
      %v4426 = vadd.f32 %v4425, %v4298
      %v4427 = vadd.f32 %v4426, %v4299
      %v4428 = vadd.f32 %v4427, %v4300
      %v4429 = vadd.f32 %v4428, %v4301
      %v4430 = vadd.f32 %v4429, %v4302
      %v4431 = vadd.f32 %v4430, %v4303
      %v4432 = vadd.f32 %v4431, %v4304
      %v4433 = vadd.f32 %v4432, %v4305
      %v4434 = vadd.f32 %v4433, %v4306
      %v4435 = vadd.f32 %v4434, %v4307
      %v4436 = vadd.f32 %v4435, %v4308
      %v4437 = vadd.f32 %v4436, %v4309
      %v4438 = vadd.f32 %v4437, %v4310
      %v4439 = vadd.f32 %v4438, %v4311
      %v4440 = vadd.f32 %v4439, %v4312
      %v4441 = vadd.f32 %v4440, %v4313
      %v4442 = vadd.f32 %v4441, %v4314
      %v4443 = vadd.f32 %v4442, %v4315
      %v4444 = vadd.f32 %v4443, %v4316
      %v4445 = vadd.f32 %v4444, %v4317
      %v4446 = vadd.f32 %v4445, %v4318
      %v4447 = vadd.f32 %v4446, %v4319
      %v4448 = vadd.f32 %v4447, %v4320
      %v4449 = vadd.f32 %v4448, %v4321
      %v4450 = vadd.f32 %v4449, %v4322
      %v4451 = vadd.f32 %v4450, %v4323
      %v4452 = vadd.f32 %v4451, %v4324
      %v4453 = vadd.f32 %v4452, %v4325
      %v4454 = vadd.f32 %v4453, %v4326
      %v4455 = vadd.f32 %v4454, %v4327
      %v4456 = vadd.f32 %v4455, %v4328
      %v4457 = vadd.f32 %v4456, %v4329
      %v4458 = vadd.f32 %v4457, %v4330
      %v4459 = vadd.f32 %v4458, %v4331
      %v4460 = vadd.f32 %v4459, %v4332
      %v4461 = vadd.f32 %v4460, %v4333
      %v4462 = vadd.f32 %v4461, %v4334
      %v4463 = vadd.f32 %v4462, %v4335
      %v4464 = vadd.f32 %v4463, %v4336
      %v4465 = vadd.f32 %v4464, %v4337
      %v4466 = vadd.f32 %v4465, %v4338
      %v4467 = vadd.f32 %v4466, %v4339
      %v4468 = vadd.f32 %v4467, %v4340
      %v4469 = vadd.f32 %v4468, %v4341
      %v4470 = vadd.f32 %v4469, %v4342
      %v4471 = vadd.f32 %v4470, %v4343
      %v4472 = vadd.f32 %v4471, %v4344
      %v4473 = vadd.f32 %v4472, %v4345
      %v4474 = vadd.f32 %v4473, %v4346
      %v4475 = vadd.f32 %v4474, %v4347
      %v4476 = vadd.f32 %v4475, %v4348
      %v4477 = vadd.f32 %v4476, %v4349
      %v4478 = vadd.f32 %v4477, %v4350
      %v4479 = vadd.f32 %v4478, %v4351
      %v4480 = vadd.f32 %v4479, %v4352
      %v4481 = vadd.f32 %v4480, %v4353
      %v4482 = vadd.f32 %v4481, %v4354
      %v4483 = vadd.f32 %v4482, %v4355
      %v4484 = vadd.f32 %v4483, %v4356
      %v4485 = vadd.f32 %v4484, %v4357
      %v4486 = vadd.f32 %v4485, %v4358
      %v4487 = vadd.f32 %v4486, %v4359
      %v4488 = vadd.f32 %v4487, %v4360
      %v4489 = vadd.f32 %v4488, %v4361
      %v4490 = vadd.f32 %v4489, %v4362
      %v4491 = vadd.f32 %v4490, %v4363
      %v4492 = vadd.f32 %v4491, %v4364
      %v4493 = vadd.f32 %v4492, %v4365
      %v4494 = vadd.f32 %v4493, %v4366
      %v4495 = vadd.f32 %v4494, %v4367
      %v4496 = vadd.f32 %v4495, %v4368
      %v4497 = vadd.f32 %v4496, %v4369
      %v4498 = vadd.f32 %v4497, %v4370
      %v4499 = vadd.f32 %v4498, %v4371
      %v4500 = vadd.f32 %v4499, %v4372
      %v4501 = vadd.f32 %v4500, %v4373
      %v4502 = vadd.f32 %v4501, %v4374
      %v4503 = vadd.f32 %v4502, %v4375
      %v4504 = vadd.f32 %v4503, %v4376
      %v4505 = vadd.f32 %v4504, %v4377
      %v4506 = vrot.slane %v4505, 4
      %v4507 = vadd.f32 %v4505, %v4506
      %v4508 = vrot.slane %v4507, 2
      %v4509 = vadd.f32 %v4507, %v4508
      %v4510 = vrot.slane %v4509, 1
      %v4511 = vadd.f32 %v4509, %v4510
      %v4512 = vmul.f32 %v4250, %v4250
      %v4513 = vmul.f32 %v4251, %v4251
      %v4514 = vmul.f32 %v4252, %v4252
      %v4515 = vmul.f32 %v4253, %v4253
      %v4516 = vmul.f32 %v4254, %v4254
      %v4517 = vmul.f32 %v4255, %v4255
      %v4518 = vmul.f32 %v4256, %v4256
      %v4519 = vmul.f32 %v4257, %v4257
      %v4520 = vmul.f32 %v4258, %v4258
      %v4521 = vmul.f32 %v4259, %v4259
      %v4522 = vmul.f32 %v4260, %v4260
      %v4523 = vmul.f32 %v4261, %v4261
      %v4524 = vmul.f32 %v4262, %v4262
      %v4525 = vmul.f32 %v4263, %v4263
      %v4526 = vmul.f32 %v4264, %v4264
      %v4527 = vmul.f32 %v4265, %v4265
      %v4528 = vmul.f32 %v4266, %v4266
      %v4529 = vmul.f32 %v4267, %v4267
      %v4530 = vmul.f32 %v4268, %v4268
      %v4531 = vmul.f32 %v4269, %v4269
      %v4532 = vmul.f32 %v4270, %v4270
      %v4533 = vmul.f32 %v4271, %v4271
      %v4534 = vmul.f32 %v4272, %v4272
      %v4535 = vmul.f32 %v4273, %v4273
      %v4536 = vmul.f32 %v4274, %v4274
      %v4537 = vmul.f32 %v4275, %v4275
      %v4538 = vmul.f32 %v4276, %v4276
      %v4539 = vmul.f32 %v4277, %v4277
      %v4540 = vmul.f32 %v4278, %v4278
      %v4541 = vmul.f32 %v4279, %v4279
      %v4542 = vmul.f32 %v4280, %v4280
      %v4543 = vmul.f32 %v4281, %v4281
      %v4544 = vmul.f32 %v4282, %v4282
      %v4545 = vmul.f32 %v4283, %v4283
      %v4546 = vmul.f32 %v4284, %v4284
      %v4547 = vmul.f32 %v4285, %v4285
      %v4548 = vmul.f32 %v4286, %v4286
      %v4549 = vmul.f32 %v4287, %v4287
      %v4550 = vmul.f32 %v4288, %v4288
      %v4551 = vmul.f32 %v4289, %v4289
      %v4552 = vmul.f32 %v4290, %v4290
      %v4553 = vmul.f32 %v4291, %v4291
      %v4554 = vmul.f32 %v4292, %v4292
      %v4555 = vmul.f32 %v4293, %v4293
      %v4556 = vmul.f32 %v4294, %v4294
      %v4557 = vmul.f32 %v4295, %v4295
      %v4558 = vmul.f32 %v4296, %v4296
      %v4559 = vmul.f32 %v4297, %v4297
      %v4560 = vmul.f32 %v4298, %v4298
      %v4561 = vmul.f32 %v4299, %v4299
      %v4562 = vmul.f32 %v4300, %v4300
      %v4563 = vmul.f32 %v4301, %v4301
      %v4564 = vmul.f32 %v4302, %v4302
      %v4565 = vmul.f32 %v4303, %v4303
      %v4566 = vmul.f32 %v4304, %v4304
      %v4567 = vmul.f32 %v4305, %v4305
      %v4568 = vmul.f32 %v4306, %v4306
      %v4569 = vmul.f32 %v4307, %v4307
      %v4570 = vmul.f32 %v4308, %v4308
      %v4571 = vmul.f32 %v4309, %v4309
      %v4572 = vmul.f32 %v4310, %v4310
      %v4573 = vmul.f32 %v4311, %v4311
      %v4574 = vmul.f32 %v4312, %v4312
      %v4575 = vmul.f32 %v4313, %v4313
      %v4576 = vmul.f32 %v4314, %v4314
      %v4577 = vmul.f32 %v4315, %v4315
      %v4578 = vmul.f32 %v4316, %v4316
      %v4579 = vmul.f32 %v4317, %v4317
      %v4580 = vmul.f32 %v4318, %v4318
      %v4581 = vmul.f32 %v4319, %v4319
      %v4582 = vmul.f32 %v4320, %v4320
      %v4583 = vmul.f32 %v4321, %v4321
      %v4584 = vmul.f32 %v4322, %v4322
      %v4585 = vmul.f32 %v4323, %v4323
      %v4586 = vmul.f32 %v4324, %v4324
      %v4587 = vmul.f32 %v4325, %v4325
      %v4588 = vmul.f32 %v4326, %v4326
      %v4589 = vmul.f32 %v4327, %v4327
      %v4590 = vmul.f32 %v4328, %v4328
      %v4591 = vmul.f32 %v4329, %v4329
      %v4592 = vmul.f32 %v4330, %v4330
      %v4593 = vmul.f32 %v4331, %v4331
      %v4594 = vmul.f32 %v4332, %v4332
      %v4595 = vmul.f32 %v4333, %v4333
      %v4596 = vmul.f32 %v4334, %v4334
      %v4597 = vmul.f32 %v4335, %v4335
      %v4598 = vmul.f32 %v4336, %v4336
      %v4599 = vmul.f32 %v4337, %v4337
      %v4600 = vmul.f32 %v4338, %v4338
      %v4601 = vmul.f32 %v4339, %v4339
      %v4602 = vmul.f32 %v4340, %v4340
      %v4603 = vmul.f32 %v4341, %v4341
      %v4604 = vmul.f32 %v4342, %v4342
      %v4605 = vmul.f32 %v4343, %v4343
      %v4606 = vmul.f32 %v4344, %v4344
      %v4607 = vmul.f32 %v4345, %v4345
      %v4608 = vmul.f32 %v4346, %v4346
      %v4609 = vmul.f32 %v4347, %v4347
      %v4610 = vmul.f32 %v4348, %v4348
      %v4611 = vmul.f32 %v4349, %v4349
      %v4612 = vmul.f32 %v4350, %v4350
      %v4613 = vmul.f32 %v4351, %v4351
      %v4614 = vmul.f32 %v4352, %v4352
      %v4615 = vmul.f32 %v4353, %v4353
      %v4616 = vmul.f32 %v4354, %v4354
      %v4617 = vmul.f32 %v4355, %v4355
      %v4618 = vmul.f32 %v4356, %v4356
      %v4619 = vmul.f32 %v4357, %v4357
      %v4620 = vmul.f32 %v4358, %v4358
      %v4621 = vmul.f32 %v4359, %v4359
      %v4622 = vmul.f32 %v4360, %v4360
      %v4623 = vmul.f32 %v4361, %v4361
      %v4624 = vmul.f32 %v4362, %v4362
      %v4625 = vmul.f32 %v4363, %v4363
      %v4626 = vmul.f32 %v4364, %v4364
      %v4627 = vmul.f32 %v4365, %v4365
      %v4628 = vmul.f32 %v4366, %v4366
      %v4629 = vmul.f32 %v4367, %v4367
      %v4630 = vmul.f32 %v4368, %v4368
      %v4631 = vmul.f32 %v4369, %v4369
      %v4632 = vmul.f32 %v4370, %v4370
      %v4633 = vmul.f32 %v4371, %v4371
      %v4634 = vmul.f32 %v4372, %v4372
      %v4635 = vmul.f32 %v4373, %v4373
      %v4636 = vmul.f32 %v4374, %v4374
      %v4637 = vmul.f32 %v4375, %v4375
      %v4638 = vmul.f32 %v4376, %v4376
      %v4639 = vmul.f32 %v4377, %v4377
      %v4640 = vadd.f32 %v4512, %v4513
      %v4641 = vadd.f32 %v4640, %v4514
      %v4642 = vadd.f32 %v4641, %v4515
      %v4643 = vadd.f32 %v4642, %v4516
      %v4644 = vadd.f32 %v4643, %v4517
      %v4645 = vadd.f32 %v4644, %v4518
      %v4646 = vadd.f32 %v4645, %v4519
      %v4647 = vadd.f32 %v4646, %v4520
      %v4648 = vadd.f32 %v4647, %v4521
      %v4649 = vadd.f32 %v4648, %v4522
      %v4650 = vadd.f32 %v4649, %v4523
      %v4651 = vadd.f32 %v4650, %v4524
      %v4652 = vadd.f32 %v4651, %v4525
      %v4653 = vadd.f32 %v4652, %v4526
      %v4654 = vadd.f32 %v4653, %v4527
      %v4655 = vadd.f32 %v4654, %v4528
      %v4656 = vadd.f32 %v4655, %v4529
      %v4657 = vadd.f32 %v4656, %v4530
      %v4658 = vadd.f32 %v4657, %v4531
      %v4659 = vadd.f32 %v4658, %v4532
      %v4660 = vadd.f32 %v4659, %v4533
      %v4661 = vadd.f32 %v4660, %v4534
      %v4662 = vadd.f32 %v4661, %v4535
      %v4663 = vadd.f32 %v4662, %v4536
      %v4664 = vadd.f32 %v4663, %v4537
      %v4665 = vadd.f32 %v4664, %v4538
      %v4666 = vadd.f32 %v4665, %v4539
      %v4667 = vadd.f32 %v4666, %v4540
      %v4668 = vadd.f32 %v4667, %v4541
      %v4669 = vadd.f32 %v4668, %v4542
      %v4670 = vadd.f32 %v4669, %v4543
      %v4671 = vadd.f32 %v4670, %v4544
      %v4672 = vadd.f32 %v4671, %v4545
      %v4673 = vadd.f32 %v4672, %v4546
      %v4674 = vadd.f32 %v4673, %v4547
      %v4675 = vadd.f32 %v4674, %v4548
      %v4676 = vadd.f32 %v4675, %v4549
      %v4677 = vadd.f32 %v4676, %v4550
      %v4678 = vadd.f32 %v4677, %v4551
      %v4679 = vadd.f32 %v4678, %v4552
      %v4680 = vadd.f32 %v4679, %v4553
      %v4681 = vadd.f32 %v4680, %v4554
      %v4682 = vadd.f32 %v4681, %v4555
      %v4683 = vadd.f32 %v4682, %v4556
      %v4684 = vadd.f32 %v4683, %v4557
      %v4685 = vadd.f32 %v4684, %v4558
      %v4686 = vadd.f32 %v4685, %v4559
      %v4687 = vadd.f32 %v4686, %v4560
      %v4688 = vadd.f32 %v4687, %v4561
      %v4689 = vadd.f32 %v4688, %v4562
      %v4690 = vadd.f32 %v4689, %v4563
      %v4691 = vadd.f32 %v4690, %v4564
      %v4692 = vadd.f32 %v4691, %v4565
      %v4693 = vadd.f32 %v4692, %v4566
      %v4694 = vadd.f32 %v4693, %v4567
      %v4695 = vadd.f32 %v4694, %v4568
      %v4696 = vadd.f32 %v4695, %v4569
      %v4697 = vadd.f32 %v4696, %v4570
      %v4698 = vadd.f32 %v4697, %v4571
      %v4699 = vadd.f32 %v4698, %v4572
      %v4700 = vadd.f32 %v4699, %v4573
      %v4701 = vadd.f32 %v4700, %v4574
      %v4702 = vadd.f32 %v4701, %v4575
      %v4703 = vadd.f32 %v4702, %v4576
      %v4704 = vadd.f32 %v4703, %v4577
      %v4705 = vadd.f32 %v4704, %v4578
      %v4706 = vadd.f32 %v4705, %v4579
      %v4707 = vadd.f32 %v4706, %v4580
      %v4708 = vadd.f32 %v4707, %v4581
      %v4709 = vadd.f32 %v4708, %v4582
      %v4710 = vadd.f32 %v4709, %v4583
      %v4711 = vadd.f32 %v4710, %v4584
      %v4712 = vadd.f32 %v4711, %v4585
      %v4713 = vadd.f32 %v4712, %v4586
      %v4714 = vadd.f32 %v4713, %v4587
      %v4715 = vadd.f32 %v4714, %v4588
      %v4716 = vadd.f32 %v4715, %v4589
      %v4717 = vadd.f32 %v4716, %v4590
      %v4718 = vadd.f32 %v4717, %v4591
      %v4719 = vadd.f32 %v4718, %v4592
      %v4720 = vadd.f32 %v4719, %v4593
      %v4721 = vadd.f32 %v4720, %v4594
      %v4722 = vadd.f32 %v4721, %v4595
      %v4723 = vadd.f32 %v4722, %v4596
      %v4724 = vadd.f32 %v4723, %v4597
      %v4725 = vadd.f32 %v4724, %v4598
      %v4726 = vadd.f32 %v4725, %v4599
      %v4727 = vadd.f32 %v4726, %v4600
      %v4728 = vadd.f32 %v4727, %v4601
      %v4729 = vadd.f32 %v4728, %v4602
      %v4730 = vadd.f32 %v4729, %v4603
      %v4731 = vadd.f32 %v4730, %v4604
      %v4732 = vadd.f32 %v4731, %v4605
      %v4733 = vadd.f32 %v4732, %v4606
      %v4734 = vadd.f32 %v4733, %v4607
      %v4735 = vadd.f32 %v4734, %v4608
      %v4736 = vadd.f32 %v4735, %v4609
      %v4737 = vadd.f32 %v4736, %v4610
      %v4738 = vadd.f32 %v4737, %v4611
      %v4739 = vadd.f32 %v4738, %v4612
      %v4740 = vadd.f32 %v4739, %v4613
      %v4741 = vadd.f32 %v4740, %v4614
      %v4742 = vadd.f32 %v4741, %v4615
      %v4743 = vadd.f32 %v4742, %v4616
      %v4744 = vadd.f32 %v4743, %v4617
      %v4745 = vadd.f32 %v4744, %v4618
      %v4746 = vadd.f32 %v4745, %v4619
      %v4747 = vadd.f32 %v4746, %v4620
      %v4748 = vadd.f32 %v4747, %v4621
      %v4749 = vadd.f32 %v4748, %v4622
      %v4750 = vadd.f32 %v4749, %v4623
      %v4751 = vadd.f32 %v4750, %v4624
      %v4752 = vadd.f32 %v4751, %v4625
      %v4753 = vadd.f32 %v4752, %v4626
      %v4754 = vadd.f32 %v4753, %v4627
      %v4755 = vadd.f32 %v4754, %v4628
      %v4756 = vadd.f32 %v4755, %v4629
      %v4757 = vadd.f32 %v4756, %v4630
      %v4758 = vadd.f32 %v4757, %v4631
      %v4759 = vadd.f32 %v4758, %v4632
      %v4760 = vadd.f32 %v4759, %v4633
      %v4761 = vadd.f32 %v4760, %v4634
      %v4762 = vadd.f32 %v4761, %v4635
      %v4763 = vadd.f32 %v4762, %v4636
      %v4764 = vadd.f32 %v4763, %v4637
      %v4765 = vadd.f32 %v4764, %v4638
      %v4766 = vadd.f32 %v4765, %v4639
      %v4767 = vrot.slane %v4766, 4
      %v4768 = vadd.f32 %v4766, %v4767
      %v4769 = vrot.slane %v4768, 2
      %v4770 = vadd.f32 %v4768, %v4769
      %v4771 = vrot.slane %v4770, 1
      %v4772 = vadd.f32 %v4770, %v4771
      %vm4773 = vcmask 1040384
      %v4774 = vsel %vm4773, %v4511, %v4772
      %v4775 = vadd.f32 %v4378, %v4774
      %4776 = vst [vmem:[%s4] sm:$0x3] %v4775
      // Predicated region
      $region41: #{pixel_discriminator_pallas.2} parent=35 // pred_check
        %p4777 = pneg %p117
      $region42: #{pixel_discriminator_pallas.2} parent=35 // pred_check_branch
        %4779 = sbr.rel (%p4777) target = $region44
      $region43: #{pixel_discriminator_pallas.2} parent=35 // pred_region
        _
      $region44: #{pixel_discriminator_pallas.2} parent=35 // pred_fallthru
        _
      // Predicated region
      $region45: #{pixel_discriminator_pallas.2} parent=35 // pred_check
        %p4780 = pneg %p117
      $region46: #{pixel_discriminator_pallas.2} parent=35 // pred_check_branch
        %4782 = sbr.rel (%p4780) target = $region48
      $region47: #{pixel_discriminator_pallas.2} parent=35 // pred_region
        _
      $region48: #{pixel_discriminator_pallas.2} parent=35 // pred_fallthru
        _
    $region36: #{pixel_discriminator_pallas.2} parent=5 // pred_fallthru
      _
    %p4783 = scmp.le.s32.totalorder 2, %s10
    // Predicated region
    $region49: #{pixel_discriminator_pallas.2} parent=5 // pred_check
      %p4784 = pneg %p4783
    $region50: #{pixel_discriminator_pallas.2} parent=5 // pred_check_branch
      %4786 = sbr.rel (%p4784) target = $region52
    $region51: #{pixel_discriminator_pallas.2} parent=5 // pred_region
      %s4787 = ssub.s32 %s10, 2
    $region52: #{pixel_discriminator_pallas.2} parent=5 // pred_fallthru
      _
  $region6: #{pixel_discriminator_pallas.2} parent=0 // loop_footer
    %s14 = sadd.s32 1, %s10
  $region7: #{pixel_discriminator_pallas.2} parent=0 // loop_footer_branch
    %9 = sbr.rel target = $region3
  $region8: #{pixel_discriminator_pallas.2} parent=0 // loop_exit
    _

</llo_original>
